<compile_context>
chip_gen: v7x
topology: tpu7x:2x2x1
jax: 0.10.0
libtpu: 0.0.40
codegen_flags: <defaults>
</compile_context>

<pallas_src>
import jax
import jax.numpy as jnp
from jax.experimental import pallas as pl
from jax.experimental.pallas import tpu as pltpu

IN_FEATURES = 18420
H1, H2, H3, OUT = 256, 128, 64, 6

# fc1 reduction (K) dim padded to a multiple of K_TILE -> 2 pipelined K-steps.
K_TILE = 9216                                                # 72 * 128
K_PAD = ((IN_FEATURES + K_TILE - 1) // K_TILE) * K_TILE      # 18432
NUM_K_TILES = K_PAD // K_TILE                                # 2

# Dominant-stream dtype (see header).  Zero-padded K rows contribute nothing.
W1_DTYPE = jnp.bfloat16


def fused_net_kernel(x_ref, w1_ref, b1_ref, w2_ref, b2_ref, w3_ref, b3_ref,
                     w4_ref, b4_ref, out_ref, acc_ref):
    """fc1 reduced over grid axis 0 (K tiles); full fused tail in the last step."""
    k = pl.program_id(0)

    @pl.when(k == 0)
    def _init():
        acc_ref[...] = jnp.zeros_like(acc_ref)

    # bf16 x bf16 matmul on the MXU, f32 accumulation.
    xv = x_ref[...].astype(w1_ref.dtype)
    acc_ref[...] += jnp.dot(xv, w1_ref[...], preferred_element_type=jnp.float32)

    @pl.when(k == pl.num_programs(0) - 1)
    def _finalize():
        # fc1 bias + ReLU (bias added once, here, not per K step).
        h1 = jnp.maximum(acc_ref[...] + b1_ref[...], 0.0)
        # Tiny fused tail: fc2 -> relu -> fc3 -> relu -> fc4 -> softmax (all f32).
        h2 = jnp.maximum(
            jnp.dot(h1, w2_ref[...], preferred_element_type=jnp.float32)
            + b2_ref[...], 0.0)
        h3 = jnp.maximum(
            jnp.dot(h2, w3_ref[...], preferred_element_type=jnp.float32)
            + b3_ref[...], 0.0)
        logits = (jnp.dot(h3, w4_ref[...], preferred_element_type=jnp.float32)
                  + b4_ref[...])
        # softmax over dim=1 (max-subtracted, exact divide).
        m = jnp.max(logits, axis=1, keepdims=True)
        e = jnp.exp(logits - m)
        out_ref[...] = (e / jnp.sum(e, axis=1, keepdims=True)).astype(out_ref.dtype)


@jax.jit
def net_forward(x, params):
    w1, b1, w2, b2, w3, b3, w4, b4 = params      # w1 already (K_PAD, H1) bf16
    B = x.shape[0]
    x2 = x.reshape(B, -1).astype(jnp.float32)    # x.view(B, -1)
    # Pad only x's reduction dim (12 zero columns — cheap, contributes nothing).
    x_pad = jnp.pad(x2, ((0, 0), (0, K_PAD - IN_FEATURES)))

    # Biases as (1, N) rows so they broadcast against (B, N) activations.
    b1r = b1.reshape(1, H1)
    b2r = b2.reshape(1, H2)
    b3r = b3.reshape(1, H3)
    b4r = b4.reshape(1, OUT)

    const = lambda k: (0, 0)   # full-array, DMA'd once (constant block index)

    out = pl.pallas_call(
        fused_net_kernel,
        out_shape=jax.ShapeDtypeStruct((B, OUT), jnp.float32),
        grid_spec=pltpu.PrefetchScalarGridSpec(
            num_scalar_prefetch=0,
            grid=(NUM_K_TILES,),
            in_specs=[
                pl.BlockSpec((B, K_TILE), lambda k: (0, k)),    # x K-tile
                pl.BlockSpec((K_TILE, H1), lambda k: (k, 0)),   # W1 K-tile (bf16)
                pl.BlockSpec((1, H1), const),                   # b1
                pl.BlockSpec((H1, H2), const),                  # W2
                pl.BlockSpec((1, H2), const),                   # b2
                pl.BlockSpec((H2, H3), const),                  # W3
                pl.BlockSpec((1, H3), const),                   # b3
                pl.BlockSpec((H3, OUT), const),                 # W4
                pl.BlockSpec((1, OUT), const),                  # b4
            ],
            out_specs=pl.BlockSpec((B, OUT), const),
            scratch_shapes=[pltpu.VMEM((B, H1), jnp.float32)],  # fc1 accumulator
        ),
        compiler_params=pltpu.CompilerParams(
            dimension_semantics=("arbitrary",),     # K is a reduction axis
            vmem_limit_bytes=32 * 1024 * 1024),
    )(x_pad, w1, b1r, w2, b2r, w3, b3r, w4, b4r)
    return out


def init_params(key):
    """Deterministic init mirroring nn.Linear's U(-1/sqrt(fan_in), +1/sqrt(fan_in)).
    W1 is zero-padded along K and cast to bf16 ONCE here, not per call."""
    def linear(key, fan_in, fan_out):
        kw, kb = jax.random.split(key)
        bound = 1.0 / jnp.sqrt(fan_in)
        w = jax.random.uniform(kw, (fan_in, fan_out), jnp.float32, -bound, bound)
        b = jax.random.uniform(kb, (fan_out,), jnp.float32, -bound, bound)
        return w, b

    k1, k2, k3, k4 = jax.random.split(key, 4)
    w1, b1 = linear(k1, IN_FEATURES, H1)
    w1 = jnp.pad(w1, ((0, K_PAD - IN_FEATURES), (0, 0))).astype(W1_DTYPE)
    w2, b2 = linear(k2, H1, H2)
    w3, b3 = linear(k3, H2, H3)
    w4, b4 = linear(k4, H3, OUT)
    return (w1, b1, w2, b2, w3, b3, w4, b4)


if __name__ == "__main__":
    key = jax.random.PRNGKey(0)
    k_params, k_x = jax.random.split(key)
    params = init_params(k_params)

    B = 2
    x = jax.random.normal(k_x, (B, IN_FEATURES), jnp.float32)

    out = jax.block_until_ready(net_forward(x, params))

    # sanity: valid softmax output
    assert out.shape == (B, OUT)
    assert bool(jnp.all(out >= 0.0))
    assert jnp.allclose(jnp.sum(out, axis=1), 1.0, atol=1e-5)
    print("KERNEL_OK")
</pallas_src>

<mosaic_0001>
module attributes {stable_mosaic.version = 11 : i64} {
  func.func @fused_net_kernel(%arg0: i32, %arg1: memref<2x9216xf32, #tpu.memory_space<vmem>>, %arg2: memref<9216x256xbf16, #tpu.memory_space<vmem>>, %arg3: memref<1x256xf32, #tpu.memory_space<vmem>>, %arg4: memref<256x128xf32, #tpu.memory_space<vmem>>, %arg5: memref<1x128xf32, #tpu.memory_space<vmem>>, %arg6: memref<128x64xf32, #tpu.memory_space<vmem>>, %arg7: memref<1x64xf32, #tpu.memory_space<vmem>>, %arg8: memref<64x6xf32, #tpu.memory_space<vmem>>, %arg9: memref<1x6xf32, #tpu.memory_space<vmem>>, %arg10: memref<2x6xf32, #tpu.memory_space<vmem>>, %arg11: memref<2x256xf32, #tpu.memory_space<vmem>>) attributes {dimension_semantics = [#tpu.dimension_semantics<arbitrary>], iteration_bounds = array<i64: 2>, scalar_prefetch = 0 : i64, scratch_operands = 1 : i64, tpu.core_type = #tpu.core_type<tc>, window_params = [{transform_indices = @transform_0, window_bounds = array<i64: 2, 9216>}, {transform_indices = @transform_1, window_bounds = array<i64: 9216, 256>}, {pipeline_mode = #tpu.pipeline_mode<synchronous>, transform_indices = @transform_2, window_bounds = array<i64: 1, 256>}, {pipeline_mode = #tpu.pipeline_mode<synchronous>, transform_indices = @transform_3, window_bounds = array<i64: 256, 128>}, {pipeline_mode = #tpu.pipeline_mode<synchronous>, transform_indices = @transform_4, window_bounds = array<i64: 1, 128>}, {pipeline_mode = #tpu.pipeline_mode<synchronous>, transform_indices = @transform_5, window_bounds = array<i64: 128, 64>}, {pipeline_mode = #tpu.pipeline_mode<synchronous>, transform_indices = @transform_6, window_bounds = array<i64: 1, 64>}, {pipeline_mode = #tpu.pipeline_mode<synchronous>, transform_indices = @transform_7, window_bounds = array<i64: 64, 6>}, {pipeline_mode = #tpu.pipeline_mode<synchronous>, transform_indices = @transform_8, window_bounds = array<i64: 1, 6>}, {pipeline_mode = #tpu.pipeline_mode<synchronous>, transform_indices = @transform_9, window_bounds = array<i64: 2, 6>}]} {
    %c0_i32 = arith.constant 0 : i32
    %0 = arith.cmpi eq, %arg0, %c0_i32 : i32
    %1 = arith.extui %0 : i1 to i32
    %c0_i32_0 = arith.constant 0 : i32
    %2 = arith.cmpi ne, %1, %c0_i32_0 : i32
    scf.if %2 {
      %cst_9 = arith.constant 0.000000e+00 : f32
      %13 = vector.broadcast %cst_9 : f32 to vector<2x256xf32>
      %c0_10 = arith.constant 0 : index
      %c0_11 = arith.constant 0 : index
      %14 = vector.load %arg11[%c0_10, %c0_11] : memref<2x256xf32, #tpu.memory_space<vmem>>, vector<2x256xf32>
      tpu.vector_store %arg11[%c0_10, %c0_11], %13 {strides = array<i32>} : memref<2x256xf32, #tpu.memory_space<vmem>>, vector<2x256xf32>,
    } else {
    }
    %c0 = arith.constant 0 : index
    %c0_1 = arith.constant 0 : index
    %3 = vector.load %arg1[%c0, %c0_1] : memref<2x9216xf32, #tpu.memory_space<vmem>>, vector<2x9216xf32>
    %4 = arith.truncf %3 : vector<2x9216xf32> to vector<2x9216xbf16>
    %c0_2 = arith.constant 0 : index
    %c0_3 = arith.constant 0 : index
    %5 = vector.load %arg11[%c0_2, %c0_3] : memref<2x256xf32, #tpu.memory_space<vmem>>, vector<2x256xf32>
    %c0_4 = arith.constant 0 : index
    %c0_5 = arith.constant 0 : index
    %6 = vector.load %arg2[%c0_4, %c0_5] : memref<9216x256xbf16, #tpu.memory_space<vmem>>, vector<9216x256xbf16>
    %cst = arith.constant dense<0.000000e+00> : vector<2x256xf32>
    %7 = tpu.matmul %4, %6, %cst {dimension_numbers = #tpu.dot_dimension_numbers<[1], [0], [0], [1], [0, 0, 1, 1], [], []>} : vector<2x9216xbf16>, vector<9216x256xbf16>, vector<2x256xf32> -> vector<2x256xf32>
    %8 = arith.addf %5, %7 : vector<2x256xf32>
    %c0_6 = arith.constant 0 : index
    %c0_7 = arith.constant 0 : index
    %9 = vector.load %arg11[%c0_6, %c0_7] : memref<2x256xf32, #tpu.memory_space<vmem>>, vector<2x256xf32>
    tpu.vector_store %arg11[%c0_6, %c0_7], %8 {strides = array<i32>} : memref<2x256xf32, #tpu.memory_space<vmem>>, vector<2x256xf32>,
    %c1_i32 = arith.constant 1 : i32
    %10 = arith.cmpi eq, %arg0, %c1_i32 : i32
    %11 = arith.extui %10 : i1 to i32
    %c0_i32_8 = arith.constant 0 : i32
    %12 = arith.cmpi ne, %11, %c0_i32_8 : i32
    scf.if %12 {
      %c0_9 = arith.constant 0 : index
      %c0_10 = arith.constant 0 : index
      %13 = vector.load %arg11[%c0_9, %c0_10] : memref<2x256xf32, #tpu.memory_space<vmem>>, vector<2x256xf32>
      %c0_11 = arith.constant 0 : index
      %c0_12 = arith.constant 0 : index
      %14 = vector.load %arg3[%c0_11, %c0_12] : memref<1x256xf32, #tpu.memory_space<vmem>>, vector<1x256xf32>
      %15 = vector.broadcast %14 : vector<1x256xf32> to vector<2x256xf32>
      %16 = arith.addf %13, %15 : vector<2x256xf32>
      %cst_13 = arith.constant 0.000000e+00 : f32
      %17 = vector.broadcast %cst_13 : f32 to vector<2x256xf32>
      %18 = arith.maximumf %16, %17 : vector<2x256xf32>
      %c0_14 = arith.constant 0 : index
      %c0_15 = arith.constant 0 : index
      %19 = vector.load %arg4[%c0_14, %c0_15] : memref<256x128xf32, #tpu.memory_space<vmem>>, vector<256x128xf32>
      %cst_16 = arith.constant dense<0.000000e+00> : vector<2x128xf32>
      %20 = tpu.matmul %18, %19, %cst_16 {dimension_numbers = #tpu.dot_dimension_numbers<[1], [0], [0], [1], [0, 0, 1, 1], [], []>} : vector<2x256xf32>, vector<256x128xf32>, vector<2x128xf32> -> vector<2x128xf32>
      %c0_17 = arith.constant 0 : index
      %c0_18 = arith.constant 0 : index
      %21 = vector.load %arg5[%c0_17, %c0_18] : memref<1x128xf32, #tpu.memory_space<vmem>>, vector<1x128xf32>
      %22 = vector.broadcast %21 : vector<1x128xf32> to vector<2x128xf32>
      %23 = arith.addf %20, %22 : vector<2x128xf32>
      %cst_19 = arith.constant 0.000000e+00 : f32
      %24 = vector.broadcast %cst_19 : f32 to vector<2x128xf32>
      %25 = arith.maximumf %23, %24 : vector<2x128xf32>
      %c0_20 = arith.constant 0 : index
      %c0_21 = arith.constant 0 : index
      %26 = vector.load %arg6[%c0_20, %c0_21] : memref<128x64xf32, #tpu.memory_space<vmem>>, vector<128x64xf32>
      %cst_22 = arith.constant dense<0.000000e+00> : vector<2x64xf32>
      %27 = tpu.matmul %25, %26, %cst_22 {dimension_numbers = #tpu.dot_dimension_numbers<[1], [0], [0], [1], [0, 0, 1, 1], [], []>} : vector<2x128xf32>, vector<128x64xf32>, vector<2x64xf32> -> vector<2x64xf32>
      %c0_23 = arith.constant 0 : index
      %c0_24 = arith.constant 0 : index
      %28 = vector.load %arg7[%c0_23, %c0_24] : memref<1x64xf32, #tpu.memory_space<vmem>>, vector<1x64xf32>
      %29 = vector.broadcast %28 : vector<1x64xf32> to vector<2x64xf32>
      %30 = arith.addf %27, %29 : vector<2x64xf32>
      %cst_25 = arith.constant 0.000000e+00 : f32
      %31 = vector.broadcast %cst_25 : f32 to vector<2x64xf32>
      %32 = arith.maximumf %30, %31 : vector<2x64xf32>
      %c0_26 = arith.constant 0 : index
      %c0_27 = arith.constant 0 : index
      %33 = vector.load %arg8[%c0_26, %c0_27] : memref<64x6xf32, #tpu.memory_space<vmem>>, vector<64x6xf32>
      %cst_28 = arith.constant dense<0.000000e+00> : vector<2x6xf32>
      %34 = tpu.matmul %32, %33, %cst_28 {dimension_numbers = #tpu.dot_dimension_numbers<[1], [0], [0], [1], [0, 0, 1, 1], [], []>} : vector<2x64xf32>, vector<64x6xf32>, vector<2x6xf32> -> vector<2x6xf32>
      %c0_29 = arith.constant 0 : index
      %c0_30 = arith.constant 0 : index
      %35 = vector.load %arg9[%c0_29, %c0_30] : memref<1x6xf32, #tpu.memory_space<vmem>>, vector<1x6xf32>
      %36 = vector.broadcast %35 : vector<1x6xf32> to vector<2x6xf32>
      %37 = arith.addf %34, %36 : vector<2x6xf32>
      %cst_31 = arith.constant dense<0xFF800000> : vector<2xf32>
      %38 = vector.multi_reduction <maximumf>, %37, %cst_31 [1] : vector<2x6xf32> to vector<2xf32>
      %39 = vector.shape_cast %38 : vector<2xf32> to vector<2x1xf32>
      %40 = vector.broadcast %39 : vector<2x1xf32> to vector<2x6xf32>
      %41 = arith.subf %37, %40 : vector<2x6xf32>
      %42 = math.exp %41 : vector<2x6xf32>
      %cst_32 = arith.constant dense<0.000000e+00> : vector<2xf32>
      %43 = vector.multi_reduction <add>, %42, %cst_32 [1] : vector<2x6xf32> to vector<2xf32>
      %44 = vector.shape_cast %43 : vector<2xf32> to vector<2x1xf32>
      %45 = vector.broadcast %44 : vector<2x1xf32> to vector<2x6xf32>
      %46 = arith.divf %42, %45 : vector<2x6xf32>
      %c0_33 = arith.constant 0 : index
      %c0_34 = arith.constant 0 : index
      %47 = vector.load %arg10[%c0_33, %c0_34] : memref<2x6xf32, #tpu.memory_space<vmem>>, vector<2x6xf32>
      tpu.vector_store %arg10[%c0_33, %c0_34], %46 {strides = array<i32>} : memref<2x6xf32, #tpu.memory_space<vmem>>, vector<2x6xf32>,
    } else {
    }
    return
  }
  func.func @transform_0(%arg0: i32) -> (i32, i32) {
    %c0_i32 = arith.constant 0 : i32
    %c0_i32_0 = arith.constant 0 : i32
    return %c0_i32, %arg0 : i32, i32
  }
  func.func @transform_1(%arg0: i32) -> (i32, i32) {
    %c0_i32 = arith.constant 0 : i32
    %c0_i32_0 = arith.constant 0 : i32
    return %arg0, %c0_i32 : i32, i32
  }
  func.func @transform_2(%arg0: i32) -> (i32, i32) {
    %c0_i32 = arith.constant 0 : i32
    %c0_i32_0 = arith.constant 0 : i32
    %c0_i32_1 = arith.constant 0 : i32
    return %c0_i32, %c0_i32_0 : i32, i32
  }
  func.func @transform_3(%arg0: i32) -> (i32, i32) {
    %c0_i32 = arith.constant 0 : i32
    %c0_i32_0 = arith.constant 0 : i32
    %c0_i32_1 = arith.constant 0 : i32
    return %c0_i32, %c0_i32_0 : i32, i32
  }
  func.func @transform_4(%arg0: i32) -> (i32, i32) {
    %c0_i32 = arith.constant 0 : i32
    %c0_i32_0 = arith.constant 0 : i32
    %c0_i32_1 = arith.constant 0 : i32
    return %c0_i32, %c0_i32_0 : i32, i32
  }
  func.func @transform_5(%arg0: i32) -> (i32, i32) {
    %c0_i32 = arith.constant 0 : i32
    %c0_i32_0 = arith.constant 0 : i32
    %c0_i32_1 = arith.constant 0 : i32
    return %c0_i32, %c0_i32_0 : i32, i32
  }
  func.func @transform_6(%arg0: i32) -> (i32, i32) {
    %c0_i32 = arith.constant 0 : i32
    %c0_i32_0 = arith.constant 0 : i32
    %c0_i32_1 = arith.constant 0 : i32
    return %c0_i32, %c0_i32_0 : i32, i32
  }
  func.func @transform_7(%arg0: i32) -> (i32, i32) {
    %c0_i32 = arith.constant 0 : i32
    %c0_i32_0 = arith.constant 0 : i32
    %c0_i32_1 = arith.constant 0 : i32
    return %c0_i32, %c0_i32_0 : i32, i32
  }
  func.func @transform_8(%arg0: i32) -> (i32, i32) {
    %c0_i32 = arith.constant 0 : i32
    %c0_i32_0 = arith.constant 0 : i32
    %c0_i32_1 = arith.constant 0 : i32
    return %c0_i32, %c0_i32_0 : i32, i32
  }
  func.func @transform_9(%arg0: i32) -> (i32, i32) {
    %c0_i32 = arith.constant 0 : i32
    %c0_i32_0 = arith.constant 0 : i32
    %c0_i32_1 = arith.constant 0 : i32
    return %c0_i32, %c0_i32_0 : i32, i32
  }
}

</mosaic_0001>

<llo_original>
// kernel: net_forward.1
$region0: #{net_forward.1}
  #allocation0 [shape = 'u32[]', space=smem, size = 0x4, offset = 0x4, fixed_abs, tag = 'smem constant byte address 0x4 - core index']
  #allocation1 [shape = 'u32[144,128]{1,0:T(1,128)}', space=vmem, size = 0x12000, scoped, tag = 'internal scratch']
  #allocation2 [shape = 'f32[2,256]{1,0:T(2,128)}', space=vmem, size = 0x800, scoped, tag = 'scratch operand']
  %s0 = inlined_call_operand.vmem [shape: f32[2,18432], index: 0, kind: input, shape index: {}]
  %s1 = inlined_call_operand.hbm [shape: bf16[18432,256], index: 1, kind: input, shape index: {}]
  %s2 = inlined_call_operand.hbm [shape: f32[1,256], index: 2, kind: input, shape index: {}]
  %s3 = inlined_call_operand.hbm [shape: f32[256,128], index: 3, kind: input, shape index: {}]
  %s4 = inlined_call_operand.hbm [shape: f32[1,128], index: 4, kind: input, shape index: {}]
  %s5 = inlined_call_operand.vmem [shape: f32[128,64], index: 5, kind: input, shape index: {}]
  %s6 = inlined_call_operand.hbm [shape: f32[1,64], index: 6, kind: input, shape index: {}]
  %s7 = inlined_call_operand.vmem [shape: f32[64,6], index: 7, kind: input, shape index: {}]
  %s8 = inlined_call_operand.hbm [shape: f32[1,6], index: 8, kind: input, shape index: {}]
  %s9 = inlined_call_operand.hbm [shape: f32[2,6], index: 9, kind: output, shape index: {}]
  %s10 = sld [smem:[#allocation0]]
  $region101: #{net_forward.1} parent=0
    _
  %s12 = ssub.s32 1, %s10
  %s13 = scalar_select 0, %s12, %s10
  $region1: #{net_forward.1} parent=0
    #allocation3 [shape = 'u8[9437184]{0}', space=vmem, size = 0x900000, scoped, tag = 'input window, operand 1']
    #allocation4 [shape = 's32[2]{0}', space=sflag, size = 0x8, scoped, tag = 'scoped memory for net_forward.1']
    #allocation5 [shape = 's32[2]{0}', space=sflag, size = 0x8, scoped, tag = 'scoped memory for net_forward.1']
    #allocation6 [shape = 'u8[1024]{0}', space=vmem, size = 0x400, scoped, tag = 'input window, operand 2, single buffered']
    #allocation7 [shape = 's32[1]{0}', space=sflag, size = 0x4, scoped, tag = 'scoped memory for net_forward.1']
    #allocation8 [shape = 'u8[131072]{0}', space=vmem, size = 0x20000, scoped, tag = 'input window, operand 3, single buffered']
    #allocation9 [shape = 'u8[512]{0}', space=vmem, size = 0x400, scoped, tag = 'input window, operand 4, single buffered']
    #allocation10 [shape = 's32[1]{0}', space=sflag, size = 0x4, scoped, tag = 'scoped memory for net_forward.1']
    #allocation11 [shape = 'u8[512]{0}', space=vmem, size = 0x400, scoped, tag = 'input window, operand 6, single buffered']
    #allocation12 [shape = 'u8[512]{0}', space=vmem, size = 0x400, scoped, tag = 'input window, operand 8, single buffered']
    #allocation13 [shape = 's32[1]{0}', space=sflag, size = 0x4, scoped, tag = 'scoped memory for net_forward.1']
    #allocation14 [shape = 'u8[1024]{0}', space=vmem, size = 0x400, scoped, tag = 'output window, operand 0, single buffered']
    %14 = vsyncpa [#allocation4], 0
    %s15 = scalar_lea.sflag [#allocation4], 1
    %16 = vsyncpa %s15, 0
    %17 = vsyncpa [#allocation7], 0
    %18 = vsyncpa [#allocation10], 0
    %19 = vsyncpa [#allocation13], 0
    %20 = vsyncpa [#allocation5], 0
    loop: start=0, step=1, limit=4
    $region2: #{net_forward.1} parent=1 // loop_pre_header
      _
    $region3: #{net_forward.1} parent=1 // loop_header
      %s22 = sphi 0, %s26
      %p23 = scmp.ge.s32.totalorder %s22, 4
      %s32 = sphi 0, %s34
      %s35 = sphi 0, %s32
      %s36 = sphi 0, %s35
      %s52 = sphi 0, %s36
      %s58 = sphi 0, %s60
      %s61 = sphi 0, %s58
      %s62 = sphi 0, %s61
      %s78 = sphi 0, %s62
      %s82 = sphi 0, %s82
      %s84 = sphi 0, %s82
      %s85 = sphi 0, %s84
      %s99 = sphi 0, %s85
      %s103 = sphi 0, %s103
      %s105 = sphi 0, %s103
      %s106 = sphi 0, %s105
      %s120 = sphi 0, %s106
      %s124 = sphi 0, %s124
      %s126 = sphi 0, %s124
      %s127 = sphi 0, %s126
      %s141 = sphi 0, %s127
      %s145 = sphi 0, %s145
      %s147 = sphi 0, %s145
      %s148 = sphi 0, %s147
      %s162 = sphi 0, %s148
      %s166 = sphi 0, %s166
      %s168 = sphi 0, %s166
      %s169 = sphi 0, %s168
      %s183 = sphi 0, %s169
      %s187 = sphi 0, %s187
      %s189 = sphi 0, %s187
      %s190 = sphi 0, %s189
      %s204 = sphi 0, %s190
      %s208 = sphi 0, %s208
      %s210 = sphi 0, %s208
      %s211 = sphi 0, %s210
      %s225 = sphi 0, %s211
      %s229 = sphi 0, %s229
      %s231 = sphi 0, %s229
      %s232 = sphi 0, %s231
      %s246 = sphi 0, %s232
    $region4: #{net_forward.1} parent=1 // loop_header_branch
      %25 = sbr.rel (%p23) target = $region8
    $region5: #{net_forward.1} parent=1 // loop_body
      %s27 = ssub.s32 %s22, 1
      %s28 = ssub.s32 %s22, 2
      %s29 = sadd.s32 %s22, 1
      %s30 = ssub.s32 %s22, %s29
      %p31 = scmp.eq.s32.totalorder %s30, 0
      %s33 = sadd.s32 %s32, 1
      %s34 = scalar_select %p31, %s32, %s33
      %p37 = pneg %p31
      %p38 = scmp.eq.s32.totalorder %s22, 1
      %p39 = por %p37, %p38
      %p40 = scmp.ne.s32.totalorder %s32, %s35
      %p41 = scmp.eq.s32.totalorder %s22, 0
      %p42 = por %p40, %p41
      %p43 = scmp.ne.s32.totalorder %s32, %s35
      %p44 = scmp.eq.s32.totalorder %s27, 1
      %p45 = por %p43, %p44
      %p46 = scmp.ne.s32.totalorder %s35, %s36
      %p47 = scmp.eq.s32.totalorder %s27, 0
      %p48 = por %p46, %p47
      %p49 = scmp.ne.s32.totalorder %s35, %s36
      %p50 = scmp.eq.s32.totalorder %s28, 1
      %p51 = por %p49, %p50
      %p53 = scmp.ne.s32.totalorder %s36, %s52
      %p54 = scmp.eq.s32.totalorder %s28, 0
      %p55 = por %p53, %p54
      %s56 = ssub.s32 %s22, %s29
      %p57 = scmp.eq.s32.totalorder %s56, 0
      %s59 = sadd.s32 %s58, 1
      %s60 = scalar_select %p57, %s58, %s59
      %p63 = pneg %p57
      %p64 = scmp.eq.s32.totalorder %s22, 1
      %p65 = por %p63, %p64
      %p66 = scmp.ne.s32.totalorder %s58, %s61
      %p67 = scmp.eq.s32.totalorder %s22, 0
      %p68 = por %p66, %p67
      %p69 = scmp.ne.s32.totalorder %s58, %s61
      %p70 = scmp.eq.s32.totalorder %s27, 1
      %p71 = por %p69, %p70
      %p72 = scmp.ne.s32.totalorder %s61, %s62
      %p73 = scmp.eq.s32.totalorder %s27, 0
      %p74 = por %p72, %p73
      %p75 = scmp.ne.s32.totalorder %s61, %s62
      %p76 = scmp.eq.s32.totalorder %s28, 1
      %p77 = por %p75, %p76
      %p79 = scmp.ne.s32.totalorder %s62, %s78
      %p80 = scmp.eq.s32.totalorder %s28, 0
      %p81 = por %p79, %p80
      %s83 = sadd.s32 %s82, 1
      %p86 = scmp.eq.s32.totalorder %s22, 1
      %p87 = scmp.ne.s32.totalorder %s82, %s84
      %p88 = scmp.eq.s32.totalorder %s22, 0
      %p89 = por %p87, %p88
      %p90 = scmp.ne.s32.totalorder %s82, %s84
      %p91 = scmp.eq.s32.totalorder %s27, 1
      %p92 = por %p90, %p91
      %p93 = scmp.ne.s32.totalorder %s84, %s85
      %p94 = scmp.eq.s32.totalorder %s27, 0
      %p95 = por %p93, %p94
      %p96 = scmp.ne.s32.totalorder %s84, %s85
      %p97 = scmp.eq.s32.totalorder %s28, 1
      %p98 = por %p96, %p97
      %p100 = scmp.ne.s32.totalorder %s85, %s99
      %p101 = scmp.eq.s32.totalorder %s28, 0
      %p102 = por %p100, %p101
      %s104 = sadd.s32 %s103, 1
      %p107 = scmp.eq.s32.totalorder %s22, 1
      %p108 = scmp.ne.s32.totalorder %s103, %s105
      %p109 = scmp.eq.s32.totalorder %s22, 0
      %p110 = por %p108, %p109
      %p111 = scmp.ne.s32.totalorder %s103, %s105
      %p112 = scmp.eq.s32.totalorder %s27, 1
      %p113 = por %p111, %p112
      %p114 = scmp.ne.s32.totalorder %s105, %s106
      %p115 = scmp.eq.s32.totalorder %s27, 0
      %p116 = por %p114, %p115
      %p117 = scmp.ne.s32.totalorder %s105, %s106
      %p118 = scmp.eq.s32.totalorder %s28, 1
      %p119 = por %p117, %p118
      %p121 = scmp.ne.s32.totalorder %s106, %s120
      %p122 = scmp.eq.s32.totalorder %s28, 0
      %p123 = por %p121, %p122
      %s125 = sadd.s32 %s124, 1
      %p128 = scmp.eq.s32.totalorder %s22, 1
      %p129 = scmp.ne.s32.totalorder %s124, %s126
      %p130 = scmp.eq.s32.totalorder %s22, 0
      %p131 = por %p129, %p130
      %p132 = scmp.ne.s32.totalorder %s124, %s126
      %p133 = scmp.eq.s32.totalorder %s27, 1
      %p134 = por %p132, %p133
      %p135 = scmp.ne.s32.totalorder %s126, %s127
      %p136 = scmp.eq.s32.totalorder %s27, 0
      %p137 = por %p135, %p136
      %p138 = scmp.ne.s32.totalorder %s126, %s127
      %p139 = scmp.eq.s32.totalorder %s28, 1
      %p140 = por %p138, %p139
      %p142 = scmp.ne.s32.totalorder %s127, %s141
      %p143 = scmp.eq.s32.totalorder %s28, 0
      %p144 = por %p142, %p143
      %s146 = sadd.s32 %s145, 1
      %p149 = scmp.eq.s32.totalorder %s22, 1
      %p150 = scmp.ne.s32.totalorder %s145, %s147
      %p151 = scmp.eq.s32.totalorder %s22, 0
      %p152 = por %p150, %p151
      %p153 = scmp.ne.s32.totalorder %s145, %s147
      %p154 = scmp.eq.s32.totalorder %s27, 1
      %p155 = por %p153, %p154
      %p156 = scmp.ne.s32.totalorder %s147, %s148
      %p157 = scmp.eq.s32.totalorder %s27, 0
      %p158 = por %p156, %p157
      %p159 = scmp.ne.s32.totalorder %s147, %s148
      %p160 = scmp.eq.s32.totalorder %s28, 1
      %p161 = por %p159, %p160
      %p163 = scmp.ne.s32.totalorder %s148, %s162
      %p164 = scmp.eq.s32.totalorder %s28, 0
      %p165 = por %p163, %p164
      %s167 = sadd.s32 %s166, 1
      %p170 = scmp.eq.s32.totalorder %s22, 1
      %p171 = scmp.ne.s32.totalorder %s166, %s168
      %p172 = scmp.eq.s32.totalorder %s22, 0
      %p173 = por %p171, %p172
      %p174 = scmp.ne.s32.totalorder %s166, %s168
      %p175 = scmp.eq.s32.totalorder %s27, 1
      %p176 = por %p174, %p175
      %p177 = scmp.ne.s32.totalorder %s168, %s169
      %p178 = scmp.eq.s32.totalorder %s27, 0
      %p179 = por %p177, %p178
      %p180 = scmp.ne.s32.totalorder %s168, %s169
      %p181 = scmp.eq.s32.totalorder %s28, 1
      %p182 = por %p180, %p181
      %p184 = scmp.ne.s32.totalorder %s169, %s183
      %p185 = scmp.eq.s32.totalorder %s28, 0
      %p186 = por %p184, %p185
      %s188 = sadd.s32 %s187, 1
      %p191 = scmp.eq.s32.totalorder %s22, 1
      %p192 = scmp.ne.s32.totalorder %s187, %s189
      %p193 = scmp.eq.s32.totalorder %s22, 0
      %p194 = por %p192, %p193
      %p195 = scmp.ne.s32.totalorder %s187, %s189
      %p196 = scmp.eq.s32.totalorder %s27, 1
      %p197 = por %p195, %p196
      %p198 = scmp.ne.s32.totalorder %s189, %s190
      %p199 = scmp.eq.s32.totalorder %s27, 0
      %p200 = por %p198, %p199
      %p201 = scmp.ne.s32.totalorder %s189, %s190
      %p202 = scmp.eq.s32.totalorder %s28, 1
      %p203 = por %p201, %p202
      %p205 = scmp.ne.s32.totalorder %s190, %s204
      %p206 = scmp.eq.s32.totalorder %s28, 0
      %p207 = por %p205, %p206
      %s209 = sadd.s32 %s208, 1
      %p212 = scmp.eq.s32.totalorder %s22, 1
      %p213 = scmp.ne.s32.totalorder %s208, %s210
      %p214 = scmp.eq.s32.totalorder %s22, 0
      %p215 = por %p213, %p214
      %p216 = scmp.ne.s32.totalorder %s208, %s210
      %p217 = scmp.eq.s32.totalorder %s27, 1
      %p218 = por %p216, %p217
      %p219 = scmp.ne.s32.totalorder %s210, %s211
      %p220 = scmp.eq.s32.totalorder %s27, 0
      %p221 = por %p219, %p220
      %p222 = scmp.ne.s32.totalorder %s210, %s211
      %p223 = scmp.eq.s32.totalorder %s28, 1
      %p224 = por %p222, %p223
      %p226 = scmp.ne.s32.totalorder %s211, %s225
      %p227 = scmp.eq.s32.totalorder %s28, 0
      %p228 = por %p226, %p227
      %s230 = sadd.s32 %s229, 1
      %p233 = scmp.eq.s32.totalorder %s22, 1
      %p234 = scmp.ne.s32.totalorder %s229, %s231
      %p235 = scmp.eq.s32.totalorder %s22, 0
      %p236 = por %p234, %p235
      %p237 = scmp.ne.s32.totalorder %s229, %s231
      %p238 = scmp.eq.s32.totalorder %s27, 1
      %p239 = por %p237, %p238
      %p240 = scmp.ne.s32.totalorder %s231, %s232
      %p241 = scmp.eq.s32.totalorder %s27, 0
      %p242 = por %p240, %p241
      %p243 = scmp.ne.s32.totalorder %s231, %s232
      %p244 = scmp.eq.s32.totalorder %s28, 1
      %p245 = por %p243, %p244
      %p247 = scmp.ne.s32.totalorder %s232, %s246
      %p248 = scmp.eq.s32.totalorder %s28, 0
      %p249 = por %p247, %p248
      %p250 = scmp.le.s32.totalorder 1, %s22
      %p251 = scmp.lt.s32.totalorder %s22, 3
      %p252 = pnand %p250, %p251
      %p253 = pneg %p252
      // Predicated region
      $region9: #{net_forward.1} parent=5 // pred_check
        _
      $region10: #{net_forward.1} parent=5 // pred_check_branch
        %255 = sbr.rel (%p252) target = $region12
      $region11: #{net_forward.1} parent=5 // pred_region
        %s256 = ssub.s32 %s22, 1
        // Predicated region
        $region13: #{net_forward.1} parent=11 // pred_check
          %p257 = pneg %p95
        $region14: #{net_forward.1} parent=11 // pred_check_branch
          %259 = sbr.rel (%p257) target = $region16
        $region15: #{net_forward.1} parent=11 // pred_region
          %s261 = ssub.s32 32, 32
          %262 = vsyncadd [#allocation7], %s261
          %s264 = sshll.u32 [#allocation6], 4
          %s265 = int_to_ptr.vmem [resolvable:$true] %s264
          %267 = dma.hbm_to_vmem [thread:$0]  %s2, 32, %s265, [#allocation7]
        $region16: #{net_forward.1} parent=11 // pred_fallthru
          _
        // Predicated region
        $region17: #{net_forward.1} parent=11 // pred_check
          %p268 = pneg %p116
        $region18: #{net_forward.1} parent=11 // pred_check_branch
          %270 = sbr.rel (%p268) target = $region20
        $region19: #{net_forward.1} parent=11 // pred_region
          %s272 = ssub.s32 4096, 4096
          %273 = vsyncadd [#allocation7], %s272
          %s274 = sshll.u32 [#allocation8], 4
          %s275 = int_to_ptr.vmem [resolvable:$true] %s274
          %280 = dma.hbm_to_vmem [thread:$0]  %s3, 4096, %s275, [#allocation7], 128, 128, 8
        $region20: #{net_forward.1} parent=11 // pred_fallthru
          _
        // Predicated region
        $region21: #{net_forward.1} parent=11 // pred_check
          %p281 = pneg %p137
        $region22: #{net_forward.1} parent=11 // pred_check_branch
          %283 = sbr.rel (%p281) target = $region24
        $region23: #{net_forward.1} parent=11 // pred_region
          %s285 = ssub.s32 16, 16
          %286 = vsyncadd [#allocation10], %s285
          %s288 = sshll.u32 [#allocation9], 4
          %s289 = int_to_ptr.vmem [resolvable:$true] %s288
          %291 = dma.hbm_to_vmem [thread:$0]  %s4, 16, %s289, [#allocation10]
        $region24: #{net_forward.1} parent=11 // pred_fallthru
          _
        // Predicated region
        $region25: #{net_forward.1} parent=11 // pred_check
          %p292 = pneg %p158
        $region26: #{net_forward.1} parent=11 // pred_check_branch
          %294 = sbr.rel (%p292) target = $region28
        $region27: #{net_forward.1} parent=11 // pred_region
          _
        $region28: #{net_forward.1} parent=11 // pred_fallthru
          _
        // Predicated region
        $region29: #{net_forward.1} parent=11 // pred_check
          %p295 = pneg %p179
        $region30: #{net_forward.1} parent=11 // pred_check_branch
          %297 = sbr.rel (%p295) target = $region32
        $region31: #{net_forward.1} parent=11 // pred_region
          %s299 = ssub.s32 16, 16
          %300 = vsyncadd [#allocation10], %s299
          %s302 = sshll.u32 [#allocation11], 4
          %s303 = int_to_ptr.vmem [resolvable:$true] %s302
          %305 = dma.hbm_to_vmem [thread:$0]  %s6, 16, %s303, [#allocation10]
        $region32: #{net_forward.1} parent=11 // pred_fallthru
          _
        // Predicated region
        $region33: #{net_forward.1} parent=11 // pred_check
          %p306 = pneg %p200
        $region34: #{net_forward.1} parent=11 // pred_check_branch
          %308 = sbr.rel (%p306) target = $region36
        $region35: #{net_forward.1} parent=11 // pred_region
          _
        $region36: #{net_forward.1} parent=11 // pred_fallthru
          _
        // Predicated region
        $region37: #{net_forward.1} parent=11 // pred_check
          %p309 = pneg %p221
        $region38: #{net_forward.1} parent=11 // pred_check_branch
          %311 = sbr.rel (%p309) target = $region40
        $region39: #{net_forward.1} parent=11 // pred_region
          %s313 = ssub.s32 16, 16
          %314 = vsyncadd [#allocation13], %s313
          %s316 = sshll.u32 [#allocation12], 4
          %s317 = int_to_ptr.vmem [resolvable:$true] %s316
          %319 = dma.hbm_to_vmem [thread:$0]  %s8, 16, %s317, [#allocation13]
        $region40: #{net_forward.1} parent=11 // pred_fallthru
          _
      $region12: #{net_forward.1} parent=5 // pred_fallthru
        _
      %p320 = scmp.lt.s32.totalorder %s22, 2
      // Predicated region
      $region41: #{net_forward.1} parent=5 // pred_check
        %p321 = pneg %p320
      $region42: #{net_forward.1} parent=5 // pred_check_branch
        %323 = sbr.rel (%p321) target = $region44
      $region43: #{net_forward.1} parent=5 // pred_region
        // Predicated region
        $region45: #{net_forward.1} parent=43 // pred_check
          %p324 = pneg %p42
        $region46: #{net_forward.1} parent=43 // pred_check_branch
          %326 = sbr.rel (%p324) target = $region48
        $region47: #{net_forward.1} parent=43 // pred_region
          %s327 = smul.u32 72, %s22
          %p328 = scmp.lt.s32.totalorder %s327, 143
          %s329 = scalar_select %p328, %s327, 143
          %s330 = smul.addr %s329, 2
          %s331 = scalar_lea.vmem %s0, %s330
          %s332 = smul.u32 72, %s22
        $region48: #{net_forward.1} parent=43 // pred_fallthru
          _
        // Predicated region
        $region49: #{net_forward.1} parent=43 // pred_check
          %p333 = pneg %p68
        $region50: #{net_forward.1} parent=43 // pred_check_branch
          %335 = sbr.rel (%p333) target = $region52
        $region51: #{net_forward.1} parent=43 // pred_region
          %s336 = sand.u32 %s58, 1
          %s337 = scalar_lea.sflag [#allocation4], %s336
          %s338 = sand.u32 %s58, 1
          %s339 = smul.addr %s338, 9216
          %s340 = scalar_lea.vmem [#allocation3], %s339
          %s341 = smul.u32 1152, %s22
          %s343 = ssub.s32 147456, 147456
          %344 = vsyncadd %s337, %s343
          %s345 = smul.addr %s341, 2
          %s346 = smul.addr %s345, 64
          %s347 = scalar_lea.hbm %s1, %s346
          %s348 = sshll.u32 %s340, 4
          %s349 = int_to_ptr.vmem [resolvable:$true] %s348
          %354 = dma.hbm_to_vmem [thread:$0]  %s347, 147456, %s349, %s337, 128, 128, 8
        $region52: #{net_forward.1} parent=43 // pred_fallthru
          _
      $region44: #{net_forward.1} parent=5 // pred_fallthru
        _
      %p355 = scmp.le.s32.totalorder 1, %s22
      %p356 = scmp.lt.s32.totalorder %s22, 3
      %p357 = pnand %p355, %p356
      %p358 = pneg %p357
      // Predicated region
      $region53: #{net_forward.1} parent=5 // pred_check
        _
      $region54: #{net_forward.1} parent=5 // pred_check_branch
        %360 = sbr.rel (%p357) target = $region56
      $region55: #{net_forward.1} parent=5 // pred_region
        %s361 = ssub.s32 %s22, 1
        %s362 = sand.u32 %s61, 1
        %s363 = scalar_lea.sflag [#allocation4], %s362
        %s364 = sand.u32 %s61, 1
        %s365 = smul.addr %s364, 9216
        %s366 = scalar_lea.vmem [#allocation3], %s365
        // Predicated region
        $region57: #{net_forward.1} parent=55 // pred_check
          %p367 = pneg %p74
        $region58: #{net_forward.1} parent=55 // pred_check_branch
          %369 = sbr.rel (%p367) target = $region60
        $region59: #{net_forward.1} parent=55 // pred_region
          %370 = dma.done %s363, 147456
        $region60: #{net_forward.1} parent=55 // pred_fallthru
          _
        // Predicated region
        $region61: #{net_forward.1} parent=55 // pred_check
          %p371 = pneg %p95
        $region62: #{net_forward.1} parent=55 // pred_check_branch
          %373 = sbr.rel (%p371) target = $region64
        $region63: #{net_forward.1} parent=55 // pred_region
          %374 = dma.done [#allocation7], 32
        $region64: #{net_forward.1} parent=55 // pred_fallthru
          _
        // Predicated region
        $region65: #{net_forward.1} parent=55 // pred_check
          %p375 = pneg %p116
        $region66: #{net_forward.1} parent=55 // pred_check_branch
          %377 = sbr.rel (%p375) target = $region68
        $region67: #{net_forward.1} parent=55 // pred_region
          %378 = dma.done [#allocation7], 4096
        $region68: #{net_forward.1} parent=55 // pred_fallthru
          _
        // Predicated region
        $region69: #{net_forward.1} parent=55 // pred_check
          %p379 = pneg %p137
        $region70: #{net_forward.1} parent=55 // pred_check_branch
          %381 = sbr.rel (%p379) target = $region72
        $region71: #{net_forward.1} parent=55 // pred_region
          %382 = dma.done [#allocation10], 16
        $region72: #{net_forward.1} parent=55 // pred_fallthru
          _
        // Predicated region
        $region73: #{net_forward.1} parent=55 // pred_check
          %p383 = pneg %p179
        $region74: #{net_forward.1} parent=55 // pred_check_branch
          %385 = sbr.rel (%p383) target = $region76
        $region75: #{net_forward.1} parent=55 // pred_region
          %386 = dma.done [#allocation10], 16
        $region76: #{net_forward.1} parent=55 // pred_fallthru
          _
        // Predicated region
        $region77: #{net_forward.1} parent=55 // pred_check
          %p387 = pneg %p221
        $region78: #{net_forward.1} parent=55 // pred_check_branch
          %389 = sbr.rel (%p387) target = $region80
        $region79: #{net_forward.1} parent=55 // pred_region
          %390 = dma.done [#allocation13], 16
        $region80: #{net_forward.1} parent=55 // pred_fallthru
          _
        %s391 = smul.u32 72, %s27
        %p392 = scmp.lt.s32.totalorder %s391, 143
        %s393 = scalar_select %p392, %s391, 143
        %s394 = smul.addr %s393, 2
        %s395 = scalar_lea.vmem %s0, %s394
        %p396 = pneg %p48
        %p397 = pneg %p45
        %s398 = sand.u32 %s61, 1
        %s399 = scalar_lea.sflag [#allocation4], %s398
        %s400 = sand.u32 %s61, 1
        %s401 = smul.addr %s400, 9216
        %s402 = scalar_lea.vmem [#allocation3], %s401
        %p403 = pneg %p74
        %p404 = pneg %p71
        %p405 = pneg %p95
        %p406 = pneg %p92
        %p407 = pneg %p116
        %p408 = pneg %p113
        %p409 = pneg %p137
        %p410 = pneg %p134
        %p411 = pneg %p158
        %p412 = pneg %p155
        %p413 = pneg %p179
        %p414 = pneg %p176
        %p415 = pneg %p200
        %p416 = pneg %p197
        %p417 = pneg %p221
        %p418 = pneg %p218
        %p419 = pneg %p242
        %p420 = pneg %p239
        %s421 = smul.u32 72, %s27
        %p422 = scmp.lt.s32.totalorder %s421, 143
        %s423 = scalar_select %p422, %s421, 143
        %s424 = smul.addr %s423, 2
        %s425 = scalar_lea.vmem %s0, %s424
        %s426 = smul.u32 72, %s27
        %s427 = smul.u32 1152, %s27
        %p428 = scmp.eq.s32.totalorder %s27, 0
        // Predicated region
        $region81: #{net_forward.1} parent=55 // pred_check
          %p429 = pneg %p428
        $region82: #{net_forward.1} parent=55 // pred_check_branch
          %431 = sbr.rel (%p429) target = $region84
        $region83: #{net_forward.1} parent=55 // pred_region
          %432 = vst [vmem:[#allocation2] sm:$0xf] 0.0
        $region84: #{net_forward.1} parent=55 // pred_fallthru
          _
        %v433 = vld [vmem:[%s425] sm:$0xff]
        %v434 = vld [vmem:[%s425 + $0x8] sm:$0xff]
        %v435 = vld [vmem:[%s425 + $0x10] sm:$0xff]
        %v436 = vld [vmem:[%s425 + $0x18] sm:$0xff]
        %v437 = vld [vmem:[%s425 + $0x20] sm:$0xff]
        %v438 = vld [vmem:[%s425 + $0x28] sm:$0xff]
        %v439 = vld [vmem:[%s425 + $0x30] sm:$0xff]
        %v440 = vld [vmem:[%s425 + $0x38] sm:$0xff]
        %v441 = vld [vmem:[%s425 + $0x40] sm:$0xff]
        %v442 = vld [vmem:[%s425 + $0x48] sm:$0xff]
        %v443 = vld [vmem:[%s425 + $0x50] sm:$0xff]
        %v444 = vld [vmem:[%s425 + $0x58] sm:$0xff]
        %v445 = vld [vmem:[%s425 + $0x60] sm:$0xff]
        %v446 = vld [vmem:[%s425 + $0x68] sm:$0xff]
        %v447 = vld [vmem:[%s425 + $0x70] sm:$0xff]
        %v448 = vld [vmem:[%s425 + $0x78] sm:$0xff]
        %v449 = vld [vmem:[%s425 + $0x80] sm:$0xff]
        %v450 = vld [vmem:[%s425 + $0x88] sm:$0xff]
        %v469 = vcombine.high %v433, %v433
        %v471 = vunpack.c.l.s4 1983009808
        %v472 = vunpack.c.0.s8 %v471
        %v473 = vlaneseq
        %v474 = vshrl.u32 %v473, 7
        %v475 = vsub.s32 %v472, %v474
        %v476 = vrot.slane %v433, %v475
        %v478 = vunpack.c.l.s4 1983009808
        %v479 = vunpack.c.0.s8 %v478
        %v480 = vlaneseq
        %v481 = vshrl.u32 %v480, 7
        %v482 = vsub.s32 %v479, %v481
        %v483 = vrot.slane %v469, %v482
        %v484 = vcombine.high %v476, %v476
        %v485 = vcombine.high %v483, %v483
        %v486 = vcombine.high %v434, %v434
        %v488 = vunpack.c.l.s4 1983009808
        %v489 = vunpack.c.0.s8 %v488
        %v490 = vlaneseq
        %v491 = vshrl.u32 %v490, 7
        %v492 = vsub.s32 %v489, %v491
        %v493 = vrot.slane %v434, %v492
        %v495 = vunpack.c.l.s4 1983009808
        %v496 = vunpack.c.0.s8 %v495
        %v497 = vlaneseq
        %v498 = vshrl.u32 %v497, 7
        %v499 = vsub.s32 %v496, %v498
        %v500 = vrot.slane %v486, %v499
        %v501 = vcombine.high %v493, %v493
        %v502 = vcombine.high %v500, %v500
        %v503 = vcombine.high %v435, %v435
        %v505 = vunpack.c.l.s4 1983009808
        %v506 = vunpack.c.0.s8 %v505
        %v507 = vlaneseq
        %v508 = vshrl.u32 %v507, 7
        %v509 = vsub.s32 %v506, %v508
        %v510 = vrot.slane %v435, %v509
        %v512 = vunpack.c.l.s4 1983009808
        %v513 = vunpack.c.0.s8 %v512
        %v514 = vlaneseq
        %v515 = vshrl.u32 %v514, 7
        %v516 = vsub.s32 %v513, %v515
        %v517 = vrot.slane %v503, %v516
        %v518 = vcombine.high %v510, %v510
        %v519 = vcombine.high %v517, %v517
        %v520 = vcombine.high %v436, %v436
        %v522 = vunpack.c.l.s4 1983009808
        %v523 = vunpack.c.0.s8 %v522
        %v524 = vlaneseq
        %v525 = vshrl.u32 %v524, 7
        %v526 = vsub.s32 %v523, %v525
        %v527 = vrot.slane %v436, %v526
        %v529 = vunpack.c.l.s4 1983009808
        %v530 = vunpack.c.0.s8 %v529
        %v531 = vlaneseq
        %v532 = vshrl.u32 %v531, 7
        %v533 = vsub.s32 %v530, %v532
        %v534 = vrot.slane %v520, %v533
        %v535 = vcombine.high %v527, %v527
        %v536 = vcombine.high %v534, %v534
        %v537 = vcombine.high %v437, %v437
        %v539 = vunpack.c.l.s4 1983009808
        %v540 = vunpack.c.0.s8 %v539
        %v541 = vlaneseq
        %v542 = vshrl.u32 %v541, 7
        %v543 = vsub.s32 %v540, %v542
        %v544 = vrot.slane %v437, %v543
        %v546 = vunpack.c.l.s4 1983009808
        %v547 = vunpack.c.0.s8 %v546
        %v548 = vlaneseq
        %v549 = vshrl.u32 %v548, 7
        %v550 = vsub.s32 %v547, %v549
        %v551 = vrot.slane %v537, %v550
        %v552 = vcombine.high %v544, %v544
        %v553 = vcombine.high %v551, %v551
        %v554 = vcombine.high %v438, %v438
        %v556 = vunpack.c.l.s4 1983009808
        %v557 = vunpack.c.0.s8 %v556
        %v558 = vlaneseq
        %v559 = vshrl.u32 %v558, 7
        %v560 = vsub.s32 %v557, %v559
        %v561 = vrot.slane %v438, %v560
        %v563 = vunpack.c.l.s4 1983009808
        %v564 = vunpack.c.0.s8 %v563
        %v565 = vlaneseq
        %v566 = vshrl.u32 %v565, 7
        %v567 = vsub.s32 %v564, %v566
        %v568 = vrot.slane %v554, %v567
        %v569 = vcombine.high %v561, %v561
        %v570 = vcombine.high %v568, %v568
        %v571 = vcombine.high %v439, %v439
        %v573 = vunpack.c.l.s4 1983009808
        %v574 = vunpack.c.0.s8 %v573
        %v575 = vlaneseq
        %v576 = vshrl.u32 %v575, 7
        %v577 = vsub.s32 %v574, %v576
        %v578 = vrot.slane %v439, %v577
        %v580 = vunpack.c.l.s4 1983009808
        %v581 = vunpack.c.0.s8 %v580
        %v582 = vlaneseq
        %v583 = vshrl.u32 %v582, 7
        %v584 = vsub.s32 %v581, %v583
        %v585 = vrot.slane %v571, %v584
        %v586 = vcombine.high %v578, %v578
        %v587 = vcombine.high %v585, %v585
        %v588 = vcombine.high %v440, %v440
        %v590 = vunpack.c.l.s4 1983009808
        %v591 = vunpack.c.0.s8 %v590
        %v592 = vlaneseq
        %v593 = vshrl.u32 %v592, 7
        %v594 = vsub.s32 %v591, %v593
        %v595 = vrot.slane %v440, %v594
        %v597 = vunpack.c.l.s4 1983009808
        %v598 = vunpack.c.0.s8 %v597
        %v599 = vlaneseq
        %v600 = vshrl.u32 %v599, 7
        %v601 = vsub.s32 %v598, %v600
        %v602 = vrot.slane %v588, %v601
        %v603 = vcombine.high %v595, %v595
        %v604 = vcombine.high %v602, %v602
        %v605 = vcombine.high %v441, %v441
        %v607 = vunpack.c.l.s4 1983009808
        %v608 = vunpack.c.0.s8 %v607
        %v609 = vlaneseq
        %v610 = vshrl.u32 %v609, 7
        %v611 = vsub.s32 %v608, %v610
        %v612 = vrot.slane %v441, %v611
        %v614 = vunpack.c.l.s4 1983009808
        %v615 = vunpack.c.0.s8 %v614
        %v616 = vlaneseq
        %v617 = vshrl.u32 %v616, 7
        %v618 = vsub.s32 %v615, %v617
        %v619 = vrot.slane %v605, %v618
        %v620 = vcombine.high %v612, %v612
        %v621 = vcombine.high %v619, %v619
        %v622 = vcombine.high %v442, %v442
        %v624 = vunpack.c.l.s4 1983009808
        %v625 = vunpack.c.0.s8 %v624
        %v626 = vlaneseq
        %v627 = vshrl.u32 %v626, 7
        %v628 = vsub.s32 %v625, %v627
        %v629 = vrot.slane %v442, %v628
        %v631 = vunpack.c.l.s4 1983009808
        %v632 = vunpack.c.0.s8 %v631
        %v633 = vlaneseq
        %v634 = vshrl.u32 %v633, 7
        %v635 = vsub.s32 %v632, %v634
        %v636 = vrot.slane %v622, %v635
        %v637 = vcombine.high %v629, %v629
        %v638 = vcombine.high %v636, %v636
        %v639 = vcombine.high %v443, %v443
        %v641 = vunpack.c.l.s4 1983009808
        %v642 = vunpack.c.0.s8 %v641
        %v643 = vlaneseq
        %v644 = vshrl.u32 %v643, 7
        %v645 = vsub.s32 %v642, %v644
        %v646 = vrot.slane %v443, %v645
        %v648 = vunpack.c.l.s4 1983009808
        %v649 = vunpack.c.0.s8 %v648
        %v650 = vlaneseq
        %v651 = vshrl.u32 %v650, 7
        %v652 = vsub.s32 %v649, %v651
        %v653 = vrot.slane %v639, %v652
        %v654 = vcombine.high %v646, %v646
        %v655 = vcombine.high %v653, %v653
        %v656 = vcombine.high %v444, %v444
        %v658 = vunpack.c.l.s4 1983009808
        %v659 = vunpack.c.0.s8 %v658
        %v660 = vlaneseq
        %v661 = vshrl.u32 %v660, 7
        %v662 = vsub.s32 %v659, %v661
        %v663 = vrot.slane %v444, %v662
        %v665 = vunpack.c.l.s4 1983009808
        %v666 = vunpack.c.0.s8 %v665
        %v667 = vlaneseq
        %v668 = vshrl.u32 %v667, 7
        %v669 = vsub.s32 %v666, %v668
        %v670 = vrot.slane %v656, %v669
        %v671 = vcombine.high %v663, %v663
        %v672 = vcombine.high %v670, %v670
        %v673 = vcombine.high %v445, %v445
        %v675 = vunpack.c.l.s4 1983009808
        %v676 = vunpack.c.0.s8 %v675
        %v677 = vlaneseq
        %v678 = vshrl.u32 %v677, 7
        %v679 = vsub.s32 %v676, %v678
        %v680 = vrot.slane %v445, %v679
        %v682 = vunpack.c.l.s4 1983009808
        %v683 = vunpack.c.0.s8 %v682
        %v684 = vlaneseq
        %v685 = vshrl.u32 %v684, 7
        %v686 = vsub.s32 %v683, %v685
        %v687 = vrot.slane %v673, %v686
        %v688 = vcombine.high %v680, %v680
        %v689 = vcombine.high %v687, %v687
        %v690 = vcombine.high %v446, %v446
        %v692 = vunpack.c.l.s4 1983009808
        %v693 = vunpack.c.0.s8 %v692
        %v694 = vlaneseq
        %v695 = vshrl.u32 %v694, 7
        %v696 = vsub.s32 %v693, %v695
        %v697 = vrot.slane %v446, %v696
        %v699 = vunpack.c.l.s4 1983009808
        %v700 = vunpack.c.0.s8 %v699
        %v701 = vlaneseq
        %v702 = vshrl.u32 %v701, 7
        %v703 = vsub.s32 %v700, %v702
        %v704 = vrot.slane %v690, %v703
        %v705 = vcombine.high %v697, %v697
        %v706 = vcombine.high %v704, %v704
        %v707 = vcombine.high %v447, %v447
        %v709 = vunpack.c.l.s4 1983009808
        %v710 = vunpack.c.0.s8 %v709
        %v711 = vlaneseq
        %v712 = vshrl.u32 %v711, 7
        %v713 = vsub.s32 %v710, %v712
        %v714 = vrot.slane %v447, %v713
        %v716 = vunpack.c.l.s4 1983009808
        %v717 = vunpack.c.0.s8 %v716
        %v718 = vlaneseq
        %v719 = vshrl.u32 %v718, 7
        %v720 = vsub.s32 %v717, %v719
        %v721 = vrot.slane %v707, %v720
        %v722 = vcombine.high %v714, %v714
        %v723 = vcombine.high %v721, %v721
        %v724 = vcombine.high %v448, %v448
        %v726 = vunpack.c.l.s4 1983009808
        %v727 = vunpack.c.0.s8 %v726
        %v728 = vlaneseq
        %v729 = vshrl.u32 %v728, 7
        %v730 = vsub.s32 %v727, %v729
        %v731 = vrot.slane %v448, %v730
        %v733 = vunpack.c.l.s4 1983009808
        %v734 = vunpack.c.0.s8 %v733
        %v735 = vlaneseq
        %v736 = vshrl.u32 %v735, 7
        %v737 = vsub.s32 %v734, %v736
        %v738 = vrot.slane %v724, %v737
        %v739 = vcombine.high %v731, %v731
        %v740 = vcombine.high %v738, %v738
        %v741 = vcombine.high %v449, %v449
        %v743 = vunpack.c.l.s4 1983009808
        %v744 = vunpack.c.0.s8 %v743
        %v745 = vlaneseq
        %v746 = vshrl.u32 %v745, 7
        %v747 = vsub.s32 %v744, %v746
        %v748 = vrot.slane %v449, %v747
        %v750 = vunpack.c.l.s4 1983009808
        %v751 = vunpack.c.0.s8 %v750
        %v752 = vlaneseq
        %v753 = vshrl.u32 %v752, 7
        %v754 = vsub.s32 %v751, %v753
        %v755 = vrot.slane %v741, %v754
        %v756 = vcombine.high %v748, %v748
        %v757 = vcombine.high %v755, %v755
        %v758 = vcombine.high %v450, %v450
        %v760 = vunpack.c.l.s4 1983009808
        %v761 = vunpack.c.0.s8 %v760
        %v762 = vlaneseq
        %v763 = vshrl.u32 %v762, 7
        %v764 = vsub.s32 %v761, %v763
        %v765 = vrot.slane %v450, %v764
        %v767 = vunpack.c.l.s4 1983009808
        %v768 = vunpack.c.0.s8 %v767
        %v769 = vlaneseq
        %v770 = vshrl.u32 %v769, 7
        %v771 = vsub.s32 %v768, %v770
        %v772 = vrot.slane %v758, %v771
        %v773 = vcombine.high %v765, %v765
        %v774 = vcombine.high %v772, %v772
        %v847 = vpack.c.bf16 %v476, %v476
        %v848 = vpack.c.bf16 %v484, %v484
        %v849 = vpack.c.bf16 %v483, %v483
        %v850 = vpack.c.bf16 %v485, %v485
        %v851 = vpack.c.bf16 %v493, %v493
        %v852 = vpack.c.bf16 %v501, %v501
        %v853 = vpack.c.bf16 %v500, %v500
        %v854 = vpack.c.bf16 %v502, %v502
        %v855 = vpack.c.bf16 %v510, %v510
        %v856 = vpack.c.bf16 %v518, %v518
        %v857 = vpack.c.bf16 %v517, %v517
        %v858 = vpack.c.bf16 %v519, %v519
        %v859 = vpack.c.bf16 %v527, %v527
        %v860 = vpack.c.bf16 %v535, %v535
        %v861 = vpack.c.bf16 %v534, %v534
        %v862 = vpack.c.bf16 %v536, %v536
        %v863 = vpack.c.bf16 %v544, %v544
        %v864 = vpack.c.bf16 %v552, %v552
        %v865 = vpack.c.bf16 %v551, %v551
        %v866 = vpack.c.bf16 %v553, %v553
        %v867 = vpack.c.bf16 %v561, %v561
        %v868 = vpack.c.bf16 %v569, %v569
        %v869 = vpack.c.bf16 %v568, %v568
        %v870 = vpack.c.bf16 %v570, %v570
        %v871 = vpack.c.bf16 %v578, %v578
        %v872 = vpack.c.bf16 %v586, %v586
        %v873 = vpack.c.bf16 %v585, %v585
        %v874 = vpack.c.bf16 %v587, %v587
        %v875 = vpack.c.bf16 %v595, %v595
        %v876 = vpack.c.bf16 %v603, %v603
        %v877 = vpack.c.bf16 %v602, %v602
        %v878 = vpack.c.bf16 %v604, %v604
        %v879 = vpack.c.bf16 %v612, %v612
        %v880 = vpack.c.bf16 %v620, %v620
        %v881 = vpack.c.bf16 %v619, %v619
        %v882 = vpack.c.bf16 %v621, %v621
        %v883 = vpack.c.bf16 %v629, %v629
        %v884 = vpack.c.bf16 %v637, %v637
        %v885 = vpack.c.bf16 %v636, %v636
        %v886 = vpack.c.bf16 %v638, %v638
        %v887 = vpack.c.bf16 %v646, %v646
        %v888 = vpack.c.bf16 %v654, %v654
        %v889 = vpack.c.bf16 %v653, %v653
        %v890 = vpack.c.bf16 %v655, %v655
        %v891 = vpack.c.bf16 %v663, %v663
        %v892 = vpack.c.bf16 %v671, %v671
        %v893 = vpack.c.bf16 %v670, %v670
        %v894 = vpack.c.bf16 %v672, %v672
        %v895 = vpack.c.bf16 %v680, %v680
        %v896 = vpack.c.bf16 %v688, %v688
        %v897 = vpack.c.bf16 %v687, %v687
        %v898 = vpack.c.bf16 %v689, %v689
        %v899 = vpack.c.bf16 %v697, %v697
        %v900 = vpack.c.bf16 %v705, %v705
        %v901 = vpack.c.bf16 %v704, %v704
        %v902 = vpack.c.bf16 %v706, %v706
        %v903 = vpack.c.bf16 %v714, %v714
        %v904 = vpack.c.bf16 %v722, %v722
        %v905 = vpack.c.bf16 %v721, %v721
        %v906 = vpack.c.bf16 %v723, %v723
        %v907 = vpack.c.bf16 %v731, %v731
        %v908 = vpack.c.bf16 %v739, %v739
        %v909 = vpack.c.bf16 %v738, %v738
        %v910 = vpack.c.bf16 %v740, %v740
        %v911 = vpack.c.bf16 %v748, %v748
        %v912 = vpack.c.bf16 %v756, %v756
        %v913 = vpack.c.bf16 %v755, %v755
        %v914 = vpack.c.bf16 %v757, %v757
        %v915 = vpack.c.bf16 %v765, %v765
        %v916 = vpack.c.bf16 %v773, %v773
        %v917 = vpack.c.bf16 %v772, %v772
        %v918 = vpack.c.bf16 %v774, %v774
        %v919 = vld [vmem:[#allocation2] sm:$0xf]
        %v920 = vld [vmem:[%s366] sm:$0xff]
        %v921 = vld [vmem:[%s366 + $0x8] sm:$0xff]
        %v922 = vld [vmem:[%s366 + $0x10] sm:$0xff]
        %v923 = vld [vmem:[%s366 + $0x18] sm:$0xff]
        %v924 = vld [vmem:[%s366 + $0x20] sm:$0xff]
        %v925 = vld [vmem:[%s366 + $0x28] sm:$0xff]
        %v926 = vld [vmem:[%s366 + $0x30] sm:$0xff]
        %v927 = vld [vmem:[%s366 + $0x38] sm:$0xff]
        %v928 = vld [vmem:[%s366 + $0x40] sm:$0xff]
        %v929 = vld [vmem:[%s366 + $0x48] sm:$0xff]
        %v930 = vld [vmem:[%s366 + $0x50] sm:$0xff]
        %v931 = vld [vmem:[%s366 + $0x58] sm:$0xff]
        %v932 = vld [vmem:[%s366 + $0x60] sm:$0xff]
        %v933 = vld [vmem:[%s366 + $0x68] sm:$0xff]
        %v934 = vld [vmem:[%s366 + $0x70] sm:$0xff]
        %v935 = vld [vmem:[%s366 + $0x78] sm:$0xff]
        %v936 = vld [vmem:[%s366 + $0x80] sm:$0xff]
        %v937 = vld [vmem:[%s366 + $0x88] sm:$0xff]
        %v938 = vld [vmem:[%s366 + $0x90] sm:$0xff]
        %v939 = vld [vmem:[%s366 + $0x98] sm:$0xff]
        %v940 = vld [vmem:[%s366 + $0xa0] sm:$0xff]
        %v941 = vld [vmem:[%s366 + $0xa8] sm:$0xff]
        %v942 = vld [vmem:[%s366 + $0xb0] sm:$0xff]
        %v943 = vld [vmem:[%s366 + $0xb8] sm:$0xff]
        %v944 = vld [vmem:[%s366 + $0xc0] sm:$0xff]
        %v945 = vld [vmem:[%s366 + $0xc8] sm:$0xff]
        %v946 = vld [vmem:[%s366 + $0xd0] sm:$0xff]
        %v947 = vld [vmem:[%s366 + $0xd8] sm:$0xff]
        %v948 = vld [vmem:[%s366 + $0xe0] sm:$0xff]
        %v949 = vld [vmem:[%s366 + $0xe8] sm:$0xff]
        %v950 = vld [vmem:[%s366 + $0xf0] sm:$0xff]
        %v951 = vld [vmem:[%s366 + $0xf8] sm:$0xff]
        %v952 = vld [vmem:[%s366 + $0x100] sm:$0xff]
        %v953 = vld [vmem:[%s366 + $0x108] sm:$0xff]
        %v954 = vld [vmem:[%s366 + $0x110] sm:$0xff]
        %v955 = vld [vmem:[%s366 + $0x118] sm:$0xff]
        %v956 = vld [vmem:[%s366 + $0x120] sm:$0xff]
        %v957 = vld [vmem:[%s366 + $0x128] sm:$0xff]
        %v958 = vld [vmem:[%s366 + $0x130] sm:$0xff]
        %v959 = vld [vmem:[%s366 + $0x138] sm:$0xff]
        %v960 = vld [vmem:[%s366 + $0x140] sm:$0xff]
        %v961 = vld [vmem:[%s366 + $0x148] sm:$0xff]
        %v962 = vld [vmem:[%s366 + $0x150] sm:$0xff]
        %v963 = vld [vmem:[%s366 + $0x158] sm:$0xff]
        %v964 = vld [vmem:[%s366 + $0x160] sm:$0xff]
        %v965 = vld [vmem:[%s366 + $0x168] sm:$0xff]
        %v966 = vld [vmem:[%s366 + $0x170] sm:$0xff]
        %v967 = vld [vmem:[%s366 + $0x178] sm:$0xff]
        %v968 = vld [vmem:[%s366 + $0x180] sm:$0xff]
        %v969 = vld [vmem:[%s366 + $0x188] sm:$0xff]
        %v970 = vld [vmem:[%s366 + $0x190] sm:$0xff]
        %v971 = vld [vmem:[%s366 + $0x198] sm:$0xff]
        %v972 = vld [vmem:[%s366 + $0x1a0] sm:$0xff]
        %v973 = vld [vmem:[%s366 + $0x1a8] sm:$0xff]
        %v974 = vld [vmem:[%s366 + $0x1b0] sm:$0xff]
        %v975 = vld [vmem:[%s366 + $0x1b8] sm:$0xff]
        %v976 = vld [vmem:[%s366 + $0x1c0] sm:$0xff]
        %v977 = vld [vmem:[%s366 + $0x1c8] sm:$0xff]
        %v978 = vld [vmem:[%s366 + $0x1d0] sm:$0xff]
        %v979 = vld [vmem:[%s366 + $0x1d8] sm:$0xff]
        %v980 = vld [vmem:[%s366 + $0x1e0] sm:$0xff]
        %v981 = vld [vmem:[%s366 + $0x1e8] sm:$0xff]
        %v982 = vld [vmem:[%s366 + $0x1f0] sm:$0xff]
        %v983 = vld [vmem:[%s366 + $0x1f8] sm:$0xff]
        %v984 = vld [vmem:[%s366 + $0x200] sm:$0xff]
        %v985 = vld [vmem:[%s366 + $0x208] sm:$0xff]
        %v986 = vld [vmem:[%s366 + $0x210] sm:$0xff]
        %v987 = vld [vmem:[%s366 + $0x218] sm:$0xff]
        %v988 = vld [vmem:[%s366 + $0x220] sm:$0xff]
        %v989 = vld [vmem:[%s366 + $0x228] sm:$0xff]
        %v990 = vld [vmem:[%s366 + $0x230] sm:$0xff]
        %v991 = vld [vmem:[%s366 + $0x238] sm:$0xff]
        %v992 = vld [vmem:[%s366 + $0x240] sm:$0xff]
        %v993 = vld [vmem:[%s366 + $0x248] sm:$0xff]
        %v994 = vld [vmem:[%s366 + $0x250] sm:$0xff]
        %v995 = vld [vmem:[%s366 + $0x258] sm:$0xff]
        %v996 = vld [vmem:[%s366 + $0x260] sm:$0xff]
        %v997 = vld [vmem:[%s366 + $0x268] sm:$0xff]
        %v998 = vld [vmem:[%s366 + $0x270] sm:$0xff]
        %v999 = vld [vmem:[%s366 + $0x278] sm:$0xff]
        %v1000 = vld [vmem:[%s366 + $0x280] sm:$0xff]
        %v1001 = vld [vmem:[%s366 + $0x288] sm:$0xff]
        %v1002 = vld [vmem:[%s366 + $0x290] sm:$0xff]
        %v1003 = vld [vmem:[%s366 + $0x298] sm:$0xff]
        %v1004 = vld [vmem:[%s366 + $0x2a0] sm:$0xff]
        %v1005 = vld [vmem:[%s366 + $0x2a8] sm:$0xff]
        %v1006 = vld [vmem:[%s366 + $0x2b0] sm:$0xff]
        %v1007 = vld [vmem:[%s366 + $0x2b8] sm:$0xff]
        %v1008 = vld [vmem:[%s366 + $0x2c0] sm:$0xff]
        %v1009 = vld [vmem:[%s366 + $0x2c8] sm:$0xff]
        %v1010 = vld [vmem:[%s366 + $0x2d0] sm:$0xff]
        %v1011 = vld [vmem:[%s366 + $0x2d8] sm:$0xff]
        %v1012 = vld [vmem:[%s366 + $0x2e0] sm:$0xff]
        %v1013 = vld [vmem:[%s366 + $0x2e8] sm:$0xff]
        %v1014 = vld [vmem:[%s366 + $0x2f0] sm:$0xff]
        %v1015 = vld [vmem:[%s366 + $0x2f8] sm:$0xff]
        %v1016 = vld [vmem:[%s366 + $0x300] sm:$0xff]
        %v1017 = vld [vmem:[%s366 + $0x308] sm:$0xff]
        %v1018 = vld [vmem:[%s366 + $0x310] sm:$0xff]
        %v1019 = vld [vmem:[%s366 + $0x318] sm:$0xff]
        %v1020 = vld [vmem:[%s366 + $0x320] sm:$0xff]
        %v1021 = vld [vmem:[%s366 + $0x328] sm:$0xff]
        %v1022 = vld [vmem:[%s366 + $0x330] sm:$0xff]
        %v1023 = vld [vmem:[%s366 + $0x338] sm:$0xff]
        %v1024 = vld [vmem:[%s366 + $0x340] sm:$0xff]
        %v1025 = vld [vmem:[%s366 + $0x348] sm:$0xff]
        %v1026 = vld [vmem:[%s366 + $0x350] sm:$0xff]
        %v1027 = vld [vmem:[%s366 + $0x358] sm:$0xff]
        %v1028 = vld [vmem:[%s366 + $0x360] sm:$0xff]
        %v1029 = vld [vmem:[%s366 + $0x368] sm:$0xff]
        %v1030 = vld [vmem:[%s366 + $0x370] sm:$0xff]
        %v1031 = vld [vmem:[%s366 + $0x378] sm:$0xff]
        %v1032 = vld [vmem:[%s366 + $0x380] sm:$0xff]
        %v1033 = vld [vmem:[%s366 + $0x388] sm:$0xff]
        %v1034 = vld [vmem:[%s366 + $0x390] sm:$0xff]
        %v1035 = vld [vmem:[%s366 + $0x398] sm:$0xff]
        %v1036 = vld [vmem:[%s366 + $0x3a0] sm:$0xff]
        %v1037 = vld [vmem:[%s366 + $0x3a8] sm:$0xff]
        %v1038 = vld [vmem:[%s366 + $0x3b0] sm:$0xff]
        %v1039 = vld [vmem:[%s366 + $0x3b8] sm:$0xff]
        %v1040 = vld [vmem:[%s366 + $0x3c0] sm:$0xff]
        %v1041 = vld [vmem:[%s366 + $0x3c8] sm:$0xff]
        %v1042 = vld [vmem:[%s366 + $0x3d0] sm:$0xff]
        %v1043 = vld [vmem:[%s366 + $0x3d8] sm:$0xff]
        %v1044 = vld [vmem:[%s366 + $0x3e0] sm:$0xff]
        %v1045 = vld [vmem:[%s366 + $0x3e8] sm:$0xff]
        %v1046 = vld [vmem:[%s366 + $0x3f0] sm:$0xff]
        %v1047 = vld [vmem:[%s366 + $0x3f8] sm:$0xff]
        %v1048 = vld [vmem:[%s366 + $0x400] sm:$0xff]
        %v1049 = vld [vmem:[%s366 + $0x408] sm:$0xff]
        %v1050 = vld [vmem:[%s366 + $0x410] sm:$0xff]
        %v1051 = vld [vmem:[%s366 + $0x418] sm:$0xff]
        %v1052 = vld [vmem:[%s366 + $0x420] sm:$0xff]
        %v1053 = vld [vmem:[%s366 + $0x428] sm:$0xff]
        %v1054 = vld [vmem:[%s366 + $0x430] sm:$0xff]
        %v1055 = vld [vmem:[%s366 + $0x438] sm:$0xff]
        %v1056 = vld [vmem:[%s366 + $0x440] sm:$0xff]
        %v1057 = vld [vmem:[%s366 + $0x448] sm:$0xff]
        %v1058 = vld [vmem:[%s366 + $0x450] sm:$0xff]
        %v1059 = vld [vmem:[%s366 + $0x458] sm:$0xff]
        %v1060 = vld [vmem:[%s366 + $0x460] sm:$0xff]
        %v1061 = vld [vmem:[%s366 + $0x468] sm:$0xff]
        %v1062 = vld [vmem:[%s366 + $0x470] sm:$0xff]
        %v1063 = vld [vmem:[%s366 + $0x478] sm:$0xff]
        %v1064 = vld [vmem:[%s366 + $0x480] sm:$0xff]
        %v1065 = vld [vmem:[%s366 + $0x488] sm:$0xff]
        %v1066 = vld [vmem:[%s366 + $0x490] sm:$0xff]
        %v1067 = vld [vmem:[%s366 + $0x498] sm:$0xff]
        %v1068 = vld [vmem:[%s366 + $0x4a0] sm:$0xff]
        %v1069 = vld [vmem:[%s366 + $0x4a8] sm:$0xff]
        %v1070 = vld [vmem:[%s366 + $0x4b0] sm:$0xff]
        %v1071 = vld [vmem:[%s366 + $0x4b8] sm:$0xff]
        %v1072 = vld [vmem:[%s366 + $0x4c0] sm:$0xff]
        %v1073 = vld [vmem:[%s366 + $0x4c8] sm:$0xff]
        %v1074 = vld [vmem:[%s366 + $0x4d0] sm:$0xff]
        %v1075 = vld [vmem:[%s366 + $0x4d8] sm:$0xff]
        %v1076 = vld [vmem:[%s366 + $0x4e0] sm:$0xff]
        %v1077 = vld [vmem:[%s366 + $0x4e8] sm:$0xff]
        %v1078 = vld [vmem:[%s366 + $0x4f0] sm:$0xff]
        %v1079 = vld [vmem:[%s366 + $0x4f8] sm:$0xff]
        %v1080 = vld [vmem:[%s366 + $0x500] sm:$0xff]
        %v1081 = vld [vmem:[%s366 + $0x508] sm:$0xff]
        %v1082 = vld [vmem:[%s366 + $0x510] sm:$0xff]
        %v1083 = vld [vmem:[%s366 + $0x518] sm:$0xff]
        %v1084 = vld [vmem:[%s366 + $0x520] sm:$0xff]
        %v1085 = vld [vmem:[%s366 + $0x528] sm:$0xff]
        %v1086 = vld [vmem:[%s366 + $0x530] sm:$0xff]
        %v1087 = vld [vmem:[%s366 + $0x538] sm:$0xff]
        %v1088 = vld [vmem:[%s366 + $0x540] sm:$0xff]
        %v1089 = vld [vmem:[%s366 + $0x548] sm:$0xff]
        %v1090 = vld [vmem:[%s366 + $0x550] sm:$0xff]
        %v1091 = vld [vmem:[%s366 + $0x558] sm:$0xff]
        %v1092 = vld [vmem:[%s366 + $0x560] sm:$0xff]
        %v1093 = vld [vmem:[%s366 + $0x568] sm:$0xff]
        %v1094 = vld [vmem:[%s366 + $0x570] sm:$0xff]
        %v1095 = vld [vmem:[%s366 + $0x578] sm:$0xff]
        %v1096 = vld [vmem:[%s366 + $0x580] sm:$0xff]
        %v1097 = vld [vmem:[%s366 + $0x588] sm:$0xff]
        %v1098 = vld [vmem:[%s366 + $0x590] sm:$0xff]
        %v1099 = vld [vmem:[%s366 + $0x598] sm:$0xff]
        %v1100 = vld [vmem:[%s366 + $0x5a0] sm:$0xff]
        %v1101 = vld [vmem:[%s366 + $0x5a8] sm:$0xff]
        %v1102 = vld [vmem:[%s366 + $0x5b0] sm:$0xff]
        %v1103 = vld [vmem:[%s366 + $0x5b8] sm:$0xff]
        %v1104 = vld [vmem:[%s366 + $0x5c0] sm:$0xff]
        %v1105 = vld [vmem:[%s366 + $0x5c8] sm:$0xff]
        %v1106 = vld [vmem:[%s366 + $0x5d0] sm:$0xff]
        %v1107 = vld [vmem:[%s366 + $0x5d8] sm:$0xff]
        %v1108 = vld [vmem:[%s366 + $0x5e0] sm:$0xff]
        %v1109 = vld [vmem:[%s366 + $0x5e8] sm:$0xff]
        %v1110 = vld [vmem:[%s366 + $0x5f0] sm:$0xff]
        %v1111 = vld [vmem:[%s366 + $0x5f8] sm:$0xff]
        %v1112 = vld [vmem:[%s366 + $0x600] sm:$0xff]
        %v1113 = vld [vmem:[%s366 + $0x608] sm:$0xff]
        %v1114 = vld [vmem:[%s366 + $0x610] sm:$0xff]
        %v1115 = vld [vmem:[%s366 + $0x618] sm:$0xff]
        %v1116 = vld [vmem:[%s366 + $0x620] sm:$0xff]
        %v1117 = vld [vmem:[%s366 + $0x628] sm:$0xff]
        %v1118 = vld [vmem:[%s366 + $0x630] sm:$0xff]
        %v1119 = vld [vmem:[%s366 + $0x638] sm:$0xff]
        %v1120 = vld [vmem:[%s366 + $0x640] sm:$0xff]
        %v1121 = vld [vmem:[%s366 + $0x648] sm:$0xff]
        %v1122 = vld [vmem:[%s366 + $0x650] sm:$0xff]
        %v1123 = vld [vmem:[%s366 + $0x658] sm:$0xff]
        %v1124 = vld [vmem:[%s366 + $0x660] sm:$0xff]
        %v1125 = vld [vmem:[%s366 + $0x668] sm:$0xff]
        %v1126 = vld [vmem:[%s366 + $0x670] sm:$0xff]
        %v1127 = vld [vmem:[%s366 + $0x678] sm:$0xff]
        %v1128 = vld [vmem:[%s366 + $0x680] sm:$0xff]
        %v1129 = vld [vmem:[%s366 + $0x688] sm:$0xff]
        %v1130 = vld [vmem:[%s366 + $0x690] sm:$0xff]
        %v1131 = vld [vmem:[%s366 + $0x698] sm:$0xff]
        %v1132 = vld [vmem:[%s366 + $0x6a0] sm:$0xff]
        %v1133 = vld [vmem:[%s366 + $0x6a8] sm:$0xff]
        %v1134 = vld [vmem:[%s366 + $0x6b0] sm:$0xff]
        %v1135 = vld [vmem:[%s366 + $0x6b8] sm:$0xff]
        %v1136 = vld [vmem:[%s366 + $0x6c0] sm:$0xff]
        %v1137 = vld [vmem:[%s366 + $0x6c8] sm:$0xff]
        %v1138 = vld [vmem:[%s366 + $0x6d0] sm:$0xff]
        %v1139 = vld [vmem:[%s366 + $0x6d8] sm:$0xff]
        %v1140 = vld [vmem:[%s366 + $0x6e0] sm:$0xff]
        %v1141 = vld [vmem:[%s366 + $0x6e8] sm:$0xff]
        %v1142 = vld [vmem:[%s366 + $0x6f0] sm:$0xff]
        %v1143 = vld [vmem:[%s366 + $0x6f8] sm:$0xff]
        %v1144 = vld [vmem:[%s366 + $0x700] sm:$0xff]
        %v1145 = vld [vmem:[%s366 + $0x708] sm:$0xff]
        %v1146 = vld [vmem:[%s366 + $0x710] sm:$0xff]
        %v1147 = vld [vmem:[%s366 + $0x718] sm:$0xff]
        %v1148 = vld [vmem:[%s366 + $0x720] sm:$0xff]
        %v1149 = vld [vmem:[%s366 + $0x728] sm:$0xff]
        %v1150 = vld [vmem:[%s366 + $0x730] sm:$0xff]
        %v1151 = vld [vmem:[%s366 + $0x738] sm:$0xff]
        %v1152 = vld [vmem:[%s366 + $0x740] sm:$0xff]
        %v1153 = vld [vmem:[%s366 + $0x748] sm:$0xff]
        %v1154 = vld [vmem:[%s366 + $0x750] sm:$0xff]
        %v1155 = vld [vmem:[%s366 + $0x758] sm:$0xff]
        %v1156 = vld [vmem:[%s366 + $0x760] sm:$0xff]
        %v1157 = vld [vmem:[%s366 + $0x768] sm:$0xff]
        %v1158 = vld [vmem:[%s366 + $0x770] sm:$0xff]
        %v1159 = vld [vmem:[%s366 + $0x778] sm:$0xff]
        %v1160 = vld [vmem:[%s366 + $0x780] sm:$0xff]
        %v1161 = vld [vmem:[%s366 + $0x788] sm:$0xff]
        %v1162 = vld [vmem:[%s366 + $0x790] sm:$0xff]
        %v1163 = vld [vmem:[%s366 + $0x798] sm:$0xff]
        %v1164 = vld [vmem:[%s366 + $0x7a0] sm:$0xff]
        %v1165 = vld [vmem:[%s366 + $0x7a8] sm:$0xff]
        %v1166 = vld [vmem:[%s366 + $0x7b0] sm:$0xff]
        %v1167 = vld [vmem:[%s366 + $0x7b8] sm:$0xff]
        %v1168 = vld [vmem:[%s366 + $0x7c0] sm:$0xff]
        %v1169 = vld [vmem:[%s366 + $0x7c8] sm:$0xff]
        %v1170 = vld [vmem:[%s366 + $0x7d0] sm:$0xff]
        %v1171 = vld [vmem:[%s366 + $0x7d8] sm:$0xff]
        %v1172 = vld [vmem:[%s366 + $0x7e0] sm:$0xff]
        %v1173 = vld [vmem:[%s366 + $0x7e8] sm:$0xff]
        %v1174 = vld [vmem:[%s366 + $0x7f0] sm:$0xff]
        %v1175 = vld [vmem:[%s366 + $0x7f8] sm:$0xff]
        %v1176 = vld [vmem:[%s366 + $0x800] sm:$0xff]
        %v1177 = vld [vmem:[%s366 + $0x808] sm:$0xff]
        %v1178 = vld [vmem:[%s366 + $0x810] sm:$0xff]
        %v1179 = vld [vmem:[%s366 + $0x818] sm:$0xff]
        %v1180 = vld [vmem:[%s366 + $0x820] sm:$0xff]
        %v1181 = vld [vmem:[%s366 + $0x828] sm:$0xff]
        %v1182 = vld [vmem:[%s366 + $0x830] sm:$0xff]
        %v1183 = vld [vmem:[%s366 + $0x838] sm:$0xff]
        %v1184 = vld [vmem:[%s366 + $0x840] sm:$0xff]
        %v1185 = vld [vmem:[%s366 + $0x848] sm:$0xff]
        %v1186 = vld [vmem:[%s366 + $0x850] sm:$0xff]
        %v1187 = vld [vmem:[%s366 + $0x858] sm:$0xff]
        %v1188 = vld [vmem:[%s366 + $0x860] sm:$0xff]
        %v1189 = vld [vmem:[%s366 + $0x868] sm:$0xff]
        %v1190 = vld [vmem:[%s366 + $0x870] sm:$0xff]
        %v1191 = vld [vmem:[%s366 + $0x878] sm:$0xff]
        %v1192 = vld [vmem:[%s366 + $0x880] sm:$0xff]
        %v1193 = vld [vmem:[%s366 + $0x888] sm:$0xff]
        %v1194 = vld [vmem:[%s366 + $0x890] sm:$0xff]
        %v1195 = vld [vmem:[%s366 + $0x898] sm:$0xff]
        %v1196 = vld [vmem:[%s366 + $0x8a0] sm:$0xff]
        %v1197 = vld [vmem:[%s366 + $0x8a8] sm:$0xff]
        %v1198 = vld [vmem:[%s366 + $0x8b0] sm:$0xff]
        %v1199 = vld [vmem:[%s366 + $0x8b8] sm:$0xff]
        %v1200 = vld [vmem:[%s366 + $0x8c0] sm:$0xff]
        %v1201 = vld [vmem:[%s366 + $0x8c8] sm:$0xff]
        %v1202 = vld [vmem:[%s366 + $0x8d0] sm:$0xff]
        %v1203 = vld [vmem:[%s366 + $0x8d8] sm:$0xff]
        %v1204 = vld [vmem:[%s366 + $0x8e0] sm:$0xff]
        %v1205 = vld [vmem:[%s366 + $0x8e8] sm:$0xff]
        %v1206 = vld [vmem:[%s366 + $0x8f0] sm:$0xff]
        %v1207 = vld [vmem:[%s366 + $0x8f8] sm:$0xff]
        %v1208 = vld [vmem:[%s366 + $0x900] sm:$0xff]
        %v1209 = vld [vmem:[%s366 + $0x908] sm:$0xff]
        %v1210 = vld [vmem:[%s366 + $0x910] sm:$0xff]
        %v1211 = vld [vmem:[%s366 + $0x918] sm:$0xff]
        %v1212 = vld [vmem:[%s366 + $0x920] sm:$0xff]
        %v1213 = vld [vmem:[%s366 + $0x928] sm:$0xff]
        %v1214 = vld [vmem:[%s366 + $0x930] sm:$0xff]
        %v1215 = vld [vmem:[%s366 + $0x938] sm:$0xff]
        %v1216 = vld [vmem:[%s366 + $0x940] sm:$0xff]
        %v1217 = vld [vmem:[%s366 + $0x948] sm:$0xff]
        %v1218 = vld [vmem:[%s366 + $0x950] sm:$0xff]
        %v1219 = vld [vmem:[%s366 + $0x958] sm:$0xff]
        %v1220 = vld [vmem:[%s366 + $0x960] sm:$0xff]
        %v1221 = vld [vmem:[%s366 + $0x968] sm:$0xff]
        %v1222 = vld [vmem:[%s366 + $0x970] sm:$0xff]
        %v1223 = vld [vmem:[%s366 + $0x978] sm:$0xff]
        %v1224 = vld [vmem:[%s366 + $0x980] sm:$0xff]
        %v1225 = vld [vmem:[%s366 + $0x988] sm:$0xff]
        %v1226 = vld [vmem:[%s366 + $0x990] sm:$0xff]
        %v1227 = vld [vmem:[%s366 + $0x998] sm:$0xff]
        %v1228 = vld [vmem:[%s366 + $0x9a0] sm:$0xff]
        %v1229 = vld [vmem:[%s366 + $0x9a8] sm:$0xff]
        %v1230 = vld [vmem:[%s366 + $0x9b0] sm:$0xff]
        %v1231 = vld [vmem:[%s366 + $0x9b8] sm:$0xff]
        %v1232 = vld [vmem:[%s366 + $0x9c0] sm:$0xff]
        %v1233 = vld [vmem:[%s366 + $0x9c8] sm:$0xff]
        %v1234 = vld [vmem:[%s366 + $0x9d0] sm:$0xff]
        %v1235 = vld [vmem:[%s366 + $0x9d8] sm:$0xff]
        %v1236 = vld [vmem:[%s366 + $0x9e0] sm:$0xff]
        %v1237 = vld [vmem:[%s366 + $0x9e8] sm:$0xff]
        %v1238 = vld [vmem:[%s366 + $0x9f0] sm:$0xff]
        %v1239 = vld [vmem:[%s366 + $0x9f8] sm:$0xff]
        %v1240 = vld [vmem:[%s366 + $0xa00] sm:$0xff]
        %v1241 = vld [vmem:[%s366 + $0xa08] sm:$0xff]
        %v1242 = vld [vmem:[%s366 + $0xa10] sm:$0xff]
        %v1243 = vld [vmem:[%s366 + $0xa18] sm:$0xff]
        %v1244 = vld [vmem:[%s366 + $0xa20] sm:$0xff]
        %v1245 = vld [vmem:[%s366 + $0xa28] sm:$0xff]
        %v1246 = vld [vmem:[%s366 + $0xa30] sm:$0xff]
        %v1247 = vld [vmem:[%s366 + $0xa38] sm:$0xff]
        %v1248 = vld [vmem:[%s366 + $0xa40] sm:$0xff]
        %v1249 = vld [vmem:[%s366 + $0xa48] sm:$0xff]
        %v1250 = vld [vmem:[%s366 + $0xa50] sm:$0xff]
        %v1251 = vld [vmem:[%s366 + $0xa58] sm:$0xff]
        %v1252 = vld [vmem:[%s366 + $0xa60] sm:$0xff]
        %v1253 = vld [vmem:[%s366 + $0xa68] sm:$0xff]
        %v1254 = vld [vmem:[%s366 + $0xa70] sm:$0xff]
        %v1255 = vld [vmem:[%s366 + $0xa78] sm:$0xff]
        %v1256 = vld [vmem:[%s366 + $0xa80] sm:$0xff]
        %v1257 = vld [vmem:[%s366 + $0xa88] sm:$0xff]
        %v1258 = vld [vmem:[%s366 + $0xa90] sm:$0xff]
        %v1259 = vld [vmem:[%s366 + $0xa98] sm:$0xff]
        %v1260 = vld [vmem:[%s366 + $0xaa0] sm:$0xff]
        %v1261 = vld [vmem:[%s366 + $0xaa8] sm:$0xff]
        %v1262 = vld [vmem:[%s366 + $0xab0] sm:$0xff]
        %v1263 = vld [vmem:[%s366 + $0xab8] sm:$0xff]
        %v1264 = vld [vmem:[%s366 + $0xac0] sm:$0xff]
        %v1265 = vld [vmem:[%s366 + $0xac8] sm:$0xff]
        %v1266 = vld [vmem:[%s366 + $0xad0] sm:$0xff]
        %v1267 = vld [vmem:[%s366 + $0xad8] sm:$0xff]
        %v1268 = vld [vmem:[%s366 + $0xae0] sm:$0xff]
        %v1269 = vld [vmem:[%s366 + $0xae8] sm:$0xff]
        %v1270 = vld [vmem:[%s366 + $0xaf0] sm:$0xff]
        %v1271 = vld [vmem:[%s366 + $0xaf8] sm:$0xff]
        %v1272 = vld [vmem:[%s366 + $0xb00] sm:$0xff]
        %v1273 = vld [vmem:[%s366 + $0xb08] sm:$0xff]
        %v1274 = vld [vmem:[%s366 + $0xb10] sm:$0xff]
        %v1275 = vld [vmem:[%s366 + $0xb18] sm:$0xff]
        %v1276 = vld [vmem:[%s366 + $0xb20] sm:$0xff]
        %v1277 = vld [vmem:[%s366 + $0xb28] sm:$0xff]
        %v1278 = vld [vmem:[%s366 + $0xb30] sm:$0xff]
        %v1279 = vld [vmem:[%s366 + $0xb38] sm:$0xff]
        %v1280 = vld [vmem:[%s366 + $0xb40] sm:$0xff]
        %v1281 = vld [vmem:[%s366 + $0xb48] sm:$0xff]
        %v1282 = vld [vmem:[%s366 + $0xb50] sm:$0xff]
        %v1283 = vld [vmem:[%s366 + $0xb58] sm:$0xff]
        %v1284 = vld [vmem:[%s366 + $0xb60] sm:$0xff]
        %v1285 = vld [vmem:[%s366 + $0xb68] sm:$0xff]
        %v1286 = vld [vmem:[%s366 + $0xb70] sm:$0xff]
        %v1287 = vld [vmem:[%s366 + $0xb78] sm:$0xff]
        %v1288 = vld [vmem:[%s366 + $0xb80] sm:$0xff]
        %v1289 = vld [vmem:[%s366 + $0xb88] sm:$0xff]
        %v1290 = vld [vmem:[%s366 + $0xb90] sm:$0xff]
        %v1291 = vld [vmem:[%s366 + $0xb98] sm:$0xff]
        %v1292 = vld [vmem:[%s366 + $0xba0] sm:$0xff]
        %v1293 = vld [vmem:[%s366 + $0xba8] sm:$0xff]
        %v1294 = vld [vmem:[%s366 + $0xbb0] sm:$0xff]
        %v1295 = vld [vmem:[%s366 + $0xbb8] sm:$0xff]
        %v1296 = vld [vmem:[%s366 + $0xbc0] sm:$0xff]
        %v1297 = vld [vmem:[%s366 + $0xbc8] sm:$0xff]
        %v1298 = vld [vmem:[%s366 + $0xbd0] sm:$0xff]
        %v1299 = vld [vmem:[%s366 + $0xbd8] sm:$0xff]
        %v1300 = vld [vmem:[%s366 + $0xbe0] sm:$0xff]
        %v1301 = vld [vmem:[%s366 + $0xbe8] sm:$0xff]
        %v1302 = vld [vmem:[%s366 + $0xbf0] sm:$0xff]
        %v1303 = vld [vmem:[%s366 + $0xbf8] sm:$0xff]
        %v1304 = vld [vmem:[%s366 + $0xc00] sm:$0xff]
        %v1305 = vld [vmem:[%s366 + $0xc08] sm:$0xff]
        %v1306 = vld [vmem:[%s366 + $0xc10] sm:$0xff]
        %v1307 = vld [vmem:[%s366 + $0xc18] sm:$0xff]
        %v1308 = vld [vmem:[%s366 + $0xc20] sm:$0xff]
        %v1309 = vld [vmem:[%s366 + $0xc28] sm:$0xff]
        %v1310 = vld [vmem:[%s366 + $0xc30] sm:$0xff]
        %v1311 = vld [vmem:[%s366 + $0xc38] sm:$0xff]
        %v1312 = vld [vmem:[%s366 + $0xc40] sm:$0xff]
        %v1313 = vld [vmem:[%s366 + $0xc48] sm:$0xff]
        %v1314 = vld [vmem:[%s366 + $0xc50] sm:$0xff]
        %v1315 = vld [vmem:[%s366 + $0xc58] sm:$0xff]
        %v1316 = vld [vmem:[%s366 + $0xc60] sm:$0xff]
        %v1317 = vld [vmem:[%s366 + $0xc68] sm:$0xff]
        %v1318 = vld [vmem:[%s366 + $0xc70] sm:$0xff]
        %v1319 = vld [vmem:[%s366 + $0xc78] sm:$0xff]
        %v1320 = vld [vmem:[%s366 + $0xc80] sm:$0xff]
        %v1321 = vld [vmem:[%s366 + $0xc88] sm:$0xff]
        %v1322 = vld [vmem:[%s366 + $0xc90] sm:$0xff]
        %v1323 = vld [vmem:[%s366 + $0xc98] sm:$0xff]
        %v1324 = vld [vmem:[%s366 + $0xca0] sm:$0xff]
        %v1325 = vld [vmem:[%s366 + $0xca8] sm:$0xff]
        %v1326 = vld [vmem:[%s366 + $0xcb0] sm:$0xff]
        %v1327 = vld [vmem:[%s366 + $0xcb8] sm:$0xff]
        %v1328 = vld [vmem:[%s366 + $0xcc0] sm:$0xff]
        %v1329 = vld [vmem:[%s366 + $0xcc8] sm:$0xff]
        %v1330 = vld [vmem:[%s366 + $0xcd0] sm:$0xff]
        %v1331 = vld [vmem:[%s366 + $0xcd8] sm:$0xff]
        %v1332 = vld [vmem:[%s366 + $0xce0] sm:$0xff]
        %v1333 = vld [vmem:[%s366 + $0xce8] sm:$0xff]
        %v1334 = vld [vmem:[%s366 + $0xcf0] sm:$0xff]
        %v1335 = vld [vmem:[%s366 + $0xcf8] sm:$0xff]
        %v1336 = vld [vmem:[%s366 + $0xd00] sm:$0xff]
        %v1337 = vld [vmem:[%s366 + $0xd08] sm:$0xff]
        %v1338 = vld [vmem:[%s366 + $0xd10] sm:$0xff]
        %v1339 = vld [vmem:[%s366 + $0xd18] sm:$0xff]
        %v1340 = vld [vmem:[%s366 + $0xd20] sm:$0xff]
        %v1341 = vld [vmem:[%s366 + $0xd28] sm:$0xff]
        %v1342 = vld [vmem:[%s366 + $0xd30] sm:$0xff]
        %v1343 = vld [vmem:[%s366 + $0xd38] sm:$0xff]
        %v1344 = vld [vmem:[%s366 + $0xd40] sm:$0xff]
        %v1345 = vld [vmem:[%s366 + $0xd48] sm:$0xff]
        %v1346 = vld [vmem:[%s366 + $0xd50] sm:$0xff]
        %v1347 = vld [vmem:[%s366 + $0xd58] sm:$0xff]
        %v1348 = vld [vmem:[%s366 + $0xd60] sm:$0xff]
        %v1349 = vld [vmem:[%s366 + $0xd68] sm:$0xff]
        %v1350 = vld [vmem:[%s366 + $0xd70] sm:$0xff]
        %v1351 = vld [vmem:[%s366 + $0xd78] sm:$0xff]
        %v1352 = vld [vmem:[%s366 + $0xd80] sm:$0xff]
        %v1353 = vld [vmem:[%s366 + $0xd88] sm:$0xff]
        %v1354 = vld [vmem:[%s366 + $0xd90] sm:$0xff]
        %v1355 = vld [vmem:[%s366 + $0xd98] sm:$0xff]
        %v1356 = vld [vmem:[%s366 + $0xda0] sm:$0xff]
        %v1357 = vld [vmem:[%s366 + $0xda8] sm:$0xff]
        %v1358 = vld [vmem:[%s366 + $0xdb0] sm:$0xff]
        %v1359 = vld [vmem:[%s366 + $0xdb8] sm:$0xff]
        %v1360 = vld [vmem:[%s366 + $0xdc0] sm:$0xff]
        %v1361 = vld [vmem:[%s366 + $0xdc8] sm:$0xff]
        %v1362 = vld [vmem:[%s366 + $0xdd0] sm:$0xff]
        %v1363 = vld [vmem:[%s366 + $0xdd8] sm:$0xff]
        %v1364 = vld [vmem:[%s366 + $0xde0] sm:$0xff]
        %v1365 = vld [vmem:[%s366 + $0xde8] sm:$0xff]
        %v1366 = vld [vmem:[%s366 + $0xdf0] sm:$0xff]
        %v1367 = vld [vmem:[%s366 + $0xdf8] sm:$0xff]
        %v1368 = vld [vmem:[%s366 + $0xe00] sm:$0xff]
        %v1369 = vld [vmem:[%s366 + $0xe08] sm:$0xff]
        %v1370 = vld [vmem:[%s366 + $0xe10] sm:$0xff]
        %v1371 = vld [vmem:[%s366 + $0xe18] sm:$0xff]
        %v1372 = vld [vmem:[%s366 + $0xe20] sm:$0xff]
        %v1373 = vld [vmem:[%s366 + $0xe28] sm:$0xff]
        %v1374 = vld [vmem:[%s366 + $0xe30] sm:$0xff]
        %v1375 = vld [vmem:[%s366 + $0xe38] sm:$0xff]
        %v1376 = vld [vmem:[%s366 + $0xe40] sm:$0xff]
        %v1377 = vld [vmem:[%s366 + $0xe48] sm:$0xff]
        %v1378 = vld [vmem:[%s366 + $0xe50] sm:$0xff]
        %v1379 = vld [vmem:[%s366 + $0xe58] sm:$0xff]
        %v1380 = vld [vmem:[%s366 + $0xe60] sm:$0xff]
        %v1381 = vld [vmem:[%s366 + $0xe68] sm:$0xff]
        %v1382 = vld [vmem:[%s366 + $0xe70] sm:$0xff]
        %v1383 = vld [vmem:[%s366 + $0xe78] sm:$0xff]
        %v1384 = vld [vmem:[%s366 + $0xe80] sm:$0xff]
        %v1385 = vld [vmem:[%s366 + $0xe88] sm:$0xff]
        %v1386 = vld [vmem:[%s366 + $0xe90] sm:$0xff]
        %v1387 = vld [vmem:[%s366 + $0xe98] sm:$0xff]
        %v1388 = vld [vmem:[%s366 + $0xea0] sm:$0xff]
        %v1389 = vld [vmem:[%s366 + $0xea8] sm:$0xff]
        %v1390 = vld [vmem:[%s366 + $0xeb0] sm:$0xff]
        %v1391 = vld [vmem:[%s366 + $0xeb8] sm:$0xff]
        %v1392 = vld [vmem:[%s366 + $0xec0] sm:$0xff]
        %v1393 = vld [vmem:[%s366 + $0xec8] sm:$0xff]
        %v1394 = vld [vmem:[%s366 + $0xed0] sm:$0xff]
        %v1395 = vld [vmem:[%s366 + $0xed8] sm:$0xff]
        %v1396 = vld [vmem:[%s366 + $0xee0] sm:$0xff]
        %v1397 = vld [vmem:[%s366 + $0xee8] sm:$0xff]
        %v1398 = vld [vmem:[%s366 + $0xef0] sm:$0xff]
        %v1399 = vld [vmem:[%s366 + $0xef8] sm:$0xff]
        %v1400 = vld [vmem:[%s366 + $0xf00] sm:$0xff]
        %v1401 = vld [vmem:[%s366 + $0xf08] sm:$0xff]
        %v1402 = vld [vmem:[%s366 + $0xf10] sm:$0xff]
        %v1403 = vld [vmem:[%s366 + $0xf18] sm:$0xff]
        %v1404 = vld [vmem:[%s366 + $0xf20] sm:$0xff]
        %v1405 = vld [vmem:[%s366 + $0xf28] sm:$0xff]
        %v1406 = vld [vmem:[%s366 + $0xf30] sm:$0xff]
        %v1407 = vld [vmem:[%s366 + $0xf38] sm:$0xff]
        %v1408 = vld [vmem:[%s366 + $0xf40] sm:$0xff]
        %v1409 = vld [vmem:[%s366 + $0xf48] sm:$0xff]
        %v1410 = vld [vmem:[%s366 + $0xf50] sm:$0xff]
        %v1411 = vld [vmem:[%s366 + $0xf58] sm:$0xff]
        %v1412 = vld [vmem:[%s366 + $0xf60] sm:$0xff]
        %v1413 = vld [vmem:[%s366 + $0xf68] sm:$0xff]
        %v1414 = vld [vmem:[%s366 + $0xf70] sm:$0xff]
        %v1415 = vld [vmem:[%s366 + $0xf78] sm:$0xff]
        %v1416 = vld [vmem:[%s366 + $0xf80] sm:$0xff]
        %v1417 = vld [vmem:[%s366 + $0xf88] sm:$0xff]
        %v1418 = vld [vmem:[%s366 + $0xf90] sm:$0xff]
        %v1419 = vld [vmem:[%s366 + $0xf98] sm:$0xff]
        %v1420 = vld [vmem:[%s366 + $0xfa0] sm:$0xff]
        %v1421 = vld [vmem:[%s366 + $0xfa8] sm:$0xff]
        %v1422 = vld [vmem:[%s366 + $0xfb0] sm:$0xff]
        %v1423 = vld [vmem:[%s366 + $0xfb8] sm:$0xff]
        %v1424 = vld [vmem:[%s366 + $0xfc0] sm:$0xff]
        %v1425 = vld [vmem:[%s366 + $0xfc8] sm:$0xff]
        %v1426 = vld [vmem:[%s366 + $0xfd0] sm:$0xff]
        %v1427 = vld [vmem:[%s366 + $0xfd8] sm:$0xff]
        %v1428 = vld [vmem:[%s366 + $0xfe0] sm:$0xff]
        %v1429 = vld [vmem:[%s366 + $0xfe8] sm:$0xff]
        %v1430 = vld [vmem:[%s366 + $0xff0] sm:$0xff]
        %v1431 = vld [vmem:[%s366 + $0xff8] sm:$0xff]
        %v1432 = vld [vmem:[%s366 + $0x1000] sm:$0xff]
        %v1433 = vld [vmem:[%s366 + $0x1008] sm:$0xff]
        %v1434 = vld [vmem:[%s366 + $0x1010] sm:$0xff]
        %v1435 = vld [vmem:[%s366 + $0x1018] sm:$0xff]
        %v1436 = vld [vmem:[%s366 + $0x1020] sm:$0xff]
        %v1437 = vld [vmem:[%s366 + $0x1028] sm:$0xff]
        %v1438 = vld [vmem:[%s366 + $0x1030] sm:$0xff]
        %v1439 = vld [vmem:[%s366 + $0x1038] sm:$0xff]
        %v1440 = vld [vmem:[%s366 + $0x1040] sm:$0xff]
        %v1441 = vld [vmem:[%s366 + $0x1048] sm:$0xff]
        %v1442 = vld [vmem:[%s366 + $0x1050] sm:$0xff]
        %v1443 = vld [vmem:[%s366 + $0x1058] sm:$0xff]
        %v1444 = vld [vmem:[%s366 + $0x1060] sm:$0xff]
        %v1445 = vld [vmem:[%s366 + $0x1068] sm:$0xff]
        %v1446 = vld [vmem:[%s366 + $0x1070] sm:$0xff]
        %v1447 = vld [vmem:[%s366 + $0x1078] sm:$0xff]
        %v1448 = vld [vmem:[%s366 + $0x1080] sm:$0xff]
        %v1449 = vld [vmem:[%s366 + $0x1088] sm:$0xff]
        %v1450 = vld [vmem:[%s366 + $0x1090] sm:$0xff]
        %v1451 = vld [vmem:[%s366 + $0x1098] sm:$0xff]
        %v1452 = vld [vmem:[%s366 + $0x10a0] sm:$0xff]
        %v1453 = vld [vmem:[%s366 + $0x10a8] sm:$0xff]
        %v1454 = vld [vmem:[%s366 + $0x10b0] sm:$0xff]
        %v1455 = vld [vmem:[%s366 + $0x10b8] sm:$0xff]
        %v1456 = vld [vmem:[%s366 + $0x10c0] sm:$0xff]
        %v1457 = vld [vmem:[%s366 + $0x10c8] sm:$0xff]
        %v1458 = vld [vmem:[%s366 + $0x10d0] sm:$0xff]
        %v1459 = vld [vmem:[%s366 + $0x10d8] sm:$0xff]
        %v1460 = vld [vmem:[%s366 + $0x10e0] sm:$0xff]
        %v1461 = vld [vmem:[%s366 + $0x10e8] sm:$0xff]
        %v1462 = vld [vmem:[%s366 + $0x10f0] sm:$0xff]
        %v1463 = vld [vmem:[%s366 + $0x10f8] sm:$0xff]
        %v1464 = vld [vmem:[%s366 + $0x1100] sm:$0xff]
        %v1465 = vld [vmem:[%s366 + $0x1108] sm:$0xff]
        %v1466 = vld [vmem:[%s366 + $0x1110] sm:$0xff]
        %v1467 = vld [vmem:[%s366 + $0x1118] sm:$0xff]
        %v1468 = vld [vmem:[%s366 + $0x1120] sm:$0xff]
        %v1469 = vld [vmem:[%s366 + $0x1128] sm:$0xff]
        %v1470 = vld [vmem:[%s366 + $0x1130] sm:$0xff]
        %v1471 = vld [vmem:[%s366 + $0x1138] sm:$0xff]
        %v1472 = vld [vmem:[%s366 + $0x1140] sm:$0xff]
        %v1473 = vld [vmem:[%s366 + $0x1148] sm:$0xff]
        %v1474 = vld [vmem:[%s366 + $0x1150] sm:$0xff]
        %v1475 = vld [vmem:[%s366 + $0x1158] sm:$0xff]
        %v1476 = vld [vmem:[%s366 + $0x1160] sm:$0xff]
        %v1477 = vld [vmem:[%s366 + $0x1168] sm:$0xff]
        %v1478 = vld [vmem:[%s366 + $0x1170] sm:$0xff]
        %v1479 = vld [vmem:[%s366 + $0x1178] sm:$0xff]
        %v1480 = vld [vmem:[%s366 + $0x1180] sm:$0xff]
        %v1481 = vld [vmem:[%s366 + $0x1188] sm:$0xff]
        %v1482 = vld [vmem:[%s366 + $0x1190] sm:$0xff]
        %v1483 = vld [vmem:[%s366 + $0x1198] sm:$0xff]
        %v1484 = vld [vmem:[%s366 + $0x11a0] sm:$0xff]
        %v1485 = vld [vmem:[%s366 + $0x11a8] sm:$0xff]
        %v1486 = vld [vmem:[%s366 + $0x11b0] sm:$0xff]
        %v1487 = vld [vmem:[%s366 + $0x11b8] sm:$0xff]
        %v1488 = vld [vmem:[%s366 + $0x11c0] sm:$0xff]
        %v1489 = vld [vmem:[%s366 + $0x11c8] sm:$0xff]
        %v1490 = vld [vmem:[%s366 + $0x11d0] sm:$0xff]
        %v1491 = vld [vmem:[%s366 + $0x11d8] sm:$0xff]
        %v1492 = vld [vmem:[%s366 + $0x11e0] sm:$0xff]
        %v1493 = vld [vmem:[%s366 + $0x11e8] sm:$0xff]
        %v1494 = vld [vmem:[%s366 + $0x11f0] sm:$0xff]
        %v1495 = vld [vmem:[%s366 + $0x11f8] sm:$0xff]
        %v1496 = vld [vmem:[%s366 + $0x1200] sm:$0xff]
        %v1497 = vld [vmem:[%s366 + $0x1208] sm:$0xff]
        %v1498 = vld [vmem:[%s366 + $0x1210] sm:$0xff]
        %v1499 = vld [vmem:[%s366 + $0x1218] sm:$0xff]
        %v1500 = vld [vmem:[%s366 + $0x1220] sm:$0xff]
        %v1501 = vld [vmem:[%s366 + $0x1228] sm:$0xff]
        %v1502 = vld [vmem:[%s366 + $0x1230] sm:$0xff]
        %v1503 = vld [vmem:[%s366 + $0x1238] sm:$0xff]
        %v1504 = vld [vmem:[%s366 + $0x1240] sm:$0xff]
        %v1505 = vld [vmem:[%s366 + $0x1248] sm:$0xff]
        %v1506 = vld [vmem:[%s366 + $0x1250] sm:$0xff]
        %v1507 = vld [vmem:[%s366 + $0x1258] sm:$0xff]
        %v1508 = vld [vmem:[%s366 + $0x1260] sm:$0xff]
        %v1509 = vld [vmem:[%s366 + $0x1268] sm:$0xff]
        %v1510 = vld [vmem:[%s366 + $0x1270] sm:$0xff]
        %v1511 = vld [vmem:[%s366 + $0x1278] sm:$0xff]
        %v1512 = vld [vmem:[%s366 + $0x1280] sm:$0xff]
        %v1513 = vld [vmem:[%s366 + $0x1288] sm:$0xff]
        %v1514 = vld [vmem:[%s366 + $0x1290] sm:$0xff]
        %v1515 = vld [vmem:[%s366 + $0x1298] sm:$0xff]
        %v1516 = vld [vmem:[%s366 + $0x12a0] sm:$0xff]
        %v1517 = vld [vmem:[%s366 + $0x12a8] sm:$0xff]
        %v1518 = vld [vmem:[%s366 + $0x12b0] sm:$0xff]
        %v1519 = vld [vmem:[%s366 + $0x12b8] sm:$0xff]
        %v1520 = vld [vmem:[%s366 + $0x12c0] sm:$0xff]
        %v1521 = vld [vmem:[%s366 + $0x12c8] sm:$0xff]
        %v1522 = vld [vmem:[%s366 + $0x12d0] sm:$0xff]
        %v1523 = vld [vmem:[%s366 + $0x12d8] sm:$0xff]
        %v1524 = vld [vmem:[%s366 + $0x12e0] sm:$0xff]
        %v1525 = vld [vmem:[%s366 + $0x12e8] sm:$0xff]
        %v1526 = vld [vmem:[%s366 + $0x12f0] sm:$0xff]
        %v1527 = vld [vmem:[%s366 + $0x12f8] sm:$0xff]
        %v1528 = vld [vmem:[%s366 + $0x1300] sm:$0xff]
        %v1529 = vld [vmem:[%s366 + $0x1308] sm:$0xff]
        %v1530 = vld [vmem:[%s366 + $0x1310] sm:$0xff]
        %v1531 = vld [vmem:[%s366 + $0x1318] sm:$0xff]
        %v1532 = vld [vmem:[%s366 + $0x1320] sm:$0xff]
        %v1533 = vld [vmem:[%s366 + $0x1328] sm:$0xff]
        %v1534 = vld [vmem:[%s366 + $0x1330] sm:$0xff]
        %v1535 = vld [vmem:[%s366 + $0x1338] sm:$0xff]
        %v1536 = vld [vmem:[%s366 + $0x1340] sm:$0xff]
        %v1537 = vld [vmem:[%s366 + $0x1348] sm:$0xff]
        %v1538 = vld [vmem:[%s366 + $0x1350] sm:$0xff]
        %v1539 = vld [vmem:[%s366 + $0x1358] sm:$0xff]
        %v1540 = vld [vmem:[%s366 + $0x1360] sm:$0xff]
        %v1541 = vld [vmem:[%s366 + $0x1368] sm:$0xff]
        %v1542 = vld [vmem:[%s366 + $0x1370] sm:$0xff]
        %v1543 = vld [vmem:[%s366 + $0x1378] sm:$0xff]
        %v1544 = vld [vmem:[%s366 + $0x1380] sm:$0xff]
        %v1545 = vld [vmem:[%s366 + $0x1388] sm:$0xff]
        %v1546 = vld [vmem:[%s366 + $0x1390] sm:$0xff]
        %v1547 = vld [vmem:[%s366 + $0x1398] sm:$0xff]
        %v1548 = vld [vmem:[%s366 + $0x13a0] sm:$0xff]
        %v1549 = vld [vmem:[%s366 + $0x13a8] sm:$0xff]
        %v1550 = vld [vmem:[%s366 + $0x13b0] sm:$0xff]
        %v1551 = vld [vmem:[%s366 + $0x13b8] sm:$0xff]
        %v1552 = vld [vmem:[%s366 + $0x13c0] sm:$0xff]
        %v1553 = vld [vmem:[%s366 + $0x13c8] sm:$0xff]
        %v1554 = vld [vmem:[%s366 + $0x13d0] sm:$0xff]
        %v1555 = vld [vmem:[%s366 + $0x13d8] sm:$0xff]
        %v1556 = vld [vmem:[%s366 + $0x13e0] sm:$0xff]
        %v1557 = vld [vmem:[%s366 + $0x13e8] sm:$0xff]
        %v1558 = vld [vmem:[%s366 + $0x13f0] sm:$0xff]
        %v1559 = vld [vmem:[%s366 + $0x13f8] sm:$0xff]
        %v1560 = vld [vmem:[%s366 + $0x1400] sm:$0xff]
        %v1561 = vld [vmem:[%s366 + $0x1408] sm:$0xff]
        %v1562 = vld [vmem:[%s366 + $0x1410] sm:$0xff]
        %v1563 = vld [vmem:[%s366 + $0x1418] sm:$0xff]
        %v1564 = vld [vmem:[%s366 + $0x1420] sm:$0xff]
        %v1565 = vld [vmem:[%s366 + $0x1428] sm:$0xff]
        %v1566 = vld [vmem:[%s366 + $0x1430] sm:$0xff]
        %v1567 = vld [vmem:[%s366 + $0x1438] sm:$0xff]
        %v1568 = vld [vmem:[%s366 + $0x1440] sm:$0xff]
        %v1569 = vld [vmem:[%s366 + $0x1448] sm:$0xff]
        %v1570 = vld [vmem:[%s366 + $0x1450] sm:$0xff]
        %v1571 = vld [vmem:[%s366 + $0x1458] sm:$0xff]
        %v1572 = vld [vmem:[%s366 + $0x1460] sm:$0xff]
        %v1573 = vld [vmem:[%s366 + $0x1468] sm:$0xff]
        %v1574 = vld [vmem:[%s366 + $0x1470] sm:$0xff]
        %v1575 = vld [vmem:[%s366 + $0x1478] sm:$0xff]
        %v1576 = vld [vmem:[%s366 + $0x1480] sm:$0xff]
        %v1577 = vld [vmem:[%s366 + $0x1488] sm:$0xff]
        %v1578 = vld [vmem:[%s366 + $0x1490] sm:$0xff]
        %v1579 = vld [vmem:[%s366 + $0x1498] sm:$0xff]
        %v1580 = vld [vmem:[%s366 + $0x14a0] sm:$0xff]
        %v1581 = vld [vmem:[%s366 + $0x14a8] sm:$0xff]
        %v1582 = vld [vmem:[%s366 + $0x14b0] sm:$0xff]
        %v1583 = vld [vmem:[%s366 + $0x14b8] sm:$0xff]
        %v1584 = vld [vmem:[%s366 + $0x14c0] sm:$0xff]
        %v1585 = vld [vmem:[%s366 + $0x14c8] sm:$0xff]
        %v1586 = vld [vmem:[%s366 + $0x14d0] sm:$0xff]
        %v1587 = vld [vmem:[%s366 + $0x14d8] sm:$0xff]
        %v1588 = vld [vmem:[%s366 + $0x14e0] sm:$0xff]
        %v1589 = vld [vmem:[%s366 + $0x14e8] sm:$0xff]
        %v1590 = vld [vmem:[%s366 + $0x14f0] sm:$0xff]
        %v1591 = vld [vmem:[%s366 + $0x14f8] sm:$0xff]
        %v1592 = vld [vmem:[%s366 + $0x1500] sm:$0xff]
        %v1593 = vld [vmem:[%s366 + $0x1508] sm:$0xff]
        %v1594 = vld [vmem:[%s366 + $0x1510] sm:$0xff]
        %v1595 = vld [vmem:[%s366 + $0x1518] sm:$0xff]
        %v1596 = vld [vmem:[%s366 + $0x1520] sm:$0xff]
        %v1597 = vld [vmem:[%s366 + $0x1528] sm:$0xff]
        %v1598 = vld [vmem:[%s366 + $0x1530] sm:$0xff]
        %v1599 = vld [vmem:[%s366 + $0x1538] sm:$0xff]
        %v1600 = vld [vmem:[%s366 + $0x1540] sm:$0xff]
        %v1601 = vld [vmem:[%s366 + $0x1548] sm:$0xff]
        %v1602 = vld [vmem:[%s366 + $0x1550] sm:$0xff]
        %v1603 = vld [vmem:[%s366 + $0x1558] sm:$0xff]
        %v1604 = vld [vmem:[%s366 + $0x1560] sm:$0xff]
        %v1605 = vld [vmem:[%s366 + $0x1568] sm:$0xff]
        %v1606 = vld [vmem:[%s366 + $0x1570] sm:$0xff]
        %v1607 = vld [vmem:[%s366 + $0x1578] sm:$0xff]
        %v1608 = vld [vmem:[%s366 + $0x1580] sm:$0xff]
        %v1609 = vld [vmem:[%s366 + $0x1588] sm:$0xff]
        %v1610 = vld [vmem:[%s366 + $0x1590] sm:$0xff]
        %v1611 = vld [vmem:[%s366 + $0x1598] sm:$0xff]
        %v1612 = vld [vmem:[%s366 + $0x15a0] sm:$0xff]
        %v1613 = vld [vmem:[%s366 + $0x15a8] sm:$0xff]
        %v1614 = vld [vmem:[%s366 + $0x15b0] sm:$0xff]
        %v1615 = vld [vmem:[%s366 + $0x15b8] sm:$0xff]
        %v1616 = vld [vmem:[%s366 + $0x15c0] sm:$0xff]
        %v1617 = vld [vmem:[%s366 + $0x15c8] sm:$0xff]
        %v1618 = vld [vmem:[%s366 + $0x15d0] sm:$0xff]
        %v1619 = vld [vmem:[%s366 + $0x15d8] sm:$0xff]
        %v1620 = vld [vmem:[%s366 + $0x15e0] sm:$0xff]
        %v1621 = vld [vmem:[%s366 + $0x15e8] sm:$0xff]
        %v1622 = vld [vmem:[%s366 + $0x15f0] sm:$0xff]
        %v1623 = vld [vmem:[%s366 + $0x15f8] sm:$0xff]
        %v1624 = vld [vmem:[%s366 + $0x1600] sm:$0xff]
        %v1625 = vld [vmem:[%s366 + $0x1608] sm:$0xff]
        %v1626 = vld [vmem:[%s366 + $0x1610] sm:$0xff]
        %v1627 = vld [vmem:[%s366 + $0x1618] sm:$0xff]
        %v1628 = vld [vmem:[%s366 + $0x1620] sm:$0xff]
        %v1629 = vld [vmem:[%s366 + $0x1628] sm:$0xff]
        %v1630 = vld [vmem:[%s366 + $0x1630] sm:$0xff]
        %v1631 = vld [vmem:[%s366 + $0x1638] sm:$0xff]
        %v1632 = vld [vmem:[%s366 + $0x1640] sm:$0xff]
        %v1633 = vld [vmem:[%s366 + $0x1648] sm:$0xff]
        %v1634 = vld [vmem:[%s366 + $0x1650] sm:$0xff]
        %v1635 = vld [vmem:[%s366 + $0x1658] sm:$0xff]
        %v1636 = vld [vmem:[%s366 + $0x1660] sm:$0xff]
        %v1637 = vld [vmem:[%s366 + $0x1668] sm:$0xff]
        %v1638 = vld [vmem:[%s366 + $0x1670] sm:$0xff]
        %v1639 = vld [vmem:[%s366 + $0x1678] sm:$0xff]
        %v1640 = vld [vmem:[%s366 + $0x1680] sm:$0xff]
        %v1641 = vld [vmem:[%s366 + $0x1688] sm:$0xff]
        %v1642 = vld [vmem:[%s366 + $0x1690] sm:$0xff]
        %v1643 = vld [vmem:[%s366 + $0x1698] sm:$0xff]
        %v1644 = vld [vmem:[%s366 + $0x16a0] sm:$0xff]
        %v1645 = vld [vmem:[%s366 + $0x16a8] sm:$0xff]
        %v1646 = vld [vmem:[%s366 + $0x16b0] sm:$0xff]
        %v1647 = vld [vmem:[%s366 + $0x16b8] sm:$0xff]
        %v1648 = vld [vmem:[%s366 + $0x16c0] sm:$0xff]
        %v1649 = vld [vmem:[%s366 + $0x16c8] sm:$0xff]
        %v1650 = vld [vmem:[%s366 + $0x16d0] sm:$0xff]
        %v1651 = vld [vmem:[%s366 + $0x16d8] sm:$0xff]
        %v1652 = vld [vmem:[%s366 + $0x16e0] sm:$0xff]
        %v1653 = vld [vmem:[%s366 + $0x16e8] sm:$0xff]
        %v1654 = vld [vmem:[%s366 + $0x16f0] sm:$0xff]
        %v1655 = vld [vmem:[%s366 + $0x16f8] sm:$0xff]
        %v1656 = vld [vmem:[%s366 + $0x1700] sm:$0xff]
        %v1657 = vld [vmem:[%s366 + $0x1708] sm:$0xff]
        %v1658 = vld [vmem:[%s366 + $0x1710] sm:$0xff]
        %v1659 = vld [vmem:[%s366 + $0x1718] sm:$0xff]
        %v1660 = vld [vmem:[%s366 + $0x1720] sm:$0xff]
        %v1661 = vld [vmem:[%s366 + $0x1728] sm:$0xff]
        %v1662 = vld [vmem:[%s366 + $0x1730] sm:$0xff]
        %v1663 = vld [vmem:[%s366 + $0x1738] sm:$0xff]
        %v1664 = vld [vmem:[%s366 + $0x1740] sm:$0xff]
        %v1665 = vld [vmem:[%s366 + $0x1748] sm:$0xff]
        %v1666 = vld [vmem:[%s366 + $0x1750] sm:$0xff]
        %v1667 = vld [vmem:[%s366 + $0x1758] sm:$0xff]
        %v1668 = vld [vmem:[%s366 + $0x1760] sm:$0xff]
        %v1669 = vld [vmem:[%s366 + $0x1768] sm:$0xff]
        %v1670 = vld [vmem:[%s366 + $0x1770] sm:$0xff]
        %v1671 = vld [vmem:[%s366 + $0x1778] sm:$0xff]
        %v1672 = vld [vmem:[%s366 + $0x1780] sm:$0xff]
        %v1673 = vld [vmem:[%s366 + $0x1788] sm:$0xff]
        %v1674 = vld [vmem:[%s366 + $0x1790] sm:$0xff]
        %v1675 = vld [vmem:[%s366 + $0x1798] sm:$0xff]
        %v1676 = vld [vmem:[%s366 + $0x17a0] sm:$0xff]
        %v1677 = vld [vmem:[%s366 + $0x17a8] sm:$0xff]
        %v1678 = vld [vmem:[%s366 + $0x17b0] sm:$0xff]
        %v1679 = vld [vmem:[%s366 + $0x17b8] sm:$0xff]
        %v1680 = vld [vmem:[%s366 + $0x17c0] sm:$0xff]
        %v1681 = vld [vmem:[%s366 + $0x17c8] sm:$0xff]
        %v1682 = vld [vmem:[%s366 + $0x17d0] sm:$0xff]
        %v1683 = vld [vmem:[%s366 + $0x17d8] sm:$0xff]
        %v1684 = vld [vmem:[%s366 + $0x17e0] sm:$0xff]
        %v1685 = vld [vmem:[%s366 + $0x17e8] sm:$0xff]
        %v1686 = vld [vmem:[%s366 + $0x17f0] sm:$0xff]
        %v1687 = vld [vmem:[%s366 + $0x17f8] sm:$0xff]
        %v1688 = vld [vmem:[%s366 + $0x1800] sm:$0xff]
        %v1689 = vld [vmem:[%s366 + $0x1808] sm:$0xff]
        %v1690 = vld [vmem:[%s366 + $0x1810] sm:$0xff]
        %v1691 = vld [vmem:[%s366 + $0x1818] sm:$0xff]
        %v1692 = vld [vmem:[%s366 + $0x1820] sm:$0xff]
        %v1693 = vld [vmem:[%s366 + $0x1828] sm:$0xff]
        %v1694 = vld [vmem:[%s366 + $0x1830] sm:$0xff]
        %v1695 = vld [vmem:[%s366 + $0x1838] sm:$0xff]
        %v1696 = vld [vmem:[%s366 + $0x1840] sm:$0xff]
        %v1697 = vld [vmem:[%s366 + $0x1848] sm:$0xff]
        %v1698 = vld [vmem:[%s366 + $0x1850] sm:$0xff]
        %v1699 = vld [vmem:[%s366 + $0x1858] sm:$0xff]
        %v1700 = vld [vmem:[%s366 + $0x1860] sm:$0xff]
        %v1701 = vld [vmem:[%s366 + $0x1868] sm:$0xff]
        %v1702 = vld [vmem:[%s366 + $0x1870] sm:$0xff]
        %v1703 = vld [vmem:[%s366 + $0x1878] sm:$0xff]
        %v1704 = vld [vmem:[%s366 + $0x1880] sm:$0xff]
        %v1705 = vld [vmem:[%s366 + $0x1888] sm:$0xff]
        %v1706 = vld [vmem:[%s366 + $0x1890] sm:$0xff]
        %v1707 = vld [vmem:[%s366 + $0x1898] sm:$0xff]
        %v1708 = vld [vmem:[%s366 + $0x18a0] sm:$0xff]
        %v1709 = vld [vmem:[%s366 + $0x18a8] sm:$0xff]
        %v1710 = vld [vmem:[%s366 + $0x18b0] sm:$0xff]
        %v1711 = vld [vmem:[%s366 + $0x18b8] sm:$0xff]
        %v1712 = vld [vmem:[%s366 + $0x18c0] sm:$0xff]
        %v1713 = vld [vmem:[%s366 + $0x18c8] sm:$0xff]
        %v1714 = vld [vmem:[%s366 + $0x18d0] sm:$0xff]
        %v1715 = vld [vmem:[%s366 + $0x18d8] sm:$0xff]
        %v1716 = vld [vmem:[%s366 + $0x18e0] sm:$0xff]
        %v1717 = vld [vmem:[%s366 + $0x18e8] sm:$0xff]
        %v1718 = vld [vmem:[%s366 + $0x18f0] sm:$0xff]
        %v1719 = vld [vmem:[%s366 + $0x18f8] sm:$0xff]
        %v1720 = vld [vmem:[%s366 + $0x1900] sm:$0xff]
        %v1721 = vld [vmem:[%s366 + $0x1908] sm:$0xff]
        %v1722 = vld [vmem:[%s366 + $0x1910] sm:$0xff]
        %v1723 = vld [vmem:[%s366 + $0x1918] sm:$0xff]
        %v1724 = vld [vmem:[%s366 + $0x1920] sm:$0xff]
        %v1725 = vld [vmem:[%s366 + $0x1928] sm:$0xff]
        %v1726 = vld [vmem:[%s366 + $0x1930] sm:$0xff]
        %v1727 = vld [vmem:[%s366 + $0x1938] sm:$0xff]
        %v1728 = vld [vmem:[%s366 + $0x1940] sm:$0xff]
        %v1729 = vld [vmem:[%s366 + $0x1948] sm:$0xff]
        %v1730 = vld [vmem:[%s366 + $0x1950] sm:$0xff]
        %v1731 = vld [vmem:[%s366 + $0x1958] sm:$0xff]
        %v1732 = vld [vmem:[%s366 + $0x1960] sm:$0xff]
        %v1733 = vld [vmem:[%s366 + $0x1968] sm:$0xff]
        %v1734 = vld [vmem:[%s366 + $0x1970] sm:$0xff]
        %v1735 = vld [vmem:[%s366 + $0x1978] sm:$0xff]
        %v1736 = vld [vmem:[%s366 + $0x1980] sm:$0xff]
        %v1737 = vld [vmem:[%s366 + $0x1988] sm:$0xff]
        %v1738 = vld [vmem:[%s366 + $0x1990] sm:$0xff]
        %v1739 = vld [vmem:[%s366 + $0x1998] sm:$0xff]
        %v1740 = vld [vmem:[%s366 + $0x19a0] sm:$0xff]
        %v1741 = vld [vmem:[%s366 + $0x19a8] sm:$0xff]
        %v1742 = vld [vmem:[%s366 + $0x19b0] sm:$0xff]
        %v1743 = vld [vmem:[%s366 + $0x19b8] sm:$0xff]
        %v1744 = vld [vmem:[%s366 + $0x19c0] sm:$0xff]
        %v1745 = vld [vmem:[%s366 + $0x19c8] sm:$0xff]
        %v1746 = vld [vmem:[%s366 + $0x19d0] sm:$0xff]
        %v1747 = vld [vmem:[%s366 + $0x19d8] sm:$0xff]
        %v1748 = vld [vmem:[%s366 + $0x19e0] sm:$0xff]
        %v1749 = vld [vmem:[%s366 + $0x19e8] sm:$0xff]
        %v1750 = vld [vmem:[%s366 + $0x19f0] sm:$0xff]
        %v1751 = vld [vmem:[%s366 + $0x19f8] sm:$0xff]
        %v1752 = vld [vmem:[%s366 + $0x1a00] sm:$0xff]
        %v1753 = vld [vmem:[%s366 + $0x1a08] sm:$0xff]
        %v1754 = vld [vmem:[%s366 + $0x1a10] sm:$0xff]
        %v1755 = vld [vmem:[%s366 + $0x1a18] sm:$0xff]
        %v1756 = vld [vmem:[%s366 + $0x1a20] sm:$0xff]
        %v1757 = vld [vmem:[%s366 + $0x1a28] sm:$0xff]
        %v1758 = vld [vmem:[%s366 + $0x1a30] sm:$0xff]
        %v1759 = vld [vmem:[%s366 + $0x1a38] sm:$0xff]
        %v1760 = vld [vmem:[%s366 + $0x1a40] sm:$0xff]
        %v1761 = vld [vmem:[%s366 + $0x1a48] sm:$0xff]
        %v1762 = vld [vmem:[%s366 + $0x1a50] sm:$0xff]
        %v1763 = vld [vmem:[%s366 + $0x1a58] sm:$0xff]
        %v1764 = vld [vmem:[%s366 + $0x1a60] sm:$0xff]
        %v1765 = vld [vmem:[%s366 + $0x1a68] sm:$0xff]
        %v1766 = vld [vmem:[%s366 + $0x1a70] sm:$0xff]
        %v1767 = vld [vmem:[%s366 + $0x1a78] sm:$0xff]
        %v1768 = vld [vmem:[%s366 + $0x1a80] sm:$0xff]
        %v1769 = vld [vmem:[%s366 + $0x1a88] sm:$0xff]
        %v1770 = vld [vmem:[%s366 + $0x1a90] sm:$0xff]
        %v1771 = vld [vmem:[%s366 + $0x1a98] sm:$0xff]
        %v1772 = vld [vmem:[%s366 + $0x1aa0] sm:$0xff]
        %v1773 = vld [vmem:[%s366 + $0x1aa8] sm:$0xff]
        %v1774 = vld [vmem:[%s366 + $0x1ab0] sm:$0xff]
        %v1775 = vld [vmem:[%s366 + $0x1ab8] sm:$0xff]
        %v1776 = vld [vmem:[%s366 + $0x1ac0] sm:$0xff]
        %v1777 = vld [vmem:[%s366 + $0x1ac8] sm:$0xff]
        %v1778 = vld [vmem:[%s366 + $0x1ad0] sm:$0xff]
        %v1779 = vld [vmem:[%s366 + $0x1ad8] sm:$0xff]
        %v1780 = vld [vmem:[%s366 + $0x1ae0] sm:$0xff]
        %v1781 = vld [vmem:[%s366 + $0x1ae8] sm:$0xff]
        %v1782 = vld [vmem:[%s366 + $0x1af0] sm:$0xff]
        %v1783 = vld [vmem:[%s366 + $0x1af8] sm:$0xff]
        %v1784 = vld [vmem:[%s366 + $0x1b00] sm:$0xff]
        %v1785 = vld [vmem:[%s366 + $0x1b08] sm:$0xff]
        %v1786 = vld [vmem:[%s366 + $0x1b10] sm:$0xff]
        %v1787 = vld [vmem:[%s366 + $0x1b18] sm:$0xff]
        %v1788 = vld [vmem:[%s366 + $0x1b20] sm:$0xff]
        %v1789 = vld [vmem:[%s366 + $0x1b28] sm:$0xff]
        %v1790 = vld [vmem:[%s366 + $0x1b30] sm:$0xff]
        %v1791 = vld [vmem:[%s366 + $0x1b38] sm:$0xff]
        %v1792 = vld [vmem:[%s366 + $0x1b40] sm:$0xff]
        %v1793 = vld [vmem:[%s366 + $0x1b48] sm:$0xff]
        %v1794 = vld [vmem:[%s366 + $0x1b50] sm:$0xff]
        %v1795 = vld [vmem:[%s366 + $0x1b58] sm:$0xff]
        %v1796 = vld [vmem:[%s366 + $0x1b60] sm:$0xff]
        %v1797 = vld [vmem:[%s366 + $0x1b68] sm:$0xff]
        %v1798 = vld [vmem:[%s366 + $0x1b70] sm:$0xff]
        %v1799 = vld [vmem:[%s366 + $0x1b78] sm:$0xff]
        %v1800 = vld [vmem:[%s366 + $0x1b80] sm:$0xff]
        %v1801 = vld [vmem:[%s366 + $0x1b88] sm:$0xff]
        %v1802 = vld [vmem:[%s366 + $0x1b90] sm:$0xff]
        %v1803 = vld [vmem:[%s366 + $0x1b98] sm:$0xff]
        %v1804 = vld [vmem:[%s366 + $0x1ba0] sm:$0xff]
        %v1805 = vld [vmem:[%s366 + $0x1ba8] sm:$0xff]
        %v1806 = vld [vmem:[%s366 + $0x1bb0] sm:$0xff]
        %v1807 = vld [vmem:[%s366 + $0x1bb8] sm:$0xff]
        %v1808 = vld [vmem:[%s366 + $0x1bc0] sm:$0xff]
        %v1809 = vld [vmem:[%s366 + $0x1bc8] sm:$0xff]
        %v1810 = vld [vmem:[%s366 + $0x1bd0] sm:$0xff]
        %v1811 = vld [vmem:[%s366 + $0x1bd8] sm:$0xff]
        %v1812 = vld [vmem:[%s366 + $0x1be0] sm:$0xff]
        %v1813 = vld [vmem:[%s366 + $0x1be8] sm:$0xff]
        %v1814 = vld [vmem:[%s366 + $0x1bf0] sm:$0xff]
        %v1815 = vld [vmem:[%s366 + $0x1bf8] sm:$0xff]
        %v1816 = vld [vmem:[%s366 + $0x1c00] sm:$0xff]
        %v1817 = vld [vmem:[%s366 + $0x1c08] sm:$0xff]
        %v1818 = vld [vmem:[%s366 + $0x1c10] sm:$0xff]
        %v1819 = vld [vmem:[%s366 + $0x1c18] sm:$0xff]
        %v1820 = vld [vmem:[%s366 + $0x1c20] sm:$0xff]
        %v1821 = vld [vmem:[%s366 + $0x1c28] sm:$0xff]
        %v1822 = vld [vmem:[%s366 + $0x1c30] sm:$0xff]
        %v1823 = vld [vmem:[%s366 + $0x1c38] sm:$0xff]
        %v1824 = vld [vmem:[%s366 + $0x1c40] sm:$0xff]
        %v1825 = vld [vmem:[%s366 + $0x1c48] sm:$0xff]
        %v1826 = vld [vmem:[%s366 + $0x1c50] sm:$0xff]
        %v1827 = vld [vmem:[%s366 + $0x1c58] sm:$0xff]
        %v1828 = vld [vmem:[%s366 + $0x1c60] sm:$0xff]
        %v1829 = vld [vmem:[%s366 + $0x1c68] sm:$0xff]
        %v1830 = vld [vmem:[%s366 + $0x1c70] sm:$0xff]
        %v1831 = vld [vmem:[%s366 + $0x1c78] sm:$0xff]
        %v1832 = vld [vmem:[%s366 + $0x1c80] sm:$0xff]
        %v1833 = vld [vmem:[%s366 + $0x1c88] sm:$0xff]
        %v1834 = vld [vmem:[%s366 + $0x1c90] sm:$0xff]
        %v1835 = vld [vmem:[%s366 + $0x1c98] sm:$0xff]
        %v1836 = vld [vmem:[%s366 + $0x1ca0] sm:$0xff]
        %v1837 = vld [vmem:[%s366 + $0x1ca8] sm:$0xff]
        %v1838 = vld [vmem:[%s366 + $0x1cb0] sm:$0xff]
        %v1839 = vld [vmem:[%s366 + $0x1cb8] sm:$0xff]
        %v1840 = vld [vmem:[%s366 + $0x1cc0] sm:$0xff]
        %v1841 = vld [vmem:[%s366 + $0x1cc8] sm:$0xff]
        %v1842 = vld [vmem:[%s366 + $0x1cd0] sm:$0xff]
        %v1843 = vld [vmem:[%s366 + $0x1cd8] sm:$0xff]
        %v1844 = vld [vmem:[%s366 + $0x1ce0] sm:$0xff]
        %v1845 = vld [vmem:[%s366 + $0x1ce8] sm:$0xff]
        %v1846 = vld [vmem:[%s366 + $0x1cf0] sm:$0xff]
        %v1847 = vld [vmem:[%s366 + $0x1cf8] sm:$0xff]
        %v1848 = vld [vmem:[%s366 + $0x1d00] sm:$0xff]
        %v1849 = vld [vmem:[%s366 + $0x1d08] sm:$0xff]
        %v1850 = vld [vmem:[%s366 + $0x1d10] sm:$0xff]
        %v1851 = vld [vmem:[%s366 + $0x1d18] sm:$0xff]
        %v1852 = vld [vmem:[%s366 + $0x1d20] sm:$0xff]
        %v1853 = vld [vmem:[%s366 + $0x1d28] sm:$0xff]
        %v1854 = vld [vmem:[%s366 + $0x1d30] sm:$0xff]
        %v1855 = vld [vmem:[%s366 + $0x1d38] sm:$0xff]
        %v1856 = vld [vmem:[%s366 + $0x1d40] sm:$0xff]
        %v1857 = vld [vmem:[%s366 + $0x1d48] sm:$0xff]
        %v1858 = vld [vmem:[%s366 + $0x1d50] sm:$0xff]
        %v1859 = vld [vmem:[%s366 + $0x1d58] sm:$0xff]
        %v1860 = vld [vmem:[%s366 + $0x1d60] sm:$0xff]
        %v1861 = vld [vmem:[%s366 + $0x1d68] sm:$0xff]
        %v1862 = vld [vmem:[%s366 + $0x1d70] sm:$0xff]
        %v1863 = vld [vmem:[%s366 + $0x1d78] sm:$0xff]
        %v1864 = vld [vmem:[%s366 + $0x1d80] sm:$0xff]
        %v1865 = vld [vmem:[%s366 + $0x1d88] sm:$0xff]
        %v1866 = vld [vmem:[%s366 + $0x1d90] sm:$0xff]
        %v1867 = vld [vmem:[%s366 + $0x1d98] sm:$0xff]
        %v1868 = vld [vmem:[%s366 + $0x1da0] sm:$0xff]
        %v1869 = vld [vmem:[%s366 + $0x1da8] sm:$0xff]
        %v1870 = vld [vmem:[%s366 + $0x1db0] sm:$0xff]
        %v1871 = vld [vmem:[%s366 + $0x1db8] sm:$0xff]
        %v1872 = vld [vmem:[%s366 + $0x1dc0] sm:$0xff]
        %v1873 = vld [vmem:[%s366 + $0x1dc8] sm:$0xff]
        %v1874 = vld [vmem:[%s366 + $0x1dd0] sm:$0xff]
        %v1875 = vld [vmem:[%s366 + $0x1dd8] sm:$0xff]
        %v1876 = vld [vmem:[%s366 + $0x1de0] sm:$0xff]
        %v1877 = vld [vmem:[%s366 + $0x1de8] sm:$0xff]
        %v1878 = vld [vmem:[%s366 + $0x1df0] sm:$0xff]
        %v1879 = vld [vmem:[%s366 + $0x1df8] sm:$0xff]
        %v1880 = vld [vmem:[%s366 + $0x1e00] sm:$0xff]
        %v1881 = vld [vmem:[%s366 + $0x1e08] sm:$0xff]
        %v1882 = vld [vmem:[%s366 + $0x1e10] sm:$0xff]
        %v1883 = vld [vmem:[%s366 + $0x1e18] sm:$0xff]
        %v1884 = vld [vmem:[%s366 + $0x1e20] sm:$0xff]
        %v1885 = vld [vmem:[%s366 + $0x1e28] sm:$0xff]
        %v1886 = vld [vmem:[%s366 + $0x1e30] sm:$0xff]
        %v1887 = vld [vmem:[%s366 + $0x1e38] sm:$0xff]
        %v1888 = vld [vmem:[%s366 + $0x1e40] sm:$0xff]
        %v1889 = vld [vmem:[%s366 + $0x1e48] sm:$0xff]
        %v1890 = vld [vmem:[%s366 + $0x1e50] sm:$0xff]
        %v1891 = vld [vmem:[%s366 + $0x1e58] sm:$0xff]
        %v1892 = vld [vmem:[%s366 + $0x1e60] sm:$0xff]
        %v1893 = vld [vmem:[%s366 + $0x1e68] sm:$0xff]
        %v1894 = vld [vmem:[%s366 + $0x1e70] sm:$0xff]
        %v1895 = vld [vmem:[%s366 + $0x1e78] sm:$0xff]
        %v1896 = vld [vmem:[%s366 + $0x1e80] sm:$0xff]
        %v1897 = vld [vmem:[%s366 + $0x1e88] sm:$0xff]
        %v1898 = vld [vmem:[%s366 + $0x1e90] sm:$0xff]
        %v1899 = vld [vmem:[%s366 + $0x1e98] sm:$0xff]
        %v1900 = vld [vmem:[%s366 + $0x1ea0] sm:$0xff]
        %v1901 = vld [vmem:[%s366 + $0x1ea8] sm:$0xff]
        %v1902 = vld [vmem:[%s366 + $0x1eb0] sm:$0xff]
        %v1903 = vld [vmem:[%s366 + $0x1eb8] sm:$0xff]
        %v1904 = vld [vmem:[%s366 + $0x1ec0] sm:$0xff]
        %v1905 = vld [vmem:[%s366 + $0x1ec8] sm:$0xff]
        %v1906 = vld [vmem:[%s366 + $0x1ed0] sm:$0xff]
        %v1907 = vld [vmem:[%s366 + $0x1ed8] sm:$0xff]
        %v1908 = vld [vmem:[%s366 + $0x1ee0] sm:$0xff]
        %v1909 = vld [vmem:[%s366 + $0x1ee8] sm:$0xff]
        %v1910 = vld [vmem:[%s366 + $0x1ef0] sm:$0xff]
        %v1911 = vld [vmem:[%s366 + $0x1ef8] sm:$0xff]
        %v1912 = vld [vmem:[%s366 + $0x1f00] sm:$0xff]
        %v1913 = vld [vmem:[%s366 + $0x1f08] sm:$0xff]
        %v1914 = vld [vmem:[%s366 + $0x1f10] sm:$0xff]
        %v1915 = vld [vmem:[%s366 + $0x1f18] sm:$0xff]
        %v1916 = vld [vmem:[%s366 + $0x1f20] sm:$0xff]
        %v1917 = vld [vmem:[%s366 + $0x1f28] sm:$0xff]
        %v1918 = vld [vmem:[%s366 + $0x1f30] sm:$0xff]
        %v1919 = vld [vmem:[%s366 + $0x1f38] sm:$0xff]
        %v1920 = vld [vmem:[%s366 + $0x1f40] sm:$0xff]
        %v1921 = vld [vmem:[%s366 + $0x1f48] sm:$0xff]
        %v1922 = vld [vmem:[%s366 + $0x1f50] sm:$0xff]
        %v1923 = vld [vmem:[%s366 + $0x1f58] sm:$0xff]
        %v1924 = vld [vmem:[%s366 + $0x1f60] sm:$0xff]
        %v1925 = vld [vmem:[%s366 + $0x1f68] sm:$0xff]
        %v1926 = vld [vmem:[%s366 + $0x1f70] sm:$0xff]
        %v1927 = vld [vmem:[%s366 + $0x1f78] sm:$0xff]
        %v1928 = vld [vmem:[%s366 + $0x1f80] sm:$0xff]
        %v1929 = vld [vmem:[%s366 + $0x1f88] sm:$0xff]
        %v1930 = vld [vmem:[%s366 + $0x1f90] sm:$0xff]
        %v1931 = vld [vmem:[%s366 + $0x1f98] sm:$0xff]
        %v1932 = vld [vmem:[%s366 + $0x1fa0] sm:$0xff]
        %v1933 = vld [vmem:[%s366 + $0x1fa8] sm:$0xff]
        %v1934 = vld [vmem:[%s366 + $0x1fb0] sm:$0xff]
        %v1935 = vld [vmem:[%s366 + $0x1fb8] sm:$0xff]
        %v1936 = vld [vmem:[%s366 + $0x1fc0] sm:$0xff]
        %v1937 = vld [vmem:[%s366 + $0x1fc8] sm:$0xff]
        %v1938 = vld [vmem:[%s366 + $0x1fd0] sm:$0xff]
        %v1939 = vld [vmem:[%s366 + $0x1fd8] sm:$0xff]
        %v1940 = vld [vmem:[%s366 + $0x1fe0] sm:$0xff]
        %v1941 = vld [vmem:[%s366 + $0x1fe8] sm:$0xff]
        %v1942 = vld [vmem:[%s366 + $0x1ff0] sm:$0xff]
        %v1943 = vld [vmem:[%s366 + $0x1ff8] sm:$0xff]
        %v1944 = vld [vmem:[%s366 + $0x2000] sm:$0xff]
        %v1945 = vld [vmem:[%s366 + $0x2008] sm:$0xff]
        %v1946 = vld [vmem:[%s366 + $0x2010] sm:$0xff]
        %v1947 = vld [vmem:[%s366 + $0x2018] sm:$0xff]
        %v1948 = vld [vmem:[%s366 + $0x2020] sm:$0xff]
        %v1949 = vld [vmem:[%s366 + $0x2028] sm:$0xff]
        %v1950 = vld [vmem:[%s366 + $0x2030] sm:$0xff]
        %v1951 = vld [vmem:[%s366 + $0x2038] sm:$0xff]
        %v1952 = vld [vmem:[%s366 + $0x2040] sm:$0xff]
        %v1953 = vld [vmem:[%s366 + $0x2048] sm:$0xff]
        %v1954 = vld [vmem:[%s366 + $0x2050] sm:$0xff]
        %v1955 = vld [vmem:[%s366 + $0x2058] sm:$0xff]
        %v1956 = vld [vmem:[%s366 + $0x2060] sm:$0xff]
        %v1957 = vld [vmem:[%s366 + $0x2068] sm:$0xff]
        %v1958 = vld [vmem:[%s366 + $0x2070] sm:$0xff]
        %v1959 = vld [vmem:[%s366 + $0x2078] sm:$0xff]
        %v1960 = vld [vmem:[%s366 + $0x2080] sm:$0xff]
        %v1961 = vld [vmem:[%s366 + $0x2088] sm:$0xff]
        %v1962 = vld [vmem:[%s366 + $0x2090] sm:$0xff]
        %v1963 = vld [vmem:[%s366 + $0x2098] sm:$0xff]
        %v1964 = vld [vmem:[%s366 + $0x20a0] sm:$0xff]
        %v1965 = vld [vmem:[%s366 + $0x20a8] sm:$0xff]
        %v1966 = vld [vmem:[%s366 + $0x20b0] sm:$0xff]
        %v1967 = vld [vmem:[%s366 + $0x20b8] sm:$0xff]
        %v1968 = vld [vmem:[%s366 + $0x20c0] sm:$0xff]
        %v1969 = vld [vmem:[%s366 + $0x20c8] sm:$0xff]
        %v1970 = vld [vmem:[%s366 + $0x20d0] sm:$0xff]
        %v1971 = vld [vmem:[%s366 + $0x20d8] sm:$0xff]
        %v1972 = vld [vmem:[%s366 + $0x20e0] sm:$0xff]
        %v1973 = vld [vmem:[%s366 + $0x20e8] sm:$0xff]
        %v1974 = vld [vmem:[%s366 + $0x20f0] sm:$0xff]
        %v1975 = vld [vmem:[%s366 + $0x20f8] sm:$0xff]
        %v1976 = vld [vmem:[%s366 + $0x2100] sm:$0xff]
        %v1977 = vld [vmem:[%s366 + $0x2108] sm:$0xff]
        %v1978 = vld [vmem:[%s366 + $0x2110] sm:$0xff]
        %v1979 = vld [vmem:[%s366 + $0x2118] sm:$0xff]
        %v1980 = vld [vmem:[%s366 + $0x2120] sm:$0xff]
        %v1981 = vld [vmem:[%s366 + $0x2128] sm:$0xff]
        %v1982 = vld [vmem:[%s366 + $0x2130] sm:$0xff]
        %v1983 = vld [vmem:[%s366 + $0x2138] sm:$0xff]
        %v1984 = vld [vmem:[%s366 + $0x2140] sm:$0xff]
        %v1985 = vld [vmem:[%s366 + $0x2148] sm:$0xff]
        %v1986 = vld [vmem:[%s366 + $0x2150] sm:$0xff]
        %v1987 = vld [vmem:[%s366 + $0x2158] sm:$0xff]
        %v1988 = vld [vmem:[%s366 + $0x2160] sm:$0xff]
        %v1989 = vld [vmem:[%s366 + $0x2168] sm:$0xff]
        %v1990 = vld [vmem:[%s366 + $0x2170] sm:$0xff]
        %v1991 = vld [vmem:[%s366 + $0x2178] sm:$0xff]
        %v1992 = vld [vmem:[%s366 + $0x2180] sm:$0xff]
        %v1993 = vld [vmem:[%s366 + $0x2188] sm:$0xff]
        %v1994 = vld [vmem:[%s366 + $0x2190] sm:$0xff]
        %v1995 = vld [vmem:[%s366 + $0x2198] sm:$0xff]
        %v1996 = vld [vmem:[%s366 + $0x21a0] sm:$0xff]
        %v1997 = vld [vmem:[%s366 + $0x21a8] sm:$0xff]
        %v1998 = vld [vmem:[%s366 + $0x21b0] sm:$0xff]
        %v1999 = vld [vmem:[%s366 + $0x21b8] sm:$0xff]
        %v2000 = vld [vmem:[%s366 + $0x21c0] sm:$0xff]
        %v2001 = vld [vmem:[%s366 + $0x21c8] sm:$0xff]
        %v2002 = vld [vmem:[%s366 + $0x21d0] sm:$0xff]
        %v2003 = vld [vmem:[%s366 + $0x21d8] sm:$0xff]
        %v2004 = vld [vmem:[%s366 + $0x21e0] sm:$0xff]
        %v2005 = vld [vmem:[%s366 + $0x21e8] sm:$0xff]
        %v2006 = vld [vmem:[%s366 + $0x21f0] sm:$0xff]
        %v2007 = vld [vmem:[%s366 + $0x21f8] sm:$0xff]
        %v2008 = vld [vmem:[%s366 + $0x2200] sm:$0xff]
        %v2009 = vld [vmem:[%s366 + $0x2208] sm:$0xff]
        %v2010 = vld [vmem:[%s366 + $0x2210] sm:$0xff]
        %v2011 = vld [vmem:[%s366 + $0x2218] sm:$0xff]
        %v2012 = vld [vmem:[%s366 + $0x2220] sm:$0xff]
        %v2013 = vld [vmem:[%s366 + $0x2228] sm:$0xff]
        %v2014 = vld [vmem:[%s366 + $0x2230] sm:$0xff]
        %v2015 = vld [vmem:[%s366 + $0x2238] sm:$0xff]
        %v2016 = vld [vmem:[%s366 + $0x2240] sm:$0xff]
        %v2017 = vld [vmem:[%s366 + $0x2248] sm:$0xff]
        %v2018 = vld [vmem:[%s366 + $0x2250] sm:$0xff]
        %v2019 = vld [vmem:[%s366 + $0x2258] sm:$0xff]
        %v2020 = vld [vmem:[%s366 + $0x2260] sm:$0xff]
        %v2021 = vld [vmem:[%s366 + $0x2268] sm:$0xff]
        %v2022 = vld [vmem:[%s366 + $0x2270] sm:$0xff]
        %v2023 = vld [vmem:[%s366 + $0x2278] sm:$0xff]
        %v2024 = vld [vmem:[%s366 + $0x2280] sm:$0xff]
        %v2025 = vld [vmem:[%s366 + $0x2288] sm:$0xff]
        %v2026 = vld [vmem:[%s366 + $0x2290] sm:$0xff]
        %v2027 = vld [vmem:[%s366 + $0x2298] sm:$0xff]
        %v2028 = vld [vmem:[%s366 + $0x22a0] sm:$0xff]
        %v2029 = vld [vmem:[%s366 + $0x22a8] sm:$0xff]
        %v2030 = vld [vmem:[%s366 + $0x22b0] sm:$0xff]
        %v2031 = vld [vmem:[%s366 + $0x22b8] sm:$0xff]
        %v2032 = vld [vmem:[%s366 + $0x22c0] sm:$0xff]
        %v2033 = vld [vmem:[%s366 + $0x22c8] sm:$0xff]
        %v2034 = vld [vmem:[%s366 + $0x22d0] sm:$0xff]
        %v2035 = vld [vmem:[%s366 + $0x22d8] sm:$0xff]
        %v2036 = vld [vmem:[%s366 + $0x22e0] sm:$0xff]
        %v2037 = vld [vmem:[%s366 + $0x22e8] sm:$0xff]
        %v2038 = vld [vmem:[%s366 + $0x22f0] sm:$0xff]
        %v2039 = vld [vmem:[%s366 + $0x22f8] sm:$0xff]
        %v2040 = vld [vmem:[%s366 + $0x2300] sm:$0xff]
        %v2041 = vld [vmem:[%s366 + $0x2308] sm:$0xff]
        %v2042 = vld [vmem:[%s366 + $0x2310] sm:$0xff]
        %v2043 = vld [vmem:[%s366 + $0x2318] sm:$0xff]
        %v2044 = vld [vmem:[%s366 + $0x2320] sm:$0xff]
        %v2045 = vld [vmem:[%s366 + $0x2328] sm:$0xff]
        %v2046 = vld [vmem:[%s366 + $0x2330] sm:$0xff]
        %v2047 = vld [vmem:[%s366 + $0x2338] sm:$0xff]
        %v2048 = vld [vmem:[%s366 + $0x2340] sm:$0xff]
        %v2049 = vld [vmem:[%s366 + $0x2348] sm:$0xff]
        %v2050 = vld [vmem:[%s366 + $0x2350] sm:$0xff]
        %v2051 = vld [vmem:[%s366 + $0x2358] sm:$0xff]
        %v2052 = vld [vmem:[%s366 + $0x2360] sm:$0xff]
        %v2053 = vld [vmem:[%s366 + $0x2368] sm:$0xff]
        %v2054 = vld [vmem:[%s366 + $0x2370] sm:$0xff]
        %v2055 = vld [vmem:[%s366 + $0x2378] sm:$0xff]
        %v2056 = vld [vmem:[%s366 + $0x2380] sm:$0xff]
        %v2057 = vld [vmem:[%s366 + $0x2388] sm:$0xff]
        %v2058 = vld [vmem:[%s366 + $0x2390] sm:$0xff]
        %v2059 = vld [vmem:[%s366 + $0x2398] sm:$0xff]
        %v2060 = vld [vmem:[%s366 + $0x23a0] sm:$0xff]
        %v2061 = vld [vmem:[%s366 + $0x23a8] sm:$0xff]
        %v2062 = vld [vmem:[%s366 + $0x23b0] sm:$0xff]
        %v2063 = vld [vmem:[%s366 + $0x23b8] sm:$0xff]
        %v2064 = vld [vmem:[%s366 + $0x23c0] sm:$0xff]
        %v2065 = vld [vmem:[%s366 + $0x23c8] sm:$0xff]
        %v2066 = vld [vmem:[%s366 + $0x23d0] sm:$0xff]
        %v2067 = vld [vmem:[%s366 + $0x23d8] sm:$0xff]
        %v2068 = vld [vmem:[%s366 + $0x23e0] sm:$0xff]
        %v2069 = vld [vmem:[%s366 + $0x23e8] sm:$0xff]
        %v2070 = vld [vmem:[%s366 + $0x23f0] sm:$0xff]
        %v2071 = vld [vmem:[%s366 + $0x23f8] sm:$0xff]
        %v3224 = vunpack.c.l.b16 %v920
        %v3225 = vunpack.c.h.b16 %v920
        %v3226 = vunpack.c.l.b16 %v921
        %v3227 = vunpack.c.h.b16 %v921
        %v3228 = vunpack.c.l.b16 %v922
        %v3229 = vunpack.c.h.b16 %v922
        %v3230 = vunpack.c.l.b16 %v923
        %v3231 = vunpack.c.h.b16 %v923
        %v3232 = vunpack.c.l.b16 %v924
        %v3233 = vunpack.c.h.b16 %v924
        %v3234 = vunpack.c.l.b16 %v925
        %v3235 = vunpack.c.h.b16 %v925
        %v3236 = vunpack.c.l.b16 %v926
        %v3237 = vunpack.c.h.b16 %v926
        %v3238 = vunpack.c.l.b16 %v927
        %v3239 = vunpack.c.h.b16 %v927
        %v3240 = vunpack.c.l.b16 %v928
        %v3241 = vunpack.c.h.b16 %v928
        %v3242 = vunpack.c.l.b16 %v929
        %v3243 = vunpack.c.h.b16 %v929
        %v3244 = vunpack.c.l.b16 %v930
        %v3245 = vunpack.c.h.b16 %v930
        %v3246 = vunpack.c.l.b16 %v931
        %v3247 = vunpack.c.h.b16 %v931
        %v3248 = vunpack.c.l.b16 %v932
        %v3249 = vunpack.c.h.b16 %v932
        %v3250 = vunpack.c.l.b16 %v933
        %v3251 = vunpack.c.h.b16 %v933
        %v3252 = vunpack.c.l.b16 %v934
        %v3253 = vunpack.c.h.b16 %v934
        %v3254 = vunpack.c.l.b16 %v935
        %v3255 = vunpack.c.h.b16 %v935
        %v3256 = vunpack.c.l.b16 %v936
        %v3257 = vunpack.c.h.b16 %v936
        %v3258 = vunpack.c.l.b16 %v937
        %v3259 = vunpack.c.h.b16 %v937
        %v3260 = vunpack.c.l.b16 %v938
        %v3261 = vunpack.c.h.b16 %v938
        %v3262 = vunpack.c.l.b16 %v939
        %v3263 = vunpack.c.h.b16 %v939
        %v3264 = vunpack.c.l.b16 %v940
        %v3265 = vunpack.c.h.b16 %v940
        %v3266 = vunpack.c.l.b16 %v941
        %v3267 = vunpack.c.h.b16 %v941
        %v3268 = vunpack.c.l.b16 %v942
        %v3269 = vunpack.c.h.b16 %v942
        %v3270 = vunpack.c.l.b16 %v943
        %v3271 = vunpack.c.h.b16 %v943
        %v3272 = vunpack.c.l.b16 %v944
        %v3273 = vunpack.c.h.b16 %v944
        %v3274 = vunpack.c.l.b16 %v945
        %v3275 = vunpack.c.h.b16 %v945
        %v3276 = vunpack.c.l.b16 %v946
        %v3277 = vunpack.c.h.b16 %v946
        %v3278 = vunpack.c.l.b16 %v947
        %v3279 = vunpack.c.h.b16 %v947
        %v3280 = vunpack.c.l.b16 %v948
        %v3281 = vunpack.c.h.b16 %v948
        %v3282 = vunpack.c.l.b16 %v949
        %v3283 = vunpack.c.h.b16 %v949
        %v3284 = vunpack.c.l.b16 %v950
        %v3285 = vunpack.c.h.b16 %v950
        %v3286 = vunpack.c.l.b16 %v951
        %v3287 = vunpack.c.h.b16 %v951
        %v3288 = vunpack.c.l.b16 %v952
        %v3289 = vunpack.c.h.b16 %v952
        %v3290 = vunpack.c.l.b16 %v953
        %v3291 = vunpack.c.h.b16 %v953
        %v3292 = vunpack.c.l.b16 %v954
        %v3293 = vunpack.c.h.b16 %v954
        %v3294 = vunpack.c.l.b16 %v955
        %v3295 = vunpack.c.h.b16 %v955
        %v3296 = vunpack.c.l.b16 %v956
        %v3297 = vunpack.c.h.b16 %v956
        %v3298 = vunpack.c.l.b16 %v957
        %v3299 = vunpack.c.h.b16 %v957
        %v3300 = vunpack.c.l.b16 %v958
        %v3301 = vunpack.c.h.b16 %v958
        %v3302 = vunpack.c.l.b16 %v959
        %v3303 = vunpack.c.h.b16 %v959
        %v3304 = vunpack.c.l.b16 %v960
        %v3305 = vunpack.c.h.b16 %v960
        %v3306 = vunpack.c.l.b16 %v961
        %v3307 = vunpack.c.h.b16 %v961
        %v3308 = vunpack.c.l.b16 %v962
        %v3309 = vunpack.c.h.b16 %v962
        %v3310 = vunpack.c.l.b16 %v963
        %v3311 = vunpack.c.h.b16 %v963
        %v3312 = vunpack.c.l.b16 %v964
        %v3313 = vunpack.c.h.b16 %v964
        %v3314 = vunpack.c.l.b16 %v965
        %v3315 = vunpack.c.h.b16 %v965
        %v3316 = vunpack.c.l.b16 %v966
        %v3317 = vunpack.c.h.b16 %v966
        %v3318 = vunpack.c.l.b16 %v967
        %v3319 = vunpack.c.h.b16 %v967
        %v3320 = vunpack.c.l.b16 %v968
        %v3321 = vunpack.c.h.b16 %v968
        %v3322 = vunpack.c.l.b16 %v969
        %v3323 = vunpack.c.h.b16 %v969
        %v3324 = vunpack.c.l.b16 %v970
        %v3325 = vunpack.c.h.b16 %v970
        %v3326 = vunpack.c.l.b16 %v971
        %v3327 = vunpack.c.h.b16 %v971
        %v3328 = vunpack.c.l.b16 %v972
        %v3329 = vunpack.c.h.b16 %v972
        %v3330 = vunpack.c.l.b16 %v973
        %v3331 = vunpack.c.h.b16 %v973
        %v3332 = vunpack.c.l.b16 %v974
        %v3333 = vunpack.c.h.b16 %v974
        %v3334 = vunpack.c.l.b16 %v975
        %v3335 = vunpack.c.h.b16 %v975
        %v3336 = vunpack.c.l.b16 %v976
        %v3337 = vunpack.c.h.b16 %v976
        %v3338 = vunpack.c.l.b16 %v977
        %v3339 = vunpack.c.h.b16 %v977
        %v3340 = vunpack.c.l.b16 %v978
        %v3341 = vunpack.c.h.b16 %v978
        %v3342 = vunpack.c.l.b16 %v979
        %v3343 = vunpack.c.h.b16 %v979
        %v3344 = vunpack.c.l.b16 %v980
        %v3345 = vunpack.c.h.b16 %v980
        %v3346 = vunpack.c.l.b16 %v981
        %v3347 = vunpack.c.h.b16 %v981
        %v3348 = vunpack.c.l.b16 %v982
        %v3349 = vunpack.c.h.b16 %v982
        %v3350 = vunpack.c.l.b16 %v983
        %v3351 = vunpack.c.h.b16 %v983
        %v3352 = vunpack.c.l.b16 %v984
        %v3353 = vunpack.c.h.b16 %v984
        %v3354 = vunpack.c.l.b16 %v985
        %v3355 = vunpack.c.h.b16 %v985
        %v3356 = vunpack.c.l.b16 %v986
        %v3357 = vunpack.c.h.b16 %v986
        %v3358 = vunpack.c.l.b16 %v987
        %v3359 = vunpack.c.h.b16 %v987
        %v3360 = vunpack.c.l.b16 %v988
        %v3361 = vunpack.c.h.b16 %v988
        %v3362 = vunpack.c.l.b16 %v989
        %v3363 = vunpack.c.h.b16 %v989
        %v3364 = vunpack.c.l.b16 %v990
        %v3365 = vunpack.c.h.b16 %v990
        %v3366 = vunpack.c.l.b16 %v991
        %v3367 = vunpack.c.h.b16 %v991
        %v3368 = vunpack.c.l.b16 %v992
        %v3369 = vunpack.c.h.b16 %v992
        %v3370 = vunpack.c.l.b16 %v993
        %v3371 = vunpack.c.h.b16 %v993
        %v3372 = vunpack.c.l.b16 %v994
        %v3373 = vunpack.c.h.b16 %v994
        %v3374 = vunpack.c.l.b16 %v995
        %v3375 = vunpack.c.h.b16 %v995
        %v3376 = vunpack.c.l.b16 %v996
        %v3377 = vunpack.c.h.b16 %v996
        %v3378 = vunpack.c.l.b16 %v997
        %v3379 = vunpack.c.h.b16 %v997
        %v3380 = vunpack.c.l.b16 %v998
        %v3381 = vunpack.c.h.b16 %v998
        %v3382 = vunpack.c.l.b16 %v999
        %v3383 = vunpack.c.h.b16 %v999
        %v3384 = vunpack.c.l.b16 %v1000
        %v3385 = vunpack.c.h.b16 %v1000
        %v3386 = vunpack.c.l.b16 %v1001
        %v3387 = vunpack.c.h.b16 %v1001
        %v3388 = vunpack.c.l.b16 %v1002
        %v3389 = vunpack.c.h.b16 %v1002
        %v3390 = vunpack.c.l.b16 %v1003
        %v3391 = vunpack.c.h.b16 %v1003
        %v3392 = vunpack.c.l.b16 %v1004
        %v3393 = vunpack.c.h.b16 %v1004
        %v3394 = vunpack.c.l.b16 %v1005
        %v3395 = vunpack.c.h.b16 %v1005
        %v3396 = vunpack.c.l.b16 %v1006
        %v3397 = vunpack.c.h.b16 %v1006
        %v3398 = vunpack.c.l.b16 %v1007
        %v3399 = vunpack.c.h.b16 %v1007
        %v3400 = vunpack.c.l.b16 %v1008
        %v3401 = vunpack.c.h.b16 %v1008
        %v3402 = vunpack.c.l.b16 %v1009
        %v3403 = vunpack.c.h.b16 %v1009
        %v3404 = vunpack.c.l.b16 %v1010
        %v3405 = vunpack.c.h.b16 %v1010
        %v3406 = vunpack.c.l.b16 %v1011
        %v3407 = vunpack.c.h.b16 %v1011
        %v3408 = vunpack.c.l.b16 %v1012
        %v3409 = vunpack.c.h.b16 %v1012
        %v3410 = vunpack.c.l.b16 %v1013
        %v3411 = vunpack.c.h.b16 %v1013
        %v3412 = vunpack.c.l.b16 %v1014
        %v3413 = vunpack.c.h.b16 %v1014
        %v3414 = vunpack.c.l.b16 %v1015
        %v3415 = vunpack.c.h.b16 %v1015
        %v3416 = vunpack.c.l.b16 %v1016
        %v3417 = vunpack.c.h.b16 %v1016
        %v3418 = vunpack.c.l.b16 %v1017
        %v3419 = vunpack.c.h.b16 %v1017
        %v3420 = vunpack.c.l.b16 %v1018
        %v3421 = vunpack.c.h.b16 %v1018
        %v3422 = vunpack.c.l.b16 %v1019
        %v3423 = vunpack.c.h.b16 %v1019
        %v3424 = vunpack.c.l.b16 %v1020
        %v3425 = vunpack.c.h.b16 %v1020
        %v3426 = vunpack.c.l.b16 %v1021
        %v3427 = vunpack.c.h.b16 %v1021
        %v3428 = vunpack.c.l.b16 %v1022
        %v3429 = vunpack.c.h.b16 %v1022
        %v3430 = vunpack.c.l.b16 %v1023
        %v3431 = vunpack.c.h.b16 %v1023
        %v3432 = vunpack.c.l.b16 %v1024
        %v3433 = vunpack.c.h.b16 %v1024
        %v3434 = vunpack.c.l.b16 %v1025
        %v3435 = vunpack.c.h.b16 %v1025
        %v3436 = vunpack.c.l.b16 %v1026
        %v3437 = vunpack.c.h.b16 %v1026
        %v3438 = vunpack.c.l.b16 %v1027
        %v3439 = vunpack.c.h.b16 %v1027
        %v3440 = vunpack.c.l.b16 %v1028
        %v3441 = vunpack.c.h.b16 %v1028
        %v3442 = vunpack.c.l.b16 %v1029
        %v3443 = vunpack.c.h.b16 %v1029
        %v3444 = vunpack.c.l.b16 %v1030
        %v3445 = vunpack.c.h.b16 %v1030
        %v3446 = vunpack.c.l.b16 %v1031
        %v3447 = vunpack.c.h.b16 %v1031
        %v3448 = vunpack.c.l.b16 %v1032
        %v3449 = vunpack.c.h.b16 %v1032
        %v3450 = vunpack.c.l.b16 %v1033
        %v3451 = vunpack.c.h.b16 %v1033
        %v3452 = vunpack.c.l.b16 %v1034
        %v3453 = vunpack.c.h.b16 %v1034
        %v3454 = vunpack.c.l.b16 %v1035
        %v3455 = vunpack.c.h.b16 %v1035
        %v3456 = vunpack.c.l.b16 %v1036
        %v3457 = vunpack.c.h.b16 %v1036
        %v3458 = vunpack.c.l.b16 %v1037
        %v3459 = vunpack.c.h.b16 %v1037
        %v3460 = vunpack.c.l.b16 %v1038
        %v3461 = vunpack.c.h.b16 %v1038
        %v3462 = vunpack.c.l.b16 %v1039
        %v3463 = vunpack.c.h.b16 %v1039
        %v3464 = vunpack.c.l.b16 %v1040
        %v3465 = vunpack.c.h.b16 %v1040
        %v3466 = vunpack.c.l.b16 %v1041
        %v3467 = vunpack.c.h.b16 %v1041
        %v3468 = vunpack.c.l.b16 %v1042
        %v3469 = vunpack.c.h.b16 %v1042
        %v3470 = vunpack.c.l.b16 %v1043
        %v3471 = vunpack.c.h.b16 %v1043
        %v3472 = vunpack.c.l.b16 %v1044
        %v3473 = vunpack.c.h.b16 %v1044
        %v3474 = vunpack.c.l.b16 %v1045
        %v3475 = vunpack.c.h.b16 %v1045
        %v3476 = vunpack.c.l.b16 %v1046
        %v3477 = vunpack.c.h.b16 %v1046
        %v3478 = vunpack.c.l.b16 %v1047
        %v3479 = vunpack.c.h.b16 %v1047
        %v3480 = vunpack.c.l.b16 %v1048
        %v3481 = vunpack.c.h.b16 %v1048
        %v3482 = vunpack.c.l.b16 %v1049
        %v3483 = vunpack.c.h.b16 %v1049
        %v3484 = vunpack.c.l.b16 %v1050
        %v3485 = vunpack.c.h.b16 %v1050
        %v3486 = vunpack.c.l.b16 %v1051
        %v3487 = vunpack.c.h.b16 %v1051
        %v3488 = vunpack.c.l.b16 %v1052
        %v3489 = vunpack.c.h.b16 %v1052
        %v3490 = vunpack.c.l.b16 %v1053
        %v3491 = vunpack.c.h.b16 %v1053
        %v3492 = vunpack.c.l.b16 %v1054
        %v3493 = vunpack.c.h.b16 %v1054
        %v3494 = vunpack.c.l.b16 %v1055
        %v3495 = vunpack.c.h.b16 %v1055
        %v3496 = vunpack.c.l.b16 %v1056
        %v3497 = vunpack.c.h.b16 %v1056
        %v3498 = vunpack.c.l.b16 %v1057
        %v3499 = vunpack.c.h.b16 %v1057
        %v3500 = vunpack.c.l.b16 %v1058
        %v3501 = vunpack.c.h.b16 %v1058
        %v3502 = vunpack.c.l.b16 %v1059
        %v3503 = vunpack.c.h.b16 %v1059
        %v3504 = vunpack.c.l.b16 %v1060
        %v3505 = vunpack.c.h.b16 %v1060
        %v3506 = vunpack.c.l.b16 %v1061
        %v3507 = vunpack.c.h.b16 %v1061
        %v3508 = vunpack.c.l.b16 %v1062
        %v3509 = vunpack.c.h.b16 %v1062
        %v3510 = vunpack.c.l.b16 %v1063
        %v3511 = vunpack.c.h.b16 %v1063
        %v3512 = vunpack.c.l.b16 %v1064
        %v3513 = vunpack.c.h.b16 %v1064
        %v3514 = vunpack.c.l.b16 %v1065
        %v3515 = vunpack.c.h.b16 %v1065
        %v3516 = vunpack.c.l.b16 %v1066
        %v3517 = vunpack.c.h.b16 %v1066
        %v3518 = vunpack.c.l.b16 %v1067
        %v3519 = vunpack.c.h.b16 %v1067
        %v3520 = vunpack.c.l.b16 %v1068
        %v3521 = vunpack.c.h.b16 %v1068
        %v3522 = vunpack.c.l.b16 %v1069
        %v3523 = vunpack.c.h.b16 %v1069
        %v3524 = vunpack.c.l.b16 %v1070
        %v3525 = vunpack.c.h.b16 %v1070
        %v3526 = vunpack.c.l.b16 %v1071
        %v3527 = vunpack.c.h.b16 %v1071
        %v3528 = vunpack.c.l.b16 %v1072
        %v3529 = vunpack.c.h.b16 %v1072
        %v3530 = vunpack.c.l.b16 %v1073
        %v3531 = vunpack.c.h.b16 %v1073
        %v3532 = vunpack.c.l.b16 %v1074
        %v3533 = vunpack.c.h.b16 %v1074
        %v3534 = vunpack.c.l.b16 %v1075
        %v3535 = vunpack.c.h.b16 %v1075
        %v3536 = vunpack.c.l.b16 %v1076
        %v3537 = vunpack.c.h.b16 %v1076
        %v3538 = vunpack.c.l.b16 %v1077
        %v3539 = vunpack.c.h.b16 %v1077
        %v3540 = vunpack.c.l.b16 %v1078
        %v3541 = vunpack.c.h.b16 %v1078
        %v3542 = vunpack.c.l.b16 %v1079
        %v3543 = vunpack.c.h.b16 %v1079
        %v3544 = vunpack.c.l.b16 %v1080
        %v3545 = vunpack.c.h.b16 %v1080
        %v3546 = vunpack.c.l.b16 %v1081
        %v3547 = vunpack.c.h.b16 %v1081
        %v3548 = vunpack.c.l.b16 %v1082
        %v3549 = vunpack.c.h.b16 %v1082
        %v3550 = vunpack.c.l.b16 %v1083
        %v3551 = vunpack.c.h.b16 %v1083
        %v3552 = vunpack.c.l.b16 %v1084
        %v3553 = vunpack.c.h.b16 %v1084
        %v3554 = vunpack.c.l.b16 %v1085
        %v3555 = vunpack.c.h.b16 %v1085
        %v3556 = vunpack.c.l.b16 %v1086
        %v3557 = vunpack.c.h.b16 %v1086
        %v3558 = vunpack.c.l.b16 %v1087
        %v3559 = vunpack.c.h.b16 %v1087
        %v3560 = vunpack.c.l.b16 %v1088
        %v3561 = vunpack.c.h.b16 %v1088
        %v3562 = vunpack.c.l.b16 %v1089
        %v3563 = vunpack.c.h.b16 %v1089
        %v3564 = vunpack.c.l.b16 %v1090
        %v3565 = vunpack.c.h.b16 %v1090
        %v3566 = vunpack.c.l.b16 %v1091
        %v3567 = vunpack.c.h.b16 %v1091
        %v3568 = vunpack.c.l.b16 %v1092
        %v3569 = vunpack.c.h.b16 %v1092
        %v3570 = vunpack.c.l.b16 %v1093
        %v3571 = vunpack.c.h.b16 %v1093
        %v3572 = vunpack.c.l.b16 %v1094
        %v3573 = vunpack.c.h.b16 %v1094
        %v3574 = vunpack.c.l.b16 %v1095
        %v3575 = vunpack.c.h.b16 %v1095
        %v3576 = vunpack.c.l.b16 %v1096
        %v3577 = vunpack.c.h.b16 %v1096
        %v3578 = vunpack.c.l.b16 %v1097
        %v3579 = vunpack.c.h.b16 %v1097
        %v3580 = vunpack.c.l.b16 %v1098
        %v3581 = vunpack.c.h.b16 %v1098
        %v3582 = vunpack.c.l.b16 %v1099
        %v3583 = vunpack.c.h.b16 %v1099
        %v3584 = vunpack.c.l.b16 %v1100
        %v3585 = vunpack.c.h.b16 %v1100
        %v3586 = vunpack.c.l.b16 %v1101
        %v3587 = vunpack.c.h.b16 %v1101
        %v3588 = vunpack.c.l.b16 %v1102
        %v3589 = vunpack.c.h.b16 %v1102
        %v3590 = vunpack.c.l.b16 %v1103
        %v3591 = vunpack.c.h.b16 %v1103
        %v3592 = vunpack.c.l.b16 %v1104
        %v3593 = vunpack.c.h.b16 %v1104
        %v3594 = vunpack.c.l.b16 %v1105
        %v3595 = vunpack.c.h.b16 %v1105
        %v3596 = vunpack.c.l.b16 %v1106
        %v3597 = vunpack.c.h.b16 %v1106
        %v3598 = vunpack.c.l.b16 %v1107
        %v3599 = vunpack.c.h.b16 %v1107
        %v3600 = vunpack.c.l.b16 %v1108
        %v3601 = vunpack.c.h.b16 %v1108
        %v3602 = vunpack.c.l.b16 %v1109
        %v3603 = vunpack.c.h.b16 %v1109
        %v3604 = vunpack.c.l.b16 %v1110
        %v3605 = vunpack.c.h.b16 %v1110
        %v3606 = vunpack.c.l.b16 %v1111
        %v3607 = vunpack.c.h.b16 %v1111
        %v3608 = vunpack.c.l.b16 %v1112
        %v3609 = vunpack.c.h.b16 %v1112
        %v3610 = vunpack.c.l.b16 %v1113
        %v3611 = vunpack.c.h.b16 %v1113
        %v3612 = vunpack.c.l.b16 %v1114
        %v3613 = vunpack.c.h.b16 %v1114
        %v3614 = vunpack.c.l.b16 %v1115
        %v3615 = vunpack.c.h.b16 %v1115
        %v3616 = vunpack.c.l.b16 %v1116
        %v3617 = vunpack.c.h.b16 %v1116
        %v3618 = vunpack.c.l.b16 %v1117
        %v3619 = vunpack.c.h.b16 %v1117
        %v3620 = vunpack.c.l.b16 %v1118
        %v3621 = vunpack.c.h.b16 %v1118
        %v3622 = vunpack.c.l.b16 %v1119
        %v3623 = vunpack.c.h.b16 %v1119
        %v3624 = vunpack.c.l.b16 %v1120
        %v3625 = vunpack.c.h.b16 %v1120
        %v3626 = vunpack.c.l.b16 %v1121
        %v3627 = vunpack.c.h.b16 %v1121
        %v3628 = vunpack.c.l.b16 %v1122
        %v3629 = vunpack.c.h.b16 %v1122
        %v3630 = vunpack.c.l.b16 %v1123
        %v3631 = vunpack.c.h.b16 %v1123
        %v3632 = vunpack.c.l.b16 %v1124
        %v3633 = vunpack.c.h.b16 %v1124
        %v3634 = vunpack.c.l.b16 %v1125
        %v3635 = vunpack.c.h.b16 %v1125
        %v3636 = vunpack.c.l.b16 %v1126
        %v3637 = vunpack.c.h.b16 %v1126
        %v3638 = vunpack.c.l.b16 %v1127
        %v3639 = vunpack.c.h.b16 %v1127
        %v3640 = vunpack.c.l.b16 %v1128
        %v3641 = vunpack.c.h.b16 %v1128
        %v3642 = vunpack.c.l.b16 %v1129
        %v3643 = vunpack.c.h.b16 %v1129
        %v3644 = vunpack.c.l.b16 %v1130
        %v3645 = vunpack.c.h.b16 %v1130
        %v3646 = vunpack.c.l.b16 %v1131
        %v3647 = vunpack.c.h.b16 %v1131
        %v3648 = vunpack.c.l.b16 %v1132
        %v3649 = vunpack.c.h.b16 %v1132
        %v3650 = vunpack.c.l.b16 %v1133
        %v3651 = vunpack.c.h.b16 %v1133
        %v3652 = vunpack.c.l.b16 %v1134
        %v3653 = vunpack.c.h.b16 %v1134
        %v3654 = vunpack.c.l.b16 %v1135
        %v3655 = vunpack.c.h.b16 %v1135
        %v3656 = vunpack.c.l.b16 %v1136
        %v3657 = vunpack.c.h.b16 %v1136
        %v3658 = vunpack.c.l.b16 %v1137
        %v3659 = vunpack.c.h.b16 %v1137
        %v3660 = vunpack.c.l.b16 %v1138
        %v3661 = vunpack.c.h.b16 %v1138
        %v3662 = vunpack.c.l.b16 %v1139
        %v3663 = vunpack.c.h.b16 %v1139
        %v3664 = vunpack.c.l.b16 %v1140
        %v3665 = vunpack.c.h.b16 %v1140
        %v3666 = vunpack.c.l.b16 %v1141
        %v3667 = vunpack.c.h.b16 %v1141
        %v3668 = vunpack.c.l.b16 %v1142
        %v3669 = vunpack.c.h.b16 %v1142
        %v3670 = vunpack.c.l.b16 %v1143
        %v3671 = vunpack.c.h.b16 %v1143
        %v3672 = vunpack.c.l.b16 %v1144
        %v3673 = vunpack.c.h.b16 %v1144
        %v3674 = vunpack.c.l.b16 %v1145
        %v3675 = vunpack.c.h.b16 %v1145
        %v3676 = vunpack.c.l.b16 %v1146
        %v3677 = vunpack.c.h.b16 %v1146
        %v3678 = vunpack.c.l.b16 %v1147
        %v3679 = vunpack.c.h.b16 %v1147
        %v3680 = vunpack.c.l.b16 %v1148
        %v3681 = vunpack.c.h.b16 %v1148
        %v3682 = vunpack.c.l.b16 %v1149
        %v3683 = vunpack.c.h.b16 %v1149
        %v3684 = vunpack.c.l.b16 %v1150
        %v3685 = vunpack.c.h.b16 %v1150
        %v3686 = vunpack.c.l.b16 %v1151
        %v3687 = vunpack.c.h.b16 %v1151
        %v3688 = vunpack.c.l.b16 %v1152
        %v3689 = vunpack.c.h.b16 %v1152
        %v3690 = vunpack.c.l.b16 %v1153
        %v3691 = vunpack.c.h.b16 %v1153
        %v3692 = vunpack.c.l.b16 %v1154
        %v3693 = vunpack.c.h.b16 %v1154
        %v3694 = vunpack.c.l.b16 %v1155
        %v3695 = vunpack.c.h.b16 %v1155
        %v3696 = vunpack.c.l.b16 %v1156
        %v3697 = vunpack.c.h.b16 %v1156
        %v3698 = vunpack.c.l.b16 %v1157
        %v3699 = vunpack.c.h.b16 %v1157
        %v3700 = vunpack.c.l.b16 %v1158
        %v3701 = vunpack.c.h.b16 %v1158
        %v3702 = vunpack.c.l.b16 %v1159
        %v3703 = vunpack.c.h.b16 %v1159
        %v3704 = vunpack.c.l.b16 %v1160
        %v3705 = vunpack.c.h.b16 %v1160
        %v3706 = vunpack.c.l.b16 %v1161
        %v3707 = vunpack.c.h.b16 %v1161
        %v3708 = vunpack.c.l.b16 %v1162
        %v3709 = vunpack.c.h.b16 %v1162
        %v3710 = vunpack.c.l.b16 %v1163
        %v3711 = vunpack.c.h.b16 %v1163
        %v3712 = vunpack.c.l.b16 %v1164
        %v3713 = vunpack.c.h.b16 %v1164
        %v3714 = vunpack.c.l.b16 %v1165
        %v3715 = vunpack.c.h.b16 %v1165
        %v3716 = vunpack.c.l.b16 %v1166
        %v3717 = vunpack.c.h.b16 %v1166
        %v3718 = vunpack.c.l.b16 %v1167
        %v3719 = vunpack.c.h.b16 %v1167
        %v3720 = vunpack.c.l.b16 %v1168
        %v3721 = vunpack.c.h.b16 %v1168
        %v3722 = vunpack.c.l.b16 %v1169
        %v3723 = vunpack.c.h.b16 %v1169
        %v3724 = vunpack.c.l.b16 %v1170
        %v3725 = vunpack.c.h.b16 %v1170
        %v3726 = vunpack.c.l.b16 %v1171
        %v3727 = vunpack.c.h.b16 %v1171
        %v3728 = vunpack.c.l.b16 %v1172
        %v3729 = vunpack.c.h.b16 %v1172
        %v3730 = vunpack.c.l.b16 %v1173
        %v3731 = vunpack.c.h.b16 %v1173
        %v3732 = vunpack.c.l.b16 %v1174
        %v3733 = vunpack.c.h.b16 %v1174
        %v3734 = vunpack.c.l.b16 %v1175
        %v3735 = vunpack.c.h.b16 %v1175
        %v3736 = vunpack.c.l.b16 %v1176
        %v3737 = vunpack.c.h.b16 %v1176
        %v3738 = vunpack.c.l.b16 %v1177
        %v3739 = vunpack.c.h.b16 %v1177
        %v3740 = vunpack.c.l.b16 %v1178
        %v3741 = vunpack.c.h.b16 %v1178
        %v3742 = vunpack.c.l.b16 %v1179
        %v3743 = vunpack.c.h.b16 %v1179
        %v3744 = vunpack.c.l.b16 %v1180
        %v3745 = vunpack.c.h.b16 %v1180
        %v3746 = vunpack.c.l.b16 %v1181
        %v3747 = vunpack.c.h.b16 %v1181
        %v3748 = vunpack.c.l.b16 %v1182
        %v3749 = vunpack.c.h.b16 %v1182
        %v3750 = vunpack.c.l.b16 %v1183
        %v3751 = vunpack.c.h.b16 %v1183
        %v3752 = vunpack.c.l.b16 %v1184
        %v3753 = vunpack.c.h.b16 %v1184
        %v3754 = vunpack.c.l.b16 %v1185
        %v3755 = vunpack.c.h.b16 %v1185
        %v3756 = vunpack.c.l.b16 %v1186
        %v3757 = vunpack.c.h.b16 %v1186
        %v3758 = vunpack.c.l.b16 %v1187
        %v3759 = vunpack.c.h.b16 %v1187
        %v3760 = vunpack.c.l.b16 %v1188
        %v3761 = vunpack.c.h.b16 %v1188
        %v3762 = vunpack.c.l.b16 %v1189
        %v3763 = vunpack.c.h.b16 %v1189
        %v3764 = vunpack.c.l.b16 %v1190
        %v3765 = vunpack.c.h.b16 %v1190
        %v3766 = vunpack.c.l.b16 %v1191
        %v3767 = vunpack.c.h.b16 %v1191
        %v3768 = vunpack.c.l.b16 %v1192
        %v3769 = vunpack.c.h.b16 %v1192
        %v3770 = vunpack.c.l.b16 %v1193
        %v3771 = vunpack.c.h.b16 %v1193
        %v3772 = vunpack.c.l.b16 %v1194
        %v3773 = vunpack.c.h.b16 %v1194
        %v3774 = vunpack.c.l.b16 %v1195
        %v3775 = vunpack.c.h.b16 %v1195
        %v3776 = vunpack.c.l.b16 %v1196
        %v3777 = vunpack.c.h.b16 %v1196
        %v3778 = vunpack.c.l.b16 %v1197
        %v3779 = vunpack.c.h.b16 %v1197
        %v3780 = vunpack.c.l.b16 %v1198
        %v3781 = vunpack.c.h.b16 %v1198
        %v3782 = vunpack.c.l.b16 %v1199
        %v3783 = vunpack.c.h.b16 %v1199
        %v3784 = vunpack.c.l.b16 %v1200
        %v3785 = vunpack.c.h.b16 %v1200
        %v3786 = vunpack.c.l.b16 %v1201
        %v3787 = vunpack.c.h.b16 %v1201
        %v3788 = vunpack.c.l.b16 %v1202
        %v3789 = vunpack.c.h.b16 %v1202
        %v3790 = vunpack.c.l.b16 %v1203
        %v3791 = vunpack.c.h.b16 %v1203
        %v3792 = vunpack.c.l.b16 %v1204
        %v3793 = vunpack.c.h.b16 %v1204
        %v3794 = vunpack.c.l.b16 %v1205
        %v3795 = vunpack.c.h.b16 %v1205
        %v3796 = vunpack.c.l.b16 %v1206
        %v3797 = vunpack.c.h.b16 %v1206
        %v3798 = vunpack.c.l.b16 %v1207
        %v3799 = vunpack.c.h.b16 %v1207
        %v3800 = vunpack.c.l.b16 %v1208
        %v3801 = vunpack.c.h.b16 %v1208
        %v3802 = vunpack.c.l.b16 %v1209
        %v3803 = vunpack.c.h.b16 %v1209
        %v3804 = vunpack.c.l.b16 %v1210
        %v3805 = vunpack.c.h.b16 %v1210
        %v3806 = vunpack.c.l.b16 %v1211
        %v3807 = vunpack.c.h.b16 %v1211
        %v3808 = vunpack.c.l.b16 %v1212
        %v3809 = vunpack.c.h.b16 %v1212
        %v3810 = vunpack.c.l.b16 %v1213
        %v3811 = vunpack.c.h.b16 %v1213
        %v3812 = vunpack.c.l.b16 %v1214
        %v3813 = vunpack.c.h.b16 %v1214
        %v3814 = vunpack.c.l.b16 %v1215
        %v3815 = vunpack.c.h.b16 %v1215
        %v3816 = vunpack.c.l.b16 %v1216
        %v3817 = vunpack.c.h.b16 %v1216
        %v3818 = vunpack.c.l.b16 %v1217
        %v3819 = vunpack.c.h.b16 %v1217
        %v3820 = vunpack.c.l.b16 %v1218
        %v3821 = vunpack.c.h.b16 %v1218
        %v3822 = vunpack.c.l.b16 %v1219
        %v3823 = vunpack.c.h.b16 %v1219
        %v3824 = vunpack.c.l.b16 %v1220
        %v3825 = vunpack.c.h.b16 %v1220
        %v3826 = vunpack.c.l.b16 %v1221
        %v3827 = vunpack.c.h.b16 %v1221
        %v3828 = vunpack.c.l.b16 %v1222
        %v3829 = vunpack.c.h.b16 %v1222
        %v3830 = vunpack.c.l.b16 %v1223
        %v3831 = vunpack.c.h.b16 %v1223
        %v3832 = vunpack.c.l.b16 %v1224
        %v3833 = vunpack.c.h.b16 %v1224
        %v3834 = vunpack.c.l.b16 %v1225
        %v3835 = vunpack.c.h.b16 %v1225
        %v3836 = vunpack.c.l.b16 %v1226
        %v3837 = vunpack.c.h.b16 %v1226
        %v3838 = vunpack.c.l.b16 %v1227
        %v3839 = vunpack.c.h.b16 %v1227
        %v3840 = vunpack.c.l.b16 %v1228
        %v3841 = vunpack.c.h.b16 %v1228
        %v3842 = vunpack.c.l.b16 %v1229
        %v3843 = vunpack.c.h.b16 %v1229
        %v3844 = vunpack.c.l.b16 %v1230
        %v3845 = vunpack.c.h.b16 %v1230
        %v3846 = vunpack.c.l.b16 %v1231
        %v3847 = vunpack.c.h.b16 %v1231
        %v3848 = vunpack.c.l.b16 %v1232
        %v3849 = vunpack.c.h.b16 %v1232
        %v3850 = vunpack.c.l.b16 %v1233
        %v3851 = vunpack.c.h.b16 %v1233
        %v3852 = vunpack.c.l.b16 %v1234
        %v3853 = vunpack.c.h.b16 %v1234
        %v3854 = vunpack.c.l.b16 %v1235
        %v3855 = vunpack.c.h.b16 %v1235
        %v3856 = vunpack.c.l.b16 %v1236
        %v3857 = vunpack.c.h.b16 %v1236
        %v3858 = vunpack.c.l.b16 %v1237
        %v3859 = vunpack.c.h.b16 %v1237
        %v3860 = vunpack.c.l.b16 %v1238
        %v3861 = vunpack.c.h.b16 %v1238
        %v3862 = vunpack.c.l.b16 %v1239
        %v3863 = vunpack.c.h.b16 %v1239
        %v3864 = vunpack.c.l.b16 %v1240
        %v3865 = vunpack.c.h.b16 %v1240
        %v3866 = vunpack.c.l.b16 %v1241
        %v3867 = vunpack.c.h.b16 %v1241
        %v3868 = vunpack.c.l.b16 %v1242
        %v3869 = vunpack.c.h.b16 %v1242
        %v3870 = vunpack.c.l.b16 %v1243
        %v3871 = vunpack.c.h.b16 %v1243
        %v3872 = vunpack.c.l.b16 %v1244
        %v3873 = vunpack.c.h.b16 %v1244
        %v3874 = vunpack.c.l.b16 %v1245
        %v3875 = vunpack.c.h.b16 %v1245
        %v3876 = vunpack.c.l.b16 %v1246
        %v3877 = vunpack.c.h.b16 %v1246
        %v3878 = vunpack.c.l.b16 %v1247
        %v3879 = vunpack.c.h.b16 %v1247
        %v3880 = vunpack.c.l.b16 %v1248
        %v3881 = vunpack.c.h.b16 %v1248
        %v3882 = vunpack.c.l.b16 %v1249
        %v3883 = vunpack.c.h.b16 %v1249
        %v3884 = vunpack.c.l.b16 %v1250
        %v3885 = vunpack.c.h.b16 %v1250
        %v3886 = vunpack.c.l.b16 %v1251
        %v3887 = vunpack.c.h.b16 %v1251
        %v3888 = vunpack.c.l.b16 %v1252
        %v3889 = vunpack.c.h.b16 %v1252
        %v3890 = vunpack.c.l.b16 %v1253
        %v3891 = vunpack.c.h.b16 %v1253
        %v3892 = vunpack.c.l.b16 %v1254
        %v3893 = vunpack.c.h.b16 %v1254
        %v3894 = vunpack.c.l.b16 %v1255
        %v3895 = vunpack.c.h.b16 %v1255
        %v3896 = vunpack.c.l.b16 %v1256
        %v3897 = vunpack.c.h.b16 %v1256
        %v3898 = vunpack.c.l.b16 %v1257
        %v3899 = vunpack.c.h.b16 %v1257
        %v3900 = vunpack.c.l.b16 %v1258
        %v3901 = vunpack.c.h.b16 %v1258
        %v3902 = vunpack.c.l.b16 %v1259
        %v3903 = vunpack.c.h.b16 %v1259
        %v3904 = vunpack.c.l.b16 %v1260
        %v3905 = vunpack.c.h.b16 %v1260
        %v3906 = vunpack.c.l.b16 %v1261
        %v3907 = vunpack.c.h.b16 %v1261
        %v3908 = vunpack.c.l.b16 %v1262
        %v3909 = vunpack.c.h.b16 %v1262
        %v3910 = vunpack.c.l.b16 %v1263
        %v3911 = vunpack.c.h.b16 %v1263
        %v3912 = vunpack.c.l.b16 %v1264
        %v3913 = vunpack.c.h.b16 %v1264
        %v3914 = vunpack.c.l.b16 %v1265
        %v3915 = vunpack.c.h.b16 %v1265
        %v3916 = vunpack.c.l.b16 %v1266
        %v3917 = vunpack.c.h.b16 %v1266
        %v3918 = vunpack.c.l.b16 %v1267
        %v3919 = vunpack.c.h.b16 %v1267
        %v3920 = vunpack.c.l.b16 %v1268
        %v3921 = vunpack.c.h.b16 %v1268
        %v3922 = vunpack.c.l.b16 %v1269
        %v3923 = vunpack.c.h.b16 %v1269
        %v3924 = vunpack.c.l.b16 %v1270
        %v3925 = vunpack.c.h.b16 %v1270
        %v3926 = vunpack.c.l.b16 %v1271
        %v3927 = vunpack.c.h.b16 %v1271
        %v3928 = vunpack.c.l.b16 %v1272
        %v3929 = vunpack.c.h.b16 %v1272
        %v3930 = vunpack.c.l.b16 %v1273
        %v3931 = vunpack.c.h.b16 %v1273
        %v3932 = vunpack.c.l.b16 %v1274
        %v3933 = vunpack.c.h.b16 %v1274
        %v3934 = vunpack.c.l.b16 %v1275
        %v3935 = vunpack.c.h.b16 %v1275
        %v3936 = vunpack.c.l.b16 %v1276
        %v3937 = vunpack.c.h.b16 %v1276
        %v3938 = vunpack.c.l.b16 %v1277
        %v3939 = vunpack.c.h.b16 %v1277
        %v3940 = vunpack.c.l.b16 %v1278
        %v3941 = vunpack.c.h.b16 %v1278
        %v3942 = vunpack.c.l.b16 %v1279
        %v3943 = vunpack.c.h.b16 %v1279
        %v3944 = vunpack.c.l.b16 %v1280
        %v3945 = vunpack.c.h.b16 %v1280
        %v3946 = vunpack.c.l.b16 %v1281
        %v3947 = vunpack.c.h.b16 %v1281
        %v3948 = vunpack.c.l.b16 %v1282
        %v3949 = vunpack.c.h.b16 %v1282
        %v3950 = vunpack.c.l.b16 %v1283
        %v3951 = vunpack.c.h.b16 %v1283
        %v3952 = vunpack.c.l.b16 %v1284
        %v3953 = vunpack.c.h.b16 %v1284
        %v3954 = vunpack.c.l.b16 %v1285
        %v3955 = vunpack.c.h.b16 %v1285
        %v3956 = vunpack.c.l.b16 %v1286
        %v3957 = vunpack.c.h.b16 %v1286
        %v3958 = vunpack.c.l.b16 %v1287
        %v3959 = vunpack.c.h.b16 %v1287
        %v3960 = vunpack.c.l.b16 %v1288
        %v3961 = vunpack.c.h.b16 %v1288
        %v3962 = vunpack.c.l.b16 %v1289
        %v3963 = vunpack.c.h.b16 %v1289
        %v3964 = vunpack.c.l.b16 %v1290
        %v3965 = vunpack.c.h.b16 %v1290
        %v3966 = vunpack.c.l.b16 %v1291
        %v3967 = vunpack.c.h.b16 %v1291
        %v3968 = vunpack.c.l.b16 %v1292
        %v3969 = vunpack.c.h.b16 %v1292
        %v3970 = vunpack.c.l.b16 %v1293
        %v3971 = vunpack.c.h.b16 %v1293
        %v3972 = vunpack.c.l.b16 %v1294
        %v3973 = vunpack.c.h.b16 %v1294
        %v3974 = vunpack.c.l.b16 %v1295
        %v3975 = vunpack.c.h.b16 %v1295
        %v3976 = vunpack.c.l.b16 %v1296
        %v3977 = vunpack.c.h.b16 %v1296
        %v3978 = vunpack.c.l.b16 %v1297
        %v3979 = vunpack.c.h.b16 %v1297
        %v3980 = vunpack.c.l.b16 %v1298
        %v3981 = vunpack.c.h.b16 %v1298
        %v3982 = vunpack.c.l.b16 %v1299
        %v3983 = vunpack.c.h.b16 %v1299
        %v3984 = vunpack.c.l.b16 %v1300
        %v3985 = vunpack.c.h.b16 %v1300
        %v3986 = vunpack.c.l.b16 %v1301
        %v3987 = vunpack.c.h.b16 %v1301
        %v3988 = vunpack.c.l.b16 %v1302
        %v3989 = vunpack.c.h.b16 %v1302
        %v3990 = vunpack.c.l.b16 %v1303
        %v3991 = vunpack.c.h.b16 %v1303
        %v3992 = vunpack.c.l.b16 %v1304
        %v3993 = vunpack.c.h.b16 %v1304
        %v3994 = vunpack.c.l.b16 %v1305
        %v3995 = vunpack.c.h.b16 %v1305
        %v3996 = vunpack.c.l.b16 %v1306
        %v3997 = vunpack.c.h.b16 %v1306
        %v3998 = vunpack.c.l.b16 %v1307
        %v3999 = vunpack.c.h.b16 %v1307
        %v4000 = vunpack.c.l.b16 %v1308
        %v4001 = vunpack.c.h.b16 %v1308
        %v4002 = vunpack.c.l.b16 %v1309
        %v4003 = vunpack.c.h.b16 %v1309
        %v4004 = vunpack.c.l.b16 %v1310
        %v4005 = vunpack.c.h.b16 %v1310
        %v4006 = vunpack.c.l.b16 %v1311
        %v4007 = vunpack.c.h.b16 %v1311
        %v4008 = vunpack.c.l.b16 %v1312
        %v4009 = vunpack.c.h.b16 %v1312
        %v4010 = vunpack.c.l.b16 %v1313
        %v4011 = vunpack.c.h.b16 %v1313
        %v4012 = vunpack.c.l.b16 %v1314
        %v4013 = vunpack.c.h.b16 %v1314
        %v4014 = vunpack.c.l.b16 %v1315
        %v4015 = vunpack.c.h.b16 %v1315
        %v4016 = vunpack.c.l.b16 %v1316
        %v4017 = vunpack.c.h.b16 %v1316
        %v4018 = vunpack.c.l.b16 %v1317
        %v4019 = vunpack.c.h.b16 %v1317
        %v4020 = vunpack.c.l.b16 %v1318
        %v4021 = vunpack.c.h.b16 %v1318
        %v4022 = vunpack.c.l.b16 %v1319
        %v4023 = vunpack.c.h.b16 %v1319
        %v4024 = vunpack.c.l.b16 %v1320
        %v4025 = vunpack.c.h.b16 %v1320
        %v4026 = vunpack.c.l.b16 %v1321
        %v4027 = vunpack.c.h.b16 %v1321
        %v4028 = vunpack.c.l.b16 %v1322
        %v4029 = vunpack.c.h.b16 %v1322
        %v4030 = vunpack.c.l.b16 %v1323
        %v4031 = vunpack.c.h.b16 %v1323
        %v4032 = vunpack.c.l.b16 %v1324
        %v4033 = vunpack.c.h.b16 %v1324
        %v4034 = vunpack.c.l.b16 %v1325
        %v4035 = vunpack.c.h.b16 %v1325
        %v4036 = vunpack.c.l.b16 %v1326
        %v4037 = vunpack.c.h.b16 %v1326
        %v4038 = vunpack.c.l.b16 %v1327
        %v4039 = vunpack.c.h.b16 %v1327
        %v4040 = vunpack.c.l.b16 %v1328
        %v4041 = vunpack.c.h.b16 %v1328
        %v4042 = vunpack.c.l.b16 %v1329
        %v4043 = vunpack.c.h.b16 %v1329
        %v4044 = vunpack.c.l.b16 %v1330
        %v4045 = vunpack.c.h.b16 %v1330
        %v4046 = vunpack.c.l.b16 %v1331
        %v4047 = vunpack.c.h.b16 %v1331
        %v4048 = vunpack.c.l.b16 %v1332
        %v4049 = vunpack.c.h.b16 %v1332
        %v4050 = vunpack.c.l.b16 %v1333
        %v4051 = vunpack.c.h.b16 %v1333
        %v4052 = vunpack.c.l.b16 %v1334
        %v4053 = vunpack.c.h.b16 %v1334
        %v4054 = vunpack.c.l.b16 %v1335
        %v4055 = vunpack.c.h.b16 %v1335
        %v4056 = vunpack.c.l.b16 %v1336
        %v4057 = vunpack.c.h.b16 %v1336
        %v4058 = vunpack.c.l.b16 %v1337
        %v4059 = vunpack.c.h.b16 %v1337
        %v4060 = vunpack.c.l.b16 %v1338
        %v4061 = vunpack.c.h.b16 %v1338
        %v4062 = vunpack.c.l.b16 %v1339
        %v4063 = vunpack.c.h.b16 %v1339
        %v4064 = vunpack.c.l.b16 %v1340
        %v4065 = vunpack.c.h.b16 %v1340
        %v4066 = vunpack.c.l.b16 %v1341
        %v4067 = vunpack.c.h.b16 %v1341
        %v4068 = vunpack.c.l.b16 %v1342
        %v4069 = vunpack.c.h.b16 %v1342
        %v4070 = vunpack.c.l.b16 %v1343
        %v4071 = vunpack.c.h.b16 %v1343
        %v4072 = vunpack.c.l.b16 %v1344
        %v4073 = vunpack.c.h.b16 %v1344
        %v4074 = vunpack.c.l.b16 %v1345
        %v4075 = vunpack.c.h.b16 %v1345
        %v4076 = vunpack.c.l.b16 %v1346
        %v4077 = vunpack.c.h.b16 %v1346
        %v4078 = vunpack.c.l.b16 %v1347
        %v4079 = vunpack.c.h.b16 %v1347
        %v4080 = vunpack.c.l.b16 %v1348
        %v4081 = vunpack.c.h.b16 %v1348
        %v4082 = vunpack.c.l.b16 %v1349
        %v4083 = vunpack.c.h.b16 %v1349
        %v4084 = vunpack.c.l.b16 %v1350
        %v4085 = vunpack.c.h.b16 %v1350
        %v4086 = vunpack.c.l.b16 %v1351
        %v4087 = vunpack.c.h.b16 %v1351
        %v4088 = vunpack.c.l.b16 %v1352
        %v4089 = vunpack.c.h.b16 %v1352
        %v4090 = vunpack.c.l.b16 %v1353
        %v4091 = vunpack.c.h.b16 %v1353
        %v4092 = vunpack.c.l.b16 %v1354
        %v4093 = vunpack.c.h.b16 %v1354
        %v4094 = vunpack.c.l.b16 %v1355
        %v4095 = vunpack.c.h.b16 %v1355
        %v4096 = vunpack.c.l.b16 %v1356
        %v4097 = vunpack.c.h.b16 %v1356
        %v4098 = vunpack.c.l.b16 %v1357
        %v4099 = vunpack.c.h.b16 %v1357
        %v4100 = vunpack.c.l.b16 %v1358
        %v4101 = vunpack.c.h.b16 %v1358
        %v4102 = vunpack.c.l.b16 %v1359
        %v4103 = vunpack.c.h.b16 %v1359
        %v4104 = vunpack.c.l.b16 %v1360
        %v4105 = vunpack.c.h.b16 %v1360
        %v4106 = vunpack.c.l.b16 %v1361
        %v4107 = vunpack.c.h.b16 %v1361
        %v4108 = vunpack.c.l.b16 %v1362
        %v4109 = vunpack.c.h.b16 %v1362
        %v4110 = vunpack.c.l.b16 %v1363
        %v4111 = vunpack.c.h.b16 %v1363
        %v4112 = vunpack.c.l.b16 %v1364
        %v4113 = vunpack.c.h.b16 %v1364
        %v4114 = vunpack.c.l.b16 %v1365
        %v4115 = vunpack.c.h.b16 %v1365
        %v4116 = vunpack.c.l.b16 %v1366
        %v4117 = vunpack.c.h.b16 %v1366
        %v4118 = vunpack.c.l.b16 %v1367
        %v4119 = vunpack.c.h.b16 %v1367
        %v4120 = vunpack.c.l.b16 %v1368
        %v4121 = vunpack.c.h.b16 %v1368
        %v4122 = vunpack.c.l.b16 %v1369
        %v4123 = vunpack.c.h.b16 %v1369
        %v4124 = vunpack.c.l.b16 %v1370
        %v4125 = vunpack.c.h.b16 %v1370
        %v4126 = vunpack.c.l.b16 %v1371
        %v4127 = vunpack.c.h.b16 %v1371
        %v4128 = vunpack.c.l.b16 %v1372
        %v4129 = vunpack.c.h.b16 %v1372
        %v4130 = vunpack.c.l.b16 %v1373
        %v4131 = vunpack.c.h.b16 %v1373
        %v4132 = vunpack.c.l.b16 %v1374
        %v4133 = vunpack.c.h.b16 %v1374
        %v4134 = vunpack.c.l.b16 %v1375
        %v4135 = vunpack.c.h.b16 %v1375
        %v4136 = vunpack.c.l.b16 %v1376
        %v4137 = vunpack.c.h.b16 %v1376
        %v4138 = vunpack.c.l.b16 %v1377
        %v4139 = vunpack.c.h.b16 %v1377
        %v4140 = vunpack.c.l.b16 %v1378
        %v4141 = vunpack.c.h.b16 %v1378
        %v4142 = vunpack.c.l.b16 %v1379
        %v4143 = vunpack.c.h.b16 %v1379
        %v4144 = vunpack.c.l.b16 %v1380
        %v4145 = vunpack.c.h.b16 %v1380
        %v4146 = vunpack.c.l.b16 %v1381
        %v4147 = vunpack.c.h.b16 %v1381
        %v4148 = vunpack.c.l.b16 %v1382
        %v4149 = vunpack.c.h.b16 %v1382
        %v4150 = vunpack.c.l.b16 %v1383
        %v4151 = vunpack.c.h.b16 %v1383
        %v4152 = vunpack.c.l.b16 %v1384
        %v4153 = vunpack.c.h.b16 %v1384
        %v4154 = vunpack.c.l.b16 %v1385
        %v4155 = vunpack.c.h.b16 %v1385
        %v4156 = vunpack.c.l.b16 %v1386
        %v4157 = vunpack.c.h.b16 %v1386
        %v4158 = vunpack.c.l.b16 %v1387
        %v4159 = vunpack.c.h.b16 %v1387
        %v4160 = vunpack.c.l.b16 %v1388
        %v4161 = vunpack.c.h.b16 %v1388
        %v4162 = vunpack.c.l.b16 %v1389
        %v4163 = vunpack.c.h.b16 %v1389
        %v4164 = vunpack.c.l.b16 %v1390
        %v4165 = vunpack.c.h.b16 %v1390
        %v4166 = vunpack.c.l.b16 %v1391
        %v4167 = vunpack.c.h.b16 %v1391
        %v4168 = vunpack.c.l.b16 %v1392
        %v4169 = vunpack.c.h.b16 %v1392
        %v4170 = vunpack.c.l.b16 %v1393
        %v4171 = vunpack.c.h.b16 %v1393
        %v4172 = vunpack.c.l.b16 %v1394
        %v4173 = vunpack.c.h.b16 %v1394
        %v4174 = vunpack.c.l.b16 %v1395
        %v4175 = vunpack.c.h.b16 %v1395
        %v4176 = vunpack.c.l.b16 %v1396
        %v4177 = vunpack.c.h.b16 %v1396
        %v4178 = vunpack.c.l.b16 %v1397
        %v4179 = vunpack.c.h.b16 %v1397
        %v4180 = vunpack.c.l.b16 %v1398
        %v4181 = vunpack.c.h.b16 %v1398
        %v4182 = vunpack.c.l.b16 %v1399
        %v4183 = vunpack.c.h.b16 %v1399
        %v4184 = vunpack.c.l.b16 %v1400
        %v4185 = vunpack.c.h.b16 %v1400
        %v4186 = vunpack.c.l.b16 %v1401
        %v4187 = vunpack.c.h.b16 %v1401
        %v4188 = vunpack.c.l.b16 %v1402
        %v4189 = vunpack.c.h.b16 %v1402
        %v4190 = vunpack.c.l.b16 %v1403
        %v4191 = vunpack.c.h.b16 %v1403
        %v4192 = vunpack.c.l.b16 %v1404
        %v4193 = vunpack.c.h.b16 %v1404
        %v4194 = vunpack.c.l.b16 %v1405
        %v4195 = vunpack.c.h.b16 %v1405
        %v4196 = vunpack.c.l.b16 %v1406
        %v4197 = vunpack.c.h.b16 %v1406
        %v4198 = vunpack.c.l.b16 %v1407
        %v4199 = vunpack.c.h.b16 %v1407
        %v4200 = vunpack.c.l.b16 %v1408
        %v4201 = vunpack.c.h.b16 %v1408
        %v4202 = vunpack.c.l.b16 %v1409
        %v4203 = vunpack.c.h.b16 %v1409
        %v4204 = vunpack.c.l.b16 %v1410
        %v4205 = vunpack.c.h.b16 %v1410
        %v4206 = vunpack.c.l.b16 %v1411
        %v4207 = vunpack.c.h.b16 %v1411
        %v4208 = vunpack.c.l.b16 %v1412
        %v4209 = vunpack.c.h.b16 %v1412
        %v4210 = vunpack.c.l.b16 %v1413
        %v4211 = vunpack.c.h.b16 %v1413
        %v4212 = vunpack.c.l.b16 %v1414
        %v4213 = vunpack.c.h.b16 %v1414
        %v4214 = vunpack.c.l.b16 %v1415
        %v4215 = vunpack.c.h.b16 %v1415
        %v4216 = vunpack.c.l.b16 %v1416
        %v4217 = vunpack.c.h.b16 %v1416
        %v4218 = vunpack.c.l.b16 %v1417
        %v4219 = vunpack.c.h.b16 %v1417
        %v4220 = vunpack.c.l.b16 %v1418
        %v4221 = vunpack.c.h.b16 %v1418
        %v4222 = vunpack.c.l.b16 %v1419
        %v4223 = vunpack.c.h.b16 %v1419
        %v4224 = vunpack.c.l.b16 %v1420
        %v4225 = vunpack.c.h.b16 %v1420
        %v4226 = vunpack.c.l.b16 %v1421
        %v4227 = vunpack.c.h.b16 %v1421
        %v4228 = vunpack.c.l.b16 %v1422
        %v4229 = vunpack.c.h.b16 %v1422
        %v4230 = vunpack.c.l.b16 %v1423
        %v4231 = vunpack.c.h.b16 %v1423
        %v4232 = vunpack.c.l.b16 %v1424
        %v4233 = vunpack.c.h.b16 %v1424
        %v4234 = vunpack.c.l.b16 %v1425
        %v4235 = vunpack.c.h.b16 %v1425
        %v4236 = vunpack.c.l.b16 %v1426
        %v4237 = vunpack.c.h.b16 %v1426
        %v4238 = vunpack.c.l.b16 %v1427
        %v4239 = vunpack.c.h.b16 %v1427
        %v4240 = vunpack.c.l.b16 %v1428
        %v4241 = vunpack.c.h.b16 %v1428
        %v4242 = vunpack.c.l.b16 %v1429
        %v4243 = vunpack.c.h.b16 %v1429
        %v4244 = vunpack.c.l.b16 %v1430
        %v4245 = vunpack.c.h.b16 %v1430
        %v4246 = vunpack.c.l.b16 %v1431
        %v4247 = vunpack.c.h.b16 %v1431
        %v4248 = vunpack.c.l.b16 %v1432
        %v4249 = vunpack.c.h.b16 %v1432
        %v4250 = vunpack.c.l.b16 %v1433
        %v4251 = vunpack.c.h.b16 %v1433
        %v4252 = vunpack.c.l.b16 %v1434
        %v4253 = vunpack.c.h.b16 %v1434
        %v4254 = vunpack.c.l.b16 %v1435
        %v4255 = vunpack.c.h.b16 %v1435
        %v4256 = vunpack.c.l.b16 %v1436
        %v4257 = vunpack.c.h.b16 %v1436
        %v4258 = vunpack.c.l.b16 %v1437
        %v4259 = vunpack.c.h.b16 %v1437
        %v4260 = vunpack.c.l.b16 %v1438
        %v4261 = vunpack.c.h.b16 %v1438
        %v4262 = vunpack.c.l.b16 %v1439
        %v4263 = vunpack.c.h.b16 %v1439
        %v4264 = vunpack.c.l.b16 %v1440
        %v4265 = vunpack.c.h.b16 %v1440
        %v4266 = vunpack.c.l.b16 %v1441
        %v4267 = vunpack.c.h.b16 %v1441
        %v4268 = vunpack.c.l.b16 %v1442
        %v4269 = vunpack.c.h.b16 %v1442
        %v4270 = vunpack.c.l.b16 %v1443
        %v4271 = vunpack.c.h.b16 %v1443
        %v4272 = vunpack.c.l.b16 %v1444
        %v4273 = vunpack.c.h.b16 %v1444
        %v4274 = vunpack.c.l.b16 %v1445
        %v4275 = vunpack.c.h.b16 %v1445
        %v4276 = vunpack.c.l.b16 %v1446
        %v4277 = vunpack.c.h.b16 %v1446
        %v4278 = vunpack.c.l.b16 %v1447
        %v4279 = vunpack.c.h.b16 %v1447
        %v4280 = vunpack.c.l.b16 %v1448
        %v4281 = vunpack.c.h.b16 %v1448
        %v4282 = vunpack.c.l.b16 %v1449
        %v4283 = vunpack.c.h.b16 %v1449
        %v4284 = vunpack.c.l.b16 %v1450
        %v4285 = vunpack.c.h.b16 %v1450
        %v4286 = vunpack.c.l.b16 %v1451
        %v4287 = vunpack.c.h.b16 %v1451
        %v4288 = vunpack.c.l.b16 %v1452
        %v4289 = vunpack.c.h.b16 %v1452
        %v4290 = vunpack.c.l.b16 %v1453
        %v4291 = vunpack.c.h.b16 %v1453
        %v4292 = vunpack.c.l.b16 %v1454
        %v4293 = vunpack.c.h.b16 %v1454
        %v4294 = vunpack.c.l.b16 %v1455
        %v4295 = vunpack.c.h.b16 %v1455
        %v4296 = vunpack.c.l.b16 %v1456
        %v4297 = vunpack.c.h.b16 %v1456
        %v4298 = vunpack.c.l.b16 %v1457
        %v4299 = vunpack.c.h.b16 %v1457
        %v4300 = vunpack.c.l.b16 %v1458
        %v4301 = vunpack.c.h.b16 %v1458
        %v4302 = vunpack.c.l.b16 %v1459
        %v4303 = vunpack.c.h.b16 %v1459
        %v4304 = vunpack.c.l.b16 %v1460
        %v4305 = vunpack.c.h.b16 %v1460
        %v4306 = vunpack.c.l.b16 %v1461
        %v4307 = vunpack.c.h.b16 %v1461
        %v4308 = vunpack.c.l.b16 %v1462
        %v4309 = vunpack.c.h.b16 %v1462
        %v4310 = vunpack.c.l.b16 %v1463
        %v4311 = vunpack.c.h.b16 %v1463
        %v4312 = vunpack.c.l.b16 %v1464
        %v4313 = vunpack.c.h.b16 %v1464
        %v4314 = vunpack.c.l.b16 %v1465
        %v4315 = vunpack.c.h.b16 %v1465
        %v4316 = vunpack.c.l.b16 %v1466
        %v4317 = vunpack.c.h.b16 %v1466
        %v4318 = vunpack.c.l.b16 %v1467
        %v4319 = vunpack.c.h.b16 %v1467
        %v4320 = vunpack.c.l.b16 %v1468
        %v4321 = vunpack.c.h.b16 %v1468
        %v4322 = vunpack.c.l.b16 %v1469
        %v4323 = vunpack.c.h.b16 %v1469
        %v4324 = vunpack.c.l.b16 %v1470
        %v4325 = vunpack.c.h.b16 %v1470
        %v4326 = vunpack.c.l.b16 %v1471
        %v4327 = vunpack.c.h.b16 %v1471
        %v4328 = vunpack.c.l.b16 %v1472
        %v4329 = vunpack.c.h.b16 %v1472
        %v4330 = vunpack.c.l.b16 %v1473
        %v4331 = vunpack.c.h.b16 %v1473
        %v4332 = vunpack.c.l.b16 %v1474
        %v4333 = vunpack.c.h.b16 %v1474
        %v4334 = vunpack.c.l.b16 %v1475
        %v4335 = vunpack.c.h.b16 %v1475
        %v4336 = vunpack.c.l.b16 %v1476
        %v4337 = vunpack.c.h.b16 %v1476
        %v4338 = vunpack.c.l.b16 %v1477
        %v4339 = vunpack.c.h.b16 %v1477
        %v4340 = vunpack.c.l.b16 %v1478
        %v4341 = vunpack.c.h.b16 %v1478
        %v4342 = vunpack.c.l.b16 %v1479
        %v4343 = vunpack.c.h.b16 %v1479
        %v4344 = vunpack.c.l.b16 %v1480
        %v4345 = vunpack.c.h.b16 %v1480
        %v4346 = vunpack.c.l.b16 %v1481
        %v4347 = vunpack.c.h.b16 %v1481
        %v4348 = vunpack.c.l.b16 %v1482
        %v4349 = vunpack.c.h.b16 %v1482
        %v4350 = vunpack.c.l.b16 %v1483
        %v4351 = vunpack.c.h.b16 %v1483
        %v4352 = vunpack.c.l.b16 %v1484
        %v4353 = vunpack.c.h.b16 %v1484
        %v4354 = vunpack.c.l.b16 %v1485
        %v4355 = vunpack.c.h.b16 %v1485
        %v4356 = vunpack.c.l.b16 %v1486
        %v4357 = vunpack.c.h.b16 %v1486
        %v4358 = vunpack.c.l.b16 %v1487
        %v4359 = vunpack.c.h.b16 %v1487
        %v4360 = vunpack.c.l.b16 %v1488
        %v4361 = vunpack.c.h.b16 %v1488
        %v4362 = vunpack.c.l.b16 %v1489
        %v4363 = vunpack.c.h.b16 %v1489
        %v4364 = vunpack.c.l.b16 %v1490
        %v4365 = vunpack.c.h.b16 %v1490
        %v4366 = vunpack.c.l.b16 %v1491
        %v4367 = vunpack.c.h.b16 %v1491
        %v4368 = vunpack.c.l.b16 %v1492
        %v4369 = vunpack.c.h.b16 %v1492
        %v4370 = vunpack.c.l.b16 %v1493
        %v4371 = vunpack.c.h.b16 %v1493
        %v4372 = vunpack.c.l.b16 %v1494
        %v4373 = vunpack.c.h.b16 %v1494
        %v4374 = vunpack.c.l.b16 %v1495
        %v4375 = vunpack.c.h.b16 %v1495
        %v4376 = vunpack.c.l.b16 %v1496
        %v4377 = vunpack.c.h.b16 %v1496
        %v4378 = vunpack.c.l.b16 %v1497
        %v4379 = vunpack.c.h.b16 %v1497
        %v4380 = vunpack.c.l.b16 %v1498
        %v4381 = vunpack.c.h.b16 %v1498
        %v4382 = vunpack.c.l.b16 %v1499
        %v4383 = vunpack.c.h.b16 %v1499
        %v4384 = vunpack.c.l.b16 %v1500
        %v4385 = vunpack.c.h.b16 %v1500
        %v4386 = vunpack.c.l.b16 %v1501
        %v4387 = vunpack.c.h.b16 %v1501
        %v4388 = vunpack.c.l.b16 %v1502
        %v4389 = vunpack.c.h.b16 %v1502
        %v4390 = vunpack.c.l.b16 %v1503
        %v4391 = vunpack.c.h.b16 %v1503
        %v4392 = vunpack.c.l.b16 %v1504
        %v4393 = vunpack.c.h.b16 %v1504
        %v4394 = vunpack.c.l.b16 %v1505
        %v4395 = vunpack.c.h.b16 %v1505
        %v4396 = vunpack.c.l.b16 %v1506
        %v4397 = vunpack.c.h.b16 %v1506
        %v4398 = vunpack.c.l.b16 %v1507
        %v4399 = vunpack.c.h.b16 %v1507
        %v4400 = vunpack.c.l.b16 %v1508
        %v4401 = vunpack.c.h.b16 %v1508
        %v4402 = vunpack.c.l.b16 %v1509
        %v4403 = vunpack.c.h.b16 %v1509
        %v4404 = vunpack.c.l.b16 %v1510
        %v4405 = vunpack.c.h.b16 %v1510
        %v4406 = vunpack.c.l.b16 %v1511
        %v4407 = vunpack.c.h.b16 %v1511
        %v4408 = vunpack.c.l.b16 %v1512
        %v4409 = vunpack.c.h.b16 %v1512
        %v4410 = vunpack.c.l.b16 %v1513
        %v4411 = vunpack.c.h.b16 %v1513
        %v4412 = vunpack.c.l.b16 %v1514
        %v4413 = vunpack.c.h.b16 %v1514
        %v4414 = vunpack.c.l.b16 %v1515
        %v4415 = vunpack.c.h.b16 %v1515
        %v4416 = vunpack.c.l.b16 %v1516
        %v4417 = vunpack.c.h.b16 %v1516
        %v4418 = vunpack.c.l.b16 %v1517
        %v4419 = vunpack.c.h.b16 %v1517
        %v4420 = vunpack.c.l.b16 %v1518
        %v4421 = vunpack.c.h.b16 %v1518
        %v4422 = vunpack.c.l.b16 %v1519
        %v4423 = vunpack.c.h.b16 %v1519
        %v4424 = vunpack.c.l.b16 %v1520
        %v4425 = vunpack.c.h.b16 %v1520
        %v4426 = vunpack.c.l.b16 %v1521
        %v4427 = vunpack.c.h.b16 %v1521
        %v4428 = vunpack.c.l.b16 %v1522
        %v4429 = vunpack.c.h.b16 %v1522
        %v4430 = vunpack.c.l.b16 %v1523
        %v4431 = vunpack.c.h.b16 %v1523
        %v4432 = vunpack.c.l.b16 %v1524
        %v4433 = vunpack.c.h.b16 %v1524
        %v4434 = vunpack.c.l.b16 %v1525
        %v4435 = vunpack.c.h.b16 %v1525
        %v4436 = vunpack.c.l.b16 %v1526
        %v4437 = vunpack.c.h.b16 %v1526
        %v4438 = vunpack.c.l.b16 %v1527
        %v4439 = vunpack.c.h.b16 %v1527
        %v4440 = vunpack.c.l.b16 %v1528
        %v4441 = vunpack.c.h.b16 %v1528
        %v4442 = vunpack.c.l.b16 %v1529
        %v4443 = vunpack.c.h.b16 %v1529
        %v4444 = vunpack.c.l.b16 %v1530
        %v4445 = vunpack.c.h.b16 %v1530
        %v4446 = vunpack.c.l.b16 %v1531
        %v4447 = vunpack.c.h.b16 %v1531
        %v4448 = vunpack.c.l.b16 %v1532
        %v4449 = vunpack.c.h.b16 %v1532
        %v4450 = vunpack.c.l.b16 %v1533
        %v4451 = vunpack.c.h.b16 %v1533
        %v4452 = vunpack.c.l.b16 %v1534
        %v4453 = vunpack.c.h.b16 %v1534
        %v4454 = vunpack.c.l.b16 %v1535
        %v4455 = vunpack.c.h.b16 %v1535
        %v4456 = vunpack.c.l.b16 %v1536
        %v4457 = vunpack.c.h.b16 %v1536
        %v4458 = vunpack.c.l.b16 %v1537
        %v4459 = vunpack.c.h.b16 %v1537
        %v4460 = vunpack.c.l.b16 %v1538
        %v4461 = vunpack.c.h.b16 %v1538
        %v4462 = vunpack.c.l.b16 %v1539
        %v4463 = vunpack.c.h.b16 %v1539
        %v4464 = vunpack.c.l.b16 %v1540
        %v4465 = vunpack.c.h.b16 %v1540
        %v4466 = vunpack.c.l.b16 %v1541
        %v4467 = vunpack.c.h.b16 %v1541
        %v4468 = vunpack.c.l.b16 %v1542
        %v4469 = vunpack.c.h.b16 %v1542
        %v4470 = vunpack.c.l.b16 %v1543
        %v4471 = vunpack.c.h.b16 %v1543
        %v4472 = vunpack.c.l.b16 %v1544
        %v4473 = vunpack.c.h.b16 %v1544
        %v4474 = vunpack.c.l.b16 %v1545
        %v4475 = vunpack.c.h.b16 %v1545
        %v4476 = vunpack.c.l.b16 %v1546
        %v4477 = vunpack.c.h.b16 %v1546
        %v4478 = vunpack.c.l.b16 %v1547
        %v4479 = vunpack.c.h.b16 %v1547
        %v4480 = vunpack.c.l.b16 %v1548
        %v4481 = vunpack.c.h.b16 %v1548
        %v4482 = vunpack.c.l.b16 %v1549
        %v4483 = vunpack.c.h.b16 %v1549
        %v4484 = vunpack.c.l.b16 %v1550
        %v4485 = vunpack.c.h.b16 %v1550
        %v4486 = vunpack.c.l.b16 %v1551
        %v4487 = vunpack.c.h.b16 %v1551
        %v4488 = vunpack.c.l.b16 %v1552
        %v4489 = vunpack.c.h.b16 %v1552
        %v4490 = vunpack.c.l.b16 %v1553
        %v4491 = vunpack.c.h.b16 %v1553
        %v4492 = vunpack.c.l.b16 %v1554
        %v4493 = vunpack.c.h.b16 %v1554
        %v4494 = vunpack.c.l.b16 %v1555
        %v4495 = vunpack.c.h.b16 %v1555
        %v4496 = vunpack.c.l.b16 %v1556
        %v4497 = vunpack.c.h.b16 %v1556
        %v4498 = vunpack.c.l.b16 %v1557
        %v4499 = vunpack.c.h.b16 %v1557
        %v4500 = vunpack.c.l.b16 %v1558
        %v4501 = vunpack.c.h.b16 %v1558
        %v4502 = vunpack.c.l.b16 %v1559
        %v4503 = vunpack.c.h.b16 %v1559
        %v4504 = vunpack.c.l.b16 %v1560
        %v4505 = vunpack.c.h.b16 %v1560
        %v4506 = vunpack.c.l.b16 %v1561
        %v4507 = vunpack.c.h.b16 %v1561
        %v4508 = vunpack.c.l.b16 %v1562
        %v4509 = vunpack.c.h.b16 %v1562
        %v4510 = vunpack.c.l.b16 %v1563
        %v4511 = vunpack.c.h.b16 %v1563
        %v4512 = vunpack.c.l.b16 %v1564
        %v4513 = vunpack.c.h.b16 %v1564
        %v4514 = vunpack.c.l.b16 %v1565
        %v4515 = vunpack.c.h.b16 %v1565
        %v4516 = vunpack.c.l.b16 %v1566
        %v4517 = vunpack.c.h.b16 %v1566
        %v4518 = vunpack.c.l.b16 %v1567
        %v4519 = vunpack.c.h.b16 %v1567
        %v4520 = vunpack.c.l.b16 %v1568
        %v4521 = vunpack.c.h.b16 %v1568
        %v4522 = vunpack.c.l.b16 %v1569
        %v4523 = vunpack.c.h.b16 %v1569
        %v4524 = vunpack.c.l.b16 %v1570
        %v4525 = vunpack.c.h.b16 %v1570
        %v4526 = vunpack.c.l.b16 %v1571
        %v4527 = vunpack.c.h.b16 %v1571
        %v4528 = vunpack.c.l.b16 %v1572
        %v4529 = vunpack.c.h.b16 %v1572
        %v4530 = vunpack.c.l.b16 %v1573
        %v4531 = vunpack.c.h.b16 %v1573
        %v4532 = vunpack.c.l.b16 %v1574
        %v4533 = vunpack.c.h.b16 %v1574
        %v4534 = vunpack.c.l.b16 %v1575
        %v4535 = vunpack.c.h.b16 %v1575
        %v4536 = vunpack.c.l.b16 %v1576
        %v4537 = vunpack.c.h.b16 %v1576
        %v4538 = vunpack.c.l.b16 %v1577
        %v4539 = vunpack.c.h.b16 %v1577
        %v4540 = vunpack.c.l.b16 %v1578
        %v4541 = vunpack.c.h.b16 %v1578
        %v4542 = vunpack.c.l.b16 %v1579
        %v4543 = vunpack.c.h.b16 %v1579
        %v4544 = vunpack.c.l.b16 %v1580
        %v4545 = vunpack.c.h.b16 %v1580
        %v4546 = vunpack.c.l.b16 %v1581
        %v4547 = vunpack.c.h.b16 %v1581
        %v4548 = vunpack.c.l.b16 %v1582
        %v4549 = vunpack.c.h.b16 %v1582
        %v4550 = vunpack.c.l.b16 %v1583
        %v4551 = vunpack.c.h.b16 %v1583
        %v4552 = vunpack.c.l.b16 %v1584
        %v4553 = vunpack.c.h.b16 %v1584
        %v4554 = vunpack.c.l.b16 %v1585
        %v4555 = vunpack.c.h.b16 %v1585
        %v4556 = vunpack.c.l.b16 %v1586
        %v4557 = vunpack.c.h.b16 %v1586
        %v4558 = vunpack.c.l.b16 %v1587
        %v4559 = vunpack.c.h.b16 %v1587
        %v4560 = vunpack.c.l.b16 %v1588
        %v4561 = vunpack.c.h.b16 %v1588
        %v4562 = vunpack.c.l.b16 %v1589
        %v4563 = vunpack.c.h.b16 %v1589
        %v4564 = vunpack.c.l.b16 %v1590
        %v4565 = vunpack.c.h.b16 %v1590
        %v4566 = vunpack.c.l.b16 %v1591
        %v4567 = vunpack.c.h.b16 %v1591
        %v4568 = vunpack.c.l.b16 %v1592
        %v4569 = vunpack.c.h.b16 %v1592
        %v4570 = vunpack.c.l.b16 %v1593
        %v4571 = vunpack.c.h.b16 %v1593
        %v4572 = vunpack.c.l.b16 %v1594
        %v4573 = vunpack.c.h.b16 %v1594
        %v4574 = vunpack.c.l.b16 %v1595
        %v4575 = vunpack.c.h.b16 %v1595
        %v4576 = vunpack.c.l.b16 %v1596
        %v4577 = vunpack.c.h.b16 %v1596
        %v4578 = vunpack.c.l.b16 %v1597
        %v4579 = vunpack.c.h.b16 %v1597
        %v4580 = vunpack.c.l.b16 %v1598
        %v4581 = vunpack.c.h.b16 %v1598
        %v4582 = vunpack.c.l.b16 %v1599
        %v4583 = vunpack.c.h.b16 %v1599
        %v4584 = vunpack.c.l.b16 %v1600
        %v4585 = vunpack.c.h.b16 %v1600
        %v4586 = vunpack.c.l.b16 %v1601
        %v4587 = vunpack.c.h.b16 %v1601
        %v4588 = vunpack.c.l.b16 %v1602
        %v4589 = vunpack.c.h.b16 %v1602
        %v4590 = vunpack.c.l.b16 %v1603
        %v4591 = vunpack.c.h.b16 %v1603
        %v4592 = vunpack.c.l.b16 %v1604
        %v4593 = vunpack.c.h.b16 %v1604
        %v4594 = vunpack.c.l.b16 %v1605
        %v4595 = vunpack.c.h.b16 %v1605
        %v4596 = vunpack.c.l.b16 %v1606
        %v4597 = vunpack.c.h.b16 %v1606
        %v4598 = vunpack.c.l.b16 %v1607
        %v4599 = vunpack.c.h.b16 %v1607
        %v4600 = vunpack.c.l.b16 %v1608
        %v4601 = vunpack.c.h.b16 %v1608
        %v4602 = vunpack.c.l.b16 %v1609
        %v4603 = vunpack.c.h.b16 %v1609
        %v4604 = vunpack.c.l.b16 %v1610
        %v4605 = vunpack.c.h.b16 %v1610
        %v4606 = vunpack.c.l.b16 %v1611
        %v4607 = vunpack.c.h.b16 %v1611
        %v4608 = vunpack.c.l.b16 %v1612
        %v4609 = vunpack.c.h.b16 %v1612
        %v4610 = vunpack.c.l.b16 %v1613
        %v4611 = vunpack.c.h.b16 %v1613
        %v4612 = vunpack.c.l.b16 %v1614
        %v4613 = vunpack.c.h.b16 %v1614
        %v4614 = vunpack.c.l.b16 %v1615
        %v4615 = vunpack.c.h.b16 %v1615
        %v4616 = vunpack.c.l.b16 %v1616
        %v4617 = vunpack.c.h.b16 %v1616
        %v4618 = vunpack.c.l.b16 %v1617
        %v4619 = vunpack.c.h.b16 %v1617
        %v4620 = vunpack.c.l.b16 %v1618
        %v4621 = vunpack.c.h.b16 %v1618
        %v4622 = vunpack.c.l.b16 %v1619
        %v4623 = vunpack.c.h.b16 %v1619
        %v4624 = vunpack.c.l.b16 %v1620
        %v4625 = vunpack.c.h.b16 %v1620
        %v4626 = vunpack.c.l.b16 %v1621
        %v4627 = vunpack.c.h.b16 %v1621
        %v4628 = vunpack.c.l.b16 %v1622
        %v4629 = vunpack.c.h.b16 %v1622
        %v4630 = vunpack.c.l.b16 %v1623
        %v4631 = vunpack.c.h.b16 %v1623
        %v4632 = vunpack.c.l.b16 %v1624
        %v4633 = vunpack.c.h.b16 %v1624
        %v4634 = vunpack.c.l.b16 %v1625
        %v4635 = vunpack.c.h.b16 %v1625
        %v4636 = vunpack.c.l.b16 %v1626
        %v4637 = vunpack.c.h.b16 %v1626
        %v4638 = vunpack.c.l.b16 %v1627
        %v4639 = vunpack.c.h.b16 %v1627
        %v4640 = vunpack.c.l.b16 %v1628
        %v4641 = vunpack.c.h.b16 %v1628
        %v4642 = vunpack.c.l.b16 %v1629
        %v4643 = vunpack.c.h.b16 %v1629
        %v4644 = vunpack.c.l.b16 %v1630
        %v4645 = vunpack.c.h.b16 %v1630
        %v4646 = vunpack.c.l.b16 %v1631
        %v4647 = vunpack.c.h.b16 %v1631
        %v4648 = vunpack.c.l.b16 %v1632
        %v4649 = vunpack.c.h.b16 %v1632
        %v4650 = vunpack.c.l.b16 %v1633
        %v4651 = vunpack.c.h.b16 %v1633
        %v4652 = vunpack.c.l.b16 %v1634
        %v4653 = vunpack.c.h.b16 %v1634
        %v4654 = vunpack.c.l.b16 %v1635
        %v4655 = vunpack.c.h.b16 %v1635
        %v4656 = vunpack.c.l.b16 %v1636
        %v4657 = vunpack.c.h.b16 %v1636
        %v4658 = vunpack.c.l.b16 %v1637
        %v4659 = vunpack.c.h.b16 %v1637
        %v4660 = vunpack.c.l.b16 %v1638
        %v4661 = vunpack.c.h.b16 %v1638
        %v4662 = vunpack.c.l.b16 %v1639
        %v4663 = vunpack.c.h.b16 %v1639
        %v4664 = vunpack.c.l.b16 %v1640
        %v4665 = vunpack.c.h.b16 %v1640
        %v4666 = vunpack.c.l.b16 %v1641
        %v4667 = vunpack.c.h.b16 %v1641
        %v4668 = vunpack.c.l.b16 %v1642
        %v4669 = vunpack.c.h.b16 %v1642
        %v4670 = vunpack.c.l.b16 %v1643
        %v4671 = vunpack.c.h.b16 %v1643
        %v4672 = vunpack.c.l.b16 %v1644
        %v4673 = vunpack.c.h.b16 %v1644
        %v4674 = vunpack.c.l.b16 %v1645
        %v4675 = vunpack.c.h.b16 %v1645
        %v4676 = vunpack.c.l.b16 %v1646
        %v4677 = vunpack.c.h.b16 %v1646
        %v4678 = vunpack.c.l.b16 %v1647
        %v4679 = vunpack.c.h.b16 %v1647
        %v4680 = vunpack.c.l.b16 %v1648
        %v4681 = vunpack.c.h.b16 %v1648
        %v4682 = vunpack.c.l.b16 %v1649
        %v4683 = vunpack.c.h.b16 %v1649
        %v4684 = vunpack.c.l.b16 %v1650
        %v4685 = vunpack.c.h.b16 %v1650
        %v4686 = vunpack.c.l.b16 %v1651
        %v4687 = vunpack.c.h.b16 %v1651
        %v4688 = vunpack.c.l.b16 %v1652
        %v4689 = vunpack.c.h.b16 %v1652
        %v4690 = vunpack.c.l.b16 %v1653
        %v4691 = vunpack.c.h.b16 %v1653
        %v4692 = vunpack.c.l.b16 %v1654
        %v4693 = vunpack.c.h.b16 %v1654
        %v4694 = vunpack.c.l.b16 %v1655
        %v4695 = vunpack.c.h.b16 %v1655
        %v4696 = vunpack.c.l.b16 %v1656
        %v4697 = vunpack.c.h.b16 %v1656
        %v4698 = vunpack.c.l.b16 %v1657
        %v4699 = vunpack.c.h.b16 %v1657
        %v4700 = vunpack.c.l.b16 %v1658
        %v4701 = vunpack.c.h.b16 %v1658
        %v4702 = vunpack.c.l.b16 %v1659
        %v4703 = vunpack.c.h.b16 %v1659
        %v4704 = vunpack.c.l.b16 %v1660
        %v4705 = vunpack.c.h.b16 %v1660
        %v4706 = vunpack.c.l.b16 %v1661
        %v4707 = vunpack.c.h.b16 %v1661
        %v4708 = vunpack.c.l.b16 %v1662
        %v4709 = vunpack.c.h.b16 %v1662
        %v4710 = vunpack.c.l.b16 %v1663
        %v4711 = vunpack.c.h.b16 %v1663
        %v4712 = vunpack.c.l.b16 %v1664
        %v4713 = vunpack.c.h.b16 %v1664
        %v4714 = vunpack.c.l.b16 %v1665
        %v4715 = vunpack.c.h.b16 %v1665
        %v4716 = vunpack.c.l.b16 %v1666
        %v4717 = vunpack.c.h.b16 %v1666
        %v4718 = vunpack.c.l.b16 %v1667
        %v4719 = vunpack.c.h.b16 %v1667
        %v4720 = vunpack.c.l.b16 %v1668
        %v4721 = vunpack.c.h.b16 %v1668
        %v4722 = vunpack.c.l.b16 %v1669
        %v4723 = vunpack.c.h.b16 %v1669
        %v4724 = vunpack.c.l.b16 %v1670
        %v4725 = vunpack.c.h.b16 %v1670
        %v4726 = vunpack.c.l.b16 %v1671
        %v4727 = vunpack.c.h.b16 %v1671
        %v4728 = vunpack.c.l.b16 %v1672
        %v4729 = vunpack.c.h.b16 %v1672
        %v4730 = vunpack.c.l.b16 %v1673
        %v4731 = vunpack.c.h.b16 %v1673
        %v4732 = vunpack.c.l.b16 %v1674
        %v4733 = vunpack.c.h.b16 %v1674
        %v4734 = vunpack.c.l.b16 %v1675
        %v4735 = vunpack.c.h.b16 %v1675
        %v4736 = vunpack.c.l.b16 %v1676
        %v4737 = vunpack.c.h.b16 %v1676
        %v4738 = vunpack.c.l.b16 %v1677
        %v4739 = vunpack.c.h.b16 %v1677
        %v4740 = vunpack.c.l.b16 %v1678
        %v4741 = vunpack.c.h.b16 %v1678
        %v4742 = vunpack.c.l.b16 %v1679
        %v4743 = vunpack.c.h.b16 %v1679
        %v4744 = vunpack.c.l.b16 %v1680
        %v4745 = vunpack.c.h.b16 %v1680
        %v4746 = vunpack.c.l.b16 %v1681
        %v4747 = vunpack.c.h.b16 %v1681
        %v4748 = vunpack.c.l.b16 %v1682
        %v4749 = vunpack.c.h.b16 %v1682
        %v4750 = vunpack.c.l.b16 %v1683
        %v4751 = vunpack.c.h.b16 %v1683
        %v4752 = vunpack.c.l.b16 %v1684
        %v4753 = vunpack.c.h.b16 %v1684
        %v4754 = vunpack.c.l.b16 %v1685
        %v4755 = vunpack.c.h.b16 %v1685
        %v4756 = vunpack.c.l.b16 %v1686
        %v4757 = vunpack.c.h.b16 %v1686
        %v4758 = vunpack.c.l.b16 %v1687
        %v4759 = vunpack.c.h.b16 %v1687
        %v4760 = vunpack.c.l.b16 %v1688
        %v4761 = vunpack.c.h.b16 %v1688
        %v4762 = vunpack.c.l.b16 %v1689
        %v4763 = vunpack.c.h.b16 %v1689
        %v4764 = vunpack.c.l.b16 %v1690
        %v4765 = vunpack.c.h.b16 %v1690
        %v4766 = vunpack.c.l.b16 %v1691
        %v4767 = vunpack.c.h.b16 %v1691
        %v4768 = vunpack.c.l.b16 %v1692
        %v4769 = vunpack.c.h.b16 %v1692
        %v4770 = vunpack.c.l.b16 %v1693
        %v4771 = vunpack.c.h.b16 %v1693
        %v4772 = vunpack.c.l.b16 %v1694
        %v4773 = vunpack.c.h.b16 %v1694
        %v4774 = vunpack.c.l.b16 %v1695
        %v4775 = vunpack.c.h.b16 %v1695
        %v4776 = vunpack.c.l.b16 %v1696
        %v4777 = vunpack.c.h.b16 %v1696
        %v4778 = vunpack.c.l.b16 %v1697
        %v4779 = vunpack.c.h.b16 %v1697
        %v4780 = vunpack.c.l.b16 %v1698
        %v4781 = vunpack.c.h.b16 %v1698
        %v4782 = vunpack.c.l.b16 %v1699
        %v4783 = vunpack.c.h.b16 %v1699
        %v4784 = vunpack.c.l.b16 %v1700
        %v4785 = vunpack.c.h.b16 %v1700
        %v4786 = vunpack.c.l.b16 %v1701
        %v4787 = vunpack.c.h.b16 %v1701
        %v4788 = vunpack.c.l.b16 %v1702
        %v4789 = vunpack.c.h.b16 %v1702
        %v4790 = vunpack.c.l.b16 %v1703
        %v4791 = vunpack.c.h.b16 %v1703
        %v4792 = vunpack.c.l.b16 %v1704
        %v4793 = vunpack.c.h.b16 %v1704
        %v4794 = vunpack.c.l.b16 %v1705
        %v4795 = vunpack.c.h.b16 %v1705
        %v4796 = vunpack.c.l.b16 %v1706
        %v4797 = vunpack.c.h.b16 %v1706
        %v4798 = vunpack.c.l.b16 %v1707
        %v4799 = vunpack.c.h.b16 %v1707
        %v4800 = vunpack.c.l.b16 %v1708
        %v4801 = vunpack.c.h.b16 %v1708
        %v4802 = vunpack.c.l.b16 %v1709
        %v4803 = vunpack.c.h.b16 %v1709
        %v4804 = vunpack.c.l.b16 %v1710
        %v4805 = vunpack.c.h.b16 %v1710
        %v4806 = vunpack.c.l.b16 %v1711
        %v4807 = vunpack.c.h.b16 %v1711
        %v4808 = vunpack.c.l.b16 %v1712
        %v4809 = vunpack.c.h.b16 %v1712
        %v4810 = vunpack.c.l.b16 %v1713
        %v4811 = vunpack.c.h.b16 %v1713
        %v4812 = vunpack.c.l.b16 %v1714
        %v4813 = vunpack.c.h.b16 %v1714
        %v4814 = vunpack.c.l.b16 %v1715
        %v4815 = vunpack.c.h.b16 %v1715
        %v4816 = vunpack.c.l.b16 %v1716
        %v4817 = vunpack.c.h.b16 %v1716
        %v4818 = vunpack.c.l.b16 %v1717
        %v4819 = vunpack.c.h.b16 %v1717
        %v4820 = vunpack.c.l.b16 %v1718
        %v4821 = vunpack.c.h.b16 %v1718
        %v4822 = vunpack.c.l.b16 %v1719
        %v4823 = vunpack.c.h.b16 %v1719
        %v4824 = vunpack.c.l.b16 %v1720
        %v4825 = vunpack.c.h.b16 %v1720
        %v4826 = vunpack.c.l.b16 %v1721
        %v4827 = vunpack.c.h.b16 %v1721
        %v4828 = vunpack.c.l.b16 %v1722
        %v4829 = vunpack.c.h.b16 %v1722
        %v4830 = vunpack.c.l.b16 %v1723
        %v4831 = vunpack.c.h.b16 %v1723
        %v4832 = vunpack.c.l.b16 %v1724
        %v4833 = vunpack.c.h.b16 %v1724
        %v4834 = vunpack.c.l.b16 %v1725
        %v4835 = vunpack.c.h.b16 %v1725
        %v4836 = vunpack.c.l.b16 %v1726
        %v4837 = vunpack.c.h.b16 %v1726
        %v4838 = vunpack.c.l.b16 %v1727
        %v4839 = vunpack.c.h.b16 %v1727
        %v4840 = vunpack.c.l.b16 %v1728
        %v4841 = vunpack.c.h.b16 %v1728
        %v4842 = vunpack.c.l.b16 %v1729
        %v4843 = vunpack.c.h.b16 %v1729
        %v4844 = vunpack.c.l.b16 %v1730
        %v4845 = vunpack.c.h.b16 %v1730
        %v4846 = vunpack.c.l.b16 %v1731
        %v4847 = vunpack.c.h.b16 %v1731
        %v4848 = vunpack.c.l.b16 %v1732
        %v4849 = vunpack.c.h.b16 %v1732
        %v4850 = vunpack.c.l.b16 %v1733
        %v4851 = vunpack.c.h.b16 %v1733
        %v4852 = vunpack.c.l.b16 %v1734
        %v4853 = vunpack.c.h.b16 %v1734
        %v4854 = vunpack.c.l.b16 %v1735
        %v4855 = vunpack.c.h.b16 %v1735
        %v4856 = vunpack.c.l.b16 %v1736
        %v4857 = vunpack.c.h.b16 %v1736
        %v4858 = vunpack.c.l.b16 %v1737
        %v4859 = vunpack.c.h.b16 %v1737
        %v4860 = vunpack.c.l.b16 %v1738
        %v4861 = vunpack.c.h.b16 %v1738
        %v4862 = vunpack.c.l.b16 %v1739
        %v4863 = vunpack.c.h.b16 %v1739
        %v4864 = vunpack.c.l.b16 %v1740
        %v4865 = vunpack.c.h.b16 %v1740
        %v4866 = vunpack.c.l.b16 %v1741
        %v4867 = vunpack.c.h.b16 %v1741
        %v4868 = vunpack.c.l.b16 %v1742
        %v4869 = vunpack.c.h.b16 %v1742
        %v4870 = vunpack.c.l.b16 %v1743
        %v4871 = vunpack.c.h.b16 %v1743
        %v4872 = vunpack.c.l.b16 %v1744
        %v4873 = vunpack.c.h.b16 %v1744
        %v4874 = vunpack.c.l.b16 %v1745
        %v4875 = vunpack.c.h.b16 %v1745
        %v4876 = vunpack.c.l.b16 %v1746
        %v4877 = vunpack.c.h.b16 %v1746
        %v4878 = vunpack.c.l.b16 %v1747
        %v4879 = vunpack.c.h.b16 %v1747
        %v4880 = vunpack.c.l.b16 %v1748
        %v4881 = vunpack.c.h.b16 %v1748
        %v4882 = vunpack.c.l.b16 %v1749
        %v4883 = vunpack.c.h.b16 %v1749
        %v4884 = vunpack.c.l.b16 %v1750
        %v4885 = vunpack.c.h.b16 %v1750
        %v4886 = vunpack.c.l.b16 %v1751
        %v4887 = vunpack.c.h.b16 %v1751
        %v4888 = vunpack.c.l.b16 %v1752
        %v4889 = vunpack.c.h.b16 %v1752
        %v4890 = vunpack.c.l.b16 %v1753
        %v4891 = vunpack.c.h.b16 %v1753
        %v4892 = vunpack.c.l.b16 %v1754
        %v4893 = vunpack.c.h.b16 %v1754
        %v4894 = vunpack.c.l.b16 %v1755
        %v4895 = vunpack.c.h.b16 %v1755
        %v4896 = vunpack.c.l.b16 %v1756
        %v4897 = vunpack.c.h.b16 %v1756
        %v4898 = vunpack.c.l.b16 %v1757
        %v4899 = vunpack.c.h.b16 %v1757
        %v4900 = vunpack.c.l.b16 %v1758
        %v4901 = vunpack.c.h.b16 %v1758
        %v4902 = vunpack.c.l.b16 %v1759
        %v4903 = vunpack.c.h.b16 %v1759
        %v4904 = vunpack.c.l.b16 %v1760
        %v4905 = vunpack.c.h.b16 %v1760
        %v4906 = vunpack.c.l.b16 %v1761
        %v4907 = vunpack.c.h.b16 %v1761
        %v4908 = vunpack.c.l.b16 %v1762
        %v4909 = vunpack.c.h.b16 %v1762
        %v4910 = vunpack.c.l.b16 %v1763
        %v4911 = vunpack.c.h.b16 %v1763
        %v4912 = vunpack.c.l.b16 %v1764
        %v4913 = vunpack.c.h.b16 %v1764
        %v4914 = vunpack.c.l.b16 %v1765
        %v4915 = vunpack.c.h.b16 %v1765
        %v4916 = vunpack.c.l.b16 %v1766
        %v4917 = vunpack.c.h.b16 %v1766
        %v4918 = vunpack.c.l.b16 %v1767
        %v4919 = vunpack.c.h.b16 %v1767
        %v4920 = vunpack.c.l.b16 %v1768
        %v4921 = vunpack.c.h.b16 %v1768
        %v4922 = vunpack.c.l.b16 %v1769
        %v4923 = vunpack.c.h.b16 %v1769
        %v4924 = vunpack.c.l.b16 %v1770
        %v4925 = vunpack.c.h.b16 %v1770
        %v4926 = vunpack.c.l.b16 %v1771
        %v4927 = vunpack.c.h.b16 %v1771
        %v4928 = vunpack.c.l.b16 %v1772
        %v4929 = vunpack.c.h.b16 %v1772
        %v4930 = vunpack.c.l.b16 %v1773
        %v4931 = vunpack.c.h.b16 %v1773
        %v4932 = vunpack.c.l.b16 %v1774
        %v4933 = vunpack.c.h.b16 %v1774
        %v4934 = vunpack.c.l.b16 %v1775
        %v4935 = vunpack.c.h.b16 %v1775
        %v4936 = vunpack.c.l.b16 %v1776
        %v4937 = vunpack.c.h.b16 %v1776
        %v4938 = vunpack.c.l.b16 %v1777
        %v4939 = vunpack.c.h.b16 %v1777
        %v4940 = vunpack.c.l.b16 %v1778
        %v4941 = vunpack.c.h.b16 %v1778
        %v4942 = vunpack.c.l.b16 %v1779
        %v4943 = vunpack.c.h.b16 %v1779
        %v4944 = vunpack.c.l.b16 %v1780
        %v4945 = vunpack.c.h.b16 %v1780
        %v4946 = vunpack.c.l.b16 %v1781
        %v4947 = vunpack.c.h.b16 %v1781
        %v4948 = vunpack.c.l.b16 %v1782
        %v4949 = vunpack.c.h.b16 %v1782
        %v4950 = vunpack.c.l.b16 %v1783
        %v4951 = vunpack.c.h.b16 %v1783
        %v4952 = vunpack.c.l.b16 %v1784
        %v4953 = vunpack.c.h.b16 %v1784
        %v4954 = vunpack.c.l.b16 %v1785
        %v4955 = vunpack.c.h.b16 %v1785
        %v4956 = vunpack.c.l.b16 %v1786
        %v4957 = vunpack.c.h.b16 %v1786
        %v4958 = vunpack.c.l.b16 %v1787
        %v4959 = vunpack.c.h.b16 %v1787
        %v4960 = vunpack.c.l.b16 %v1788
        %v4961 = vunpack.c.h.b16 %v1788
        %v4962 = vunpack.c.l.b16 %v1789
        %v4963 = vunpack.c.h.b16 %v1789
        %v4964 = vunpack.c.l.b16 %v1790
        %v4965 = vunpack.c.h.b16 %v1790
        %v4966 = vunpack.c.l.b16 %v1791
        %v4967 = vunpack.c.h.b16 %v1791
        %v4968 = vunpack.c.l.b16 %v1792
        %v4969 = vunpack.c.h.b16 %v1792
        %v4970 = vunpack.c.l.b16 %v1793
        %v4971 = vunpack.c.h.b16 %v1793
        %v4972 = vunpack.c.l.b16 %v1794
        %v4973 = vunpack.c.h.b16 %v1794
        %v4974 = vunpack.c.l.b16 %v1795
        %v4975 = vunpack.c.h.b16 %v1795
        %v4976 = vunpack.c.l.b16 %v1796
        %v4977 = vunpack.c.h.b16 %v1796
        %v4978 = vunpack.c.l.b16 %v1797
        %v4979 = vunpack.c.h.b16 %v1797
        %v4980 = vunpack.c.l.b16 %v1798
        %v4981 = vunpack.c.h.b16 %v1798
        %v4982 = vunpack.c.l.b16 %v1799
        %v4983 = vunpack.c.h.b16 %v1799
        %v4984 = vunpack.c.l.b16 %v1800
        %v4985 = vunpack.c.h.b16 %v1800
        %v4986 = vunpack.c.l.b16 %v1801
        %v4987 = vunpack.c.h.b16 %v1801
        %v4988 = vunpack.c.l.b16 %v1802
        %v4989 = vunpack.c.h.b16 %v1802
        %v4990 = vunpack.c.l.b16 %v1803
        %v4991 = vunpack.c.h.b16 %v1803
        %v4992 = vunpack.c.l.b16 %v1804
        %v4993 = vunpack.c.h.b16 %v1804
        %v4994 = vunpack.c.l.b16 %v1805
        %v4995 = vunpack.c.h.b16 %v1805
        %v4996 = vunpack.c.l.b16 %v1806
        %v4997 = vunpack.c.h.b16 %v1806
        %v4998 = vunpack.c.l.b16 %v1807
        %v4999 = vunpack.c.h.b16 %v1807
        %v5000 = vunpack.c.l.b16 %v1808
        %v5001 = vunpack.c.h.b16 %v1808
        %v5002 = vunpack.c.l.b16 %v1809
        %v5003 = vunpack.c.h.b16 %v1809
        %v5004 = vunpack.c.l.b16 %v1810
        %v5005 = vunpack.c.h.b16 %v1810
        %v5006 = vunpack.c.l.b16 %v1811
        %v5007 = vunpack.c.h.b16 %v1811
        %v5008 = vunpack.c.l.b16 %v1812
        %v5009 = vunpack.c.h.b16 %v1812
        %v5010 = vunpack.c.l.b16 %v1813
        %v5011 = vunpack.c.h.b16 %v1813
        %v5012 = vunpack.c.l.b16 %v1814
        %v5013 = vunpack.c.h.b16 %v1814
        %v5014 = vunpack.c.l.b16 %v1815
        %v5015 = vunpack.c.h.b16 %v1815
        %v5016 = vunpack.c.l.b16 %v1816
        %v5017 = vunpack.c.h.b16 %v1816
        %v5018 = vunpack.c.l.b16 %v1817
        %v5019 = vunpack.c.h.b16 %v1817
        %v5020 = vunpack.c.l.b16 %v1818
        %v5021 = vunpack.c.h.b16 %v1818
        %v5022 = vunpack.c.l.b16 %v1819
        %v5023 = vunpack.c.h.b16 %v1819
        %v5024 = vunpack.c.l.b16 %v1820
        %v5025 = vunpack.c.h.b16 %v1820
        %v5026 = vunpack.c.l.b16 %v1821
        %v5027 = vunpack.c.h.b16 %v1821
        %v5028 = vunpack.c.l.b16 %v1822
        %v5029 = vunpack.c.h.b16 %v1822
        %v5030 = vunpack.c.l.b16 %v1823
        %v5031 = vunpack.c.h.b16 %v1823
        %v5032 = vunpack.c.l.b16 %v1824
        %v5033 = vunpack.c.h.b16 %v1824
        %v5034 = vunpack.c.l.b16 %v1825
        %v5035 = vunpack.c.h.b16 %v1825
        %v5036 = vunpack.c.l.b16 %v1826
        %v5037 = vunpack.c.h.b16 %v1826
        %v5038 = vunpack.c.l.b16 %v1827
        %v5039 = vunpack.c.h.b16 %v1827
        %v5040 = vunpack.c.l.b16 %v1828
        %v5041 = vunpack.c.h.b16 %v1828
        %v5042 = vunpack.c.l.b16 %v1829
        %v5043 = vunpack.c.h.b16 %v1829
        %v5044 = vunpack.c.l.b16 %v1830
        %v5045 = vunpack.c.h.b16 %v1830
        %v5046 = vunpack.c.l.b16 %v1831
        %v5047 = vunpack.c.h.b16 %v1831
        %v5048 = vunpack.c.l.b16 %v1832
        %v5049 = vunpack.c.h.b16 %v1832
        %v5050 = vunpack.c.l.b16 %v1833
        %v5051 = vunpack.c.h.b16 %v1833
        %v5052 = vunpack.c.l.b16 %v1834
        %v5053 = vunpack.c.h.b16 %v1834
        %v5054 = vunpack.c.l.b16 %v1835
        %v5055 = vunpack.c.h.b16 %v1835
        %v5056 = vunpack.c.l.b16 %v1836
        %v5057 = vunpack.c.h.b16 %v1836
        %v5058 = vunpack.c.l.b16 %v1837
        %v5059 = vunpack.c.h.b16 %v1837
        %v5060 = vunpack.c.l.b16 %v1838
        %v5061 = vunpack.c.h.b16 %v1838
        %v5062 = vunpack.c.l.b16 %v1839
        %v5063 = vunpack.c.h.b16 %v1839
        %v5064 = vunpack.c.l.b16 %v1840
        %v5065 = vunpack.c.h.b16 %v1840
        %v5066 = vunpack.c.l.b16 %v1841
        %v5067 = vunpack.c.h.b16 %v1841
        %v5068 = vunpack.c.l.b16 %v1842
        %v5069 = vunpack.c.h.b16 %v1842
        %v5070 = vunpack.c.l.b16 %v1843
        %v5071 = vunpack.c.h.b16 %v1843
        %v5072 = vunpack.c.l.b16 %v1844
        %v5073 = vunpack.c.h.b16 %v1844
        %v5074 = vunpack.c.l.b16 %v1845
        %v5075 = vunpack.c.h.b16 %v1845
        %v5076 = vunpack.c.l.b16 %v1846
        %v5077 = vunpack.c.h.b16 %v1846
        %v5078 = vunpack.c.l.b16 %v1847
        %v5079 = vunpack.c.h.b16 %v1847
        %v5080 = vunpack.c.l.b16 %v1848
        %v5081 = vunpack.c.h.b16 %v1848
        %v5082 = vunpack.c.l.b16 %v1849
        %v5083 = vunpack.c.h.b16 %v1849
        %v5084 = vunpack.c.l.b16 %v1850
        %v5085 = vunpack.c.h.b16 %v1850
        %v5086 = vunpack.c.l.b16 %v1851
        %v5087 = vunpack.c.h.b16 %v1851
        %v5088 = vunpack.c.l.b16 %v1852
        %v5089 = vunpack.c.h.b16 %v1852
        %v5090 = vunpack.c.l.b16 %v1853
        %v5091 = vunpack.c.h.b16 %v1853
        %v5092 = vunpack.c.l.b16 %v1854
        %v5093 = vunpack.c.h.b16 %v1854
        %v5094 = vunpack.c.l.b16 %v1855
        %v5095 = vunpack.c.h.b16 %v1855
        %v5096 = vunpack.c.l.b16 %v1856
        %v5097 = vunpack.c.h.b16 %v1856
        %v5098 = vunpack.c.l.b16 %v1857
        %v5099 = vunpack.c.h.b16 %v1857
        %v5100 = vunpack.c.l.b16 %v1858
        %v5101 = vunpack.c.h.b16 %v1858
        %v5102 = vunpack.c.l.b16 %v1859
        %v5103 = vunpack.c.h.b16 %v1859
        %v5104 = vunpack.c.l.b16 %v1860
        %v5105 = vunpack.c.h.b16 %v1860
        %v5106 = vunpack.c.l.b16 %v1861
        %v5107 = vunpack.c.h.b16 %v1861
        %v5108 = vunpack.c.l.b16 %v1862
        %v5109 = vunpack.c.h.b16 %v1862
        %v5110 = vunpack.c.l.b16 %v1863
        %v5111 = vunpack.c.h.b16 %v1863
        %v5112 = vunpack.c.l.b16 %v1864
        %v5113 = vunpack.c.h.b16 %v1864
        %v5114 = vunpack.c.l.b16 %v1865
        %v5115 = vunpack.c.h.b16 %v1865
        %v5116 = vunpack.c.l.b16 %v1866
        %v5117 = vunpack.c.h.b16 %v1866
        %v5118 = vunpack.c.l.b16 %v1867
        %v5119 = vunpack.c.h.b16 %v1867
        %v5120 = vunpack.c.l.b16 %v1868
        %v5121 = vunpack.c.h.b16 %v1868
        %v5122 = vunpack.c.l.b16 %v1869
        %v5123 = vunpack.c.h.b16 %v1869
        %v5124 = vunpack.c.l.b16 %v1870
        %v5125 = vunpack.c.h.b16 %v1870
        %v5126 = vunpack.c.l.b16 %v1871
        %v5127 = vunpack.c.h.b16 %v1871
        %v5128 = vunpack.c.l.b16 %v1872
        %v5129 = vunpack.c.h.b16 %v1872
        %v5130 = vunpack.c.l.b16 %v1873
        %v5131 = vunpack.c.h.b16 %v1873
        %v5132 = vunpack.c.l.b16 %v1874
        %v5133 = vunpack.c.h.b16 %v1874
        %v5134 = vunpack.c.l.b16 %v1875
        %v5135 = vunpack.c.h.b16 %v1875
        %v5136 = vunpack.c.l.b16 %v1876
        %v5137 = vunpack.c.h.b16 %v1876
        %v5138 = vunpack.c.l.b16 %v1877
        %v5139 = vunpack.c.h.b16 %v1877
        %v5140 = vunpack.c.l.b16 %v1878
        %v5141 = vunpack.c.h.b16 %v1878
        %v5142 = vunpack.c.l.b16 %v1879
        %v5143 = vunpack.c.h.b16 %v1879
        %v5144 = vunpack.c.l.b16 %v1880
        %v5145 = vunpack.c.h.b16 %v1880
        %v5146 = vunpack.c.l.b16 %v1881
        %v5147 = vunpack.c.h.b16 %v1881
        %v5148 = vunpack.c.l.b16 %v1882
        %v5149 = vunpack.c.h.b16 %v1882
        %v5150 = vunpack.c.l.b16 %v1883
        %v5151 = vunpack.c.h.b16 %v1883
        %v5152 = vunpack.c.l.b16 %v1884
        %v5153 = vunpack.c.h.b16 %v1884
        %v5154 = vunpack.c.l.b16 %v1885
        %v5155 = vunpack.c.h.b16 %v1885
        %v5156 = vunpack.c.l.b16 %v1886
        %v5157 = vunpack.c.h.b16 %v1886
        %v5158 = vunpack.c.l.b16 %v1887
        %v5159 = vunpack.c.h.b16 %v1887
        %v5160 = vunpack.c.l.b16 %v1888
        %v5161 = vunpack.c.h.b16 %v1888
        %v5162 = vunpack.c.l.b16 %v1889
        %v5163 = vunpack.c.h.b16 %v1889
        %v5164 = vunpack.c.l.b16 %v1890
        %v5165 = vunpack.c.h.b16 %v1890
        %v5166 = vunpack.c.l.b16 %v1891
        %v5167 = vunpack.c.h.b16 %v1891
        %v5168 = vunpack.c.l.b16 %v1892
        %v5169 = vunpack.c.h.b16 %v1892
        %v5170 = vunpack.c.l.b16 %v1893
        %v5171 = vunpack.c.h.b16 %v1893
        %v5172 = vunpack.c.l.b16 %v1894
        %v5173 = vunpack.c.h.b16 %v1894
        %v5174 = vunpack.c.l.b16 %v1895
        %v5175 = vunpack.c.h.b16 %v1895
        %v5176 = vunpack.c.l.b16 %v1896
        %v5177 = vunpack.c.h.b16 %v1896
        %v5178 = vunpack.c.l.b16 %v1897
        %v5179 = vunpack.c.h.b16 %v1897
        %v5180 = vunpack.c.l.b16 %v1898
        %v5181 = vunpack.c.h.b16 %v1898
        %v5182 = vunpack.c.l.b16 %v1899
        %v5183 = vunpack.c.h.b16 %v1899
        %v5184 = vunpack.c.l.b16 %v1900
        %v5185 = vunpack.c.h.b16 %v1900
        %v5186 = vunpack.c.l.b16 %v1901
        %v5187 = vunpack.c.h.b16 %v1901
        %v5188 = vunpack.c.l.b16 %v1902
        %v5189 = vunpack.c.h.b16 %v1902
        %v5190 = vunpack.c.l.b16 %v1903
        %v5191 = vunpack.c.h.b16 %v1903
        %v5192 = vunpack.c.l.b16 %v1904
        %v5193 = vunpack.c.h.b16 %v1904
        %v5194 = vunpack.c.l.b16 %v1905
        %v5195 = vunpack.c.h.b16 %v1905
        %v5196 = vunpack.c.l.b16 %v1906
        %v5197 = vunpack.c.h.b16 %v1906
        %v5198 = vunpack.c.l.b16 %v1907
        %v5199 = vunpack.c.h.b16 %v1907
        %v5200 = vunpack.c.l.b16 %v1908
        %v5201 = vunpack.c.h.b16 %v1908
        %v5202 = vunpack.c.l.b16 %v1909
        %v5203 = vunpack.c.h.b16 %v1909
        %v5204 = vunpack.c.l.b16 %v1910
        %v5205 = vunpack.c.h.b16 %v1910
        %v5206 = vunpack.c.l.b16 %v1911
        %v5207 = vunpack.c.h.b16 %v1911
        %v5208 = vunpack.c.l.b16 %v1912
        %v5209 = vunpack.c.h.b16 %v1912
        %v5210 = vunpack.c.l.b16 %v1913
        %v5211 = vunpack.c.h.b16 %v1913
        %v5212 = vunpack.c.l.b16 %v1914
        %v5213 = vunpack.c.h.b16 %v1914
        %v5214 = vunpack.c.l.b16 %v1915
        %v5215 = vunpack.c.h.b16 %v1915
        %v5216 = vunpack.c.l.b16 %v1916
        %v5217 = vunpack.c.h.b16 %v1916
        %v5218 = vunpack.c.l.b16 %v1917
        %v5219 = vunpack.c.h.b16 %v1917
        %v5220 = vunpack.c.l.b16 %v1918
        %v5221 = vunpack.c.h.b16 %v1918
        %v5222 = vunpack.c.l.b16 %v1919
        %v5223 = vunpack.c.h.b16 %v1919
        %v5224 = vunpack.c.l.b16 %v1920
        %v5225 = vunpack.c.h.b16 %v1920
        %v5226 = vunpack.c.l.b16 %v1921
        %v5227 = vunpack.c.h.b16 %v1921
        %v5228 = vunpack.c.l.b16 %v1922
        %v5229 = vunpack.c.h.b16 %v1922
        %v5230 = vunpack.c.l.b16 %v1923
        %v5231 = vunpack.c.h.b16 %v1923
        %v5232 = vunpack.c.l.b16 %v1924
        %v5233 = vunpack.c.h.b16 %v1924
        %v5234 = vunpack.c.l.b16 %v1925
        %v5235 = vunpack.c.h.b16 %v1925
        %v5236 = vunpack.c.l.b16 %v1926
        %v5237 = vunpack.c.h.b16 %v1926
        %v5238 = vunpack.c.l.b16 %v1927
        %v5239 = vunpack.c.h.b16 %v1927
        %v5240 = vunpack.c.l.b16 %v1928
        %v5241 = vunpack.c.h.b16 %v1928
        %v5242 = vunpack.c.l.b16 %v1929
        %v5243 = vunpack.c.h.b16 %v1929
        %v5244 = vunpack.c.l.b16 %v1930
        %v5245 = vunpack.c.h.b16 %v1930
        %v5246 = vunpack.c.l.b16 %v1931
        %v5247 = vunpack.c.h.b16 %v1931
        %v5248 = vunpack.c.l.b16 %v1932
        %v5249 = vunpack.c.h.b16 %v1932
        %v5250 = vunpack.c.l.b16 %v1933
        %v5251 = vunpack.c.h.b16 %v1933
        %v5252 = vunpack.c.l.b16 %v1934
        %v5253 = vunpack.c.h.b16 %v1934
        %v5254 = vunpack.c.l.b16 %v1935
        %v5255 = vunpack.c.h.b16 %v1935
        %v5256 = vunpack.c.l.b16 %v1936
        %v5257 = vunpack.c.h.b16 %v1936
        %v5258 = vunpack.c.l.b16 %v1937
        %v5259 = vunpack.c.h.b16 %v1937
        %v5260 = vunpack.c.l.b16 %v1938
        %v5261 = vunpack.c.h.b16 %v1938
        %v5262 = vunpack.c.l.b16 %v1939
        %v5263 = vunpack.c.h.b16 %v1939
        %v5264 = vunpack.c.l.b16 %v1940
        %v5265 = vunpack.c.h.b16 %v1940
        %v5266 = vunpack.c.l.b16 %v1941
        %v5267 = vunpack.c.h.b16 %v1941
        %v5268 = vunpack.c.l.b16 %v1942
        %v5269 = vunpack.c.h.b16 %v1942
        %v5270 = vunpack.c.l.b16 %v1943
        %v5271 = vunpack.c.h.b16 %v1943
        %v5272 = vunpack.c.l.b16 %v1944
        %v5273 = vunpack.c.h.b16 %v1944
        %v5274 = vunpack.c.l.b16 %v1945
        %v5275 = vunpack.c.h.b16 %v1945
        %v5276 = vunpack.c.l.b16 %v1946
        %v5277 = vunpack.c.h.b16 %v1946
        %v5278 = vunpack.c.l.b16 %v1947
        %v5279 = vunpack.c.h.b16 %v1947
        %v5280 = vunpack.c.l.b16 %v1948
        %v5281 = vunpack.c.h.b16 %v1948
        %v5282 = vunpack.c.l.b16 %v1949
        %v5283 = vunpack.c.h.b16 %v1949
        %v5284 = vunpack.c.l.b16 %v1950
        %v5285 = vunpack.c.h.b16 %v1950
        %v5286 = vunpack.c.l.b16 %v1951
        %v5287 = vunpack.c.h.b16 %v1951
        %v5288 = vunpack.c.l.b16 %v1952
        %v5289 = vunpack.c.h.b16 %v1952
        %v5290 = vunpack.c.l.b16 %v1953
        %v5291 = vunpack.c.h.b16 %v1953
        %v5292 = vunpack.c.l.b16 %v1954
        %v5293 = vunpack.c.h.b16 %v1954
        %v5294 = vunpack.c.l.b16 %v1955
        %v5295 = vunpack.c.h.b16 %v1955
        %v5296 = vunpack.c.l.b16 %v1956
        %v5297 = vunpack.c.h.b16 %v1956
        %v5298 = vunpack.c.l.b16 %v1957
        %v5299 = vunpack.c.h.b16 %v1957
        %v5300 = vunpack.c.l.b16 %v1958
        %v5301 = vunpack.c.h.b16 %v1958
        %v5302 = vunpack.c.l.b16 %v1959
        %v5303 = vunpack.c.h.b16 %v1959
        %v5304 = vunpack.c.l.b16 %v1960
        %v5305 = vunpack.c.h.b16 %v1960
        %v5306 = vunpack.c.l.b16 %v1961
        %v5307 = vunpack.c.h.b16 %v1961
        %v5308 = vunpack.c.l.b16 %v1962
        %v5309 = vunpack.c.h.b16 %v1962
        %v5310 = vunpack.c.l.b16 %v1963
        %v5311 = vunpack.c.h.b16 %v1963
        %v5312 = vunpack.c.l.b16 %v1964
        %v5313 = vunpack.c.h.b16 %v1964
        %v5314 = vunpack.c.l.b16 %v1965
        %v5315 = vunpack.c.h.b16 %v1965
        %v5316 = vunpack.c.l.b16 %v1966
        %v5317 = vunpack.c.h.b16 %v1966
        %v5318 = vunpack.c.l.b16 %v1967
        %v5319 = vunpack.c.h.b16 %v1967
        %v5320 = vunpack.c.l.b16 %v1968
        %v5321 = vunpack.c.h.b16 %v1968
        %v5322 = vunpack.c.l.b16 %v1969
        %v5323 = vunpack.c.h.b16 %v1969
        %v5324 = vunpack.c.l.b16 %v1970
        %v5325 = vunpack.c.h.b16 %v1970
        %v5326 = vunpack.c.l.b16 %v1971
        %v5327 = vunpack.c.h.b16 %v1971
        %v5328 = vunpack.c.l.b16 %v1972
        %v5329 = vunpack.c.h.b16 %v1972
        %v5330 = vunpack.c.l.b16 %v1973
        %v5331 = vunpack.c.h.b16 %v1973
        %v5332 = vunpack.c.l.b16 %v1974
        %v5333 = vunpack.c.h.b16 %v1974
        %v5334 = vunpack.c.l.b16 %v1975
        %v5335 = vunpack.c.h.b16 %v1975
        %v5336 = vunpack.c.l.b16 %v1976
        %v5337 = vunpack.c.h.b16 %v1976
        %v5338 = vunpack.c.l.b16 %v1977
        %v5339 = vunpack.c.h.b16 %v1977
        %v5340 = vunpack.c.l.b16 %v1978
        %v5341 = vunpack.c.h.b16 %v1978
        %v5342 = vunpack.c.l.b16 %v1979
        %v5343 = vunpack.c.h.b16 %v1979
        %v5344 = vunpack.c.l.b16 %v1980
        %v5345 = vunpack.c.h.b16 %v1980
        %v5346 = vunpack.c.l.b16 %v1981
        %v5347 = vunpack.c.h.b16 %v1981
        %v5348 = vunpack.c.l.b16 %v1982
        %v5349 = vunpack.c.h.b16 %v1982
        %v5350 = vunpack.c.l.b16 %v1983
        %v5351 = vunpack.c.h.b16 %v1983
        %v5352 = vunpack.c.l.b16 %v1984
        %v5353 = vunpack.c.h.b16 %v1984
        %v5354 = vunpack.c.l.b16 %v1985
        %v5355 = vunpack.c.h.b16 %v1985
        %v5356 = vunpack.c.l.b16 %v1986
        %v5357 = vunpack.c.h.b16 %v1986
        %v5358 = vunpack.c.l.b16 %v1987
        %v5359 = vunpack.c.h.b16 %v1987
        %v5360 = vunpack.c.l.b16 %v1988
        %v5361 = vunpack.c.h.b16 %v1988
        %v5362 = vunpack.c.l.b16 %v1989
        %v5363 = vunpack.c.h.b16 %v1989
        %v5364 = vunpack.c.l.b16 %v1990
        %v5365 = vunpack.c.h.b16 %v1990
        %v5366 = vunpack.c.l.b16 %v1991
        %v5367 = vunpack.c.h.b16 %v1991
        %v5368 = vunpack.c.l.b16 %v1992
        %v5369 = vunpack.c.h.b16 %v1992
        %v5370 = vunpack.c.l.b16 %v1993
        %v5371 = vunpack.c.h.b16 %v1993
        %v5372 = vunpack.c.l.b16 %v1994
        %v5373 = vunpack.c.h.b16 %v1994
        %v5374 = vunpack.c.l.b16 %v1995
        %v5375 = vunpack.c.h.b16 %v1995
        %v5376 = vunpack.c.l.b16 %v1996
        %v5377 = vunpack.c.h.b16 %v1996
        %v5378 = vunpack.c.l.b16 %v1997
        %v5379 = vunpack.c.h.b16 %v1997
        %v5380 = vunpack.c.l.b16 %v1998
        %v5381 = vunpack.c.h.b16 %v1998
        %v5382 = vunpack.c.l.b16 %v1999
        %v5383 = vunpack.c.h.b16 %v1999
        %v5384 = vunpack.c.l.b16 %v2000
        %v5385 = vunpack.c.h.b16 %v2000
        %v5386 = vunpack.c.l.b16 %v2001
        %v5387 = vunpack.c.h.b16 %v2001
        %v5388 = vunpack.c.l.b16 %v2002
        %v5389 = vunpack.c.h.b16 %v2002
        %v5390 = vunpack.c.l.b16 %v2003
        %v5391 = vunpack.c.h.b16 %v2003
        %v5392 = vunpack.c.l.b16 %v2004
        %v5393 = vunpack.c.h.b16 %v2004
        %v5394 = vunpack.c.l.b16 %v2005
        %v5395 = vunpack.c.h.b16 %v2005
        %v5396 = vunpack.c.l.b16 %v2006
        %v5397 = vunpack.c.h.b16 %v2006
        %v5398 = vunpack.c.l.b16 %v2007
        %v5399 = vunpack.c.h.b16 %v2007
        %v5400 = vunpack.c.l.b16 %v2008
        %v5401 = vunpack.c.h.b16 %v2008
        %v5402 = vunpack.c.l.b16 %v2009
        %v5403 = vunpack.c.h.b16 %v2009
        %v5404 = vunpack.c.l.b16 %v2010
        %v5405 = vunpack.c.h.b16 %v2010
        %v5406 = vunpack.c.l.b16 %v2011
        %v5407 = vunpack.c.h.b16 %v2011
        %v5408 = vunpack.c.l.b16 %v2012
        %v5409 = vunpack.c.h.b16 %v2012
        %v5410 = vunpack.c.l.b16 %v2013
        %v5411 = vunpack.c.h.b16 %v2013
        %v5412 = vunpack.c.l.b16 %v2014
        %v5413 = vunpack.c.h.b16 %v2014
        %v5414 = vunpack.c.l.b16 %v2015
        %v5415 = vunpack.c.h.b16 %v2015
        %v5416 = vunpack.c.l.b16 %v2016
        %v5417 = vunpack.c.h.b16 %v2016
        %v5418 = vunpack.c.l.b16 %v2017
        %v5419 = vunpack.c.h.b16 %v2017
        %v5420 = vunpack.c.l.b16 %v2018
        %v5421 = vunpack.c.h.b16 %v2018
        %v5422 = vunpack.c.l.b16 %v2019
        %v5423 = vunpack.c.h.b16 %v2019
        %v5424 = vunpack.c.l.b16 %v2020
        %v5425 = vunpack.c.h.b16 %v2020
        %v5426 = vunpack.c.l.b16 %v2021
        %v5427 = vunpack.c.h.b16 %v2021
        %v5428 = vunpack.c.l.b16 %v2022
        %v5429 = vunpack.c.h.b16 %v2022
        %v5430 = vunpack.c.l.b16 %v2023
        %v5431 = vunpack.c.h.b16 %v2023
        %v5432 = vunpack.c.l.b16 %v2024
        %v5433 = vunpack.c.h.b16 %v2024
        %v5434 = vunpack.c.l.b16 %v2025
        %v5435 = vunpack.c.h.b16 %v2025
        %v5436 = vunpack.c.l.b16 %v2026
        %v5437 = vunpack.c.h.b16 %v2026
        %v5438 = vunpack.c.l.b16 %v2027
        %v5439 = vunpack.c.h.b16 %v2027
        %v5440 = vunpack.c.l.b16 %v2028
        %v5441 = vunpack.c.h.b16 %v2028
        %v5442 = vunpack.c.l.b16 %v2029
        %v5443 = vunpack.c.h.b16 %v2029
        %v5444 = vunpack.c.l.b16 %v2030
        %v5445 = vunpack.c.h.b16 %v2030
        %v5446 = vunpack.c.l.b16 %v2031
        %v5447 = vunpack.c.h.b16 %v2031
        %v5448 = vunpack.c.l.b16 %v2032
        %v5449 = vunpack.c.h.b16 %v2032
        %v5450 = vunpack.c.l.b16 %v2033
        %v5451 = vunpack.c.h.b16 %v2033
        %v5452 = vunpack.c.l.b16 %v2034
        %v5453 = vunpack.c.h.b16 %v2034
        %v5454 = vunpack.c.l.b16 %v2035
        %v5455 = vunpack.c.h.b16 %v2035
        %v5456 = vunpack.c.l.b16 %v2036
        %v5457 = vunpack.c.h.b16 %v2036
        %v5458 = vunpack.c.l.b16 %v2037
        %v5459 = vunpack.c.h.b16 %v2037
        %v5460 = vunpack.c.l.b16 %v2038
        %v5461 = vunpack.c.h.b16 %v2038
        %v5462 = vunpack.c.l.b16 %v2039
        %v5463 = vunpack.c.h.b16 %v2039
        %v5464 = vunpack.c.l.b16 %v2040
        %v5465 = vunpack.c.h.b16 %v2040
        %v5466 = vunpack.c.l.b16 %v2041
        %v5467 = vunpack.c.h.b16 %v2041
        %v5468 = vunpack.c.l.b16 %v2042
        %v5469 = vunpack.c.h.b16 %v2042
        %v5470 = vunpack.c.l.b16 %v2043
        %v5471 = vunpack.c.h.b16 %v2043
        %v5472 = vunpack.c.l.b16 %v2044
        %v5473 = vunpack.c.h.b16 %v2044
        %v5474 = vunpack.c.l.b16 %v2045
        %v5475 = vunpack.c.h.b16 %v2045
        %v5476 = vunpack.c.l.b16 %v2046
        %v5477 = vunpack.c.h.b16 %v2046
        %v5478 = vunpack.c.l.b16 %v2047
        %v5479 = vunpack.c.h.b16 %v2047
        %v5480 = vunpack.c.l.b16 %v2048
        %v5481 = vunpack.c.h.b16 %v2048
        %v5482 = vunpack.c.l.b16 %v2049
        %v5483 = vunpack.c.h.b16 %v2049
        %v5484 = vunpack.c.l.b16 %v2050
        %v5485 = vunpack.c.h.b16 %v2050
        %v5486 = vunpack.c.l.b16 %v2051
        %v5487 = vunpack.c.h.b16 %v2051
        %v5488 = vunpack.c.l.b16 %v2052
        %v5489 = vunpack.c.h.b16 %v2052
        %v5490 = vunpack.c.l.b16 %v2053
        %v5491 = vunpack.c.h.b16 %v2053
        %v5492 = vunpack.c.l.b16 %v2054
        %v5493 = vunpack.c.h.b16 %v2054
        %v5494 = vunpack.c.l.b16 %v2055
        %v5495 = vunpack.c.h.b16 %v2055
        %v5496 = vunpack.c.l.b16 %v2056
        %v5497 = vunpack.c.h.b16 %v2056
        %v5498 = vunpack.c.l.b16 %v2057
        %v5499 = vunpack.c.h.b16 %v2057
        %v5500 = vunpack.c.l.b16 %v2058
        %v5501 = vunpack.c.h.b16 %v2058
        %v5502 = vunpack.c.l.b16 %v2059
        %v5503 = vunpack.c.h.b16 %v2059
        %v5504 = vunpack.c.l.b16 %v2060
        %v5505 = vunpack.c.h.b16 %v2060
        %v5506 = vunpack.c.l.b16 %v2061
        %v5507 = vunpack.c.h.b16 %v2061
        %v5508 = vunpack.c.l.b16 %v2062
        %v5509 = vunpack.c.h.b16 %v2062
        %v5510 = vunpack.c.l.b16 %v2063
        %v5511 = vunpack.c.h.b16 %v2063
        %v5512 = vunpack.c.l.b16 %v2064
        %v5513 = vunpack.c.h.b16 %v2064
        %v5514 = vunpack.c.l.b16 %v2065
        %v5515 = vunpack.c.h.b16 %v2065
        %v5516 = vunpack.c.l.b16 %v2066
        %v5517 = vunpack.c.h.b16 %v2066
        %v5518 = vunpack.c.l.b16 %v2067
        %v5519 = vunpack.c.h.b16 %v2067
        %v5520 = vunpack.c.l.b16 %v2068
        %v5521 = vunpack.c.h.b16 %v2068
        %v5522 = vunpack.c.l.b16 %v2069
        %v5523 = vunpack.c.h.b16 %v2069
        %v5524 = vunpack.c.l.b16 %v2070
        %v5525 = vunpack.c.h.b16 %v2070
        %v5526 = vunpack.c.l.b16 %v2071
        %v5527 = vunpack.c.h.b16 %v2071
        %v5528 = vpack.c.b16 %v3226, %v3224
        %v5529 = vpack.c.b16 %v3227, %v3225
        %v5530 = vpack.c.b16 %v3230, %v3228
        %v5531 = vpack.c.b16 %v3231, %v3229
        %v5532 = vpack.c.b16 %v3234, %v3232
        %v5533 = vpack.c.b16 %v3235, %v3233
        %v5534 = vpack.c.b16 %v3238, %v3236
        %v5535 = vpack.c.b16 %v3239, %v3237
        %v5536 = vpack.c.b16 %v3242, %v3240
        %v5537 = vpack.c.b16 %v3243, %v3241
        %v5538 = vpack.c.b16 %v3246, %v3244
        %v5539 = vpack.c.b16 %v3247, %v3245
        %v5540 = vpack.c.b16 %v3250, %v3248
        %v5541 = vpack.c.b16 %v3251, %v3249
        %v5542 = vpack.c.b16 %v3254, %v3252
        %v5543 = vpack.c.b16 %v3255, %v3253
        %v5544 = vpack.c.b16 %v3258, %v3256
        %v5545 = vpack.c.b16 %v3259, %v3257
        %v5546 = vpack.c.b16 %v3262, %v3260
        %v5547 = vpack.c.b16 %v3263, %v3261
        %v5548 = vpack.c.b16 %v3266, %v3264
        %v5549 = vpack.c.b16 %v3267, %v3265
        %v5550 = vpack.c.b16 %v3270, %v3268
        %v5551 = vpack.c.b16 %v3271, %v3269
        %v5552 = vpack.c.b16 %v3274, %v3272
        %v5553 = vpack.c.b16 %v3275, %v3273
        %v5554 = vpack.c.b16 %v3278, %v3276
        %v5555 = vpack.c.b16 %v3279, %v3277
        %v5556 = vpack.c.b16 %v3282, %v3280
        %v5557 = vpack.c.b16 %v3283, %v3281
        %v5558 = vpack.c.b16 %v3286, %v3284
        %v5559 = vpack.c.b16 %v3287, %v3285
        %v5560 = vpack.c.b16 %v3290, %v3288
        %v5561 = vpack.c.b16 %v3291, %v3289
        %v5562 = vpack.c.b16 %v3294, %v3292
        %v5563 = vpack.c.b16 %v3295, %v3293
        %v5564 = vpack.c.b16 %v3298, %v3296
        %v5565 = vpack.c.b16 %v3299, %v3297
        %v5566 = vpack.c.b16 %v3302, %v3300
        %v5567 = vpack.c.b16 %v3303, %v3301
        %v5568 = vpack.c.b16 %v3306, %v3304
        %v5569 = vpack.c.b16 %v3307, %v3305
        %v5570 = vpack.c.b16 %v3310, %v3308
        %v5571 = vpack.c.b16 %v3311, %v3309
        %v5572 = vpack.c.b16 %v3314, %v3312
        %v5573 = vpack.c.b16 %v3315, %v3313
        %v5574 = vpack.c.b16 %v3318, %v3316
        %v5575 = vpack.c.b16 %v3319, %v3317
        %v5576 = vpack.c.b16 %v3322, %v3320
        %v5577 = vpack.c.b16 %v3323, %v3321
        %v5578 = vpack.c.b16 %v3326, %v3324
        %v5579 = vpack.c.b16 %v3327, %v3325
        %v5580 = vpack.c.b16 %v3330, %v3328
        %v5581 = vpack.c.b16 %v3331, %v3329
        %v5582 = vpack.c.b16 %v3334, %v3332
        %v5583 = vpack.c.b16 %v3335, %v3333
        %v5584 = vpack.c.b16 %v3338, %v3336
        %v5585 = vpack.c.b16 %v3339, %v3337
        %v5586 = vpack.c.b16 %v3342, %v3340
        %v5587 = vpack.c.b16 %v3343, %v3341
        %v5588 = vpack.c.b16 %v3346, %v3344
        %v5589 = vpack.c.b16 %v3347, %v3345
        %v5590 = vpack.c.b16 %v3350, %v3348
        %v5591 = vpack.c.b16 %v3351, %v3349
        %v5592 = vpack.c.b16 %v3354, %v3352
        %v5593 = vpack.c.b16 %v3355, %v3353
        %v5594 = vpack.c.b16 %v3358, %v3356
        %v5595 = vpack.c.b16 %v3359, %v3357
        %v5596 = vpack.c.b16 %v3362, %v3360
        %v5597 = vpack.c.b16 %v3363, %v3361
        %v5598 = vpack.c.b16 %v3366, %v3364
        %v5599 = vpack.c.b16 %v3367, %v3365
        %v5600 = vpack.c.b16 %v3370, %v3368
        %v5601 = vpack.c.b16 %v3371, %v3369
        %v5602 = vpack.c.b16 %v3374, %v3372
        %v5603 = vpack.c.b16 %v3375, %v3373
        %v5604 = vpack.c.b16 %v3378, %v3376
        %v5605 = vpack.c.b16 %v3379, %v3377
        %v5606 = vpack.c.b16 %v3382, %v3380
        %v5607 = vpack.c.b16 %v3383, %v3381
        %v5608 = vpack.c.b16 %v3386, %v3384
        %v5609 = vpack.c.b16 %v3387, %v3385
        %v5610 = vpack.c.b16 %v3390, %v3388
        %v5611 = vpack.c.b16 %v3391, %v3389
        %v5612 = vpack.c.b16 %v3394, %v3392
        %v5613 = vpack.c.b16 %v3395, %v3393
        %v5614 = vpack.c.b16 %v3398, %v3396
        %v5615 = vpack.c.b16 %v3399, %v3397
        %v5616 = vpack.c.b16 %v3402, %v3400
        %v5617 = vpack.c.b16 %v3403, %v3401
        %v5618 = vpack.c.b16 %v3406, %v3404
        %v5619 = vpack.c.b16 %v3407, %v3405
        %v5620 = vpack.c.b16 %v3410, %v3408
        %v5621 = vpack.c.b16 %v3411, %v3409
        %v5622 = vpack.c.b16 %v3414, %v3412
        %v5623 = vpack.c.b16 %v3415, %v3413
        %v5624 = vpack.c.b16 %v3418, %v3416
        %v5625 = vpack.c.b16 %v3419, %v3417
        %v5626 = vpack.c.b16 %v3422, %v3420
        %v5627 = vpack.c.b16 %v3423, %v3421
        %v5628 = vpack.c.b16 %v3426, %v3424
        %v5629 = vpack.c.b16 %v3427, %v3425
        %v5630 = vpack.c.b16 %v3430, %v3428
        %v5631 = vpack.c.b16 %v3431, %v3429
        %v5632 = vpack.c.b16 %v3434, %v3432
        %v5633 = vpack.c.b16 %v3435, %v3433
        %v5634 = vpack.c.b16 %v3438, %v3436
        %v5635 = vpack.c.b16 %v3439, %v3437
        %v5636 = vpack.c.b16 %v3442, %v3440
        %v5637 = vpack.c.b16 %v3443, %v3441
        %v5638 = vpack.c.b16 %v3446, %v3444
        %v5639 = vpack.c.b16 %v3447, %v3445
        %v5640 = vpack.c.b16 %v3450, %v3448
        %v5641 = vpack.c.b16 %v3451, %v3449
        %v5642 = vpack.c.b16 %v3454, %v3452
        %v5643 = vpack.c.b16 %v3455, %v3453
        %v5644 = vpack.c.b16 %v3458, %v3456
        %v5645 = vpack.c.b16 %v3459, %v3457
        %v5646 = vpack.c.b16 %v3462, %v3460
        %v5647 = vpack.c.b16 %v3463, %v3461
        %v5648 = vpack.c.b16 %v3466, %v3464
        %v5649 = vpack.c.b16 %v3467, %v3465
        %v5650 = vpack.c.b16 %v3470, %v3468
        %v5651 = vpack.c.b16 %v3471, %v3469
        %v5652 = vpack.c.b16 %v3474, %v3472
        %v5653 = vpack.c.b16 %v3475, %v3473
        %v5654 = vpack.c.b16 %v3478, %v3476
        %v5655 = vpack.c.b16 %v3479, %v3477
        %v5656 = vpack.c.b16 %v3482, %v3480
        %v5657 = vpack.c.b16 %v3483, %v3481
        %v5658 = vpack.c.b16 %v3486, %v3484
        %v5659 = vpack.c.b16 %v3487, %v3485
        %v5660 = vpack.c.b16 %v3490, %v3488
        %v5661 = vpack.c.b16 %v3491, %v3489
        %v5662 = vpack.c.b16 %v3494, %v3492
        %v5663 = vpack.c.b16 %v3495, %v3493
        %v5664 = vpack.c.b16 %v3498, %v3496
        %v5665 = vpack.c.b16 %v3499, %v3497
        %v5666 = vpack.c.b16 %v3502, %v3500
        %v5667 = vpack.c.b16 %v3503, %v3501
        %v5668 = vpack.c.b16 %v3506, %v3504
        %v5669 = vpack.c.b16 %v3507, %v3505
        %v5670 = vpack.c.b16 %v3510, %v3508
        %v5671 = vpack.c.b16 %v3511, %v3509
        %v5672 = vpack.c.b16 %v3514, %v3512
        %v5673 = vpack.c.b16 %v3515, %v3513
        %v5674 = vpack.c.b16 %v3518, %v3516
        %v5675 = vpack.c.b16 %v3519, %v3517
        %v5676 = vpack.c.b16 %v3522, %v3520
        %v5677 = vpack.c.b16 %v3523, %v3521
        %v5678 = vpack.c.b16 %v3526, %v3524
        %v5679 = vpack.c.b16 %v3527, %v3525
        %v5680 = vpack.c.b16 %v3530, %v3528
        %v5681 = vpack.c.b16 %v3531, %v3529
        %v5682 = vpack.c.b16 %v3534, %v3532
        %v5683 = vpack.c.b16 %v3535, %v3533
        %v5684 = vpack.c.b16 %v3538, %v3536
        %v5685 = vpack.c.b16 %v3539, %v3537
        %v5686 = vpack.c.b16 %v3542, %v3540
        %v5687 = vpack.c.b16 %v3543, %v3541
        %v5688 = vpack.c.b16 %v3546, %v3544
        %v5689 = vpack.c.b16 %v3547, %v3545
        %v5690 = vpack.c.b16 %v3550, %v3548
        %v5691 = vpack.c.b16 %v3551, %v3549
        %v5692 = vpack.c.b16 %v3554, %v3552
        %v5693 = vpack.c.b16 %v3555, %v3553
        %v5694 = vpack.c.b16 %v3558, %v3556
        %v5695 = vpack.c.b16 %v3559, %v3557
        %v5696 = vpack.c.b16 %v3562, %v3560
        %v5697 = vpack.c.b16 %v3563, %v3561
        %v5698 = vpack.c.b16 %v3566, %v3564
        %v5699 = vpack.c.b16 %v3567, %v3565
        %v5700 = vpack.c.b16 %v3570, %v3568
        %v5701 = vpack.c.b16 %v3571, %v3569
        %v5702 = vpack.c.b16 %v3574, %v3572
        %v5703 = vpack.c.b16 %v3575, %v3573
        %v5704 = vpack.c.b16 %v3578, %v3576
        %v5705 = vpack.c.b16 %v3579, %v3577
        %v5706 = vpack.c.b16 %v3582, %v3580
        %v5707 = vpack.c.b16 %v3583, %v3581
        %v5708 = vpack.c.b16 %v3586, %v3584
        %v5709 = vpack.c.b16 %v3587, %v3585
        %v5710 = vpack.c.b16 %v3590, %v3588
        %v5711 = vpack.c.b16 %v3591, %v3589
        %v5712 = vpack.c.b16 %v3594, %v3592
        %v5713 = vpack.c.b16 %v3595, %v3593
        %v5714 = vpack.c.b16 %v3598, %v3596
        %v5715 = vpack.c.b16 %v3599, %v3597
        %v5716 = vpack.c.b16 %v3602, %v3600
        %v5717 = vpack.c.b16 %v3603, %v3601
        %v5718 = vpack.c.b16 %v3606, %v3604
        %v5719 = vpack.c.b16 %v3607, %v3605
        %v5720 = vpack.c.b16 %v3610, %v3608
        %v5721 = vpack.c.b16 %v3611, %v3609
        %v5722 = vpack.c.b16 %v3614, %v3612
        %v5723 = vpack.c.b16 %v3615, %v3613
        %v5724 = vpack.c.b16 %v3618, %v3616
        %v5725 = vpack.c.b16 %v3619, %v3617
        %v5726 = vpack.c.b16 %v3622, %v3620
        %v5727 = vpack.c.b16 %v3623, %v3621
        %v5728 = vpack.c.b16 %v3626, %v3624
        %v5729 = vpack.c.b16 %v3627, %v3625
        %v5730 = vpack.c.b16 %v3630, %v3628
        %v5731 = vpack.c.b16 %v3631, %v3629
        %v5732 = vpack.c.b16 %v3634, %v3632
        %v5733 = vpack.c.b16 %v3635, %v3633
        %v5734 = vpack.c.b16 %v3638, %v3636
        %v5735 = vpack.c.b16 %v3639, %v3637
        %v5736 = vpack.c.b16 %v3642, %v3640
        %v5737 = vpack.c.b16 %v3643, %v3641
        %v5738 = vpack.c.b16 %v3646, %v3644
        %v5739 = vpack.c.b16 %v3647, %v3645
        %v5740 = vpack.c.b16 %v3650, %v3648
        %v5741 = vpack.c.b16 %v3651, %v3649
        %v5742 = vpack.c.b16 %v3654, %v3652
        %v5743 = vpack.c.b16 %v3655, %v3653
        %v5744 = vpack.c.b16 %v3658, %v3656
        %v5745 = vpack.c.b16 %v3659, %v3657
        %v5746 = vpack.c.b16 %v3662, %v3660
        %v5747 = vpack.c.b16 %v3663, %v3661
        %v5748 = vpack.c.b16 %v3666, %v3664
        %v5749 = vpack.c.b16 %v3667, %v3665
        %v5750 = vpack.c.b16 %v3670, %v3668
        %v5751 = vpack.c.b16 %v3671, %v3669
        %v5752 = vpack.c.b16 %v3674, %v3672
        %v5753 = vpack.c.b16 %v3675, %v3673
        %v5754 = vpack.c.b16 %v3678, %v3676
        %v5755 = vpack.c.b16 %v3679, %v3677
        %v5756 = vpack.c.b16 %v3682, %v3680
        %v5757 = vpack.c.b16 %v3683, %v3681
        %v5758 = vpack.c.b16 %v3686, %v3684
        %v5759 = vpack.c.b16 %v3687, %v3685
        %v5760 = vpack.c.b16 %v3690, %v3688
        %v5761 = vpack.c.b16 %v3691, %v3689
        %v5762 = vpack.c.b16 %v3694, %v3692
        %v5763 = vpack.c.b16 %v3695, %v3693
        %v5764 = vpack.c.b16 %v3698, %v3696
        %v5765 = vpack.c.b16 %v3699, %v3697
        %v5766 = vpack.c.b16 %v3702, %v3700
        %v5767 = vpack.c.b16 %v3703, %v3701
        %v5768 = vpack.c.b16 %v3706, %v3704
        %v5769 = vpack.c.b16 %v3707, %v3705
        %v5770 = vpack.c.b16 %v3710, %v3708
        %v5771 = vpack.c.b16 %v3711, %v3709
        %v5772 = vpack.c.b16 %v3714, %v3712
        %v5773 = vpack.c.b16 %v3715, %v3713
        %v5774 = vpack.c.b16 %v3718, %v3716
        %v5775 = vpack.c.b16 %v3719, %v3717
        %v5776 = vpack.c.b16 %v3722, %v3720
        %v5777 = vpack.c.b16 %v3723, %v3721
        %v5778 = vpack.c.b16 %v3726, %v3724
        %v5779 = vpack.c.b16 %v3727, %v3725
        %v5780 = vpack.c.b16 %v3730, %v3728
        %v5781 = vpack.c.b16 %v3731, %v3729
        %v5782 = vpack.c.b16 %v3734, %v3732
        %v5783 = vpack.c.b16 %v3735, %v3733
        %v5784 = vpack.c.b16 %v3738, %v3736
        %v5785 = vpack.c.b16 %v3739, %v3737
        %v5786 = vpack.c.b16 %v3742, %v3740
        %v5787 = vpack.c.b16 %v3743, %v3741
        %v5788 = vpack.c.b16 %v3746, %v3744
        %v5789 = vpack.c.b16 %v3747, %v3745
        %v5790 = vpack.c.b16 %v3750, %v3748
        %v5791 = vpack.c.b16 %v3751, %v3749
        %v5792 = vpack.c.b16 %v3754, %v3752
        %v5793 = vpack.c.b16 %v3755, %v3753
        %v5794 = vpack.c.b16 %v3758, %v3756
        %v5795 = vpack.c.b16 %v3759, %v3757
        %v5796 = vpack.c.b16 %v3762, %v3760
        %v5797 = vpack.c.b16 %v3763, %v3761
        %v5798 = vpack.c.b16 %v3766, %v3764
        %v5799 = vpack.c.b16 %v3767, %v3765
        %v5800 = vpack.c.b16 %v3770, %v3768
        %v5801 = vpack.c.b16 %v3771, %v3769
        %v5802 = vpack.c.b16 %v3774, %v3772
        %v5803 = vpack.c.b16 %v3775, %v3773
        %v5804 = vpack.c.b16 %v3778, %v3776
        %v5805 = vpack.c.b16 %v3779, %v3777
        %v5806 = vpack.c.b16 %v3782, %v3780
        %v5807 = vpack.c.b16 %v3783, %v3781
        %v5808 = vpack.c.b16 %v3786, %v3784
        %v5809 = vpack.c.b16 %v3787, %v3785
        %v5810 = vpack.c.b16 %v3790, %v3788
        %v5811 = vpack.c.b16 %v3791, %v3789
        %v5812 = vpack.c.b16 %v3794, %v3792
        %v5813 = vpack.c.b16 %v3795, %v3793
        %v5814 = vpack.c.b16 %v3798, %v3796
        %v5815 = vpack.c.b16 %v3799, %v3797
        %v5816 = vpack.c.b16 %v3802, %v3800
        %v5817 = vpack.c.b16 %v3803, %v3801
        %v5818 = vpack.c.b16 %v3806, %v3804
        %v5819 = vpack.c.b16 %v3807, %v3805
        %v5820 = vpack.c.b16 %v3810, %v3808
        %v5821 = vpack.c.b16 %v3811, %v3809
        %v5822 = vpack.c.b16 %v3814, %v3812
        %v5823 = vpack.c.b16 %v3815, %v3813
        %v5824 = vpack.c.b16 %v3818, %v3816
        %v5825 = vpack.c.b16 %v3819, %v3817
        %v5826 = vpack.c.b16 %v3822, %v3820
        %v5827 = vpack.c.b16 %v3823, %v3821
        %v5828 = vpack.c.b16 %v3826, %v3824
        %v5829 = vpack.c.b16 %v3827, %v3825
        %v5830 = vpack.c.b16 %v3830, %v3828
        %v5831 = vpack.c.b16 %v3831, %v3829
        %v5832 = vpack.c.b16 %v3834, %v3832
        %v5833 = vpack.c.b16 %v3835, %v3833
        %v5834 = vpack.c.b16 %v3838, %v3836
        %v5835 = vpack.c.b16 %v3839, %v3837
        %v5836 = vpack.c.b16 %v3842, %v3840
        %v5837 = vpack.c.b16 %v3843, %v3841
        %v5838 = vpack.c.b16 %v3846, %v3844
        %v5839 = vpack.c.b16 %v3847, %v3845
        %v5840 = vpack.c.b16 %v3850, %v3848
        %v5841 = vpack.c.b16 %v3851, %v3849
        %v5842 = vpack.c.b16 %v3854, %v3852
        %v5843 = vpack.c.b16 %v3855, %v3853
        %v5844 = vpack.c.b16 %v3858, %v3856
        %v5845 = vpack.c.b16 %v3859, %v3857
        %v5846 = vpack.c.b16 %v3862, %v3860
        %v5847 = vpack.c.b16 %v3863, %v3861
        %v5848 = vpack.c.b16 %v3866, %v3864
        %v5849 = vpack.c.b16 %v3867, %v3865
        %v5850 = vpack.c.b16 %v3870, %v3868
        %v5851 = vpack.c.b16 %v3871, %v3869
        %v5852 = vpack.c.b16 %v3874, %v3872
        %v5853 = vpack.c.b16 %v3875, %v3873
        %v5854 = vpack.c.b16 %v3878, %v3876
        %v5855 = vpack.c.b16 %v3879, %v3877
        %v5856 = vpack.c.b16 %v3882, %v3880
        %v5857 = vpack.c.b16 %v3883, %v3881
        %v5858 = vpack.c.b16 %v3886, %v3884
        %v5859 = vpack.c.b16 %v3887, %v3885
        %v5860 = vpack.c.b16 %v3890, %v3888
        %v5861 = vpack.c.b16 %v3891, %v3889
        %v5862 = vpack.c.b16 %v3894, %v3892
        %v5863 = vpack.c.b16 %v3895, %v3893
        %v5864 = vpack.c.b16 %v3898, %v3896
        %v5865 = vpack.c.b16 %v3899, %v3897
        %v5866 = vpack.c.b16 %v3902, %v3900
        %v5867 = vpack.c.b16 %v3903, %v3901
        %v5868 = vpack.c.b16 %v3906, %v3904
        %v5869 = vpack.c.b16 %v3907, %v3905
        %v5870 = vpack.c.b16 %v3910, %v3908
        %v5871 = vpack.c.b16 %v3911, %v3909
        %v5872 = vpack.c.b16 %v3914, %v3912
        %v5873 = vpack.c.b16 %v3915, %v3913
        %v5874 = vpack.c.b16 %v3918, %v3916
        %v5875 = vpack.c.b16 %v3919, %v3917
        %v5876 = vpack.c.b16 %v3922, %v3920
        %v5877 = vpack.c.b16 %v3923, %v3921
        %v5878 = vpack.c.b16 %v3926, %v3924
        %v5879 = vpack.c.b16 %v3927, %v3925
        %v5880 = vpack.c.b16 %v3930, %v3928
        %v5881 = vpack.c.b16 %v3931, %v3929
        %v5882 = vpack.c.b16 %v3934, %v3932
        %v5883 = vpack.c.b16 %v3935, %v3933
        %v5884 = vpack.c.b16 %v3938, %v3936
        %v5885 = vpack.c.b16 %v3939, %v3937
        %v5886 = vpack.c.b16 %v3942, %v3940
        %v5887 = vpack.c.b16 %v3943, %v3941
        %v5888 = vpack.c.b16 %v3946, %v3944
        %v5889 = vpack.c.b16 %v3947, %v3945
        %v5890 = vpack.c.b16 %v3950, %v3948
        %v5891 = vpack.c.b16 %v3951, %v3949
        %v5892 = vpack.c.b16 %v3954, %v3952
        %v5893 = vpack.c.b16 %v3955, %v3953
        %v5894 = vpack.c.b16 %v3958, %v3956
        %v5895 = vpack.c.b16 %v3959, %v3957
        %v5896 = vpack.c.b16 %v3962, %v3960
        %v5897 = vpack.c.b16 %v3963, %v3961
        %v5898 = vpack.c.b16 %v3966, %v3964
        %v5899 = vpack.c.b16 %v3967, %v3965
        %v5900 = vpack.c.b16 %v3970, %v3968
        %v5901 = vpack.c.b16 %v3971, %v3969
        %v5902 = vpack.c.b16 %v3974, %v3972
        %v5903 = vpack.c.b16 %v3975, %v3973
        %v5904 = vpack.c.b16 %v3978, %v3976
        %v5905 = vpack.c.b16 %v3979, %v3977
        %v5906 = vpack.c.b16 %v3982, %v3980
        %v5907 = vpack.c.b16 %v3983, %v3981
        %v5908 = vpack.c.b16 %v3986, %v3984
        %v5909 = vpack.c.b16 %v3987, %v3985
        %v5910 = vpack.c.b16 %v3990, %v3988
        %v5911 = vpack.c.b16 %v3991, %v3989
        %v5912 = vpack.c.b16 %v3994, %v3992
        %v5913 = vpack.c.b16 %v3995, %v3993
        %v5914 = vpack.c.b16 %v3998, %v3996
        %v5915 = vpack.c.b16 %v3999, %v3997
        %v5916 = vpack.c.b16 %v4002, %v4000
        %v5917 = vpack.c.b16 %v4003, %v4001
        %v5918 = vpack.c.b16 %v4006, %v4004
        %v5919 = vpack.c.b16 %v4007, %v4005
        %v5920 = vpack.c.b16 %v4010, %v4008
        %v5921 = vpack.c.b16 %v4011, %v4009
        %v5922 = vpack.c.b16 %v4014, %v4012
        %v5923 = vpack.c.b16 %v4015, %v4013
        %v5924 = vpack.c.b16 %v4018, %v4016
        %v5925 = vpack.c.b16 %v4019, %v4017
        %v5926 = vpack.c.b16 %v4022, %v4020
        %v5927 = vpack.c.b16 %v4023, %v4021
        %v5928 = vpack.c.b16 %v4026, %v4024
        %v5929 = vpack.c.b16 %v4027, %v4025
        %v5930 = vpack.c.b16 %v4030, %v4028
        %v5931 = vpack.c.b16 %v4031, %v4029
        %v5932 = vpack.c.b16 %v4034, %v4032
        %v5933 = vpack.c.b16 %v4035, %v4033
        %v5934 = vpack.c.b16 %v4038, %v4036
        %v5935 = vpack.c.b16 %v4039, %v4037
        %v5936 = vpack.c.b16 %v4042, %v4040
        %v5937 = vpack.c.b16 %v4043, %v4041
        %v5938 = vpack.c.b16 %v4046, %v4044
        %v5939 = vpack.c.b16 %v4047, %v4045
        %v5940 = vpack.c.b16 %v4050, %v4048
        %v5941 = vpack.c.b16 %v4051, %v4049
        %v5942 = vpack.c.b16 %v4054, %v4052
        %v5943 = vpack.c.b16 %v4055, %v4053
        %v5944 = vpack.c.b16 %v4058, %v4056
        %v5945 = vpack.c.b16 %v4059, %v4057
        %v5946 = vpack.c.b16 %v4062, %v4060
        %v5947 = vpack.c.b16 %v4063, %v4061
        %v5948 = vpack.c.b16 %v4066, %v4064
        %v5949 = vpack.c.b16 %v4067, %v4065
        %v5950 = vpack.c.b16 %v4070, %v4068
        %v5951 = vpack.c.b16 %v4071, %v4069
        %v5952 = vpack.c.b16 %v4074, %v4072
        %v5953 = vpack.c.b16 %v4075, %v4073
        %v5954 = vpack.c.b16 %v4078, %v4076
        %v5955 = vpack.c.b16 %v4079, %v4077
        %v5956 = vpack.c.b16 %v4082, %v4080
        %v5957 = vpack.c.b16 %v4083, %v4081
        %v5958 = vpack.c.b16 %v4086, %v4084
        %v5959 = vpack.c.b16 %v4087, %v4085
        %v5960 = vpack.c.b16 %v4090, %v4088
        %v5961 = vpack.c.b16 %v4091, %v4089
        %v5962 = vpack.c.b16 %v4094, %v4092
        %v5963 = vpack.c.b16 %v4095, %v4093
        %v5964 = vpack.c.b16 %v4098, %v4096
        %v5965 = vpack.c.b16 %v4099, %v4097
        %v5966 = vpack.c.b16 %v4102, %v4100
        %v5967 = vpack.c.b16 %v4103, %v4101
        %v5968 = vpack.c.b16 %v4106, %v4104
        %v5969 = vpack.c.b16 %v4107, %v4105
        %v5970 = vpack.c.b16 %v4110, %v4108
        %v5971 = vpack.c.b16 %v4111, %v4109
        %v5972 = vpack.c.b16 %v4114, %v4112
        %v5973 = vpack.c.b16 %v4115, %v4113
        %v5974 = vpack.c.b16 %v4118, %v4116
        %v5975 = vpack.c.b16 %v4119, %v4117
        %v5976 = vpack.c.b16 %v4122, %v4120
        %v5977 = vpack.c.b16 %v4123, %v4121
        %v5978 = vpack.c.b16 %v4126, %v4124
        %v5979 = vpack.c.b16 %v4127, %v4125
        %v5980 = vpack.c.b16 %v4130, %v4128
        %v5981 = vpack.c.b16 %v4131, %v4129
        %v5982 = vpack.c.b16 %v4134, %v4132
        %v5983 = vpack.c.b16 %v4135, %v4133
        %v5984 = vpack.c.b16 %v4138, %v4136
        %v5985 = vpack.c.b16 %v4139, %v4137
        %v5986 = vpack.c.b16 %v4142, %v4140
        %v5987 = vpack.c.b16 %v4143, %v4141
        %v5988 = vpack.c.b16 %v4146, %v4144
        %v5989 = vpack.c.b16 %v4147, %v4145
        %v5990 = vpack.c.b16 %v4150, %v4148
        %v5991 = vpack.c.b16 %v4151, %v4149
        %v5992 = vpack.c.b16 %v4154, %v4152
        %v5993 = vpack.c.b16 %v4155, %v4153
        %v5994 = vpack.c.b16 %v4158, %v4156
        %v5995 = vpack.c.b16 %v4159, %v4157
        %v5996 = vpack.c.b16 %v4162, %v4160
        %v5997 = vpack.c.b16 %v4163, %v4161
        %v5998 = vpack.c.b16 %v4166, %v4164
        %v5999 = vpack.c.b16 %v4167, %v4165
        %v6000 = vpack.c.b16 %v4170, %v4168
        %v6001 = vpack.c.b16 %v4171, %v4169
        %v6002 = vpack.c.b16 %v4174, %v4172
        %v6003 = vpack.c.b16 %v4175, %v4173
        %v6004 = vpack.c.b16 %v4178, %v4176
        %v6005 = vpack.c.b16 %v4179, %v4177
        %v6006 = vpack.c.b16 %v4182, %v4180
        %v6007 = vpack.c.b16 %v4183, %v4181
        %v6008 = vpack.c.b16 %v4186, %v4184
        %v6009 = vpack.c.b16 %v4187, %v4185
        %v6010 = vpack.c.b16 %v4190, %v4188
        %v6011 = vpack.c.b16 %v4191, %v4189
        %v6012 = vpack.c.b16 %v4194, %v4192
        %v6013 = vpack.c.b16 %v4195, %v4193
        %v6014 = vpack.c.b16 %v4198, %v4196
        %v6015 = vpack.c.b16 %v4199, %v4197
        %v6016 = vpack.c.b16 %v4202, %v4200
        %v6017 = vpack.c.b16 %v4203, %v4201
        %v6018 = vpack.c.b16 %v4206, %v4204
        %v6019 = vpack.c.b16 %v4207, %v4205
        %v6020 = vpack.c.b16 %v4210, %v4208
        %v6021 = vpack.c.b16 %v4211, %v4209
        %v6022 = vpack.c.b16 %v4214, %v4212
        %v6023 = vpack.c.b16 %v4215, %v4213
        %v6024 = vpack.c.b16 %v4218, %v4216
        %v6025 = vpack.c.b16 %v4219, %v4217
        %v6026 = vpack.c.b16 %v4222, %v4220
        %v6027 = vpack.c.b16 %v4223, %v4221
        %v6028 = vpack.c.b16 %v4226, %v4224
        %v6029 = vpack.c.b16 %v4227, %v4225
        %v6030 = vpack.c.b16 %v4230, %v4228
        %v6031 = vpack.c.b16 %v4231, %v4229
        %v6032 = vpack.c.b16 %v4234, %v4232
        %v6033 = vpack.c.b16 %v4235, %v4233
        %v6034 = vpack.c.b16 %v4238, %v4236
        %v6035 = vpack.c.b16 %v4239, %v4237
        %v6036 = vpack.c.b16 %v4242, %v4240
        %v6037 = vpack.c.b16 %v4243, %v4241
        %v6038 = vpack.c.b16 %v4246, %v4244
        %v6039 = vpack.c.b16 %v4247, %v4245
        %v6040 = vpack.c.b16 %v4250, %v4248
        %v6041 = vpack.c.b16 %v4251, %v4249
        %v6042 = vpack.c.b16 %v4254, %v4252
        %v6043 = vpack.c.b16 %v4255, %v4253
        %v6044 = vpack.c.b16 %v4258, %v4256
        %v6045 = vpack.c.b16 %v4259, %v4257
        %v6046 = vpack.c.b16 %v4262, %v4260
        %v6047 = vpack.c.b16 %v4263, %v4261
        %v6048 = vpack.c.b16 %v4266, %v4264
        %v6049 = vpack.c.b16 %v4267, %v4265
        %v6050 = vpack.c.b16 %v4270, %v4268
        %v6051 = vpack.c.b16 %v4271, %v4269
        %v6052 = vpack.c.b16 %v4274, %v4272
        %v6053 = vpack.c.b16 %v4275, %v4273
        %v6054 = vpack.c.b16 %v4278, %v4276
        %v6055 = vpack.c.b16 %v4279, %v4277
        %v6056 = vpack.c.b16 %v4282, %v4280
        %v6057 = vpack.c.b16 %v4283, %v4281
        %v6058 = vpack.c.b16 %v4286, %v4284
        %v6059 = vpack.c.b16 %v4287, %v4285
        %v6060 = vpack.c.b16 %v4290, %v4288
        %v6061 = vpack.c.b16 %v4291, %v4289
        %v6062 = vpack.c.b16 %v4294, %v4292
        %v6063 = vpack.c.b16 %v4295, %v4293
        %v6064 = vpack.c.b16 %v4298, %v4296
        %v6065 = vpack.c.b16 %v4299, %v4297
        %v6066 = vpack.c.b16 %v4302, %v4300
        %v6067 = vpack.c.b16 %v4303, %v4301
        %v6068 = vpack.c.b16 %v4306, %v4304
        %v6069 = vpack.c.b16 %v4307, %v4305
        %v6070 = vpack.c.b16 %v4310, %v4308
        %v6071 = vpack.c.b16 %v4311, %v4309
        %v6072 = vpack.c.b16 %v4314, %v4312
        %v6073 = vpack.c.b16 %v4315, %v4313
        %v6074 = vpack.c.b16 %v4318, %v4316
        %v6075 = vpack.c.b16 %v4319, %v4317
        %v6076 = vpack.c.b16 %v4322, %v4320
        %v6077 = vpack.c.b16 %v4323, %v4321
        %v6078 = vpack.c.b16 %v4326, %v4324
        %v6079 = vpack.c.b16 %v4327, %v4325
        %v6080 = vpack.c.b16 %v4330, %v4328
        %v6081 = vpack.c.b16 %v4331, %v4329
        %v6082 = vpack.c.b16 %v4334, %v4332
        %v6083 = vpack.c.b16 %v4335, %v4333
        %v6084 = vpack.c.b16 %v4338, %v4336
        %v6085 = vpack.c.b16 %v4339, %v4337
        %v6086 = vpack.c.b16 %v4342, %v4340
        %v6087 = vpack.c.b16 %v4343, %v4341
        %v6088 = vpack.c.b16 %v4346, %v4344
        %v6089 = vpack.c.b16 %v4347, %v4345
        %v6090 = vpack.c.b16 %v4350, %v4348
        %v6091 = vpack.c.b16 %v4351, %v4349
        %v6092 = vpack.c.b16 %v4354, %v4352
        %v6093 = vpack.c.b16 %v4355, %v4353
        %v6094 = vpack.c.b16 %v4358, %v4356
        %v6095 = vpack.c.b16 %v4359, %v4357
        %v6096 = vpack.c.b16 %v4362, %v4360
        %v6097 = vpack.c.b16 %v4363, %v4361
        %v6098 = vpack.c.b16 %v4366, %v4364
        %v6099 = vpack.c.b16 %v4367, %v4365
        %v6100 = vpack.c.b16 %v4370, %v4368
        %v6101 = vpack.c.b16 %v4371, %v4369
        %v6102 = vpack.c.b16 %v4374, %v4372
        %v6103 = vpack.c.b16 %v4375, %v4373
        %v6104 = vpack.c.b16 %v4378, %v4376
        %v6105 = vpack.c.b16 %v4379, %v4377
        %v6106 = vpack.c.b16 %v4382, %v4380
        %v6107 = vpack.c.b16 %v4383, %v4381
        %v6108 = vpack.c.b16 %v4386, %v4384
        %v6109 = vpack.c.b16 %v4387, %v4385
        %v6110 = vpack.c.b16 %v4390, %v4388
        %v6111 = vpack.c.b16 %v4391, %v4389
        %v6112 = vpack.c.b16 %v4394, %v4392
        %v6113 = vpack.c.b16 %v4395, %v4393
        %v6114 = vpack.c.b16 %v4398, %v4396
        %v6115 = vpack.c.b16 %v4399, %v4397
        %v6116 = vpack.c.b16 %v4402, %v4400
        %v6117 = vpack.c.b16 %v4403, %v4401
        %v6118 = vpack.c.b16 %v4406, %v4404
        %v6119 = vpack.c.b16 %v4407, %v4405
        %v6120 = vpack.c.b16 %v4410, %v4408
        %v6121 = vpack.c.b16 %v4411, %v4409
        %v6122 = vpack.c.b16 %v4414, %v4412
        %v6123 = vpack.c.b16 %v4415, %v4413
        %v6124 = vpack.c.b16 %v4418, %v4416
        %v6125 = vpack.c.b16 %v4419, %v4417
        %v6126 = vpack.c.b16 %v4422, %v4420
        %v6127 = vpack.c.b16 %v4423, %v4421
        %v6128 = vpack.c.b16 %v4426, %v4424
        %v6129 = vpack.c.b16 %v4427, %v4425
        %v6130 = vpack.c.b16 %v4430, %v4428
        %v6131 = vpack.c.b16 %v4431, %v4429
        %v6132 = vpack.c.b16 %v4434, %v4432
        %v6133 = vpack.c.b16 %v4435, %v4433
        %v6134 = vpack.c.b16 %v4438, %v4436
        %v6135 = vpack.c.b16 %v4439, %v4437
        %v6136 = vpack.c.b16 %v4442, %v4440
        %v6137 = vpack.c.b16 %v4443, %v4441
        %v6138 = vpack.c.b16 %v4446, %v4444
        %v6139 = vpack.c.b16 %v4447, %v4445
        %v6140 = vpack.c.b16 %v4450, %v4448
        %v6141 = vpack.c.b16 %v4451, %v4449
        %v6142 = vpack.c.b16 %v4454, %v4452
        %v6143 = vpack.c.b16 %v4455, %v4453
        %v6144 = vpack.c.b16 %v4458, %v4456
        %v6145 = vpack.c.b16 %v4459, %v4457
        %v6146 = vpack.c.b16 %v4462, %v4460
        %v6147 = vpack.c.b16 %v4463, %v4461
        %v6148 = vpack.c.b16 %v4466, %v4464
        %v6149 = vpack.c.b16 %v4467, %v4465
        %v6150 = vpack.c.b16 %v4470, %v4468
        %v6151 = vpack.c.b16 %v4471, %v4469
        %v6152 = vpack.c.b16 %v4474, %v4472
        %v6153 = vpack.c.b16 %v4475, %v4473
        %v6154 = vpack.c.b16 %v4478, %v4476
        %v6155 = vpack.c.b16 %v4479, %v4477
        %v6156 = vpack.c.b16 %v4482, %v4480
        %v6157 = vpack.c.b16 %v4483, %v4481
        %v6158 = vpack.c.b16 %v4486, %v4484
        %v6159 = vpack.c.b16 %v4487, %v4485
        %v6160 = vpack.c.b16 %v4490, %v4488
        %v6161 = vpack.c.b16 %v4491, %v4489
        %v6162 = vpack.c.b16 %v4494, %v4492
        %v6163 = vpack.c.b16 %v4495, %v4493
        %v6164 = vpack.c.b16 %v4498, %v4496
        %v6165 = vpack.c.b16 %v4499, %v4497
        %v6166 = vpack.c.b16 %v4502, %v4500
        %v6167 = vpack.c.b16 %v4503, %v4501
        %v6168 = vpack.c.b16 %v4506, %v4504
        %v6169 = vpack.c.b16 %v4507, %v4505
        %v6170 = vpack.c.b16 %v4510, %v4508
        %v6171 = vpack.c.b16 %v4511, %v4509
        %v6172 = vpack.c.b16 %v4514, %v4512
        %v6173 = vpack.c.b16 %v4515, %v4513
        %v6174 = vpack.c.b16 %v4518, %v4516
        %v6175 = vpack.c.b16 %v4519, %v4517
        %v6176 = vpack.c.b16 %v4522, %v4520
        %v6177 = vpack.c.b16 %v4523, %v4521
        %v6178 = vpack.c.b16 %v4526, %v4524
        %v6179 = vpack.c.b16 %v4527, %v4525
        %v6180 = vpack.c.b16 %v4530, %v4528
        %v6181 = vpack.c.b16 %v4531, %v4529
        %v6182 = vpack.c.b16 %v4534, %v4532
        %v6183 = vpack.c.b16 %v4535, %v4533
        %v6184 = vpack.c.b16 %v4538, %v4536
        %v6185 = vpack.c.b16 %v4539, %v4537
        %v6186 = vpack.c.b16 %v4542, %v4540
        %v6187 = vpack.c.b16 %v4543, %v4541
        %v6188 = vpack.c.b16 %v4546, %v4544
        %v6189 = vpack.c.b16 %v4547, %v4545
        %v6190 = vpack.c.b16 %v4550, %v4548
        %v6191 = vpack.c.b16 %v4551, %v4549
        %v6192 = vpack.c.b16 %v4554, %v4552
        %v6193 = vpack.c.b16 %v4555, %v4553
        %v6194 = vpack.c.b16 %v4558, %v4556
        %v6195 = vpack.c.b16 %v4559, %v4557
        %v6196 = vpack.c.b16 %v4562, %v4560
        %v6197 = vpack.c.b16 %v4563, %v4561
        %v6198 = vpack.c.b16 %v4566, %v4564
        %v6199 = vpack.c.b16 %v4567, %v4565
        %v6200 = vpack.c.b16 %v4570, %v4568
        %v6201 = vpack.c.b16 %v4571, %v4569
        %v6202 = vpack.c.b16 %v4574, %v4572
        %v6203 = vpack.c.b16 %v4575, %v4573
        %v6204 = vpack.c.b16 %v4578, %v4576
        %v6205 = vpack.c.b16 %v4579, %v4577
        %v6206 = vpack.c.b16 %v4582, %v4580
        %v6207 = vpack.c.b16 %v4583, %v4581
        %v6208 = vpack.c.b16 %v4586, %v4584
        %v6209 = vpack.c.b16 %v4587, %v4585
        %v6210 = vpack.c.b16 %v4590, %v4588
        %v6211 = vpack.c.b16 %v4591, %v4589
        %v6212 = vpack.c.b16 %v4594, %v4592
        %v6213 = vpack.c.b16 %v4595, %v4593
        %v6214 = vpack.c.b16 %v4598, %v4596
        %v6215 = vpack.c.b16 %v4599, %v4597
        %v6216 = vpack.c.b16 %v4602, %v4600
        %v6217 = vpack.c.b16 %v4603, %v4601
        %v6218 = vpack.c.b16 %v4606, %v4604
        %v6219 = vpack.c.b16 %v4607, %v4605
        %v6220 = vpack.c.b16 %v4610, %v4608
        %v6221 = vpack.c.b16 %v4611, %v4609
        %v6222 = vpack.c.b16 %v4614, %v4612
        %v6223 = vpack.c.b16 %v4615, %v4613
        %v6224 = vpack.c.b16 %v4618, %v4616
        %v6225 = vpack.c.b16 %v4619, %v4617
        %v6226 = vpack.c.b16 %v4622, %v4620
        %v6227 = vpack.c.b16 %v4623, %v4621
        %v6228 = vpack.c.b16 %v4626, %v4624
        %v6229 = vpack.c.b16 %v4627, %v4625
        %v6230 = vpack.c.b16 %v4630, %v4628
        %v6231 = vpack.c.b16 %v4631, %v4629
        %v6232 = vpack.c.b16 %v4634, %v4632
        %v6233 = vpack.c.b16 %v4635, %v4633
        %v6234 = vpack.c.b16 %v4638, %v4636
        %v6235 = vpack.c.b16 %v4639, %v4637
        %v6236 = vpack.c.b16 %v4642, %v4640
        %v6237 = vpack.c.b16 %v4643, %v4641
        %v6238 = vpack.c.b16 %v4646, %v4644
        %v6239 = vpack.c.b16 %v4647, %v4645
        %v6240 = vpack.c.b16 %v4650, %v4648
        %v6241 = vpack.c.b16 %v4651, %v4649
        %v6242 = vpack.c.b16 %v4654, %v4652
        %v6243 = vpack.c.b16 %v4655, %v4653
        %v6244 = vpack.c.b16 %v4658, %v4656
        %v6245 = vpack.c.b16 %v4659, %v4657
        %v6246 = vpack.c.b16 %v4662, %v4660
        %v6247 = vpack.c.b16 %v4663, %v4661
        %v6248 = vpack.c.b16 %v4666, %v4664
        %v6249 = vpack.c.b16 %v4667, %v4665
        %v6250 = vpack.c.b16 %v4670, %v4668
        %v6251 = vpack.c.b16 %v4671, %v4669
        %v6252 = vpack.c.b16 %v4674, %v4672
        %v6253 = vpack.c.b16 %v4675, %v4673
        %v6254 = vpack.c.b16 %v4678, %v4676
        %v6255 = vpack.c.b16 %v4679, %v4677
        %v6256 = vpack.c.b16 %v4682, %v4680
        %v6257 = vpack.c.b16 %v4683, %v4681
        %v6258 = vpack.c.b16 %v4686, %v4684
        %v6259 = vpack.c.b16 %v4687, %v4685
        %v6260 = vpack.c.b16 %v4690, %v4688
        %v6261 = vpack.c.b16 %v4691, %v4689
        %v6262 = vpack.c.b16 %v4694, %v4692
        %v6263 = vpack.c.b16 %v4695, %v4693
        %v6264 = vpack.c.b16 %v4698, %v4696
        %v6265 = vpack.c.b16 %v4699, %v4697
        %v6266 = vpack.c.b16 %v4702, %v4700
        %v6267 = vpack.c.b16 %v4703, %v4701
        %v6268 = vpack.c.b16 %v4706, %v4704
        %v6269 = vpack.c.b16 %v4707, %v4705
        %v6270 = vpack.c.b16 %v4710, %v4708
        %v6271 = vpack.c.b16 %v4711, %v4709
        %v6272 = vpack.c.b16 %v4714, %v4712
        %v6273 = vpack.c.b16 %v4715, %v4713
        %v6274 = vpack.c.b16 %v4718, %v4716
        %v6275 = vpack.c.b16 %v4719, %v4717
        %v6276 = vpack.c.b16 %v4722, %v4720
        %v6277 = vpack.c.b16 %v4723, %v4721
        %v6278 = vpack.c.b16 %v4726, %v4724
        %v6279 = vpack.c.b16 %v4727, %v4725
        %v6280 = vpack.c.b16 %v4730, %v4728
        %v6281 = vpack.c.b16 %v4731, %v4729
        %v6282 = vpack.c.b16 %v4734, %v4732
        %v6283 = vpack.c.b16 %v4735, %v4733
        %v6284 = vpack.c.b16 %v4738, %v4736
        %v6285 = vpack.c.b16 %v4739, %v4737
        %v6286 = vpack.c.b16 %v4742, %v4740
        %v6287 = vpack.c.b16 %v4743, %v4741
        %v6288 = vpack.c.b16 %v4746, %v4744
        %v6289 = vpack.c.b16 %v4747, %v4745
        %v6290 = vpack.c.b16 %v4750, %v4748
        %v6291 = vpack.c.b16 %v4751, %v4749
        %v6292 = vpack.c.b16 %v4754, %v4752
        %v6293 = vpack.c.b16 %v4755, %v4753
        %v6294 = vpack.c.b16 %v4758, %v4756
        %v6295 = vpack.c.b16 %v4759, %v4757
        %v6296 = vpack.c.b16 %v4762, %v4760
        %v6297 = vpack.c.b16 %v4763, %v4761
        %v6298 = vpack.c.b16 %v4766, %v4764
        %v6299 = vpack.c.b16 %v4767, %v4765
        %v6300 = vpack.c.b16 %v4770, %v4768
        %v6301 = vpack.c.b16 %v4771, %v4769
        %v6302 = vpack.c.b16 %v4774, %v4772
        %v6303 = vpack.c.b16 %v4775, %v4773
        %v6304 = vpack.c.b16 %v4778, %v4776
        %v6305 = vpack.c.b16 %v4779, %v4777
        %v6306 = vpack.c.b16 %v4782, %v4780
        %v6307 = vpack.c.b16 %v4783, %v4781
        %v6308 = vpack.c.b16 %v4786, %v4784
        %v6309 = vpack.c.b16 %v4787, %v4785
        %v6310 = vpack.c.b16 %v4790, %v4788
        %v6311 = vpack.c.b16 %v4791, %v4789
        %v6312 = vpack.c.b16 %v4794, %v4792
        %v6313 = vpack.c.b16 %v4795, %v4793
        %v6314 = vpack.c.b16 %v4798, %v4796
        %v6315 = vpack.c.b16 %v4799, %v4797
        %v6316 = vpack.c.b16 %v4802, %v4800
        %v6317 = vpack.c.b16 %v4803, %v4801
        %v6318 = vpack.c.b16 %v4806, %v4804
        %v6319 = vpack.c.b16 %v4807, %v4805
        %v6320 = vpack.c.b16 %v4810, %v4808
        %v6321 = vpack.c.b16 %v4811, %v4809
        %v6322 = vpack.c.b16 %v4814, %v4812
        %v6323 = vpack.c.b16 %v4815, %v4813
        %v6324 = vpack.c.b16 %v4818, %v4816
        %v6325 = vpack.c.b16 %v4819, %v4817
        %v6326 = vpack.c.b16 %v4822, %v4820
        %v6327 = vpack.c.b16 %v4823, %v4821
        %v6328 = vpack.c.b16 %v4826, %v4824
        %v6329 = vpack.c.b16 %v4827, %v4825
        %v6330 = vpack.c.b16 %v4830, %v4828
        %v6331 = vpack.c.b16 %v4831, %v4829
        %v6332 = vpack.c.b16 %v4834, %v4832
        %v6333 = vpack.c.b16 %v4835, %v4833
        %v6334 = vpack.c.b16 %v4838, %v4836
        %v6335 = vpack.c.b16 %v4839, %v4837
        %v6336 = vpack.c.b16 %v4842, %v4840
        %v6337 = vpack.c.b16 %v4843, %v4841
        %v6338 = vpack.c.b16 %v4846, %v4844
        %v6339 = vpack.c.b16 %v4847, %v4845
        %v6340 = vpack.c.b16 %v4850, %v4848
        %v6341 = vpack.c.b16 %v4851, %v4849
        %v6342 = vpack.c.b16 %v4854, %v4852
        %v6343 = vpack.c.b16 %v4855, %v4853
        %v6344 = vpack.c.b16 %v4858, %v4856
        %v6345 = vpack.c.b16 %v4859, %v4857
        %v6346 = vpack.c.b16 %v4862, %v4860
        %v6347 = vpack.c.b16 %v4863, %v4861
        %v6348 = vpack.c.b16 %v4866, %v4864
        %v6349 = vpack.c.b16 %v4867, %v4865
        %v6350 = vpack.c.b16 %v4870, %v4868
        %v6351 = vpack.c.b16 %v4871, %v4869
        %v6352 = vpack.c.b16 %v4874, %v4872
        %v6353 = vpack.c.b16 %v4875, %v4873
        %v6354 = vpack.c.b16 %v4878, %v4876
        %v6355 = vpack.c.b16 %v4879, %v4877
        %v6356 = vpack.c.b16 %v4882, %v4880
        %v6357 = vpack.c.b16 %v4883, %v4881
        %v6358 = vpack.c.b16 %v4886, %v4884
        %v6359 = vpack.c.b16 %v4887, %v4885
        %v6360 = vpack.c.b16 %v4890, %v4888
        %v6361 = vpack.c.b16 %v4891, %v4889
        %v6362 = vpack.c.b16 %v4894, %v4892
        %v6363 = vpack.c.b16 %v4895, %v4893
        %v6364 = vpack.c.b16 %v4898, %v4896
        %v6365 = vpack.c.b16 %v4899, %v4897
        %v6366 = vpack.c.b16 %v4902, %v4900
        %v6367 = vpack.c.b16 %v4903, %v4901
        %v6368 = vpack.c.b16 %v4906, %v4904
        %v6369 = vpack.c.b16 %v4907, %v4905
        %v6370 = vpack.c.b16 %v4910, %v4908
        %v6371 = vpack.c.b16 %v4911, %v4909
        %v6372 = vpack.c.b16 %v4914, %v4912
        %v6373 = vpack.c.b16 %v4915, %v4913
        %v6374 = vpack.c.b16 %v4918, %v4916
        %v6375 = vpack.c.b16 %v4919, %v4917
        %v6376 = vpack.c.b16 %v4922, %v4920
        %v6377 = vpack.c.b16 %v4923, %v4921
        %v6378 = vpack.c.b16 %v4926, %v4924
        %v6379 = vpack.c.b16 %v4927, %v4925
        %v6380 = vpack.c.b16 %v4930, %v4928
        %v6381 = vpack.c.b16 %v4931, %v4929
        %v6382 = vpack.c.b16 %v4934, %v4932
        %v6383 = vpack.c.b16 %v4935, %v4933
        %v6384 = vpack.c.b16 %v4938, %v4936
        %v6385 = vpack.c.b16 %v4939, %v4937
        %v6386 = vpack.c.b16 %v4942, %v4940
        %v6387 = vpack.c.b16 %v4943, %v4941
        %v6388 = vpack.c.b16 %v4946, %v4944
        %v6389 = vpack.c.b16 %v4947, %v4945
        %v6390 = vpack.c.b16 %v4950, %v4948
        %v6391 = vpack.c.b16 %v4951, %v4949
        %v6392 = vpack.c.b16 %v4954, %v4952
        %v6393 = vpack.c.b16 %v4955, %v4953
        %v6394 = vpack.c.b16 %v4958, %v4956
        %v6395 = vpack.c.b16 %v4959, %v4957
        %v6396 = vpack.c.b16 %v4962, %v4960
        %v6397 = vpack.c.b16 %v4963, %v4961
        %v6398 = vpack.c.b16 %v4966, %v4964
        %v6399 = vpack.c.b16 %v4967, %v4965
        %v6400 = vpack.c.b16 %v4970, %v4968
        %v6401 = vpack.c.b16 %v4971, %v4969
        %v6402 = vpack.c.b16 %v4974, %v4972
        %v6403 = vpack.c.b16 %v4975, %v4973
        %v6404 = vpack.c.b16 %v4978, %v4976
        %v6405 = vpack.c.b16 %v4979, %v4977
        %v6406 = vpack.c.b16 %v4982, %v4980
        %v6407 = vpack.c.b16 %v4983, %v4981
        %v6408 = vpack.c.b16 %v4986, %v4984
        %v6409 = vpack.c.b16 %v4987, %v4985
        %v6410 = vpack.c.b16 %v4990, %v4988
        %v6411 = vpack.c.b16 %v4991, %v4989
        %v6412 = vpack.c.b16 %v4994, %v4992
        %v6413 = vpack.c.b16 %v4995, %v4993
        %v6414 = vpack.c.b16 %v4998, %v4996
        %v6415 = vpack.c.b16 %v4999, %v4997
        %v6416 = vpack.c.b16 %v5002, %v5000
        %v6417 = vpack.c.b16 %v5003, %v5001
        %v6418 = vpack.c.b16 %v5006, %v5004
        %v6419 = vpack.c.b16 %v5007, %v5005
        %v6420 = vpack.c.b16 %v5010, %v5008
        %v6421 = vpack.c.b16 %v5011, %v5009
        %v6422 = vpack.c.b16 %v5014, %v5012
        %v6423 = vpack.c.b16 %v5015, %v5013
        %v6424 = vpack.c.b16 %v5018, %v5016
        %v6425 = vpack.c.b16 %v5019, %v5017
        %v6426 = vpack.c.b16 %v5022, %v5020
        %v6427 = vpack.c.b16 %v5023, %v5021
        %v6428 = vpack.c.b16 %v5026, %v5024
        %v6429 = vpack.c.b16 %v5027, %v5025
        %v6430 = vpack.c.b16 %v5030, %v5028
        %v6431 = vpack.c.b16 %v5031, %v5029
        %v6432 = vpack.c.b16 %v5034, %v5032
        %v6433 = vpack.c.b16 %v5035, %v5033
        %v6434 = vpack.c.b16 %v5038, %v5036
        %v6435 = vpack.c.b16 %v5039, %v5037
        %v6436 = vpack.c.b16 %v5042, %v5040
        %v6437 = vpack.c.b16 %v5043, %v5041
        %v6438 = vpack.c.b16 %v5046, %v5044
        %v6439 = vpack.c.b16 %v5047, %v5045
        %v6440 = vpack.c.b16 %v5050, %v5048
        %v6441 = vpack.c.b16 %v5051, %v5049
        %v6442 = vpack.c.b16 %v5054, %v5052
        %v6443 = vpack.c.b16 %v5055, %v5053
        %v6444 = vpack.c.b16 %v5058, %v5056
        %v6445 = vpack.c.b16 %v5059, %v5057
        %v6446 = vpack.c.b16 %v5062, %v5060
        %v6447 = vpack.c.b16 %v5063, %v5061
        %v6448 = vpack.c.b16 %v5066, %v5064
        %v6449 = vpack.c.b16 %v5067, %v5065
        %v6450 = vpack.c.b16 %v5070, %v5068
        %v6451 = vpack.c.b16 %v5071, %v5069
        %v6452 = vpack.c.b16 %v5074, %v5072
        %v6453 = vpack.c.b16 %v5075, %v5073
        %v6454 = vpack.c.b16 %v5078, %v5076
        %v6455 = vpack.c.b16 %v5079, %v5077
        %v6456 = vpack.c.b16 %v5082, %v5080
        %v6457 = vpack.c.b16 %v5083, %v5081
        %v6458 = vpack.c.b16 %v5086, %v5084
        %v6459 = vpack.c.b16 %v5087, %v5085
        %v6460 = vpack.c.b16 %v5090, %v5088
        %v6461 = vpack.c.b16 %v5091, %v5089
        %v6462 = vpack.c.b16 %v5094, %v5092
        %v6463 = vpack.c.b16 %v5095, %v5093
        %v6464 = vpack.c.b16 %v5098, %v5096
        %v6465 = vpack.c.b16 %v5099, %v5097
        %v6466 = vpack.c.b16 %v5102, %v5100
        %v6467 = vpack.c.b16 %v5103, %v5101
        %v6468 = vpack.c.b16 %v5106, %v5104
        %v6469 = vpack.c.b16 %v5107, %v5105
        %v6470 = vpack.c.b16 %v5110, %v5108
        %v6471 = vpack.c.b16 %v5111, %v5109
        %v6472 = vpack.c.b16 %v5114, %v5112
        %v6473 = vpack.c.b16 %v5115, %v5113
        %v6474 = vpack.c.b16 %v5118, %v5116
        %v6475 = vpack.c.b16 %v5119, %v5117
        %v6476 = vpack.c.b16 %v5122, %v5120
        %v6477 = vpack.c.b16 %v5123, %v5121
        %v6478 = vpack.c.b16 %v5126, %v5124
        %v6479 = vpack.c.b16 %v5127, %v5125
        %v6480 = vpack.c.b16 %v5130, %v5128
        %v6481 = vpack.c.b16 %v5131, %v5129
        %v6482 = vpack.c.b16 %v5134, %v5132
        %v6483 = vpack.c.b16 %v5135, %v5133
        %v6484 = vpack.c.b16 %v5138, %v5136
        %v6485 = vpack.c.b16 %v5139, %v5137
        %v6486 = vpack.c.b16 %v5142, %v5140
        %v6487 = vpack.c.b16 %v5143, %v5141
        %v6488 = vpack.c.b16 %v5146, %v5144
        %v6489 = vpack.c.b16 %v5147, %v5145
        %v6490 = vpack.c.b16 %v5150, %v5148
        %v6491 = vpack.c.b16 %v5151, %v5149
        %v6492 = vpack.c.b16 %v5154, %v5152
        %v6493 = vpack.c.b16 %v5155, %v5153
        %v6494 = vpack.c.b16 %v5158, %v5156
        %v6495 = vpack.c.b16 %v5159, %v5157
        %v6496 = vpack.c.b16 %v5162, %v5160
        %v6497 = vpack.c.b16 %v5163, %v5161
        %v6498 = vpack.c.b16 %v5166, %v5164
        %v6499 = vpack.c.b16 %v5167, %v5165
        %v6500 = vpack.c.b16 %v5170, %v5168
        %v6501 = vpack.c.b16 %v5171, %v5169
        %v6502 = vpack.c.b16 %v5174, %v5172
        %v6503 = vpack.c.b16 %v5175, %v5173
        %v6504 = vpack.c.b16 %v5178, %v5176
        %v6505 = vpack.c.b16 %v5179, %v5177
        %v6506 = vpack.c.b16 %v5182, %v5180
        %v6507 = vpack.c.b16 %v5183, %v5181
        %v6508 = vpack.c.b16 %v5186, %v5184
        %v6509 = vpack.c.b16 %v5187, %v5185
        %v6510 = vpack.c.b16 %v5190, %v5188
        %v6511 = vpack.c.b16 %v5191, %v5189
        %v6512 = vpack.c.b16 %v5194, %v5192
        %v6513 = vpack.c.b16 %v5195, %v5193
        %v6514 = vpack.c.b16 %v5198, %v5196
        %v6515 = vpack.c.b16 %v5199, %v5197
        %v6516 = vpack.c.b16 %v5202, %v5200
        %v6517 = vpack.c.b16 %v5203, %v5201
        %v6518 = vpack.c.b16 %v5206, %v5204
        %v6519 = vpack.c.b16 %v5207, %v5205
        %v6520 = vpack.c.b16 %v5210, %v5208
        %v6521 = vpack.c.b16 %v5211, %v5209
        %v6522 = vpack.c.b16 %v5214, %v5212
        %v6523 = vpack.c.b16 %v5215, %v5213
        %v6524 = vpack.c.b16 %v5218, %v5216
        %v6525 = vpack.c.b16 %v5219, %v5217
        %v6526 = vpack.c.b16 %v5222, %v5220
        %v6527 = vpack.c.b16 %v5223, %v5221
        %v6528 = vpack.c.b16 %v5226, %v5224
        %v6529 = vpack.c.b16 %v5227, %v5225
        %v6530 = vpack.c.b16 %v5230, %v5228
        %v6531 = vpack.c.b16 %v5231, %v5229
        %v6532 = vpack.c.b16 %v5234, %v5232
        %v6533 = vpack.c.b16 %v5235, %v5233
        %v6534 = vpack.c.b16 %v5238, %v5236
        %v6535 = vpack.c.b16 %v5239, %v5237
        %v6536 = vpack.c.b16 %v5242, %v5240
        %v6537 = vpack.c.b16 %v5243, %v5241
        %v6538 = vpack.c.b16 %v5246, %v5244
        %v6539 = vpack.c.b16 %v5247, %v5245
        %v6540 = vpack.c.b16 %v5250, %v5248
        %v6541 = vpack.c.b16 %v5251, %v5249
        %v6542 = vpack.c.b16 %v5254, %v5252
        %v6543 = vpack.c.b16 %v5255, %v5253
        %v6544 = vpack.c.b16 %v5258, %v5256
        %v6545 = vpack.c.b16 %v5259, %v5257
        %v6546 = vpack.c.b16 %v5262, %v5260
        %v6547 = vpack.c.b16 %v5263, %v5261
        %v6548 = vpack.c.b16 %v5266, %v5264
        %v6549 = vpack.c.b16 %v5267, %v5265
        %v6550 = vpack.c.b16 %v5270, %v5268
        %v6551 = vpack.c.b16 %v5271, %v5269
        %v6552 = vpack.c.b16 %v5274, %v5272
        %v6553 = vpack.c.b16 %v5275, %v5273
        %v6554 = vpack.c.b16 %v5278, %v5276
        %v6555 = vpack.c.b16 %v5279, %v5277
        %v6556 = vpack.c.b16 %v5282, %v5280
        %v6557 = vpack.c.b16 %v5283, %v5281
        %v6558 = vpack.c.b16 %v5286, %v5284
        %v6559 = vpack.c.b16 %v5287, %v5285
        %v6560 = vpack.c.b16 %v5290, %v5288
        %v6561 = vpack.c.b16 %v5291, %v5289
        %v6562 = vpack.c.b16 %v5294, %v5292
        %v6563 = vpack.c.b16 %v5295, %v5293
        %v6564 = vpack.c.b16 %v5298, %v5296
        %v6565 = vpack.c.b16 %v5299, %v5297
        %v6566 = vpack.c.b16 %v5302, %v5300
        %v6567 = vpack.c.b16 %v5303, %v5301
        %v6568 = vpack.c.b16 %v5306, %v5304
        %v6569 = vpack.c.b16 %v5307, %v5305
        %v6570 = vpack.c.b16 %v5310, %v5308
        %v6571 = vpack.c.b16 %v5311, %v5309
        %v6572 = vpack.c.b16 %v5314, %v5312
        %v6573 = vpack.c.b16 %v5315, %v5313
        %v6574 = vpack.c.b16 %v5318, %v5316
        %v6575 = vpack.c.b16 %v5319, %v5317
        %v6576 = vpack.c.b16 %v5322, %v5320
        %v6577 = vpack.c.b16 %v5323, %v5321
        %v6578 = vpack.c.b16 %v5326, %v5324
        %v6579 = vpack.c.b16 %v5327, %v5325
        %v6580 = vpack.c.b16 %v5330, %v5328
        %v6581 = vpack.c.b16 %v5331, %v5329
        %v6582 = vpack.c.b16 %v5334, %v5332
        %v6583 = vpack.c.b16 %v5335, %v5333
        %v6584 = vpack.c.b16 %v5338, %v5336
        %v6585 = vpack.c.b16 %v5339, %v5337
        %v6586 = vpack.c.b16 %v5342, %v5340
        %v6587 = vpack.c.b16 %v5343, %v5341
        %v6588 = vpack.c.b16 %v5346, %v5344
        %v6589 = vpack.c.b16 %v5347, %v5345
        %v6590 = vpack.c.b16 %v5350, %v5348
        %v6591 = vpack.c.b16 %v5351, %v5349
        %v6592 = vpack.c.b16 %v5354, %v5352
        %v6593 = vpack.c.b16 %v5355, %v5353
        %v6594 = vpack.c.b16 %v5358, %v5356
        %v6595 = vpack.c.b16 %v5359, %v5357
        %v6596 = vpack.c.b16 %v5362, %v5360
        %v6597 = vpack.c.b16 %v5363, %v5361
        %v6598 = vpack.c.b16 %v5366, %v5364
        %v6599 = vpack.c.b16 %v5367, %v5365
        %v6600 = vpack.c.b16 %v5370, %v5368
        %v6601 = vpack.c.b16 %v5371, %v5369
        %v6602 = vpack.c.b16 %v5374, %v5372
        %v6603 = vpack.c.b16 %v5375, %v5373
        %v6604 = vpack.c.b16 %v5378, %v5376
        %v6605 = vpack.c.b16 %v5379, %v5377
        %v6606 = vpack.c.b16 %v5382, %v5380
        %v6607 = vpack.c.b16 %v5383, %v5381
        %v6608 = vpack.c.b16 %v5386, %v5384
        %v6609 = vpack.c.b16 %v5387, %v5385
        %v6610 = vpack.c.b16 %v5390, %v5388
        %v6611 = vpack.c.b16 %v5391, %v5389
        %v6612 = vpack.c.b16 %v5394, %v5392
        %v6613 = vpack.c.b16 %v5395, %v5393
        %v6614 = vpack.c.b16 %v5398, %v5396
        %v6615 = vpack.c.b16 %v5399, %v5397
        %v6616 = vpack.c.b16 %v5402, %v5400
        %v6617 = vpack.c.b16 %v5403, %v5401
        %v6618 = vpack.c.b16 %v5406, %v5404
        %v6619 = vpack.c.b16 %v5407, %v5405
        %v6620 = vpack.c.b16 %v5410, %v5408
        %v6621 = vpack.c.b16 %v5411, %v5409
        %v6622 = vpack.c.b16 %v5414, %v5412
        %v6623 = vpack.c.b16 %v5415, %v5413
        %v6624 = vpack.c.b16 %v5418, %v5416
        %v6625 = vpack.c.b16 %v5419, %v5417
        %v6626 = vpack.c.b16 %v5422, %v5420
        %v6627 = vpack.c.b16 %v5423, %v5421
        %v6628 = vpack.c.b16 %v5426, %v5424
        %v6629 = vpack.c.b16 %v5427, %v5425
        %v6630 = vpack.c.b16 %v5430, %v5428
        %v6631 = vpack.c.b16 %v5431, %v5429
        %v6632 = vpack.c.b16 %v5434, %v5432
        %v6633 = vpack.c.b16 %v5435, %v5433
        %v6634 = vpack.c.b16 %v5438, %v5436
        %v6635 = vpack.c.b16 %v5439, %v5437
        %v6636 = vpack.c.b16 %v5442, %v5440
        %v6637 = vpack.c.b16 %v5443, %v5441
        %v6638 = vpack.c.b16 %v5446, %v5444
        %v6639 = vpack.c.b16 %v5447, %v5445
        %v6640 = vpack.c.b16 %v5450, %v5448
        %v6641 = vpack.c.b16 %v5451, %v5449
        %v6642 = vpack.c.b16 %v5454, %v5452
        %v6643 = vpack.c.b16 %v5455, %v5453
        %v6644 = vpack.c.b16 %v5458, %v5456
        %v6645 = vpack.c.b16 %v5459, %v5457
        %v6646 = vpack.c.b16 %v5462, %v5460
        %v6647 = vpack.c.b16 %v5463, %v5461
        %v6648 = vpack.c.b16 %v5466, %v5464
        %v6649 = vpack.c.b16 %v5467, %v5465
        %v6650 = vpack.c.b16 %v5470, %v5468
        %v6651 = vpack.c.b16 %v5471, %v5469
        %v6652 = vpack.c.b16 %v5474, %v5472
        %v6653 = vpack.c.b16 %v5475, %v5473
        %v6654 = vpack.c.b16 %v5478, %v5476
        %v6655 = vpack.c.b16 %v5479, %v5477
        %v6656 = vpack.c.b16 %v5482, %v5480
        %v6657 = vpack.c.b16 %v5483, %v5481
        %v6658 = vpack.c.b16 %v5486, %v5484
        %v6659 = vpack.c.b16 %v5487, %v5485
        %v6660 = vpack.c.b16 %v5490, %v5488
        %v6661 = vpack.c.b16 %v5491, %v5489
        %v6662 = vpack.c.b16 %v5494, %v5492
        %v6663 = vpack.c.b16 %v5495, %v5493
        %v6664 = vpack.c.b16 %v5498, %v5496
        %v6665 = vpack.c.b16 %v5499, %v5497
        %v6666 = vpack.c.b16 %v5502, %v5500
        %v6667 = vpack.c.b16 %v5503, %v5501
        %v6668 = vpack.c.b16 %v5506, %v5504
        %v6669 = vpack.c.b16 %v5507, %v5505
        %v6670 = vpack.c.b16 %v5510, %v5508
        %v6671 = vpack.c.b16 %v5511, %v5509
        %v6672 = vpack.c.b16 %v5514, %v5512
        %v6673 = vpack.c.b16 %v5515, %v5513
        %v6674 = vpack.c.b16 %v5518, %v5516
        %v6675 = vpack.c.b16 %v5519, %v5517
        %v6676 = vpack.c.b16 %v5522, %v5520
        %v6677 = vpack.c.b16 %v5523, %v5521
        %v6678 = vpack.c.b16 %v5526, %v5524
        %v6679 = vpack.c.b16 %v5527, %v5525
        %7832 = vmatprep.subr.bf16.mxu0 %v5529
        %7833 = vmatpush1.bf16.msra.mxu0 %v5528
        %7834 = vmatprep.subr.bf16.mxu0 %v5531
        %7835 = vmatpush1.bf16.msra.mxu0 %v5530
        %7836 = vmatprep.subr.bf16.mxu0 %v5533
        %7837 = vmatpush1.bf16.msra.mxu0 %v5532
        %7838 = vmatprep.subr.bf16.mxu0 %v5535
        %7839 = vmatpush1.bf16.msra.mxu0 %v5534
        %7840 = vmatprep.subr.bf16.mxu0 %v5537
        %7841 = vmatpush1.bf16.msra.mxu0 %v5536
        %7842 = vmatprep.subr.bf16.mxu0 %v5539
        %7843 = vmatpush1.bf16.msra.mxu0 %v5538
        %7844 = vmatprep.subr.bf16.mxu0 %v5541
        %7845 = vmatpush1.bf16.msra.mxu0 %v5540
        %7846 = vmatprep.subr.bf16.mxu0 %v5543
        %7847 = vmatpush1.bf16.msra.mxu0 %v5542
        %7848 = vmatprep.subr.bf16.mxu0 %v5545
        %7849 = vmatpush1.bf16.msra.mxu0 %v5544
        %7850 = vmatprep.subr.bf16.mxu0 %v5547
        %7851 = vmatpush1.bf16.msra.mxu0 %v5546
        %7852 = vmatprep.subr.bf16.mxu0 %v5549
        %7853 = vmatpush1.bf16.msra.mxu0 %v5548
        %7854 = vmatprep.subr.bf16.mxu0 %v5551
        %7855 = vmatpush1.bf16.msra.mxu0 %v5550
        %7856 = vmatprep.subr.bf16.mxu0 %v5553
        %7857 = vmatpush1.bf16.msra.mxu0 %v5552
        %7858 = vmatprep.subr.bf16.mxu0 %v5555
        %7859 = vmatpush1.bf16.msra.mxu0 %v5554
        %7860 = vmatprep.subr.bf16.mxu0 %v5557
        %7861 = vmatpush1.bf16.msra.mxu0 %v5556
        %7862 = vmatprep.subr.bf16.mxu0 %v5559
        %7863 = vmatpush1.bf16.msra.mxu0 %v5558
        %7864 = vmatprep.mubr.bf16.mxu0 %v848
        %7865 = vmatmul.mubr.bf16.gmra.mrb[0].mxu0 %v847
        %v7866 = vpop.f32.mrb[0].mxu0
        %v7867 = vadd.f32 0.0, %v7866
        %v7868 = vpop.f32.mrb[0].mxu0
        %v7869 = vadd.f32 0.0, %v7868
        %v7870 = vpop.f32.mrb[0].mxu0
        %v7871 = vpop.f32.mrb[0].mxu0
        %7872 = vdwg.mxu0
        %7873 = vmatprep.subr.bf16.mxu0 %v5561
        %7874 = vmatpush1.bf16.msra.mxu0 %v5560
        %7875 = vmatprep.subr.bf16.mxu0 %v5563
        %7876 = vmatpush1.bf16.msra.mxu0 %v5562
        %7877 = vmatprep.subr.bf16.mxu0 %v5565
        %7878 = vmatpush1.bf16.msra.mxu0 %v5564
        %7879 = vmatprep.subr.bf16.mxu0 %v5567
        %7880 = vmatpush1.bf16.msra.mxu0 %v5566
        %7881 = vmatprep.subr.bf16.mxu0 %v5569
        %7882 = vmatpush1.bf16.msra.mxu0 %v5568
        %7883 = vmatprep.subr.bf16.mxu0 %v5571
        %7884 = vmatpush1.bf16.msra.mxu0 %v5570
        %7885 = vmatprep.subr.bf16.mxu0 %v5573
        %7886 = vmatpush1.bf16.msra.mxu0 %v5572
        %7887 = vmatprep.subr.bf16.mxu0 %v5575
        %7888 = vmatpush1.bf16.msra.mxu0 %v5574
        %7889 = vmatprep.subr.bf16.mxu0 %v5577
        %7890 = vmatpush1.bf16.msra.mxu0 %v5576
        %7891 = vmatprep.subr.bf16.mxu0 %v5579
        %7892 = vmatpush1.bf16.msra.mxu0 %v5578
        %7893 = vmatprep.subr.bf16.mxu0 %v5581
        %7894 = vmatpush1.bf16.msra.mxu0 %v5580
        %7895 = vmatprep.subr.bf16.mxu0 %v5583
        %7896 = vmatpush1.bf16.msra.mxu0 %v5582
        %7897 = vmatprep.subr.bf16.mxu0 %v5585
        %7898 = vmatpush1.bf16.msra.mxu0 %v5584
        %7899 = vmatprep.subr.bf16.mxu0 %v5587
        %7900 = vmatpush1.bf16.msra.mxu0 %v5586
        %7901 = vmatprep.subr.bf16.mxu0 %v5589
        %7902 = vmatpush1.bf16.msra.mxu0 %v5588
        %7903 = vmatprep.subr.bf16.mxu0 %v5591
        %7904 = vmatpush1.bf16.msra.mxu0 %v5590
        %7905 = vmatprep.mubr.bf16.mxu0 %v850
        %7906 = vmatmul.mubr.bf16.gmra.mrb[0].mxu0 %v849
        %v7907 = vpop.f32.mrb[0].mxu0
        %v7908 = vadd.f32 %v7867, %v7907
        %v7909 = vpop.f32.mrb[0].mxu0
        %v7910 = vadd.f32 %v7869, %v7909
        %v7911 = vpop.f32.mrb[0].mxu0
        %v7912 = vpop.f32.mrb[0].mxu0
        %7913 = vdwg.mxu0
        %7914 = vmatprep.subr.bf16.mxu0 %v5593
        %7915 = vmatpush1.bf16.msra.mxu0 %v5592
        %7916 = vmatprep.subr.bf16.mxu0 %v5595
        %7917 = vmatpush1.bf16.msra.mxu0 %v5594
        %7918 = vmatprep.subr.bf16.mxu0 %v5597
        %7919 = vmatpush1.bf16.msra.mxu0 %v5596
        %7920 = vmatprep.subr.bf16.mxu0 %v5599
        %7921 = vmatpush1.bf16.msra.mxu0 %v5598
        %7922 = vmatprep.subr.bf16.mxu0 %v5601
        %7923 = vmatpush1.bf16.msra.mxu0 %v5600
        %7924 = vmatprep.subr.bf16.mxu0 %v5603
        %7925 = vmatpush1.bf16.msra.mxu0 %v5602
        %7926 = vmatprep.subr.bf16.mxu0 %v5605
        %7927 = vmatpush1.bf16.msra.mxu0 %v5604
        %7928 = vmatprep.subr.bf16.mxu0 %v5607
        %7929 = vmatpush1.bf16.msra.mxu0 %v5606
        %7930 = vmatprep.subr.bf16.mxu0 %v5609
        %7931 = vmatpush1.bf16.msra.mxu0 %v5608
        %7932 = vmatprep.subr.bf16.mxu0 %v5611
        %7933 = vmatpush1.bf16.msra.mxu0 %v5610
        %7934 = vmatprep.subr.bf16.mxu0 %v5613
        %7935 = vmatpush1.bf16.msra.mxu0 %v5612
        %7936 = vmatprep.subr.bf16.mxu0 %v5615
        %7937 = vmatpush1.bf16.msra.mxu0 %v5614
        %7938 = vmatprep.subr.bf16.mxu0 %v5617
        %7939 = vmatpush1.bf16.msra.mxu0 %v5616
        %7940 = vmatprep.subr.bf16.mxu0 %v5619
        %7941 = vmatpush1.bf16.msra.mxu0 %v5618
        %7942 = vmatprep.subr.bf16.mxu0 %v5621
        %7943 = vmatpush1.bf16.msra.mxu0 %v5620
        %7944 = vmatprep.subr.bf16.mxu0 %v5623
        %7945 = vmatpush1.bf16.msra.mxu0 %v5622
        %7946 = vmatprep.mubr.bf16.mxu0 %v852
        %7947 = vmatmul.mubr.bf16.gmra.mrb[0].mxu0 %v851
        %v7948 = vpop.f32.mrb[0].mxu0
        %v7949 = vadd.f32 %v7908, %v7948
        %v7950 = vpop.f32.mrb[0].mxu0
        %v7951 = vadd.f32 %v7910, %v7950
        %v7952 = vpop.f32.mrb[0].mxu0
        %v7953 = vpop.f32.mrb[0].mxu0
        %7954 = vdwg.mxu0
        %7955 = vmatprep.subr.bf16.mxu0 %v5625
        %7956 = vmatpush1.bf16.msra.mxu0 %v5624
        %7957 = vmatprep.subr.bf16.mxu0 %v5627
        %7958 = vmatpush1.bf16.msra.mxu0 %v5626
        %7959 = vmatprep.subr.bf16.mxu0 %v5629
        %7960 = vmatpush1.bf16.msra.mxu0 %v5628
        %7961 = vmatprep.subr.bf16.mxu0 %v5631
        %7962 = vmatpush1.bf16.msra.mxu0 %v5630
        %7963 = vmatprep.subr.bf16.mxu0 %v5633
        %7964 = vmatpush1.bf16.msra.mxu0 %v5632
        %7965 = vmatprep.subr.bf16.mxu0 %v5635
        %7966 = vmatpush1.bf16.msra.mxu0 %v5634
        %7967 = vmatprep.subr.bf16.mxu0 %v5637
        %7968 = vmatpush1.bf16.msra.mxu0 %v5636
        %7969 = vmatprep.subr.bf16.mxu0 %v5639
        %7970 = vmatpush1.bf16.msra.mxu0 %v5638
        %7971 = vmatprep.subr.bf16.mxu0 %v5641
        %7972 = vmatpush1.bf16.msra.mxu0 %v5640
        %7973 = vmatprep.subr.bf16.mxu0 %v5643
        %7974 = vmatpush1.bf16.msra.mxu0 %v5642
        %7975 = vmatprep.subr.bf16.mxu0 %v5645
        %7976 = vmatpush1.bf16.msra.mxu0 %v5644
        %7977 = vmatprep.subr.bf16.mxu0 %v5647
        %7978 = vmatpush1.bf16.msra.mxu0 %v5646
        %7979 = vmatprep.subr.bf16.mxu0 %v5649
        %7980 = vmatpush1.bf16.msra.mxu0 %v5648
        %7981 = vmatprep.subr.bf16.mxu0 %v5651
        %7982 = vmatpush1.bf16.msra.mxu0 %v5650
        %7983 = vmatprep.subr.bf16.mxu0 %v5653
        %7984 = vmatpush1.bf16.msra.mxu0 %v5652
        %7985 = vmatprep.subr.bf16.mxu0 %v5655
        %7986 = vmatpush1.bf16.msra.mxu0 %v5654
        %7987 = vmatprep.mubr.bf16.mxu0 %v854
        %7988 = vmatmul.mubr.bf16.gmra.mrb[0].mxu0 %v853
        %v7989 = vpop.f32.mrb[0].mxu0
        %v7990 = vadd.f32 %v7949, %v7989
        %v7991 = vpop.f32.mrb[0].mxu0
        %v7992 = vadd.f32 %v7951, %v7991
        %v7993 = vpop.f32.mrb[0].mxu0
        %v7994 = vpop.f32.mrb[0].mxu0
        %7995 = vdwg.mxu0
        %7996 = vmatprep.subr.bf16.mxu0 %v5657
        %7997 = vmatpush1.bf16.msra.mxu0 %v5656
        %7998 = vmatprep.subr.bf16.mxu0 %v5659
        %7999 = vmatpush1.bf16.msra.mxu0 %v5658
        %8000 = vmatprep.subr.bf16.mxu0 %v5661
        %8001 = vmatpush1.bf16.msra.mxu0 %v5660
        %8002 = vmatprep.subr.bf16.mxu0 %v5663
        %8003 = vmatpush1.bf16.msra.mxu0 %v5662
        %8004 = vmatprep.subr.bf16.mxu0 %v5665
        %8005 = vmatpush1.bf16.msra.mxu0 %v5664
        %8006 = vmatprep.subr.bf16.mxu0 %v5667
        %8007 = vmatpush1.bf16.msra.mxu0 %v5666
        %8008 = vmatprep.subr.bf16.mxu0 %v5669
        %8009 = vmatpush1.bf16.msra.mxu0 %v5668
        %8010 = vmatprep.subr.bf16.mxu0 %v5671
        %8011 = vmatpush1.bf16.msra.mxu0 %v5670
        %8012 = vmatprep.subr.bf16.mxu0 %v5673
        %8013 = vmatpush1.bf16.msra.mxu0 %v5672
        %8014 = vmatprep.subr.bf16.mxu0 %v5675
        %8015 = vmatpush1.bf16.msra.mxu0 %v5674
        %8016 = vmatprep.subr.bf16.mxu0 %v5677
        %8017 = vmatpush1.bf16.msra.mxu0 %v5676
        %8018 = vmatprep.subr.bf16.mxu0 %v5679
        %8019 = vmatpush1.bf16.msra.mxu0 %v5678
        %8020 = vmatprep.subr.bf16.mxu0 %v5681
        %8021 = vmatpush1.bf16.msra.mxu0 %v5680
        %8022 = vmatprep.subr.bf16.mxu0 %v5683
        %8023 = vmatpush1.bf16.msra.mxu0 %v5682
        %8024 = vmatprep.subr.bf16.mxu0 %v5685
        %8025 = vmatpush1.bf16.msra.mxu0 %v5684
        %8026 = vmatprep.subr.bf16.mxu0 %v5687
        %8027 = vmatpush1.bf16.msra.mxu0 %v5686
        %8028 = vmatprep.mubr.bf16.mxu0 %v856
        %8029 = vmatmul.mubr.bf16.gmra.mrb[0].mxu0 %v855
        %v8030 = vpop.f32.mrb[0].mxu0
        %v8031 = vadd.f32 %v7990, %v8030
        %v8032 = vpop.f32.mrb[0].mxu0
        %v8033 = vadd.f32 %v7992, %v8032
        %v8034 = vpop.f32.mrb[0].mxu0
        %v8035 = vpop.f32.mrb[0].mxu0
        %8036 = vdwg.mxu0
        %8037 = vmatprep.subr.bf16.mxu0 %v5689
        %8038 = vmatpush1.bf16.msra.mxu0 %v5688
        %8039 = vmatprep.subr.bf16.mxu0 %v5691
        %8040 = vmatpush1.bf16.msra.mxu0 %v5690
        %8041 = vmatprep.subr.bf16.mxu0 %v5693
        %8042 = vmatpush1.bf16.msra.mxu0 %v5692
        %8043 = vmatprep.subr.bf16.mxu0 %v5695
        %8044 = vmatpush1.bf16.msra.mxu0 %v5694
        %8045 = vmatprep.subr.bf16.mxu0 %v5697
        %8046 = vmatpush1.bf16.msra.mxu0 %v5696
        %8047 = vmatprep.subr.bf16.mxu0 %v5699
        %8048 = vmatpush1.bf16.msra.mxu0 %v5698
        %8049 = vmatprep.subr.bf16.mxu0 %v5701
        %8050 = vmatpush1.bf16.msra.mxu0 %v5700
        %8051 = vmatprep.subr.bf16.mxu0 %v5703
        %8052 = vmatpush1.bf16.msra.mxu0 %v5702
        %8053 = vmatprep.subr.bf16.mxu0 %v5705
        %8054 = vmatpush1.bf16.msra.mxu0 %v5704
        %8055 = vmatprep.subr.bf16.mxu0 %v5707
        %8056 = vmatpush1.bf16.msra.mxu0 %v5706
        %8057 = vmatprep.subr.bf16.mxu0 %v5709
        %8058 = vmatpush1.bf16.msra.mxu0 %v5708
        %8059 = vmatprep.subr.bf16.mxu0 %v5711
        %8060 = vmatpush1.bf16.msra.mxu0 %v5710
        %8061 = vmatprep.subr.bf16.mxu0 %v5713
        %8062 = vmatpush1.bf16.msra.mxu0 %v5712
        %8063 = vmatprep.subr.bf16.mxu0 %v5715
        %8064 = vmatpush1.bf16.msra.mxu0 %v5714
        %8065 = vmatprep.subr.bf16.mxu0 %v5717
        %8066 = vmatpush1.bf16.msra.mxu0 %v5716
        %8067 = vmatprep.subr.bf16.mxu0 %v5719
        %8068 = vmatpush1.bf16.msra.mxu0 %v5718
        %8069 = vmatprep.mubr.bf16.mxu0 %v858
        %8070 = vmatmul.mubr.bf16.gmra.mrb[0].mxu0 %v857
        %v8071 = vpop.f32.mrb[0].mxu0
        %v8072 = vadd.f32 %v8031, %v8071
        %v8073 = vpop.f32.mrb[0].mxu0
        %v8074 = vadd.f32 %v8033, %v8073
        %v8075 = vpop.f32.mrb[0].mxu0
        %v8076 = vpop.f32.mrb[0].mxu0
        %8077 = vdwg.mxu0
        %8078 = vmatprep.subr.bf16.mxu0 %v5721
        %8079 = vmatpush1.bf16.msra.mxu0 %v5720
        %8080 = vmatprep.subr.bf16.mxu0 %v5723
        %8081 = vmatpush1.bf16.msra.mxu0 %v5722
        %8082 = vmatprep.subr.bf16.mxu0 %v5725
        %8083 = vmatpush1.bf16.msra.mxu0 %v5724
        %8084 = vmatprep.subr.bf16.mxu0 %v5727
        %8085 = vmatpush1.bf16.msra.mxu0 %v5726
        %8086 = vmatprep.subr.bf16.mxu0 %v5729
        %8087 = vmatpush1.bf16.msra.mxu0 %v5728
        %8088 = vmatprep.subr.bf16.mxu0 %v5731
        %8089 = vmatpush1.bf16.msra.mxu0 %v5730
        %8090 = vmatprep.subr.bf16.mxu0 %v5733
        %8091 = vmatpush1.bf16.msra.mxu0 %v5732
        %8092 = vmatprep.subr.bf16.mxu0 %v5735
        %8093 = vmatpush1.bf16.msra.mxu0 %v5734
        %8094 = vmatprep.subr.bf16.mxu0 %v5737
        %8095 = vmatpush1.bf16.msra.mxu0 %v5736
        %8096 = vmatprep.subr.bf16.mxu0 %v5739
        %8097 = vmatpush1.bf16.msra.mxu0 %v5738
        %8098 = vmatprep.subr.bf16.mxu0 %v5741
        %8099 = vmatpush1.bf16.msra.mxu0 %v5740
        %8100 = vmatprep.subr.bf16.mxu0 %v5743
        %8101 = vmatpush1.bf16.msra.mxu0 %v5742
        %8102 = vmatprep.subr.bf16.mxu0 %v5745
        %8103 = vmatpush1.bf16.msra.mxu0 %v5744
        %8104 = vmatprep.subr.bf16.mxu0 %v5747
        %8105 = vmatpush1.bf16.msra.mxu0 %v5746
        %8106 = vmatprep.subr.bf16.mxu0 %v5749
        %8107 = vmatpush1.bf16.msra.mxu0 %v5748
        %8108 = vmatprep.subr.bf16.mxu0 %v5751
        %8109 = vmatpush1.bf16.msra.mxu0 %v5750
        %8110 = vmatprep.mubr.bf16.mxu0 %v860
        %8111 = vmatmul.mubr.bf16.gmra.mrb[0].mxu0 %v859
        %v8112 = vpop.f32.mrb[0].mxu0
        %v8113 = vadd.f32 %v8072, %v8112
        %v8114 = vpop.f32.mrb[0].mxu0
        %v8115 = vadd.f32 %v8074, %v8114
        %v8116 = vpop.f32.mrb[0].mxu0
        %v8117 = vpop.f32.mrb[0].mxu0
        %8118 = vdwg.mxu0
        %8119 = vmatprep.subr.bf16.mxu0 %v5753
        %8120 = vmatpush1.bf16.msra.mxu0 %v5752
        %8121 = vmatprep.subr.bf16.mxu0 %v5755
        %8122 = vmatpush1.bf16.msra.mxu0 %v5754
        %8123 = vmatprep.subr.bf16.mxu0 %v5757
        %8124 = vmatpush1.bf16.msra.mxu0 %v5756
        %8125 = vmatprep.subr.bf16.mxu0 %v5759
        %8126 = vmatpush1.bf16.msra.mxu0 %v5758
        %8127 = vmatprep.subr.bf16.mxu0 %v5761
        %8128 = vmatpush1.bf16.msra.mxu0 %v5760
        %8129 = vmatprep.subr.bf16.mxu0 %v5763
        %8130 = vmatpush1.bf16.msra.mxu0 %v5762
        %8131 = vmatprep.subr.bf16.mxu0 %v5765
        %8132 = vmatpush1.bf16.msra.mxu0 %v5764
        %8133 = vmatprep.subr.bf16.mxu0 %v5767
        %8134 = vmatpush1.bf16.msra.mxu0 %v5766
        %8135 = vmatprep.subr.bf16.mxu0 %v5769
        %8136 = vmatpush1.bf16.msra.mxu0 %v5768
        %8137 = vmatprep.subr.bf16.mxu0 %v5771
        %8138 = vmatpush1.bf16.msra.mxu0 %v5770
        %8139 = vmatprep.subr.bf16.mxu0 %v5773
        %8140 = vmatpush1.bf16.msra.mxu0 %v5772
        %8141 = vmatprep.subr.bf16.mxu0 %v5775
        %8142 = vmatpush1.bf16.msra.mxu0 %v5774
        %8143 = vmatprep.subr.bf16.mxu0 %v5777
        %8144 = vmatpush1.bf16.msra.mxu0 %v5776
        %8145 = vmatprep.subr.bf16.mxu0 %v5779
        %8146 = vmatpush1.bf16.msra.mxu0 %v5778
        %8147 = vmatprep.subr.bf16.mxu0 %v5781
        %8148 = vmatpush1.bf16.msra.mxu0 %v5780
        %8149 = vmatprep.subr.bf16.mxu0 %v5783
        %8150 = vmatpush1.bf16.msra.mxu0 %v5782
        %8151 = vmatprep.mubr.bf16.mxu0 %v862
        %8152 = vmatmul.mubr.bf16.gmra.mrb[0].mxu0 %v861
        %v8153 = vpop.f32.mrb[0].mxu0
        %v8154 = vadd.f32 %v8113, %v8153
        %v8155 = vpop.f32.mrb[0].mxu0
        %v8156 = vadd.f32 %v8115, %v8155
        %v8157 = vpop.f32.mrb[0].mxu0
        %v8158 = vpop.f32.mrb[0].mxu0
        %8159 = vdwg.mxu0
        %8160 = vmatprep.subr.bf16.mxu0 %v5785
        %8161 = vmatpush1.bf16.msra.mxu0 %v5784
        %8162 = vmatprep.subr.bf16.mxu0 %v5787
        %8163 = vmatpush1.bf16.msra.mxu0 %v5786
        %8164 = vmatprep.subr.bf16.mxu0 %v5789
        %8165 = vmatpush1.bf16.msra.mxu0 %v5788
        %8166 = vmatprep.subr.bf16.mxu0 %v5791
        %8167 = vmatpush1.bf16.msra.mxu0 %v5790
        %8168 = vmatprep.subr.bf16.mxu0 %v5793
        %8169 = vmatpush1.bf16.msra.mxu0 %v5792
        %8170 = vmatprep.subr.bf16.mxu0 %v5795
        %8171 = vmatpush1.bf16.msra.mxu0 %v5794
        %8172 = vmatprep.subr.bf16.mxu0 %v5797
        %8173 = vmatpush1.bf16.msra.mxu0 %v5796
        %8174 = vmatprep.subr.bf16.mxu0 %v5799
        %8175 = vmatpush1.bf16.msra.mxu0 %v5798
        %8176 = vmatprep.subr.bf16.mxu0 %v5801
        %8177 = vmatpush1.bf16.msra.mxu0 %v5800
        %8178 = vmatprep.subr.bf16.mxu0 %v5803
        %8179 = vmatpush1.bf16.msra.mxu0 %v5802
        %8180 = vmatprep.subr.bf16.mxu0 %v5805
        %8181 = vmatpush1.bf16.msra.mxu0 %v5804
        %8182 = vmatprep.subr.bf16.mxu0 %v5807
        %8183 = vmatpush1.bf16.msra.mxu0 %v5806
        %8184 = vmatprep.subr.bf16.mxu0 %v5809
        %8185 = vmatpush1.bf16.msra.mxu0 %v5808
        %8186 = vmatprep.subr.bf16.mxu0 %v5811
        %8187 = vmatpush1.bf16.msra.mxu0 %v5810
        %8188 = vmatprep.subr.bf16.mxu0 %v5813
        %8189 = vmatpush1.bf16.msra.mxu0 %v5812
        %8190 = vmatprep.subr.bf16.mxu0 %v5815
        %8191 = vmatpush1.bf16.msra.mxu0 %v5814
        %8192 = vmatprep.mubr.bf16.mxu0 %v864
        %8193 = vmatmul.mubr.bf16.gmra.mrb[0].mxu0 %v863
        %v8194 = vpop.f32.mrb[0].mxu0
        %v8195 = vadd.f32 %v8154, %v8194
        %v8196 = vpop.f32.mrb[0].mxu0
        %v8197 = vadd.f32 %v8156, %v8196
        %v8198 = vpop.f32.mrb[0].mxu0
        %v8199 = vpop.f32.mrb[0].mxu0
        %8200 = vdwg.mxu0
        %8201 = vmatprep.subr.bf16.mxu0 %v5817
        %8202 = vmatpush1.bf16.msra.mxu0 %v5816
        %8203 = vmatprep.subr.bf16.mxu0 %v5819
        %8204 = vmatpush1.bf16.msra.mxu0 %v5818
        %8205 = vmatprep.subr.bf16.mxu0 %v5821
        %8206 = vmatpush1.bf16.msra.mxu0 %v5820
        %8207 = vmatprep.subr.bf16.mxu0 %v5823
        %8208 = vmatpush1.bf16.msra.mxu0 %v5822
        %8209 = vmatprep.subr.bf16.mxu0 %v5825
        %8210 = vmatpush1.bf16.msra.mxu0 %v5824
        %8211 = vmatprep.subr.bf16.mxu0 %v5827
        %8212 = vmatpush1.bf16.msra.mxu0 %v5826
        %8213 = vmatprep.subr.bf16.mxu0 %v5829
        %8214 = vmatpush1.bf16.msra.mxu0 %v5828
        %8215 = vmatprep.subr.bf16.mxu0 %v5831
        %8216 = vmatpush1.bf16.msra.mxu0 %v5830
        %8217 = vmatprep.subr.bf16.mxu0 %v5833
        %8218 = vmatpush1.bf16.msra.mxu0 %v5832
        %8219 = vmatprep.subr.bf16.mxu0 %v5835
        %8220 = vmatpush1.bf16.msra.mxu0 %v5834
        %8221 = vmatprep.subr.bf16.mxu0 %v5837
        %8222 = vmatpush1.bf16.msra.mxu0 %v5836
        %8223 = vmatprep.subr.bf16.mxu0 %v5839
        %8224 = vmatpush1.bf16.msra.mxu0 %v5838
        %8225 = vmatprep.subr.bf16.mxu0 %v5841
        %8226 = vmatpush1.bf16.msra.mxu0 %v5840
        %8227 = vmatprep.subr.bf16.mxu0 %v5843
        %8228 = vmatpush1.bf16.msra.mxu0 %v5842
        %8229 = vmatprep.subr.bf16.mxu0 %v5845
        %8230 = vmatpush1.bf16.msra.mxu0 %v5844
        %8231 = vmatprep.subr.bf16.mxu0 %v5847
        %8232 = vmatpush1.bf16.msra.mxu0 %v5846
        %8233 = vmatprep.mubr.bf16.mxu0 %v866
        %8234 = vmatmul.mubr.bf16.gmra.mrb[0].mxu0 %v865
        %v8235 = vpop.f32.mrb[0].mxu0
        %v8236 = vadd.f32 %v8195, %v8235
        %v8237 = vpop.f32.mrb[0].mxu0
        %v8238 = vadd.f32 %v8197, %v8237
        %v8239 = vpop.f32.mrb[0].mxu0
        %v8240 = vpop.f32.mrb[0].mxu0
        %8241 = vdwg.mxu0
        %8242 = vmatprep.subr.bf16.mxu0 %v5849
        %8243 = vmatpush1.bf16.msra.mxu0 %v5848
        %8244 = vmatprep.subr.bf16.mxu0 %v5851
        %8245 = vmatpush1.bf16.msra.mxu0 %v5850
        %8246 = vmatprep.subr.bf16.mxu0 %v5853
        %8247 = vmatpush1.bf16.msra.mxu0 %v5852
        %8248 = vmatprep.subr.bf16.mxu0 %v5855
        %8249 = vmatpush1.bf16.msra.mxu0 %v5854
        %8250 = vmatprep.subr.bf16.mxu0 %v5857
        %8251 = vmatpush1.bf16.msra.mxu0 %v5856
        %8252 = vmatprep.subr.bf16.mxu0 %v5859
        %8253 = vmatpush1.bf16.msra.mxu0 %v5858
        %8254 = vmatprep.subr.bf16.mxu0 %v5861
        %8255 = vmatpush1.bf16.msra.mxu0 %v5860
        %8256 = vmatprep.subr.bf16.mxu0 %v5863
        %8257 = vmatpush1.bf16.msra.mxu0 %v5862
        %8258 = vmatprep.subr.bf16.mxu0 %v5865
        %8259 = vmatpush1.bf16.msra.mxu0 %v5864
        %8260 = vmatprep.subr.bf16.mxu0 %v5867
        %8261 = vmatpush1.bf16.msra.mxu0 %v5866
        %8262 = vmatprep.subr.bf16.mxu0 %v5869
        %8263 = vmatpush1.bf16.msra.mxu0 %v5868
        %8264 = vmatprep.subr.bf16.mxu0 %v5871
        %8265 = vmatpush1.bf16.msra.mxu0 %v5870
        %8266 = vmatprep.subr.bf16.mxu0 %v5873
        %8267 = vmatpush1.bf16.msra.mxu0 %v5872
        %8268 = vmatprep.subr.bf16.mxu0 %v5875
        %8269 = vmatpush1.bf16.msra.mxu0 %v5874
        %8270 = vmatprep.subr.bf16.mxu0 %v5877
        %8271 = vmatpush1.bf16.msra.mxu0 %v5876
        %8272 = vmatprep.subr.bf16.mxu0 %v5879
        %8273 = vmatpush1.bf16.msra.mxu0 %v5878
        %8274 = vmatprep.mubr.bf16.mxu0 %v868
        %8275 = vmatmul.mubr.bf16.gmra.mrb[0].mxu0 %v867
        %v8276 = vpop.f32.mrb[0].mxu0
        %v8277 = vadd.f32 %v8236, %v8276
        %v8278 = vpop.f32.mrb[0].mxu0
        %v8279 = vadd.f32 %v8238, %v8278
        %v8280 = vpop.f32.mrb[0].mxu0
        %v8281 = vpop.f32.mrb[0].mxu0
        %8282 = vdwg.mxu0
        %8283 = vmatprep.subr.bf16.mxu0 %v5881
        %8284 = vmatpush1.bf16.msra.mxu0 %v5880
        %8285 = vmatprep.subr.bf16.mxu0 %v5883
        %8286 = vmatpush1.bf16.msra.mxu0 %v5882
        %8287 = vmatprep.subr.bf16.mxu0 %v5885
        %8288 = vmatpush1.bf16.msra.mxu0 %v5884
        %8289 = vmatprep.subr.bf16.mxu0 %v5887
        %8290 = vmatpush1.bf16.msra.mxu0 %v5886
        %8291 = vmatprep.subr.bf16.mxu0 %v5889
        %8292 = vmatpush1.bf16.msra.mxu0 %v5888
        %8293 = vmatprep.subr.bf16.mxu0 %v5891
        %8294 = vmatpush1.bf16.msra.mxu0 %v5890
        %8295 = vmatprep.subr.bf16.mxu0 %v5893
        %8296 = vmatpush1.bf16.msra.mxu0 %v5892
        %8297 = vmatprep.subr.bf16.mxu0 %v5895
        %8298 = vmatpush1.bf16.msra.mxu0 %v5894
        %8299 = vmatprep.subr.bf16.mxu0 %v5897
        %8300 = vmatpush1.bf16.msra.mxu0 %v5896
        %8301 = vmatprep.subr.bf16.mxu0 %v5899
        %8302 = vmatpush1.bf16.msra.mxu0 %v5898
        %8303 = vmatprep.subr.bf16.mxu0 %v5901
        %8304 = vmatpush1.bf16.msra.mxu0 %v5900
        %8305 = vmatprep.subr.bf16.mxu0 %v5903
        %8306 = vmatpush1.bf16.msra.mxu0 %v5902
        %8307 = vmatprep.subr.bf16.mxu0 %v5905
        %8308 = vmatpush1.bf16.msra.mxu0 %v5904
        %8309 = vmatprep.subr.bf16.mxu0 %v5907
        %8310 = vmatpush1.bf16.msra.mxu0 %v5906
        %8311 = vmatprep.subr.bf16.mxu0 %v5909
        %8312 = vmatpush1.bf16.msra.mxu0 %v5908
        %8313 = vmatprep.subr.bf16.mxu0 %v5911
        %8314 = vmatpush1.bf16.msra.mxu0 %v5910
        %8315 = vmatprep.mubr.bf16.mxu0 %v870
        %8316 = vmatmul.mubr.bf16.gmra.mrb[0].mxu0 %v869
        %v8317 = vpop.f32.mrb[0].mxu0
        %v8318 = vadd.f32 %v8277, %v8317
        %v8319 = vpop.f32.mrb[0].mxu0
        %v8320 = vadd.f32 %v8279, %v8319
        %v8321 = vpop.f32.mrb[0].mxu0
        %v8322 = vpop.f32.mrb[0].mxu0
        %8323 = vdwg.mxu0
        %8324 = vmatprep.subr.bf16.mxu0 %v5913
        %8325 = vmatpush1.bf16.msra.mxu0 %v5912
        %8326 = vmatprep.subr.bf16.mxu0 %v5915
        %8327 = vmatpush1.bf16.msra.mxu0 %v5914
        %8328 = vmatprep.subr.bf16.mxu0 %v5917
        %8329 = vmatpush1.bf16.msra.mxu0 %v5916
        %8330 = vmatprep.subr.bf16.mxu0 %v5919
        %8331 = vmatpush1.bf16.msra.mxu0 %v5918
        %8332 = vmatprep.subr.bf16.mxu0 %v5921
        %8333 = vmatpush1.bf16.msra.mxu0 %v5920
        %8334 = vmatprep.subr.bf16.mxu0 %v5923
        %8335 = vmatpush1.bf16.msra.mxu0 %v5922
        %8336 = vmatprep.subr.bf16.mxu0 %v5925
        %8337 = vmatpush1.bf16.msra.mxu0 %v5924
        %8338 = vmatprep.subr.bf16.mxu0 %v5927
        %8339 = vmatpush1.bf16.msra.mxu0 %v5926
        %8340 = vmatprep.subr.bf16.mxu0 %v5929
        %8341 = vmatpush1.bf16.msra.mxu0 %v5928
        %8342 = vmatprep.subr.bf16.mxu0 %v5931
        %8343 = vmatpush1.bf16.msra.mxu0 %v5930
        %8344 = vmatprep.subr.bf16.mxu0 %v5933
        %8345 = vmatpush1.bf16.msra.mxu0 %v5932
        %8346 = vmatprep.subr.bf16.mxu0 %v5935
        %8347 = vmatpush1.bf16.msra.mxu0 %v5934
        %8348 = vmatprep.subr.bf16.mxu0 %v5937
        %8349 = vmatpush1.bf16.msra.mxu0 %v5936
        %8350 = vmatprep.subr.bf16.mxu0 %v5939
        %8351 = vmatpush1.bf16.msra.mxu0 %v5938
        %8352 = vmatprep.subr.bf16.mxu0 %v5941
        %8353 = vmatpush1.bf16.msra.mxu0 %v5940
        %8354 = vmatprep.subr.bf16.mxu0 %v5943
        %8355 = vmatpush1.bf16.msra.mxu0 %v5942
        %8356 = vmatprep.mubr.bf16.mxu0 %v872
        %8357 = vmatmul.mubr.bf16.gmra.mrb[0].mxu0 %v871
        %v8358 = vpop.f32.mrb[0].mxu0
        %v8359 = vadd.f32 %v8318, %v8358
        %v8360 = vpop.f32.mrb[0].mxu0
        %v8361 = vadd.f32 %v8320, %v8360
        %v8362 = vpop.f32.mrb[0].mxu0
        %v8363 = vpop.f32.mrb[0].mxu0
        %8364 = vdwg.mxu0
        %8365 = vmatprep.subr.bf16.mxu0 %v5945
        %8366 = vmatpush1.bf16.msra.mxu0 %v5944
        %8367 = vmatprep.subr.bf16.mxu0 %v5947
        %8368 = vmatpush1.bf16.msra.mxu0 %v5946
        %8369 = vmatprep.subr.bf16.mxu0 %v5949
        %8370 = vmatpush1.bf16.msra.mxu0 %v5948
        %8371 = vmatprep.subr.bf16.mxu0 %v5951
        %8372 = vmatpush1.bf16.msra.mxu0 %v5950
        %8373 = vmatprep.subr.bf16.mxu0 %v5953
        %8374 = vmatpush1.bf16.msra.mxu0 %v5952
        %8375 = vmatprep.subr.bf16.mxu0 %v5955
        %8376 = vmatpush1.bf16.msra.mxu0 %v5954
        %8377 = vmatprep.subr.bf16.mxu0 %v5957
        %8378 = vmatpush1.bf16.msra.mxu0 %v5956
        %8379 = vmatprep.subr.bf16.mxu0 %v5959
        %8380 = vmatpush1.bf16.msra.mxu0 %v5958
        %8381 = vmatprep.subr.bf16.mxu0 %v5961
        %8382 = vmatpush1.bf16.msra.mxu0 %v5960
        %8383 = vmatprep.subr.bf16.mxu0 %v5963
        %8384 = vmatpush1.bf16.msra.mxu0 %v5962
        %8385 = vmatprep.subr.bf16.mxu0 %v5965
        %8386 = vmatpush1.bf16.msra.mxu0 %v5964
        %8387 = vmatprep.subr.bf16.mxu0 %v5967
        %8388 = vmatpush1.bf16.msra.mxu0 %v5966
        %8389 = vmatprep.subr.bf16.mxu0 %v5969
        %8390 = vmatpush1.bf16.msra.mxu0 %v5968
        %8391 = vmatprep.subr.bf16.mxu0 %v5971
        %8392 = vmatpush1.bf16.msra.mxu0 %v5970
        %8393 = vmatprep.subr.bf16.mxu0 %v5973
        %8394 = vmatpush1.bf16.msra.mxu0 %v5972
        %8395 = vmatprep.subr.bf16.mxu0 %v5975
        %8396 = vmatpush1.bf16.msra.mxu0 %v5974
        %8397 = vmatprep.mubr.bf16.mxu0 %v874
        %8398 = vmatmul.mubr.bf16.gmra.mrb[0].mxu0 %v873
        %v8399 = vpop.f32.mrb[0].mxu0
        %v8400 = vadd.f32 %v8359, %v8399
        %v8401 = vpop.f32.mrb[0].mxu0
        %v8402 = vadd.f32 %v8361, %v8401
        %v8403 = vpop.f32.mrb[0].mxu0
        %v8404 = vpop.f32.mrb[0].mxu0
        %8405 = vdwg.mxu0
        %8406 = vmatprep.subr.bf16.mxu0 %v5977
        %8407 = vmatpush1.bf16.msra.mxu0 %v5976
        %8408 = vmatprep.subr.bf16.mxu0 %v5979
        %8409 = vmatpush1.bf16.msra.mxu0 %v5978
        %8410 = vmatprep.subr.bf16.mxu0 %v5981
        %8411 = vmatpush1.bf16.msra.mxu0 %v5980
        %8412 = vmatprep.subr.bf16.mxu0 %v5983
        %8413 = vmatpush1.bf16.msra.mxu0 %v5982
        %8414 = vmatprep.subr.bf16.mxu0 %v5985
        %8415 = vmatpush1.bf16.msra.mxu0 %v5984
        %8416 = vmatprep.subr.bf16.mxu0 %v5987
        %8417 = vmatpush1.bf16.msra.mxu0 %v5986
        %8418 = vmatprep.subr.bf16.mxu0 %v5989
        %8419 = vmatpush1.bf16.msra.mxu0 %v5988
        %8420 = vmatprep.subr.bf16.mxu0 %v5991
        %8421 = vmatpush1.bf16.msra.mxu0 %v5990
        %8422 = vmatprep.subr.bf16.mxu0 %v5993
        %8423 = vmatpush1.bf16.msra.mxu0 %v5992
        %8424 = vmatprep.subr.bf16.mxu0 %v5995
        %8425 = vmatpush1.bf16.msra.mxu0 %v5994
        %8426 = vmatprep.subr.bf16.mxu0 %v5997
        %8427 = vmatpush1.bf16.msra.mxu0 %v5996
        %8428 = vmatprep.subr.bf16.mxu0 %v5999
        %8429 = vmatpush1.bf16.msra.mxu0 %v5998
        %8430 = vmatprep.subr.bf16.mxu0 %v6001
        %8431 = vmatpush1.bf16.msra.mxu0 %v6000
        %8432 = vmatprep.subr.bf16.mxu0 %v6003
        %8433 = vmatpush1.bf16.msra.mxu0 %v6002
        %8434 = vmatprep.subr.bf16.mxu0 %v6005
        %8435 = vmatpush1.bf16.msra.mxu0 %v6004
        %8436 = vmatprep.subr.bf16.mxu0 %v6007
        %8437 = vmatpush1.bf16.msra.mxu0 %v6006
        %8438 = vmatprep.mubr.bf16.mxu0 %v876
        %8439 = vmatmul.mubr.bf16.gmra.mrb[0].mxu0 %v875
        %v8440 = vpop.f32.mrb[0].mxu0
        %v8441 = vadd.f32 %v8400, %v8440
        %v8442 = vpop.f32.mrb[0].mxu0
        %v8443 = vadd.f32 %v8402, %v8442
        %v8444 = vpop.f32.mrb[0].mxu0
        %v8445 = vpop.f32.mrb[0].mxu0
        %8446 = vdwg.mxu0
        %8447 = vmatprep.subr.bf16.mxu0 %v6009
        %8448 = vmatpush1.bf16.msra.mxu0 %v6008
        %8449 = vmatprep.subr.bf16.mxu0 %v6011
        %8450 = vmatpush1.bf16.msra.mxu0 %v6010
        %8451 = vmatprep.subr.bf16.mxu0 %v6013
        %8452 = vmatpush1.bf16.msra.mxu0 %v6012
        %8453 = vmatprep.subr.bf16.mxu0 %v6015
        %8454 = vmatpush1.bf16.msra.mxu0 %v6014
        %8455 = vmatprep.subr.bf16.mxu0 %v6017
        %8456 = vmatpush1.bf16.msra.mxu0 %v6016
        %8457 = vmatprep.subr.bf16.mxu0 %v6019
        %8458 = vmatpush1.bf16.msra.mxu0 %v6018
        %8459 = vmatprep.subr.bf16.mxu0 %v6021
        %8460 = vmatpush1.bf16.msra.mxu0 %v6020
        %8461 = vmatprep.subr.bf16.mxu0 %v6023
        %8462 = vmatpush1.bf16.msra.mxu0 %v6022
        %8463 = vmatprep.subr.bf16.mxu0 %v6025
        %8464 = vmatpush1.bf16.msra.mxu0 %v6024
        %8465 = vmatprep.subr.bf16.mxu0 %v6027
        %8466 = vmatpush1.bf16.msra.mxu0 %v6026
        %8467 = vmatprep.subr.bf16.mxu0 %v6029
        %8468 = vmatpush1.bf16.msra.mxu0 %v6028
        %8469 = vmatprep.subr.bf16.mxu0 %v6031
        %8470 = vmatpush1.bf16.msra.mxu0 %v6030
        %8471 = vmatprep.subr.bf16.mxu0 %v6033
        %8472 = vmatpush1.bf16.msra.mxu0 %v6032
        %8473 = vmatprep.subr.bf16.mxu0 %v6035
        %8474 = vmatpush1.bf16.msra.mxu0 %v6034
        %8475 = vmatprep.subr.bf16.mxu0 %v6037
        %8476 = vmatpush1.bf16.msra.mxu0 %v6036
        %8477 = vmatprep.subr.bf16.mxu0 %v6039
        %8478 = vmatpush1.bf16.msra.mxu0 %v6038
        %8479 = vmatprep.mubr.bf16.mxu0 %v878
        %8480 = vmatmul.mubr.bf16.gmra.mrb[0].mxu0 %v877
        %v8481 = vpop.f32.mrb[0].mxu0
        %v8482 = vadd.f32 %v8441, %v8481
        %v8483 = vpop.f32.mrb[0].mxu0
        %v8484 = vadd.f32 %v8443, %v8483
        %v8485 = vpop.f32.mrb[0].mxu0
        %v8486 = vpop.f32.mrb[0].mxu0
        %8487 = vdwg.mxu0
        %8488 = vmatprep.subr.bf16.mxu0 %v6041
        %8489 = vmatpush1.bf16.msra.mxu0 %v6040
        %8490 = vmatprep.subr.bf16.mxu0 %v6043
        %8491 = vmatpush1.bf16.msra.mxu0 %v6042
        %8492 = vmatprep.subr.bf16.mxu0 %v6045
        %8493 = vmatpush1.bf16.msra.mxu0 %v6044
        %8494 = vmatprep.subr.bf16.mxu0 %v6047
        %8495 = vmatpush1.bf16.msra.mxu0 %v6046
        %8496 = vmatprep.subr.bf16.mxu0 %v6049
        %8497 = vmatpush1.bf16.msra.mxu0 %v6048
        %8498 = vmatprep.subr.bf16.mxu0 %v6051
        %8499 = vmatpush1.bf16.msra.mxu0 %v6050
        %8500 = vmatprep.subr.bf16.mxu0 %v6053
        %8501 = vmatpush1.bf16.msra.mxu0 %v6052
        %8502 = vmatprep.subr.bf16.mxu0 %v6055
        %8503 = vmatpush1.bf16.msra.mxu0 %v6054
        %8504 = vmatprep.subr.bf16.mxu0 %v6057
        %8505 = vmatpush1.bf16.msra.mxu0 %v6056
        %8506 = vmatprep.subr.bf16.mxu0 %v6059
        %8507 = vmatpush1.bf16.msra.mxu0 %v6058
        %8508 = vmatprep.subr.bf16.mxu0 %v6061
        %8509 = vmatpush1.bf16.msra.mxu0 %v6060
        %8510 = vmatprep.subr.bf16.mxu0 %v6063
        %8511 = vmatpush1.bf16.msra.mxu0 %v6062
        %8512 = vmatprep.subr.bf16.mxu0 %v6065
        %8513 = vmatpush1.bf16.msra.mxu0 %v6064
        %8514 = vmatprep.subr.bf16.mxu0 %v6067
        %8515 = vmatpush1.bf16.msra.mxu0 %v6066
        %8516 = vmatprep.subr.bf16.mxu0 %v6069
        %8517 = vmatpush1.bf16.msra.mxu0 %v6068
        %8518 = vmatprep.subr.bf16.mxu0 %v6071
        %8519 = vmatpush1.bf16.msra.mxu0 %v6070
        %8520 = vmatprep.mubr.bf16.mxu0 %v880
        %8521 = vmatmul.mubr.bf16.gmra.mrb[0].mxu0 %v879
        %v8522 = vpop.f32.mrb[0].mxu0
        %v8523 = vadd.f32 %v8482, %v8522
        %v8524 = vpop.f32.mrb[0].mxu0
        %v8525 = vadd.f32 %v8484, %v8524
        %v8526 = vpop.f32.mrb[0].mxu0
        %v8527 = vpop.f32.mrb[0].mxu0
        %8528 = vdwg.mxu0
        %8529 = vmatprep.subr.bf16.mxu0 %v6073
        %8530 = vmatpush1.bf16.msra.mxu0 %v6072
        %8531 = vmatprep.subr.bf16.mxu0 %v6075
        %8532 = vmatpush1.bf16.msra.mxu0 %v6074
        %8533 = vmatprep.subr.bf16.mxu0 %v6077
        %8534 = vmatpush1.bf16.msra.mxu0 %v6076
        %8535 = vmatprep.subr.bf16.mxu0 %v6079
        %8536 = vmatpush1.bf16.msra.mxu0 %v6078
        %8537 = vmatprep.subr.bf16.mxu0 %v6081
        %8538 = vmatpush1.bf16.msra.mxu0 %v6080
        %8539 = vmatprep.subr.bf16.mxu0 %v6083
        %8540 = vmatpush1.bf16.msra.mxu0 %v6082
        %8541 = vmatprep.subr.bf16.mxu0 %v6085
        %8542 = vmatpush1.bf16.msra.mxu0 %v6084
        %8543 = vmatprep.subr.bf16.mxu0 %v6087
        %8544 = vmatpush1.bf16.msra.mxu0 %v6086
        %8545 = vmatprep.subr.bf16.mxu0 %v6089
        %8546 = vmatpush1.bf16.msra.mxu0 %v6088
        %8547 = vmatprep.subr.bf16.mxu0 %v6091
        %8548 = vmatpush1.bf16.msra.mxu0 %v6090
        %8549 = vmatprep.subr.bf16.mxu0 %v6093
        %8550 = vmatpush1.bf16.msra.mxu0 %v6092
        %8551 = vmatprep.subr.bf16.mxu0 %v6095
        %8552 = vmatpush1.bf16.msra.mxu0 %v6094
        %8553 = vmatprep.subr.bf16.mxu0 %v6097
        %8554 = vmatpush1.bf16.msra.mxu0 %v6096
        %8555 = vmatprep.subr.bf16.mxu0 %v6099
        %8556 = vmatpush1.bf16.msra.mxu0 %v6098
        %8557 = vmatprep.subr.bf16.mxu0 %v6101
        %8558 = vmatpush1.bf16.msra.mxu0 %v6100
        %8559 = vmatprep.subr.bf16.mxu0 %v6103
        %8560 = vmatpush1.bf16.msra.mxu0 %v6102
        %8561 = vmatprep.mubr.bf16.mxu0 %v882
        %8562 = vmatmul.mubr.bf16.gmra.mrb[0].mxu0 %v881
        %v8563 = vpop.f32.mrb[0].mxu0
        %v8564 = vadd.f32 %v8523, %v8563
        %v8565 = vpop.f32.mrb[0].mxu0
        %v8566 = vadd.f32 %v8525, %v8565
        %v8567 = vpop.f32.mrb[0].mxu0
        %v8568 = vpop.f32.mrb[0].mxu0
        %8569 = vdwg.mxu0
        %8570 = vmatprep.subr.bf16.mxu0 %v6105
        %8571 = vmatpush1.bf16.msra.mxu0 %v6104
        %8572 = vmatprep.subr.bf16.mxu0 %v6107
        %8573 = vmatpush1.bf16.msra.mxu0 %v6106
        %8574 = vmatprep.subr.bf16.mxu0 %v6109
        %8575 = vmatpush1.bf16.msra.mxu0 %v6108
        %8576 = vmatprep.subr.bf16.mxu0 %v6111
        %8577 = vmatpush1.bf16.msra.mxu0 %v6110
        %8578 = vmatprep.subr.bf16.mxu0 %v6113
        %8579 = vmatpush1.bf16.msra.mxu0 %v6112
        %8580 = vmatprep.subr.bf16.mxu0 %v6115
        %8581 = vmatpush1.bf16.msra.mxu0 %v6114
        %8582 = vmatprep.subr.bf16.mxu0 %v6117
        %8583 = vmatpush1.bf16.msra.mxu0 %v6116
        %8584 = vmatprep.subr.bf16.mxu0 %v6119
        %8585 = vmatpush1.bf16.msra.mxu0 %v6118
        %8586 = vmatprep.subr.bf16.mxu0 %v6121
        %8587 = vmatpush1.bf16.msra.mxu0 %v6120
        %8588 = vmatprep.subr.bf16.mxu0 %v6123
        %8589 = vmatpush1.bf16.msra.mxu0 %v6122
        %8590 = vmatprep.subr.bf16.mxu0 %v6125
        %8591 = vmatpush1.bf16.msra.mxu0 %v6124
        %8592 = vmatprep.subr.bf16.mxu0 %v6127
        %8593 = vmatpush1.bf16.msra.mxu0 %v6126
        %8594 = vmatprep.subr.bf16.mxu0 %v6129
        %8595 = vmatpush1.bf16.msra.mxu0 %v6128
        %8596 = vmatprep.subr.bf16.mxu0 %v6131
        %8597 = vmatpush1.bf16.msra.mxu0 %v6130
        %8598 = vmatprep.subr.bf16.mxu0 %v6133
        %8599 = vmatpush1.bf16.msra.mxu0 %v6132
        %8600 = vmatprep.subr.bf16.mxu0 %v6135
        %8601 = vmatpush1.bf16.msra.mxu0 %v6134
        %8602 = vmatprep.mubr.bf16.mxu0 %v884
        %8603 = vmatmul.mubr.bf16.gmra.mrb[0].mxu0 %v883
        %v8604 = vpop.f32.mrb[0].mxu0
        %v8605 = vadd.f32 %v8564, %v8604
        %v8606 = vpop.f32.mrb[0].mxu0
        %v8607 = vadd.f32 %v8566, %v8606
        %v8608 = vpop.f32.mrb[0].mxu0
        %v8609 = vpop.f32.mrb[0].mxu0
        %8610 = vdwg.mxu0
        %8611 = vmatprep.subr.bf16.mxu0 %v6137
        %8612 = vmatpush1.bf16.msra.mxu0 %v6136
        %8613 = vmatprep.subr.bf16.mxu0 %v6139
        %8614 = vmatpush1.bf16.msra.mxu0 %v6138
        %8615 = vmatprep.subr.bf16.mxu0 %v6141
        %8616 = vmatpush1.bf16.msra.mxu0 %v6140
        %8617 = vmatprep.subr.bf16.mxu0 %v6143
        %8618 = vmatpush1.bf16.msra.mxu0 %v6142
        %8619 = vmatprep.subr.bf16.mxu0 %v6145
        %8620 = vmatpush1.bf16.msra.mxu0 %v6144
        %8621 = vmatprep.subr.bf16.mxu0 %v6147
        %8622 = vmatpush1.bf16.msra.mxu0 %v6146
        %8623 = vmatprep.subr.bf16.mxu0 %v6149
        %8624 = vmatpush1.bf16.msra.mxu0 %v6148
        %8625 = vmatprep.subr.bf16.mxu0 %v6151
        %8626 = vmatpush1.bf16.msra.mxu0 %v6150
        %8627 = vmatprep.subr.bf16.mxu0 %v6153
        %8628 = vmatpush1.bf16.msra.mxu0 %v6152
        %8629 = vmatprep.subr.bf16.mxu0 %v6155
        %8630 = vmatpush1.bf16.msra.mxu0 %v6154
        %8631 = vmatprep.subr.bf16.mxu0 %v6157
        %8632 = vmatpush1.bf16.msra.mxu0 %v6156
        %8633 = vmatprep.subr.bf16.mxu0 %v6159
        %8634 = vmatpush1.bf16.msra.mxu0 %v6158
        %8635 = vmatprep.subr.bf16.mxu0 %v6161
        %8636 = vmatpush1.bf16.msra.mxu0 %v6160
        %8637 = vmatprep.subr.bf16.mxu0 %v6163
        %8638 = vmatpush1.bf16.msra.mxu0 %v6162
        %8639 = vmatprep.subr.bf16.mxu0 %v6165
        %8640 = vmatpush1.bf16.msra.mxu0 %v6164
        %8641 = vmatprep.subr.bf16.mxu0 %v6167
        %8642 = vmatpush1.bf16.msra.mxu0 %v6166
        %8643 = vmatprep.mubr.bf16.mxu0 %v886
        %8644 = vmatmul.mubr.bf16.gmra.mrb[0].mxu0 %v885
        %v8645 = vpop.f32.mrb[0].mxu0
        %v8646 = vadd.f32 %v8605, %v8645
        %v8647 = vpop.f32.mrb[0].mxu0
        %v8648 = vadd.f32 %v8607, %v8647
        %v8649 = vpop.f32.mrb[0].mxu0
        %v8650 = vpop.f32.mrb[0].mxu0
        %8651 = vdwg.mxu0
        %8652 = vmatprep.subr.bf16.mxu0 %v6169
        %8653 = vmatpush1.bf16.msra.mxu0 %v6168
        %8654 = vmatprep.subr.bf16.mxu0 %v6171
        %8655 = vmatpush1.bf16.msra.mxu0 %v6170
        %8656 = vmatprep.subr.bf16.mxu0 %v6173
        %8657 = vmatpush1.bf16.msra.mxu0 %v6172
        %8658 = vmatprep.subr.bf16.mxu0 %v6175
        %8659 = vmatpush1.bf16.msra.mxu0 %v6174
        %8660 = vmatprep.subr.bf16.mxu0 %v6177
        %8661 = vmatpush1.bf16.msra.mxu0 %v6176
        %8662 = vmatprep.subr.bf16.mxu0 %v6179
        %8663 = vmatpush1.bf16.msra.mxu0 %v6178
        %8664 = vmatprep.subr.bf16.mxu0 %v6181
        %8665 = vmatpush1.bf16.msra.mxu0 %v6180
        %8666 = vmatprep.subr.bf16.mxu0 %v6183
        %8667 = vmatpush1.bf16.msra.mxu0 %v6182
        %8668 = vmatprep.subr.bf16.mxu0 %v6185
        %8669 = vmatpush1.bf16.msra.mxu0 %v6184
        %8670 = vmatprep.subr.bf16.mxu0 %v6187
        %8671 = vmatpush1.bf16.msra.mxu0 %v6186
        %8672 = vmatprep.subr.bf16.mxu0 %v6189
        %8673 = vmatpush1.bf16.msra.mxu0 %v6188
        %8674 = vmatprep.subr.bf16.mxu0 %v6191
        %8675 = vmatpush1.bf16.msra.mxu0 %v6190
        %8676 = vmatprep.subr.bf16.mxu0 %v6193
        %8677 = vmatpush1.bf16.msra.mxu0 %v6192
        %8678 = vmatprep.subr.bf16.mxu0 %v6195
        %8679 = vmatpush1.bf16.msra.mxu0 %v6194
        %8680 = vmatprep.subr.bf16.mxu0 %v6197
        %8681 = vmatpush1.bf16.msra.mxu0 %v6196
        %8682 = vmatprep.subr.bf16.mxu0 %v6199
        %8683 = vmatpush1.bf16.msra.mxu0 %v6198
        %8684 = vmatprep.mubr.bf16.mxu0 %v888
        %8685 = vmatmul.mubr.bf16.gmra.mrb[0].mxu0 %v887
        %v8686 = vpop.f32.mrb[0].mxu0
        %v8687 = vadd.f32 %v8646, %v8686
        %v8688 = vpop.f32.mrb[0].mxu0
        %v8689 = vadd.f32 %v8648, %v8688
        %v8690 = vpop.f32.mrb[0].mxu0
        %v8691 = vpop.f32.mrb[0].mxu0
        %8692 = vdwg.mxu0
        %8693 = vmatprep.subr.bf16.mxu0 %v6201
        %8694 = vmatpush1.bf16.msra.mxu0 %v6200
        %8695 = vmatprep.subr.bf16.mxu0 %v6203
        %8696 = vmatpush1.bf16.msra.mxu0 %v6202
        %8697 = vmatprep.subr.bf16.mxu0 %v6205
        %8698 = vmatpush1.bf16.msra.mxu0 %v6204
        %8699 = vmatprep.subr.bf16.mxu0 %v6207
        %8700 = vmatpush1.bf16.msra.mxu0 %v6206
        %8701 = vmatprep.subr.bf16.mxu0 %v6209
        %8702 = vmatpush1.bf16.msra.mxu0 %v6208
        %8703 = vmatprep.subr.bf16.mxu0 %v6211
        %8704 = vmatpush1.bf16.msra.mxu0 %v6210
        %8705 = vmatprep.subr.bf16.mxu0 %v6213
        %8706 = vmatpush1.bf16.msra.mxu0 %v6212
        %8707 = vmatprep.subr.bf16.mxu0 %v6215
        %8708 = vmatpush1.bf16.msra.mxu0 %v6214
        %8709 = vmatprep.subr.bf16.mxu0 %v6217
        %8710 = vmatpush1.bf16.msra.mxu0 %v6216
        %8711 = vmatprep.subr.bf16.mxu0 %v6219
        %8712 = vmatpush1.bf16.msra.mxu0 %v6218
        %8713 = vmatprep.subr.bf16.mxu0 %v6221
        %8714 = vmatpush1.bf16.msra.mxu0 %v6220
        %8715 = vmatprep.subr.bf16.mxu0 %v6223
        %8716 = vmatpush1.bf16.msra.mxu0 %v6222
        %8717 = vmatprep.subr.bf16.mxu0 %v6225
        %8718 = vmatpush1.bf16.msra.mxu0 %v6224
        %8719 = vmatprep.subr.bf16.mxu0 %v6227
        %8720 = vmatpush1.bf16.msra.mxu0 %v6226
        %8721 = vmatprep.subr.bf16.mxu0 %v6229
        %8722 = vmatpush1.bf16.msra.mxu0 %v6228
        %8723 = vmatprep.subr.bf16.mxu0 %v6231
        %8724 = vmatpush1.bf16.msra.mxu0 %v6230
        %8725 = vmatprep.mubr.bf16.mxu0 %v890
        %8726 = vmatmul.mubr.bf16.gmra.mrb[0].mxu0 %v889
        %v8727 = vpop.f32.mrb[0].mxu0
        %v8728 = vadd.f32 %v8687, %v8727
        %v8729 = vpop.f32.mrb[0].mxu0
        %v8730 = vadd.f32 %v8689, %v8729
        %v8731 = vpop.f32.mrb[0].mxu0
        %v8732 = vpop.f32.mrb[0].mxu0
        %8733 = vdwg.mxu0
        %8734 = vmatprep.subr.bf16.mxu0 %v6233
        %8735 = vmatpush1.bf16.msra.mxu0 %v6232
        %8736 = vmatprep.subr.bf16.mxu0 %v6235
        %8737 = vmatpush1.bf16.msra.mxu0 %v6234
        %8738 = vmatprep.subr.bf16.mxu0 %v6237
        %8739 = vmatpush1.bf16.msra.mxu0 %v6236
        %8740 = vmatprep.subr.bf16.mxu0 %v6239
        %8741 = vmatpush1.bf16.msra.mxu0 %v6238
        %8742 = vmatprep.subr.bf16.mxu0 %v6241
        %8743 = vmatpush1.bf16.msra.mxu0 %v6240
        %8744 = vmatprep.subr.bf16.mxu0 %v6243
        %8745 = vmatpush1.bf16.msra.mxu0 %v6242
        %8746 = vmatprep.subr.bf16.mxu0 %v6245
        %8747 = vmatpush1.bf16.msra.mxu0 %v6244
        %8748 = vmatprep.subr.bf16.mxu0 %v6247
        %8749 = vmatpush1.bf16.msra.mxu0 %v6246
        %8750 = vmatprep.subr.bf16.mxu0 %v6249
        %8751 = vmatpush1.bf16.msra.mxu0 %v6248
        %8752 = vmatprep.subr.bf16.mxu0 %v6251
        %8753 = vmatpush1.bf16.msra.mxu0 %v6250
        %8754 = vmatprep.subr.bf16.mxu0 %v6253
        %8755 = vmatpush1.bf16.msra.mxu0 %v6252
        %8756 = vmatprep.subr.bf16.mxu0 %v6255
        %8757 = vmatpush1.bf16.msra.mxu0 %v6254
        %8758 = vmatprep.subr.bf16.mxu0 %v6257
        %8759 = vmatpush1.bf16.msra.mxu0 %v6256
        %8760 = vmatprep.subr.bf16.mxu0 %v6259
        %8761 = vmatpush1.bf16.msra.mxu0 %v6258
        %8762 = vmatprep.subr.bf16.mxu0 %v6261
        %8763 = vmatpush1.bf16.msra.mxu0 %v6260
        %8764 = vmatprep.subr.bf16.mxu0 %v6263
        %8765 = vmatpush1.bf16.msra.mxu0 %v6262
        %8766 = vmatprep.mubr.bf16.mxu0 %v892
        %8767 = vmatmul.mubr.bf16.gmra.mrb[0].mxu0 %v891
        %v8768 = vpop.f32.mrb[0].mxu0
        %v8769 = vadd.f32 %v8728, %v8768
        %v8770 = vpop.f32.mrb[0].mxu0
        %v8771 = vadd.f32 %v8730, %v8770
        %v8772 = vpop.f32.mrb[0].mxu0
        %v8773 = vpop.f32.mrb[0].mxu0
        %8774 = vdwg.mxu0
        %8775 = vmatprep.subr.bf16.mxu0 %v6265
        %8776 = vmatpush1.bf16.msra.mxu0 %v6264
        %8777 = vmatprep.subr.bf16.mxu0 %v6267
        %8778 = vmatpush1.bf16.msra.mxu0 %v6266
        %8779 = vmatprep.subr.bf16.mxu0 %v6269
        %8780 = vmatpush1.bf16.msra.mxu0 %v6268
        %8781 = vmatprep.subr.bf16.mxu0 %v6271
        %8782 = vmatpush1.bf16.msra.mxu0 %v6270
        %8783 = vmatprep.subr.bf16.mxu0 %v6273
        %8784 = vmatpush1.bf16.msra.mxu0 %v6272
        %8785 = vmatprep.subr.bf16.mxu0 %v6275
        %8786 = vmatpush1.bf16.msra.mxu0 %v6274
        %8787 = vmatprep.subr.bf16.mxu0 %v6277
        %8788 = vmatpush1.bf16.msra.mxu0 %v6276
        %8789 = vmatprep.subr.bf16.mxu0 %v6279
        %8790 = vmatpush1.bf16.msra.mxu0 %v6278
        %8791 = vmatprep.subr.bf16.mxu0 %v6281
        %8792 = vmatpush1.bf16.msra.mxu0 %v6280
        %8793 = vmatprep.subr.bf16.mxu0 %v6283
        %8794 = vmatpush1.bf16.msra.mxu0 %v6282
        %8795 = vmatprep.subr.bf16.mxu0 %v6285
        %8796 = vmatpush1.bf16.msra.mxu0 %v6284
        %8797 = vmatprep.subr.bf16.mxu0 %v6287
        %8798 = vmatpush1.bf16.msra.mxu0 %v6286
        %8799 = vmatprep.subr.bf16.mxu0 %v6289
        %8800 = vmatpush1.bf16.msra.mxu0 %v6288
        %8801 = vmatprep.subr.bf16.mxu0 %v6291
        %8802 = vmatpush1.bf16.msra.mxu0 %v6290
        %8803 = vmatprep.subr.bf16.mxu0 %v6293
        %8804 = vmatpush1.bf16.msra.mxu0 %v6292
        %8805 = vmatprep.subr.bf16.mxu0 %v6295
        %8806 = vmatpush1.bf16.msra.mxu0 %v6294
        %8807 = vmatprep.mubr.bf16.mxu0 %v894
        %8808 = vmatmul.mubr.bf16.gmra.mrb[0].mxu0 %v893
        %v8809 = vpop.f32.mrb[0].mxu0
        %v8810 = vadd.f32 %v8769, %v8809
        %v8811 = vpop.f32.mrb[0].mxu0
        %v8812 = vadd.f32 %v8771, %v8811
        %v8813 = vpop.f32.mrb[0].mxu0
        %v8814 = vpop.f32.mrb[0].mxu0
        %8815 = vdwg.mxu0
        %8816 = vmatprep.subr.bf16.mxu0 %v6297
        %8817 = vmatpush1.bf16.msra.mxu0 %v6296
        %8818 = vmatprep.subr.bf16.mxu0 %v6299
        %8819 = vmatpush1.bf16.msra.mxu0 %v6298
        %8820 = vmatprep.subr.bf16.mxu0 %v6301
        %8821 = vmatpush1.bf16.msra.mxu0 %v6300
        %8822 = vmatprep.subr.bf16.mxu0 %v6303
        %8823 = vmatpush1.bf16.msra.mxu0 %v6302
        %8824 = vmatprep.subr.bf16.mxu0 %v6305
        %8825 = vmatpush1.bf16.msra.mxu0 %v6304
        %8826 = vmatprep.subr.bf16.mxu0 %v6307
        %8827 = vmatpush1.bf16.msra.mxu0 %v6306
        %8828 = vmatprep.subr.bf16.mxu0 %v6309
        %8829 = vmatpush1.bf16.msra.mxu0 %v6308
        %8830 = vmatprep.subr.bf16.mxu0 %v6311
        %8831 = vmatpush1.bf16.msra.mxu0 %v6310
        %8832 = vmatprep.subr.bf16.mxu0 %v6313
        %8833 = vmatpush1.bf16.msra.mxu0 %v6312
        %8834 = vmatprep.subr.bf16.mxu0 %v6315
        %8835 = vmatpush1.bf16.msra.mxu0 %v6314
        %8836 = vmatprep.subr.bf16.mxu0 %v6317
        %8837 = vmatpush1.bf16.msra.mxu0 %v6316
        %8838 = vmatprep.subr.bf16.mxu0 %v6319
        %8839 = vmatpush1.bf16.msra.mxu0 %v6318
        %8840 = vmatprep.subr.bf16.mxu0 %v6321
        %8841 = vmatpush1.bf16.msra.mxu0 %v6320
        %8842 = vmatprep.subr.bf16.mxu0 %v6323
        %8843 = vmatpush1.bf16.msra.mxu0 %v6322
        %8844 = vmatprep.subr.bf16.mxu0 %v6325
        %8845 = vmatpush1.bf16.msra.mxu0 %v6324
        %8846 = vmatprep.subr.bf16.mxu0 %v6327
        %8847 = vmatpush1.bf16.msra.mxu0 %v6326
        %8848 = vmatprep.mubr.bf16.mxu0 %v896
        %8849 = vmatmul.mubr.bf16.gmra.mrb[0].mxu0 %v895
        %v8850 = vpop.f32.mrb[0].mxu0
        %v8851 = vadd.f32 %v8810, %v8850
        %v8852 = vpop.f32.mrb[0].mxu0
        %v8853 = vadd.f32 %v8812, %v8852
        %v8854 = vpop.f32.mrb[0].mxu0
        %v8855 = vpop.f32.mrb[0].mxu0
        %8856 = vdwg.mxu0
        %8857 = vmatprep.subr.bf16.mxu0 %v6329
        %8858 = vmatpush1.bf16.msra.mxu0 %v6328
        %8859 = vmatprep.subr.bf16.mxu0 %v6331
        %8860 = vmatpush1.bf16.msra.mxu0 %v6330
        %8861 = vmatprep.subr.bf16.mxu0 %v6333
        %8862 = vmatpush1.bf16.msra.mxu0 %v6332
        %8863 = vmatprep.subr.bf16.mxu0 %v6335
        %8864 = vmatpush1.bf16.msra.mxu0 %v6334
        %8865 = vmatprep.subr.bf16.mxu0 %v6337
        %8866 = vmatpush1.bf16.msra.mxu0 %v6336
        %8867 = vmatprep.subr.bf16.mxu0 %v6339
        %8868 = vmatpush1.bf16.msra.mxu0 %v6338
        %8869 = vmatprep.subr.bf16.mxu0 %v6341
        %8870 = vmatpush1.bf16.msra.mxu0 %v6340
        %8871 = vmatprep.subr.bf16.mxu0 %v6343
        %8872 = vmatpush1.bf16.msra.mxu0 %v6342
        %8873 = vmatprep.subr.bf16.mxu0 %v6345
        %8874 = vmatpush1.bf16.msra.mxu0 %v6344
        %8875 = vmatprep.subr.bf16.mxu0 %v6347
        %8876 = vmatpush1.bf16.msra.mxu0 %v6346
        %8877 = vmatprep.subr.bf16.mxu0 %v6349
        %8878 = vmatpush1.bf16.msra.mxu0 %v6348
        %8879 = vmatprep.subr.bf16.mxu0 %v6351
        %8880 = vmatpush1.bf16.msra.mxu0 %v6350
        %8881 = vmatprep.subr.bf16.mxu0 %v6353
        %8882 = vmatpush1.bf16.msra.mxu0 %v6352
        %8883 = vmatprep.subr.bf16.mxu0 %v6355
        %8884 = vmatpush1.bf16.msra.mxu0 %v6354
        %8885 = vmatprep.subr.bf16.mxu0 %v6357
        %8886 = vmatpush1.bf16.msra.mxu0 %v6356
        %8887 = vmatprep.subr.bf16.mxu0 %v6359
        %8888 = vmatpush1.bf16.msra.mxu0 %v6358
        %8889 = vmatprep.mubr.bf16.mxu0 %v898
        %8890 = vmatmul.mubr.bf16.gmra.mrb[0].mxu0 %v897
        %v8891 = vpop.f32.mrb[0].mxu0
        %v8892 = vadd.f32 %v8851, %v8891
        %v8893 = vpop.f32.mrb[0].mxu0
        %v8894 = vadd.f32 %v8853, %v8893
        %v8895 = vpop.f32.mrb[0].mxu0
        %v8896 = vpop.f32.mrb[0].mxu0
        %8897 = vdwg.mxu0
        %8898 = vmatprep.subr.bf16.mxu0 %v6361
        %8899 = vmatpush1.bf16.msra.mxu0 %v6360
        %8900 = vmatprep.subr.bf16.mxu0 %v6363
        %8901 = vmatpush1.bf16.msra.mxu0 %v6362
        %8902 = vmatprep.subr.bf16.mxu0 %v6365
        %8903 = vmatpush1.bf16.msra.mxu0 %v6364
        %8904 = vmatprep.subr.bf16.mxu0 %v6367
        %8905 = vmatpush1.bf16.msra.mxu0 %v6366
        %8906 = vmatprep.subr.bf16.mxu0 %v6369
        %8907 = vmatpush1.bf16.msra.mxu0 %v6368
        %8908 = vmatprep.subr.bf16.mxu0 %v6371
        %8909 = vmatpush1.bf16.msra.mxu0 %v6370
        %8910 = vmatprep.subr.bf16.mxu0 %v6373
        %8911 = vmatpush1.bf16.msra.mxu0 %v6372
        %8912 = vmatprep.subr.bf16.mxu0 %v6375
        %8913 = vmatpush1.bf16.msra.mxu0 %v6374
        %8914 = vmatprep.subr.bf16.mxu0 %v6377
        %8915 = vmatpush1.bf16.msra.mxu0 %v6376
        %8916 = vmatprep.subr.bf16.mxu0 %v6379
        %8917 = vmatpush1.bf16.msra.mxu0 %v6378
        %8918 = vmatprep.subr.bf16.mxu0 %v6381
        %8919 = vmatpush1.bf16.msra.mxu0 %v6380
        %8920 = vmatprep.subr.bf16.mxu0 %v6383
        %8921 = vmatpush1.bf16.msra.mxu0 %v6382
        %8922 = vmatprep.subr.bf16.mxu0 %v6385
        %8923 = vmatpush1.bf16.msra.mxu0 %v6384
        %8924 = vmatprep.subr.bf16.mxu0 %v6387
        %8925 = vmatpush1.bf16.msra.mxu0 %v6386
        %8926 = vmatprep.subr.bf16.mxu0 %v6389
        %8927 = vmatpush1.bf16.msra.mxu0 %v6388
        %8928 = vmatprep.subr.bf16.mxu0 %v6391
        %8929 = vmatpush1.bf16.msra.mxu0 %v6390
        %8930 = vmatprep.mubr.bf16.mxu0 %v900
        %8931 = vmatmul.mubr.bf16.gmra.mrb[0].mxu0 %v899
        %v8932 = vpop.f32.mrb[0].mxu0
        %v8933 = vadd.f32 %v8892, %v8932
        %v8934 = vpop.f32.mrb[0].mxu0
        %v8935 = vadd.f32 %v8894, %v8934
        %v8936 = vpop.f32.mrb[0].mxu0
        %v8937 = vpop.f32.mrb[0].mxu0
        %8938 = vdwg.mxu0
        %8939 = vmatprep.subr.bf16.mxu0 %v6393
        %8940 = vmatpush1.bf16.msra.mxu0 %v6392
        %8941 = vmatprep.subr.bf16.mxu0 %v6395
        %8942 = vmatpush1.bf16.msra.mxu0 %v6394
        %8943 = vmatprep.subr.bf16.mxu0 %v6397
        %8944 = vmatpush1.bf16.msra.mxu0 %v6396
        %8945 = vmatprep.subr.bf16.mxu0 %v6399
        %8946 = vmatpush1.bf16.msra.mxu0 %v6398
        %8947 = vmatprep.subr.bf16.mxu0 %v6401
        %8948 = vmatpush1.bf16.msra.mxu0 %v6400
        %8949 = vmatprep.subr.bf16.mxu0 %v6403
        %8950 = vmatpush1.bf16.msra.mxu0 %v6402
        %8951 = vmatprep.subr.bf16.mxu0 %v6405
        %8952 = vmatpush1.bf16.msra.mxu0 %v6404
        %8953 = vmatprep.subr.bf16.mxu0 %v6407
        %8954 = vmatpush1.bf16.msra.mxu0 %v6406
        %8955 = vmatprep.subr.bf16.mxu0 %v6409
        %8956 = vmatpush1.bf16.msra.mxu0 %v6408
        %8957 = vmatprep.subr.bf16.mxu0 %v6411
        %8958 = vmatpush1.bf16.msra.mxu0 %v6410
        %8959 = vmatprep.subr.bf16.mxu0 %v6413
        %8960 = vmatpush1.bf16.msra.mxu0 %v6412
        %8961 = vmatprep.subr.bf16.mxu0 %v6415
        %8962 = vmatpush1.bf16.msra.mxu0 %v6414
        %8963 = vmatprep.subr.bf16.mxu0 %v6417
        %8964 = vmatpush1.bf16.msra.mxu0 %v6416
        %8965 = vmatprep.subr.bf16.mxu0 %v6419
        %8966 = vmatpush1.bf16.msra.mxu0 %v6418
        %8967 = vmatprep.subr.bf16.mxu0 %v6421
        %8968 = vmatpush1.bf16.msra.mxu0 %v6420
        %8969 = vmatprep.subr.bf16.mxu0 %v6423
        %8970 = vmatpush1.bf16.msra.mxu0 %v6422
        %8971 = vmatprep.mubr.bf16.mxu0 %v902
        %8972 = vmatmul.mubr.bf16.gmra.mrb[0].mxu0 %v901
        %v8973 = vpop.f32.mrb[0].mxu0
        %v8974 = vadd.f32 %v8933, %v8973
        %v8975 = vpop.f32.mrb[0].mxu0
        %v8976 = vadd.f32 %v8935, %v8975
        %v8977 = vpop.f32.mrb[0].mxu0
        %v8978 = vpop.f32.mrb[0].mxu0
        %8979 = vdwg.mxu0
        %8980 = vmatprep.subr.bf16.mxu0 %v6425
        %8981 = vmatpush1.bf16.msra.mxu0 %v6424
        %8982 = vmatprep.subr.bf16.mxu0 %v6427
        %8983 = vmatpush1.bf16.msra.mxu0 %v6426
        %8984 = vmatprep.subr.bf16.mxu0 %v6429
        %8985 = vmatpush1.bf16.msra.mxu0 %v6428
        %8986 = vmatprep.subr.bf16.mxu0 %v6431
        %8987 = vmatpush1.bf16.msra.mxu0 %v6430
        %8988 = vmatprep.subr.bf16.mxu0 %v6433
        %8989 = vmatpush1.bf16.msra.mxu0 %v6432
        %8990 = vmatprep.subr.bf16.mxu0 %v6435
        %8991 = vmatpush1.bf16.msra.mxu0 %v6434
        %8992 = vmatprep.subr.bf16.mxu0 %v6437
        %8993 = vmatpush1.bf16.msra.mxu0 %v6436
        %8994 = vmatprep.subr.bf16.mxu0 %v6439
        %8995 = vmatpush1.bf16.msra.mxu0 %v6438
        %8996 = vmatprep.subr.bf16.mxu0 %v6441
        %8997 = vmatpush1.bf16.msra.mxu0 %v6440
        %8998 = vmatprep.subr.bf16.mxu0 %v6443
        %8999 = vmatpush1.bf16.msra.mxu0 %v6442
        %9000 = vmatprep.subr.bf16.mxu0 %v6445
        %9001 = vmatpush1.bf16.msra.mxu0 %v6444
        %9002 = vmatprep.subr.bf16.mxu0 %v6447
        %9003 = vmatpush1.bf16.msra.mxu0 %v6446
        %9004 = vmatprep.subr.bf16.mxu0 %v6449
        %9005 = vmatpush1.bf16.msra.mxu0 %v6448
        %9006 = vmatprep.subr.bf16.mxu0 %v6451
        %9007 = vmatpush1.bf16.msra.mxu0 %v6450
        %9008 = vmatprep.subr.bf16.mxu0 %v6453
        %9009 = vmatpush1.bf16.msra.mxu0 %v6452
        %9010 = vmatprep.subr.bf16.mxu0 %v6455
        %9011 = vmatpush1.bf16.msra.mxu0 %v6454
        %9012 = vmatprep.mubr.bf16.mxu0 %v904
        %9013 = vmatmul.mubr.bf16.gmra.mrb[0].mxu0 %v903
        %v9014 = vpop.f32.mrb[0].mxu0
        %v9015 = vadd.f32 %v8974, %v9014
        %v9016 = vpop.f32.mrb[0].mxu0
        %v9017 = vadd.f32 %v8976, %v9016
        %v9018 = vpop.f32.mrb[0].mxu0
        %v9019 = vpop.f32.mrb[0].mxu0
        %9020 = vdwg.mxu0
        %9021 = vmatprep.subr.bf16.mxu0 %v6457
        %9022 = vmatpush1.bf16.msra.mxu0 %v6456
        %9023 = vmatprep.subr.bf16.mxu0 %v6459
        %9024 = vmatpush1.bf16.msra.mxu0 %v6458
        %9025 = vmatprep.subr.bf16.mxu0 %v6461
        %9026 = vmatpush1.bf16.msra.mxu0 %v6460
        %9027 = vmatprep.subr.bf16.mxu0 %v6463
        %9028 = vmatpush1.bf16.msra.mxu0 %v6462
        %9029 = vmatprep.subr.bf16.mxu0 %v6465
        %9030 = vmatpush1.bf16.msra.mxu0 %v6464
        %9031 = vmatprep.subr.bf16.mxu0 %v6467
        %9032 = vmatpush1.bf16.msra.mxu0 %v6466
        %9033 = vmatprep.subr.bf16.mxu0 %v6469
        %9034 = vmatpush1.bf16.msra.mxu0 %v6468
        %9035 = vmatprep.subr.bf16.mxu0 %v6471
        %9036 = vmatpush1.bf16.msra.mxu0 %v6470
        %9037 = vmatprep.subr.bf16.mxu0 %v6473
        %9038 = vmatpush1.bf16.msra.mxu0 %v6472
        %9039 = vmatprep.subr.bf16.mxu0 %v6475
        %9040 = vmatpush1.bf16.msra.mxu0 %v6474
        %9041 = vmatprep.subr.bf16.mxu0 %v6477
        %9042 = vmatpush1.bf16.msra.mxu0 %v6476
        %9043 = vmatprep.subr.bf16.mxu0 %v6479
        %9044 = vmatpush1.bf16.msra.mxu0 %v6478
        %9045 = vmatprep.subr.bf16.mxu0 %v6481
        %9046 = vmatpush1.bf16.msra.mxu0 %v6480
        %9047 = vmatprep.subr.bf16.mxu0 %v6483
        %9048 = vmatpush1.bf16.msra.mxu0 %v6482
        %9049 = vmatprep.subr.bf16.mxu0 %v6485
        %9050 = vmatpush1.bf16.msra.mxu0 %v6484
        %9051 = vmatprep.subr.bf16.mxu0 %v6487
        %9052 = vmatpush1.bf16.msra.mxu0 %v6486
        %9053 = vmatprep.mubr.bf16.mxu0 %v906
        %9054 = vmatmul.mubr.bf16.gmra.mrb[0].mxu0 %v905
        %v9055 = vpop.f32.mrb[0].mxu0
        %v9056 = vadd.f32 %v9015, %v9055
        %v9057 = vpop.f32.mrb[0].mxu0
        %v9058 = vadd.f32 %v9017, %v9057
        %v9059 = vpop.f32.mrb[0].mxu0
        %v9060 = vpop.f32.mrb[0].mxu0
        %9061 = vdwg.mxu0
        %9062 = vmatprep.subr.bf16.mxu0 %v6489
        %9063 = vmatpush1.bf16.msra.mxu0 %v6488
        %9064 = vmatprep.subr.bf16.mxu0 %v6491
        %9065 = vmatpush1.bf16.msra.mxu0 %v6490
        %9066 = vmatprep.subr.bf16.mxu0 %v6493
        %9067 = vmatpush1.bf16.msra.mxu0 %v6492
        %9068 = vmatprep.subr.bf16.mxu0 %v6495
        %9069 = vmatpush1.bf16.msra.mxu0 %v6494
        %9070 = vmatprep.subr.bf16.mxu0 %v6497
        %9071 = vmatpush1.bf16.msra.mxu0 %v6496
        %9072 = vmatprep.subr.bf16.mxu0 %v6499
        %9073 = vmatpush1.bf16.msra.mxu0 %v6498
        %9074 = vmatprep.subr.bf16.mxu0 %v6501
        %9075 = vmatpush1.bf16.msra.mxu0 %v6500
        %9076 = vmatprep.subr.bf16.mxu0 %v6503
        %9077 = vmatpush1.bf16.msra.mxu0 %v6502
        %9078 = vmatprep.subr.bf16.mxu0 %v6505
        %9079 = vmatpush1.bf16.msra.mxu0 %v6504
        %9080 = vmatprep.subr.bf16.mxu0 %v6507
        %9081 = vmatpush1.bf16.msra.mxu0 %v6506
        %9082 = vmatprep.subr.bf16.mxu0 %v6509
        %9083 = vmatpush1.bf16.msra.mxu0 %v6508
        %9084 = vmatprep.subr.bf16.mxu0 %v6511
        %9085 = vmatpush1.bf16.msra.mxu0 %v6510
        %9086 = vmatprep.subr.bf16.mxu0 %v6513
        %9087 = vmatpush1.bf16.msra.mxu0 %v6512
        %9088 = vmatprep.subr.bf16.mxu0 %v6515
        %9089 = vmatpush1.bf16.msra.mxu0 %v6514
        %9090 = vmatprep.subr.bf16.mxu0 %v6517
        %9091 = vmatpush1.bf16.msra.mxu0 %v6516
        %9092 = vmatprep.subr.bf16.mxu0 %v6519
        %9093 = vmatpush1.bf16.msra.mxu0 %v6518
        %9094 = vmatprep.mubr.bf16.mxu0 %v908
        %9095 = vmatmul.mubr.bf16.gmra.mrb[0].mxu0 %v907
        %v9096 = vpop.f32.mrb[0].mxu0
        %v9097 = vadd.f32 %v9056, %v9096
        %v9098 = vpop.f32.mrb[0].mxu0
        %v9099 = vadd.f32 %v9058, %v9098
        %v9100 = vpop.f32.mrb[0].mxu0
        %v9101 = vpop.f32.mrb[0].mxu0
        %9102 = vdwg.mxu0
        %9103 = vmatprep.subr.bf16.mxu0 %v6521
        %9104 = vmatpush1.bf16.msra.mxu0 %v6520
        %9105 = vmatprep.subr.bf16.mxu0 %v6523
        %9106 = vmatpush1.bf16.msra.mxu0 %v6522
        %9107 = vmatprep.subr.bf16.mxu0 %v6525
        %9108 = vmatpush1.bf16.msra.mxu0 %v6524
        %9109 = vmatprep.subr.bf16.mxu0 %v6527
        %9110 = vmatpush1.bf16.msra.mxu0 %v6526
        %9111 = vmatprep.subr.bf16.mxu0 %v6529
        %9112 = vmatpush1.bf16.msra.mxu0 %v6528
        %9113 = vmatprep.subr.bf16.mxu0 %v6531
        %9114 = vmatpush1.bf16.msra.mxu0 %v6530
        %9115 = vmatprep.subr.bf16.mxu0 %v6533
        %9116 = vmatpush1.bf16.msra.mxu0 %v6532
        %9117 = vmatprep.subr.bf16.mxu0 %v6535
        %9118 = vmatpush1.bf16.msra.mxu0 %v6534
        %9119 = vmatprep.subr.bf16.mxu0 %v6537
        %9120 = vmatpush1.bf16.msra.mxu0 %v6536
        %9121 = vmatprep.subr.bf16.mxu0 %v6539
        %9122 = vmatpush1.bf16.msra.mxu0 %v6538
        %9123 = vmatprep.subr.bf16.mxu0 %v6541
        %9124 = vmatpush1.bf16.msra.mxu0 %v6540
        %9125 = vmatprep.subr.bf16.mxu0 %v6543
        %9126 = vmatpush1.bf16.msra.mxu0 %v6542
        %9127 = vmatprep.subr.bf16.mxu0 %v6545
        %9128 = vmatpush1.bf16.msra.mxu0 %v6544
        %9129 = vmatprep.subr.bf16.mxu0 %v6547
        %9130 = vmatpush1.bf16.msra.mxu0 %v6546
        %9131 = vmatprep.subr.bf16.mxu0 %v6549
        %9132 = vmatpush1.bf16.msra.mxu0 %v6548
        %9133 = vmatprep.subr.bf16.mxu0 %v6551
        %9134 = vmatpush1.bf16.msra.mxu0 %v6550
        %9135 = vmatprep.mubr.bf16.mxu0 %v910
        %9136 = vmatmul.mubr.bf16.gmra.mrb[0].mxu0 %v909
        %v9137 = vpop.f32.mrb[0].mxu0
        %v9138 = vadd.f32 %v9097, %v9137
        %v9139 = vpop.f32.mrb[0].mxu0
        %v9140 = vadd.f32 %v9099, %v9139
        %v9141 = vpop.f32.mrb[0].mxu0
        %v9142 = vpop.f32.mrb[0].mxu0
        %9143 = vdwg.mxu0
        %9144 = vmatprep.subr.bf16.mxu0 %v6553
        %9145 = vmatpush1.bf16.msra.mxu0 %v6552
        %9146 = vmatprep.subr.bf16.mxu0 %v6555
        %9147 = vmatpush1.bf16.msra.mxu0 %v6554
        %9148 = vmatprep.subr.bf16.mxu0 %v6557
        %9149 = vmatpush1.bf16.msra.mxu0 %v6556
        %9150 = vmatprep.subr.bf16.mxu0 %v6559
        %9151 = vmatpush1.bf16.msra.mxu0 %v6558
        %9152 = vmatprep.subr.bf16.mxu0 %v6561
        %9153 = vmatpush1.bf16.msra.mxu0 %v6560
        %9154 = vmatprep.subr.bf16.mxu0 %v6563
        %9155 = vmatpush1.bf16.msra.mxu0 %v6562
        %9156 = vmatprep.subr.bf16.mxu0 %v6565
        %9157 = vmatpush1.bf16.msra.mxu0 %v6564
        %9158 = vmatprep.subr.bf16.mxu0 %v6567
        %9159 = vmatpush1.bf16.msra.mxu0 %v6566
        %9160 = vmatprep.subr.bf16.mxu0 %v6569
        %9161 = vmatpush1.bf16.msra.mxu0 %v6568
        %9162 = vmatprep.subr.bf16.mxu0 %v6571
        %9163 = vmatpush1.bf16.msra.mxu0 %v6570
        %9164 = vmatprep.subr.bf16.mxu0 %v6573
        %9165 = vmatpush1.bf16.msra.mxu0 %v6572
        %9166 = vmatprep.subr.bf16.mxu0 %v6575
        %9167 = vmatpush1.bf16.msra.mxu0 %v6574
        %9168 = vmatprep.subr.bf16.mxu0 %v6577
        %9169 = vmatpush1.bf16.msra.mxu0 %v6576
        %9170 = vmatprep.subr.bf16.mxu0 %v6579
        %9171 = vmatpush1.bf16.msra.mxu0 %v6578
        %9172 = vmatprep.subr.bf16.mxu0 %v6581
        %9173 = vmatpush1.bf16.msra.mxu0 %v6580
        %9174 = vmatprep.subr.bf16.mxu0 %v6583
        %9175 = vmatpush1.bf16.msra.mxu0 %v6582
        %9176 = vmatprep.mubr.bf16.mxu0 %v912
        %9177 = vmatmul.mubr.bf16.gmra.mrb[0].mxu0 %v911
        %v9178 = vpop.f32.mrb[0].mxu0
        %v9179 = vadd.f32 %v9138, %v9178
        %v9180 = vpop.f32.mrb[0].mxu0
        %v9181 = vadd.f32 %v9140, %v9180
        %v9182 = vpop.f32.mrb[0].mxu0
        %v9183 = vpop.f32.mrb[0].mxu0
        %9184 = vdwg.mxu0
        %9185 = vmatprep.subr.bf16.mxu0 %v6585
        %9186 = vmatpush1.bf16.msra.mxu0 %v6584
        %9187 = vmatprep.subr.bf16.mxu0 %v6587
        %9188 = vmatpush1.bf16.msra.mxu0 %v6586
        %9189 = vmatprep.subr.bf16.mxu0 %v6589
        %9190 = vmatpush1.bf16.msra.mxu0 %v6588
        %9191 = vmatprep.subr.bf16.mxu0 %v6591
        %9192 = vmatpush1.bf16.msra.mxu0 %v6590
        %9193 = vmatprep.subr.bf16.mxu0 %v6593
        %9194 = vmatpush1.bf16.msra.mxu0 %v6592
        %9195 = vmatprep.subr.bf16.mxu0 %v6595
        %9196 = vmatpush1.bf16.msra.mxu0 %v6594
        %9197 = vmatprep.subr.bf16.mxu0 %v6597
        %9198 = vmatpush1.bf16.msra.mxu0 %v6596
        %9199 = vmatprep.subr.bf16.mxu0 %v6599
        %9200 = vmatpush1.bf16.msra.mxu0 %v6598
        %9201 = vmatprep.subr.bf16.mxu0 %v6601
        %9202 = vmatpush1.bf16.msra.mxu0 %v6600
        %9203 = vmatprep.subr.bf16.mxu0 %v6603
        %9204 = vmatpush1.bf16.msra.mxu0 %v6602
        %9205 = vmatprep.subr.bf16.mxu0 %v6605
        %9206 = vmatpush1.bf16.msra.mxu0 %v6604
        %9207 = vmatprep.subr.bf16.mxu0 %v6607
        %9208 = vmatpush1.bf16.msra.mxu0 %v6606
        %9209 = vmatprep.subr.bf16.mxu0 %v6609
        %9210 = vmatpush1.bf16.msra.mxu0 %v6608
        %9211 = vmatprep.subr.bf16.mxu0 %v6611
        %9212 = vmatpush1.bf16.msra.mxu0 %v6610
        %9213 = vmatprep.subr.bf16.mxu0 %v6613
        %9214 = vmatpush1.bf16.msra.mxu0 %v6612
        %9215 = vmatprep.subr.bf16.mxu0 %v6615
        %9216 = vmatpush1.bf16.msra.mxu0 %v6614
        %9217 = vmatprep.mubr.bf16.mxu0 %v914
        %9218 = vmatmul.mubr.bf16.gmra.mrb[0].mxu0 %v913
        %v9219 = vpop.f32.mrb[0].mxu0
        %v9220 = vadd.f32 %v9179, %v9219
        %v9221 = vpop.f32.mrb[0].mxu0
        %v9222 = vadd.f32 %v9181, %v9221
        %v9223 = vpop.f32.mrb[0].mxu0
        %v9224 = vpop.f32.mrb[0].mxu0
        %9225 = vdwg.mxu0
        %9226 = vmatprep.subr.bf16.mxu0 %v6617
        %9227 = vmatpush1.bf16.msra.mxu0 %v6616
        %9228 = vmatprep.subr.bf16.mxu0 %v6619
        %9229 = vmatpush1.bf16.msra.mxu0 %v6618
        %9230 = vmatprep.subr.bf16.mxu0 %v6621
        %9231 = vmatpush1.bf16.msra.mxu0 %v6620
        %9232 = vmatprep.subr.bf16.mxu0 %v6623
        %9233 = vmatpush1.bf16.msra.mxu0 %v6622
        %9234 = vmatprep.subr.bf16.mxu0 %v6625
        %9235 = vmatpush1.bf16.msra.mxu0 %v6624
        %9236 = vmatprep.subr.bf16.mxu0 %v6627
        %9237 = vmatpush1.bf16.msra.mxu0 %v6626
        %9238 = vmatprep.subr.bf16.mxu0 %v6629
        %9239 = vmatpush1.bf16.msra.mxu0 %v6628
        %9240 = vmatprep.subr.bf16.mxu0 %v6631
        %9241 = vmatpush1.bf16.msra.mxu0 %v6630
        %9242 = vmatprep.subr.bf16.mxu0 %v6633
        %9243 = vmatpush1.bf16.msra.mxu0 %v6632
        %9244 = vmatprep.subr.bf16.mxu0 %v6635
        %9245 = vmatpush1.bf16.msra.mxu0 %v6634
        %9246 = vmatprep.subr.bf16.mxu0 %v6637
        %9247 = vmatpush1.bf16.msra.mxu0 %v6636
        %9248 = vmatprep.subr.bf16.mxu0 %v6639
        %9249 = vmatpush1.bf16.msra.mxu0 %v6638
        %9250 = vmatprep.subr.bf16.mxu0 %v6641
        %9251 = vmatpush1.bf16.msra.mxu0 %v6640
        %9252 = vmatprep.subr.bf16.mxu0 %v6643
        %9253 = vmatpush1.bf16.msra.mxu0 %v6642
        %9254 = vmatprep.subr.bf16.mxu0 %v6645
        %9255 = vmatpush1.bf16.msra.mxu0 %v6644
        %9256 = vmatprep.subr.bf16.mxu0 %v6647
        %9257 = vmatpush1.bf16.msra.mxu0 %v6646
        %9258 = vmatprep.mubr.bf16.mxu0 %v916
        %9259 = vmatmul.mubr.bf16.gmra.mrb[0].mxu0 %v915
        %v9260 = vpop.f32.mrb[0].mxu0
        %v9261 = vadd.f32 %v9220, %v9260
        %v9262 = vpop.f32.mrb[0].mxu0
        %v9263 = vadd.f32 %v9222, %v9262
        %v9264 = vpop.f32.mrb[0].mxu0
        %v9265 = vpop.f32.mrb[0].mxu0
        %9266 = vdwg.mxu0
        %9267 = vmatprep.subr.bf16.mxu0 %v6649
        %9268 = vmatpush1.bf16.msra.mxu0 %v6648
        %9269 = vmatprep.subr.bf16.mxu0 %v6651
        %9270 = vmatpush1.bf16.msra.mxu0 %v6650
        %9271 = vmatprep.subr.bf16.mxu0 %v6653
        %9272 = vmatpush1.bf16.msra.mxu0 %v6652
        %9273 = vmatprep.subr.bf16.mxu0 %v6655
        %9274 = vmatpush1.bf16.msra.mxu0 %v6654
        %9275 = vmatprep.subr.bf16.mxu0 %v6657
        %9276 = vmatpush1.bf16.msra.mxu0 %v6656
        %9277 = vmatprep.subr.bf16.mxu0 %v6659
        %9278 = vmatpush1.bf16.msra.mxu0 %v6658
        %9279 = vmatprep.subr.bf16.mxu0 %v6661
        %9280 = vmatpush1.bf16.msra.mxu0 %v6660
        %9281 = vmatprep.subr.bf16.mxu0 %v6663
        %9282 = vmatpush1.bf16.msra.mxu0 %v6662
        %9283 = vmatprep.subr.bf16.mxu0 %v6665
        %9284 = vmatpush1.bf16.msra.mxu0 %v6664
        %9285 = vmatprep.subr.bf16.mxu0 %v6667
        %9286 = vmatpush1.bf16.msra.mxu0 %v6666
        %9287 = vmatprep.subr.bf16.mxu0 %v6669
        %9288 = vmatpush1.bf16.msra.mxu0 %v6668
        %9289 = vmatprep.subr.bf16.mxu0 %v6671
        %9290 = vmatpush1.bf16.msra.mxu0 %v6670
        %9291 = vmatprep.subr.bf16.mxu0 %v6673
        %9292 = vmatpush1.bf16.msra.mxu0 %v6672
        %9293 = vmatprep.subr.bf16.mxu0 %v6675
        %9294 = vmatpush1.bf16.msra.mxu0 %v6674
        %9295 = vmatprep.subr.bf16.mxu0 %v6677
        %9296 = vmatpush1.bf16.msra.mxu0 %v6676
        %9297 = vmatprep.subr.bf16.mxu0 %v6679
        %9298 = vmatpush1.bf16.msra.mxu0 %v6678
        %9299 = vmatprep.mubr.bf16.mxu0 %v918
        %9300 = vmatmul.mubr.bf16.gmra.mrb[0].mxu0 %v917
        %v9301 = vpop.f32.mrb[0].mxu0
        %v9302 = vadd.f32 %v9261, %v9301
        %v9303 = vpop.f32.mrb[0].mxu0
        %v9304 = vadd.f32 %v9263, %v9303
        %v9305 = vpop.f32.mrb[0].mxu0
        %v9306 = vpop.f32.mrb[0].mxu0
        %9307 = vdwg.mxu0
        %v9310 = vcombine.low %v9302, %v9304
        %v9312 = vunpack.c.l.s4 1983009808
        %v9313 = vunpack.c.0.s8 %v9312
        %v9314 = vlaneseq
        %v9315 = vshrl.u32 %v9314, 7
        %v9316 = vsub.s32 %v9313, %v9315
        %v9317 = vrot.slane %v9310, %v9316
        %v9319 = vadd.f32 %v919, %v9317
        %9320 = vst [vmem:[#allocation2] sm:$0xf] %v9319
        %p9321 = scmp.eq.s32.totalorder %s27, 1
        // Predicated region
        $region85: #{net_forward.1} parent=55 // pred_check
          %p9322 = pneg %p9321
        $region86: #{net_forward.1} parent=55 // pred_check_branch
          %9324 = sbr.rel (%p9322) target = $region88
        $region87: #{net_forward.1} parent=55 // pred_region
          %v9325 = vld [vmem:[#allocation2] sm:$0xf]
          %v9326 = vld [vmem:[#allocation6] sm:$0x3]
          %v9328 = vlaneseq
          %v9329 = vshrl.u32 %v9328, 7
          %v9330 = vsub.s32 0, %v9329
          %v9331 = vrot.slane %v9326, %v9330
          %v9332 = vlaneseq
          %v9333 = vshrl.u32 %v9332, 7
          %v9334 = vsub.s32 1, %v9333
          %v9335 = vrot.slane %v9326, %v9334
          %v9336 = vcombine.low %v9331, %v9335
          %v9338 = vunpack.c.l.s4 1983009808
          %v9339 = vunpack.c.0.s8 %v9338
          %v9340 = vlaneseq
          %v9341 = vshrl.u32 %v9340, 7
          %v9342 = vsub.s32 %v9339, %v9341
          %v9343 = vrot.slane %v9336, %v9342
          %v9345 = vadd.f32 %v9325, %v9343
          %v9346 = vmax.f32 %v9345, 0.0
          %v9347 = vld [vmem:[#allocation8] sm:$0xff]
          %v9348 = vld [vmem:[#allocation8 + $0x8] sm:$0xff]
          %v9349 = vld [vmem:[#allocation8 + $0x10] sm:$0xff]
          %v9350 = vld [vmem:[#allocation8 + $0x18] sm:$0xff]
          %v9351 = vld [vmem:[#allocation8 + $0x20] sm:$0xff]
          %v9352 = vld [vmem:[#allocation8 + $0x28] sm:$0xff]
          %v9353 = vld [vmem:[#allocation8 + $0x30] sm:$0xff]
          %v9354 = vld [vmem:[#allocation8 + $0x38] sm:$0xff]
          %v9355 = vld [vmem:[#allocation8 + $0x40] sm:$0xff]
          %v9356 = vld [vmem:[#allocation8 + $0x48] sm:$0xff]
          %v9357 = vld [vmem:[#allocation8 + $0x50] sm:$0xff]
          %v9358 = vld [vmem:[#allocation8 + $0x58] sm:$0xff]
          %v9359 = vld [vmem:[#allocation8 + $0x60] sm:$0xff]
          %v9360 = vld [vmem:[#allocation8 + $0x68] sm:$0xff]
          %v9361 = vld [vmem:[#allocation8 + $0x70] sm:$0xff]
          %v9362 = vld [vmem:[#allocation8 + $0x78] sm:$0xff]
          %v9363 = vld [vmem:[#allocation8 + $0x80] sm:$0xff]
          %v9364 = vld [vmem:[#allocation8 + $0x88] sm:$0xff]
          %v9365 = vld [vmem:[#allocation8 + $0x90] sm:$0xff]
          %v9366 = vld [vmem:[#allocation8 + $0x98] sm:$0xff]
          %v9367 = vld [vmem:[#allocation8 + $0xa0] sm:$0xff]
          %v9368 = vld [vmem:[#allocation8 + $0xa8] sm:$0xff]
          %v9369 = vld [vmem:[#allocation8 + $0xb0] sm:$0xff]
          %v9370 = vld [vmem:[#allocation8 + $0xb8] sm:$0xff]
          %v9371 = vld [vmem:[#allocation8 + $0xc0] sm:$0xff]
          %v9372 = vld [vmem:[#allocation8 + $0xc8] sm:$0xff]
          %v9373 = vld [vmem:[#allocation8 + $0xd0] sm:$0xff]
          %v9374 = vld [vmem:[#allocation8 + $0xd8] sm:$0xff]
          %v9375 = vld [vmem:[#allocation8 + $0xe0] sm:$0xff]
          %v9376 = vld [vmem:[#allocation8 + $0xe8] sm:$0xff]
          %v9377 = vld [vmem:[#allocation8 + $0xf0] sm:$0xff]
          %v9378 = vld [vmem:[#allocation8 + $0xf8] sm:$0xff]
          %v9379 = vld [vmem:[#allocation9] sm:$0x1]
          %v9381 = vlaneseq
          %v9382 = vshrl.u32 %v9381, 7
          %v9383 = vsub.s32 0, %v9382
          %v9384 = vrot.slane %v9379, %v9383
          %v9388 = vunpack.c.l.s4 1983009808
          %v9389 = vunpack.c.0.s8 %v9388
          %v9390 = vlaneseq
          %v9391 = vshrl.u32 %v9390, 7
          %v9392 = vsub.s32 %v9389, %v9391
          %v9393 = vrot.slane %v9346, %v9392
          %v9394 = vcombine.high %v9393, %v9393
          %9397 = vmatprep.subr.mxu0 0.0
          %9398 = vmatpush1.msra.mxu0 %v9347
          %9399 = vmatprep.subr.mxu0 0.0
          %9400 = vmatpush1.msra.mxu0 %v9348
          %9401 = vmatprep.subr.mxu0 0.0
          %9402 = vmatpush1.msra.mxu0 %v9349
          %9403 = vmatprep.subr.mxu0 0.0
          %9404 = vmatpush1.msra.mxu0 %v9350
          %9405 = vmatprep.subr.mxu0 0.0
          %9406 = vmatpush1.msra.mxu0 %v9351
          %9407 = vmatprep.subr.mxu0 0.0
          %9408 = vmatpush1.msra.mxu0 %v9352
          %9409 = vmatprep.subr.mxu0 0.0
          %9410 = vmatpush1.msra.mxu0 %v9353
          %9411 = vmatprep.subr.mxu0 0.0
          %9412 = vmatpush1.msra.mxu0 %v9354
          %9413 = vmatprep.subr.mxu0 0.0
          %9414 = vmatpush1.msra.mxu0 %v9355
          %9415 = vmatprep.subr.mxu0 0.0
          %9416 = vmatpush1.msra.mxu0 %v9356
          %9417 = vmatprep.subr.mxu0 0.0
          %9418 = vmatpush1.msra.mxu0 %v9357
          %9419 = vmatprep.subr.mxu0 0.0
          %9420 = vmatpush1.msra.mxu0 %v9358
          %9421 = vmatprep.subr.mxu0 0.0
          %9422 = vmatpush1.msra.mxu0 %v9359
          %9423 = vmatprep.subr.mxu0 0.0
          %9424 = vmatpush1.msra.mxu0 %v9360
          %9425 = vmatprep.subr.mxu0 0.0
          %9426 = vmatpush1.msra.mxu0 %v9361
          %9427 = vmatprep.subr.mxu0 0.0
          %9428 = vmatpush1.msra.mxu0 %v9362
          %9429 = vmatprep.subr.mxu0 0.0
          %9430 = vmatpush1.msra.mxu0 %v9363
          %9431 = vmatprep.subr.mxu0 0.0
          %9432 = vmatpush1.msra.mxu0 %v9364
          %9433 = vmatprep.subr.mxu0 0.0
          %9434 = vmatpush1.msra.mxu0 %v9365
          %9435 = vmatprep.subr.mxu0 0.0
          %9436 = vmatpush1.msra.mxu0 %v9366
          %9437 = vmatprep.subr.mxu0 0.0
          %9438 = vmatpush1.msra.mxu0 %v9367
          %9439 = vmatprep.subr.mxu0 0.0
          %9440 = vmatpush1.msra.mxu0 %v9368
          %9441 = vmatprep.subr.mxu0 0.0
          %9442 = vmatpush1.msra.mxu0 %v9369
          %9443 = vmatprep.subr.mxu0 0.0
          %9444 = vmatpush1.msra.mxu0 %v9370
          %9445 = vmatprep.subr.mxu0 0.0
          %9446 = vmatpush1.msra.mxu0 %v9371
          %9447 = vmatprep.subr.mxu0 0.0
          %9448 = vmatpush1.msra.mxu0 %v9372
          %9449 = vmatprep.subr.mxu0 0.0
          %9450 = vmatpush1.msra.mxu0 %v9373
          %9451 = vmatprep.subr.mxu0 0.0
          %9452 = vmatpush1.msra.mxu0 %v9374
          %9453 = vmatprep.subr.mxu0 0.0
          %9454 = vmatpush1.msra.mxu0 %v9375
          %9455 = vmatprep.subr.mxu0 0.0
          %9456 = vmatpush1.msra.mxu0 %v9376
          %9457 = vmatprep.subr.mxu0 0.0
          %9458 = vmatpush1.msra.mxu0 %v9377
          %9459 = vmatprep.subr.mxu0 0.0
          %9460 = vmatpush1.msra.mxu0 %v9378
          %9461 = vmatprep.mubr.f32.mxu0 %v9394
          %9462 = vmatmul.mubr.f32.gmra.mrb[0].mxu0 %v9393
          %v9463 = vpop.f32.mrb[0].mxu0
          %v9464 = vadd.f32 %v9384, %v9463
          %v9465 = vpop.f32.mrb[0].mxu0
          %9466 = vdwg.mxu0
          %v9467 = vmax.f32 %v9464, 0.0
          %v9468 = vld [vmem:[%s5] sm:$0xff]
          %v9469 = vld [vmem:[%s5 + $0x8] sm:$0xff]
          %v9470 = vld [vmem:[%s5 + $0x10] sm:$0xff]
          %v9471 = vld [vmem:[%s5 + $0x18] sm:$0xff]
          %v9472 = vld [vmem:[%s5 + $0x20] sm:$0xff]
          %v9473 = vld [vmem:[%s5 + $0x28] sm:$0xff]
          %v9474 = vld [vmem:[%s5 + $0x30] sm:$0xff]
          %v9475 = vld [vmem:[%s5 + $0x38] sm:$0xff]
          %v9476 = vld [vmem:[%s5 + $0x40] sm:$0xff]
          %v9477 = vld [vmem:[%s5 + $0x48] sm:$0xff]
          %v9478 = vld [vmem:[%s5 + $0x50] sm:$0xff]
          %v9479 = vld [vmem:[%s5 + $0x58] sm:$0xff]
          %v9480 = vld [vmem:[%s5 + $0x60] sm:$0xff]
          %v9481 = vld [vmem:[%s5 + $0x68] sm:$0xff]
          %v9482 = vld [vmem:[%s5 + $0x70] sm:$0xff]
          %v9483 = vld [vmem:[%s5 + $0x78] sm:$0xff]
          %v9484 = vld [vmem:[#allocation11] sm:$0x1]
          %v9486 = vlaneseq
          %v9487 = vshrl.u32 %v9486, 7
          %v9488 = vsub.s32 0, %v9487
          %v9489 = vrot.slane %v9484, %v9488
          %9491 = vmatprep.subr.mxu0 0.0
          %9492 = vmatpush1.msra.mxu0 %v9468
          %9493 = vmatprep.subr.mxu0 0.0
          %9494 = vmatpush1.msra.mxu0 %v9469
          %9495 = vmatprep.subr.mxu0 0.0
          %9496 = vmatpush1.msra.mxu0 %v9470
          %9497 = vmatprep.subr.mxu0 0.0
          %9498 = vmatpush1.msra.mxu0 %v9471
          %9499 = vmatprep.subr.mxu0 0.0
          %9500 = vmatpush1.msra.mxu0 %v9472
          %9501 = vmatprep.subr.mxu0 0.0
          %9502 = vmatpush1.msra.mxu0 %v9473
          %9503 = vmatprep.subr.mxu0 0.0
          %9504 = vmatpush1.msra.mxu0 %v9474
          %9505 = vmatprep.subr.mxu0 0.0
          %9506 = vmatpush1.msra.mxu0 %v9475
          %9507 = vmatprep.subr.mxu0 0.0
          %9508 = vmatpush1.msra.mxu0 %v9476
          %9509 = vmatprep.subr.mxu0 0.0
          %9510 = vmatpush1.msra.mxu0 %v9477
          %9511 = vmatprep.subr.mxu0 0.0
          %9512 = vmatpush1.msra.mxu0 %v9478
          %9513 = vmatprep.subr.mxu0 0.0
          %9514 = vmatpush1.msra.mxu0 %v9479
          %9515 = vmatprep.subr.mxu0 0.0
          %9516 = vmatpush1.msra.mxu0 %v9480
          %9517 = vmatprep.subr.mxu0 0.0
          %9518 = vmatpush1.msra.mxu0 %v9481
          %9519 = vmatprep.subr.mxu0 0.0
          %9520 = vmatpush1.msra.mxu0 %v9482
          %9521 = vmatprep.subr.mxu0 0.0
          %9522 = vmatpush1.msra.mxu0 %v9483
          %9523 = vmatprep.subr.mxu0 0.0
          %9524 = vmatpush1.msra.mxu0 0.0
          %9525 = vmatprep.subr.mxu0 0.0
          %9526 = vmatpush1.msra.mxu0 0.0
          %9527 = vmatprep.subr.mxu0 0.0
          %9528 = vmatpush1.msra.mxu0 0.0
          %9529 = vmatprep.subr.mxu0 0.0
          %9530 = vmatpush1.msra.mxu0 0.0
          %9531 = vmatprep.subr.mxu0 0.0
          %9532 = vmatpush1.msra.mxu0 0.0
          %9533 = vmatprep.subr.mxu0 0.0
          %9534 = vmatpush1.msra.mxu0 0.0
          %9535 = vmatprep.subr.mxu0 0.0
          %9536 = vmatpush1.msra.mxu0 0.0
          %9537 = vmatprep.subr.mxu0 0.0
          %9538 = vmatpush1.msra.mxu0 0.0
          %9539 = vmatprep.subr.mxu0 0.0
          %9540 = vmatpush1.msra.mxu0 0.0
          %9541 = vmatprep.subr.mxu0 0.0
          %9542 = vmatpush1.msra.mxu0 0.0
          %9543 = vmatprep.subr.mxu0 0.0
          %9544 = vmatpush1.msra.mxu0 0.0
          %9545 = vmatprep.subr.mxu0 0.0
          %9546 = vmatpush1.msra.mxu0 0.0
          %9547 = vmatprep.subr.mxu0 0.0
          %9548 = vmatpush1.msra.mxu0 0.0
          %9549 = vmatprep.subr.mxu0 0.0
          %9550 = vmatpush1.msra.mxu0 0.0
          %9551 = vmatprep.subr.mxu0 0.0
          %9552 = vmatpush1.msra.mxu0 0.0
          %9553 = vmatprep.subr.mxu0 0.0
          %9554 = vmatpush1.msra.mxu0 0.0
          %9555 = vmatprep.mubr.f32.mxu0 0.0
          %9556 = vmatmul.mubr.f32.gmra.mrb[0].mxu0 %v9467
          %v9557 = vpop.f32.mrb[0].mxu0
          %v9558 = vadd.f32 %v9489, %v9557
          %v9559 = vpop.f32.mrb[0].mxu0
          %9560 = vdwg.mxu0
          %v9561 = vmax.f32 %v9558, 0.0
          %v9562 = vld [vmem:[%s7] sm:$0xff]
          %v9563 = vld [vmem:[%s7 + $0x8] sm:$0xff]
          %v9564 = vld [vmem:[%s7 + $0x10] sm:$0xff]
          %v9565 = vld [vmem:[%s7 + $0x18] sm:$0xff]
          %v9566 = vld [vmem:[%s7 + $0x20] sm:$0xff]
          %v9567 = vld [vmem:[%s7 + $0x28] sm:$0xff]
          %v9568 = vld [vmem:[%s7 + $0x30] sm:$0xff]
          %v9569 = vld [vmem:[%s7 + $0x38] sm:$0xff]
          %v9570 = vld [vmem:[#allocation12] sm:$0x1]
          %v9572 = vlaneseq
          %v9573 = vshrl.u32 %v9572, 7
          %v9574 = vsub.s32 0, %v9573
          %v9575 = vrot.slane %v9570, %v9574
          %vm9577 = vcmask 523264
          %v9579 = vsel %vm9577, %v9561, 0
          %9581 = vmatprep.subr.mxu0 0.0
          %9582 = vmatpush1.msra.mxu0 %v9562
          %9583 = vmatprep.subr.mxu0 0.0
          %9584 = vmatpush1.msra.mxu0 %v9563
          %9585 = vmatprep.subr.mxu0 0.0
          %9586 = vmatpush1.msra.mxu0 %v9564
          %9587 = vmatprep.subr.mxu0 0.0
          %9588 = vmatpush1.msra.mxu0 %v9565
          %9589 = vmatprep.subr.mxu0 0.0
          %9590 = vmatpush1.msra.mxu0 %v9566
          %9591 = vmatprep.subr.mxu0 0.0
          %9592 = vmatpush1.msra.mxu0 %v9567
          %9593 = vmatprep.subr.mxu0 0.0
          %9594 = vmatpush1.msra.mxu0 %v9568
          %9595 = vmatprep.subr.mxu0 0.0
          %9596 = vmatpush1.msra.mxu0 %v9569
          %9597 = vmatprep.subr.mxu0 0.0
          %9598 = vmatpush1.msra.mxu0 0.0
          %9599 = vmatprep.subr.mxu0 0.0
          %9600 = vmatpush1.msra.mxu0 0.0
          %9601 = vmatprep.subr.mxu0 0.0
          %9602 = vmatpush1.msra.mxu0 0.0
          %9603 = vmatprep.subr.mxu0 0.0
          %9604 = vmatpush1.msra.mxu0 0.0
          %9605 = vmatprep.subr.mxu0 0.0
          %9606 = vmatpush1.msra.mxu0 0.0
          %9607 = vmatprep.subr.mxu0 0.0
          %9608 = vmatpush1.msra.mxu0 0.0
          %9609 = vmatprep.subr.mxu0 0.0
          %9610 = vmatpush1.msra.mxu0 0.0
          %9611 = vmatprep.subr.mxu0 0.0
          %9612 = vmatpush1.msra.mxu0 0.0
          %9613 = vmatprep.subr.mxu0 0.0
          %9614 = vmatpush1.msra.mxu0 0.0
          %9615 = vmatprep.subr.mxu0 0.0
          %9616 = vmatpush1.msra.mxu0 0.0
          %9617 = vmatprep.subr.mxu0 0.0
          %9618 = vmatpush1.msra.mxu0 0.0
          %9619 = vmatprep.subr.mxu0 0.0
          %9620 = vmatpush1.msra.mxu0 0.0
          %9621 = vmatprep.subr.mxu0 0.0
          %9622 = vmatpush1.msra.mxu0 0.0
          %9623 = vmatprep.subr.mxu0 0.0
          %9624 = vmatpush1.msra.mxu0 0.0
          %9625 = vmatprep.subr.mxu0 0.0
          %9626 = vmatpush1.msra.mxu0 0.0
          %9627 = vmatprep.subr.mxu0 0.0
          %9628 = vmatpush1.msra.mxu0 0.0
          %9629 = vmatprep.subr.mxu0 0.0
          %9630 = vmatpush1.msra.mxu0 0.0
          %9631 = vmatprep.subr.mxu0 0.0
          %9632 = vmatpush1.msra.mxu0 0.0
          %9633 = vmatprep.subr.mxu0 0.0
          %9634 = vmatpush1.msra.mxu0 0.0
          %9635 = vmatprep.subr.mxu0 0.0
          %9636 = vmatpush1.msra.mxu0 0.0
          %9637 = vmatprep.subr.mxu0 0.0
          %9638 = vmatpush1.msra.mxu0 0.0
          %9639 = vmatprep.subr.mxu0 0.0
          %9640 = vmatpush1.msra.mxu0 0.0
          %9641 = vmatprep.subr.mxu0 0.0
          %9642 = vmatpush1.msra.mxu0 0.0
          %9643 = vmatprep.subr.mxu0 0.0
          %9644 = vmatpush1.msra.mxu0 0.0
          %9645 = vmatprep.mubr.f32.mxu0 0.0
          %9646 = vmatmul.mubr.f32.gmra.mrb[0].mxu0 %v9579
          %v9647 = vpop.f32.mrb[0].mxu0
          %v9648 = vadd.f32 %v9575, %v9647
          %v9649 = vpop.f32.mrb[0].mxu0
          %9650 = vdwg.mxu0
          %vm9651 = vcmask 41984
          %v9652 = vsel %vm9651, %v9648, -inf
          %9653 = vmax.xlane.f32.xlu0 %v9652
          %v9654 = vpop.xlane.xlu0 %9653
          %v9655 = vsub.f32 %v9648, %v9654
          %v9656 = vmul.f32 %v9655, 1.442695
          %v9657 = vpow.pop %v9656
          %v9658 = vsel %vm9651, %v9657, 0.0
          %9659 = vadd.xlane.f32.xlu0 %v9658
          %v9660 = vpop.xlane.xlu0 %9659
          %v9661 = vrcp.pop %v9660
          %v9662 = vmul.f32 %v9657, %v9661
          %9663 = vst.msk [vmem:[#allocation14] sm:$0x3] %vm9651, %v9662
        $region88: #{net_forward.1} parent=55 // pred_fallthru
          _
        // Predicated region
        $region89: #{net_forward.1} parent=55 // pred_check
          %p9664 = pneg %p239
        $region90: #{net_forward.1} parent=55 // pred_check_branch
          %9666 = sbr.rel (%p9664) target = $region92
        $region91: #{net_forward.1} parent=55 // pred_region
          %s9668 = ssub.s32 32, 32
          %9669 = vsyncadd [#allocation5], %s9668
          %s9671 = sshll.u32 [#allocation14], 4
          %s9672 = int_to_ptr.vmem [resolvable:$true] %s9671
          %9674 = dma.vmem_to_hbm [thread:$0]  %s9672, 32, %s9, [#allocation5]
        $region92: #{net_forward.1} parent=55 // pred_fallthru
          _
        // Predicated region
        $region93: #{net_forward.1} parent=55 // pred_check
          %p9675 = pneg %p239
        $region94: #{net_forward.1} parent=55 // pred_check_branch
          %9677 = sbr.rel (%p9675) target = $region96
        $region95: #{net_forward.1} parent=55 // pred_region
          %9678 = dma.done [#allocation5], 32
        $region96: #{net_forward.1} parent=55 // pred_fallthru
          _
      $region56: #{net_forward.1} parent=5 // pred_fallthru
        _
      %p9679 = scmp.le.s32.totalorder 2, %s22
      // Predicated region
      $region97: #{net_forward.1} parent=5 // pred_check
        %p9680 = pneg %p9679
      $region98: #{net_forward.1} parent=5 // pred_check_branch
        %9682 = sbr.rel (%p9680) target = $region100
      $region99: #{net_forward.1} parent=5 // pred_region
        %s9683 = ssub.s32 %s22, 2
      $region100: #{net_forward.1} parent=5 // pred_fallthru
        _
    $region6: #{net_forward.1} parent=1 // loop_footer
      %s26 = sadd.s32 1, %s22
    $region7: #{net_forward.1} parent=1 // loop_footer_branch
      %21 = sbr.rel target = $region3
    $region8: #{net_forward.1} parent=1 // loop_exit
      _
    %9684 = vsyncpa [#allocation4], 1
    %s9685 = scalar_lea.sflag [#allocation4], 1
    %9686 = vsyncpa %s9685, 1
    %9687 = vsyncpa [#allocation7], 1
    %9688 = vsyncpa [#allocation10], 1
    %9689 = vsyncpa [#allocation13], 1
    %9690 = vsyncpa [#allocation5], 1
    %s9691 = scalar_lea.sflag [#allocation5], 1
    %9692 = vsyncpa %s9691, 1

</llo_original>
